<compile_context>
chip_gen: v7x
topology: tpu7x:2x2x1
jax: 0.10.0
libtpu: 0.0.40
codegen_flags: <defaults>
</compile_context>

<pallas_src>
import functools

import jax
import jax.numpy as jnp
from jax.experimental import pallas as pl
from jax.experimental.pallas import tpu as pltpu


_LN_EPS = 1e-5


# ----------------------------------------------------------------------------
# Device-generation dependent tiling / VMEM configuration
# ----------------------------------------------------------------------------

def _device_config():
    vmem_cap = 0
    try:
        vmem_cap = int(getattr(pltpu.get_tpu_info(), "vmem_capacity_bytes", 0))
    except Exception:
        pass
    if vmem_cap >= 100 * 1024 * 1024:
        # v5e / v6e: 128 MiB physical VMEM -> big tiles, high scoped limit.
        return dict(vmem_limit=96 * 1024 * 1024,
                    attn_tq=512, attn_tlk=1024, mlp_tm=1024)
    # v7x (64 MiB per TensorCore) or unknown: conservative tiles / limit.
    return dict(vmem_limit=40 * 1024 * 1024,
                attn_tq=256, attn_tlk=512, mlp_tm=512)


# ----------------------------------------------------------------------------
# In-kernel math helpers
# ----------------------------------------------------------------------------

def _ln_math(x, gamma, beta, eps):
    """LayerNorm over the last axis; all operands float32."""
    mean = jnp.mean(x, axis=-1, keepdims=True)
    xc = x - mean
    var = jnp.mean(xc * xc, axis=-1, keepdims=True)
    return xc * jax.lax.rsqrt(var + eps) * gamma + beta


# ----------------------------------------------------------------------------
# Fused attention block:
#   LN( Wo @ MHA( (q_base[+q_pos])Wq , (k_base[+k_pos])Wk , k_base Wv )
#       [+ residual] )
# Grid = (batch, query tiles, key tiles); the key axis is an online-softmax
# reduction ("arbitrary"), batch / query tiles are "parallel".
# ----------------------------------------------------------------------------

def pallas_attention_block(q_base, q_pos, k_base, k_pos, attn_p, norm_p,
                           residual, *, num_heads, eps=_LN_EPS,
                           tq=None, tlk=None):
    cfg = _device_config()
    tq = int(tq) if tq else cfg["attn_tq"]
    tlk = int(tlk) if tlk else cfg["attn_tlk"]

    B, Lq, dim_in = q_base.shape
    Lk = k_base.shape[1]
    qkv = attn_p["wq"].shape[1]
    dim_out = attn_p["wo"].shape[1]
    assert qkv % num_heads == 0, "qkv_dim must be divisible by num_heads"
    hd = qkv // num_heads
    scale = float(hd) ** -0.5

    tq = min(tq, Lq)
    tlk = min(tlk, Lk)
    n_lk = pl.cdiv(Lk, tlk)
    need_mask = (Lk % tlk) != 0
    has_pos = q_pos is not None
    has_res = residual is not None
    bf16 = jnp.bfloat16
    f32 = jnp.float32

    # Head-major / transposed weight layouts, pre-cast to bf16 outside the
    # kernel (tiny tensors, traced once).
    wq3 = attn_p["wq"].reshape(dim_in, num_heads, hd).transpose(1, 0, 2).astype(bf16)
    bq3 = attn_p["bq"].reshape(num_heads, 1, hd).astype(f32)
    wkT = attn_p["wk"].T.astype(bf16)                       # (qkv, dim_in)
    bkT = attn_p["bk"].reshape(qkv, 1).astype(f32)
    wvT = attn_p["wv"].T.astype(bf16)                       # (qkv, dim_in)
    bvT = attn_p["bv"].reshape(qkv, 1).astype(f32)
    wo3 = attn_p["wo"].reshape(num_heads, hd, dim_out).astype(bf16)
    bo = attn_p["bo"].reshape(1, dim_out).astype(f32)
    gamma = norm_p["gamma"].reshape(1, dim_out).astype(f32)
    beta = norm_p["beta"].reshape(1, dim_out).astype(f32)

    def _body(qb, qp, kb, kp, wq_r, bq_r, wkT_r, bkT_r, wvT_r, bvT_r, wo_r,
              bo_r, res_r, g_r, bt_r, o_r, q_sc, m_sc, l_sc, acc_sc):
        lk = pl.program_id(2)

        # ---- once per (batch, q-tile): q projection + accumulator init ----
        @pl.when(lk == 0)
        def _init():
            if has_pos:
                qin = (qb[0] + qp[0]).astype(bf16)
            else:
                qin = qb[0].astype(bf16)
            # Static per-head loop; runs once per query tile (not in the hot
            # Lk loop) to lay q out head-major for the batched matmuls below.
            for h in range(num_heads):
                qh = jax.lax.dot_general(
                    qin, wq_r[h], (((1,), (0,)), ((), ())),
                    preferred_element_type=f32)              # (tq, hd)
                q_sc[h] = ((qh + bq_r[h]) * scale).astype(bf16)
            m_sc[...] = jnp.full(m_sc.shape, -jnp.inf, f32)
            l_sc[...] = jnp.zeros(l_sc.shape, f32)
            acc_sc[...] = jnp.zeros(acc_sc.shape, f32)

        # ---- per Lk tile: fused K/V projection (head-major layout) ----
        kb0 = kb[0]
        kbase = kb0.astype(bf16)
        if has_pos:
            kin = (kb0 + kp[0]).astype(bf16)
        else:
            kin = kbase
        trans_b = (((1,), (1,)), ((), ()))
        kT = jax.lax.dot_general(wkT_r[...], kin, trans_b,
                                 preferred_element_type=f32) + bkT_r[...]   # (qkv, tlk)
        vT = jax.lax.dot_general(wvT_r[...], kbase, trans_b,
                                 preferred_element_type=f32) + bvT_r[...]   # (qkv, tlk)

        if need_mask:
            col = jax.lax.broadcasted_iota(jnp.int32, (1, tlk), 1) + lk * tlk
            kvalid = col < Lk                                 # (1, tlk)
            vT = jnp.where(kvalid, vT, 0.0)                   # avoid 0 * garbage

        kT3 = kT.astype(bf16).reshape(num_heads, hd, tlk)
        vT3 = vT.astype(bf16).reshape(num_heads, hd, tlk)

        # ---- head-batched scores + online softmax ----
        q3 = q_sc[...]                                        # (H, tq, hd) bf16
        s = jax.lax.dot_general(q3, kT3, (((2,), (1,)), ((0,), (0,))),
                                preferred_element_type=f32)   # (H, tq, tlk)
        if need_mask:
            s = jnp.where(kvalid[None], s, -jnp.inf)

        m_prev = m_sc[...]
        m_new = jnp.maximum(m_prev, jnp.max(s, axis=-1, keepdims=True))
        alpha = jnp.exp(m_prev - m_new)
        p = jnp.exp(s - m_new)
        l_sc[...] = alpha * l_sc[...] + jnp.sum(p, axis=-1, keepdims=True)
        pv = jax.lax.dot_general(p.astype(bf16), vT3,
                                 (((2,), (2,)), ((0,), (0,))),
                                 preferred_element_type=f32)  # (H, tq, hd)
        acc_sc[...] = alpha * acc_sc[...] + pv
        m_sc[...] = m_new

        # ---- once per (batch, q-tile): output proj + residual + LayerNorm ----
        @pl.when(lk == n_lk - 1)
        def _finalize():
            o = acc_sc[...] * pl.reciprocal(l_sc[...], approx=True)  # (H, tq, hd)
            ph = jax.lax.dot_general(o.astype(bf16), wo_r[...],
                                     (((2,), (1,)), ((0,), (0,))),
                                     preferred_element_type=f32)     # (H, tq, dim)
            out = jnp.sum(ph, axis=0) + bo_r[...]                    # (tq, dim)
            if has_res:
                out = out + res_r[0].astype(f32)
            o_r[0] = _ln_math(out, g_r[...], bt_r[...], eps).astype(o_r.dtype)

    # Two explicit-signature kernel variants (pos+residual or neither), as
    # required by Block.forward.
    if has_pos and has_res:
        def kernel(qb, qp, kb, kp, wq_r, bq_r, wkT_r, bkT_r, wvT_r, bvT_r,
                   wo_r, bo_r, res_r, g_r, bt_r, o_r, q_sc, m_sc, l_sc, acc_sc):
            _body(qb, qp, kb, kp, wq_r, bq_r, wkT_r, bkT_r, wvT_r, bvT_r,
                  wo_r, bo_r, res_r, g_r, bt_r, o_r, q_sc, m_sc, l_sc, acc_sc)
    elif (not has_pos) and (not has_res):
        def kernel(qb, kb, wq_r, bq_r, wkT_r, bkT_r, wvT_r, bvT_r,
                   wo_r, bo_r, g_r, bt_r, o_r, q_sc, m_sc, l_sc, acc_sc):
            _body(qb, None, kb, None, wq_r, bq_r, wkT_r, bkT_r, wvT_r, bvT_r,
                  wo_r, bo_r, None, g_r, bt_r, o_r, q_sc, m_sc, l_sc, acc_sc)
    else:
        raise NotImplementedError("pos and residual must both be given or both omitted")

    q_idx = lambda b, i, l: (b, i, 0)
    k_idx = lambda b, i, l: (b, l, 0)
    w2_idx = lambda b, i, l: (0, 0)
    w3_idx = lambda b, i, l: (0, 0, 0)

    in_specs = [pl.BlockSpec((1, tq, dim_in), q_idx)]
    args = [q_base]
    if has_pos:
        in_specs.append(pl.BlockSpec((1, tq, dim_in), q_idx))
        args.append(q_pos)
    in_specs.append(pl.BlockSpec((1, tlk, dim_in), k_idx))
    args.append(k_base)
    if has_pos:
        in_specs.append(pl.BlockSpec((1, tlk, dim_in), k_idx))
        args.append(k_pos)
    in_specs += [
        pl.BlockSpec((num_heads, dim_in, hd), w3_idx),   # wq3
        pl.BlockSpec((num_heads, 1, hd), w3_idx),        # bq3
        pl.BlockSpec((qkv, dim_in), w2_idx),             # wkT
        pl.BlockSpec((qkv, 1), w2_idx),                  # bkT
        pl.BlockSpec((qkv, dim_in), w2_idx),             # wvT
        pl.BlockSpec((qkv, 1), w2_idx),                  # bvT
        pl.BlockSpec((num_heads, hd, dim_out), w3_idx),  # wo3
        pl.BlockSpec((1, dim_out), w2_idx),              # bo
    ]
    args += [wq3, bq3, wkT, bkT, wvT, bvT, wo3, bo]
    if has_res:
        in_specs.append(pl.BlockSpec((1, tq, dim_out), q_idx))
        args.append(residual)
    in_specs += [pl.BlockSpec((1, dim_out), w2_idx),     # gamma
                 pl.BlockSpec((1, dim_out), w2_idx)]     # beta
    args += [gamma, beta]

    # TODO(synk): when B == 1 and Lq fits one tile, split heads across an extra
    # parallel grid axis so both v7x TensorCores are engaged.
    return pl.pallas_call(
        kernel,
        out_shape=jax.ShapeDtypeStruct((B, Lq, dim_out), bf16),
        grid=(B, pl.cdiv(Lq, tq), n_lk),
        in_specs=in_specs,
        out_specs=pl.BlockSpec((1, tq, dim_out), q_idx),
        scratch_shapes=[pltpu.VMEM((num_heads, tq, hd), bf16),   # cached q
                        pltpu.VMEM((num_heads, tq, 1), f32),     # running max
                        pltpu.VMEM((num_heads, tq, 1), f32),     # running sum
                        pltpu.VMEM((num_heads, tq, hd), f32)],   # output acc
        compiler_params=pltpu.CompilerParams(
            dimension_semantics=("parallel", "parallel", "arbitrary"),
            vmem_limit_bytes=cfg["vmem_limit"]),
    )(*args)


# ----------------------------------------------------------------------------
# Fused MLP + residual + LayerNorm kernel
# ----------------------------------------------------------------------------

def _mlp_ln_kernel(x_ref, w1_ref, b1_ref, w2_ref, b2_ref, g_ref, bb_ref, o_ref,
                   *, eps):
    x = x_ref[...]                                                     # bf16
    h = jnp.dot(x, w1_ref[...], preferred_element_type=jnp.float32) + b1_ref[...]
    h = jnp.maximum(h, 0.0).astype(jnp.bfloat16)                       # fc1 + ReLU
    y = jnp.dot(h, w2_ref[...], preferred_element_type=jnp.float32) + b2_ref[...]
    y = y + x.astype(jnp.float32)                                      # residual
    o_ref[...] = _ln_math(y, g_ref[...], bb_ref[...], eps).astype(o_ref.dtype)


def pallas_mlp_ln(x, mlp_p, norm_p, *, eps=_LN_EPS, tm=None):
    cfg = _device_config()
    tm = int(tm) if tm else cfg["mlp_tm"]
    B, L, D = x.shape
    M = B * L
    x2 = x.reshape(M, D)
    Hd = mlp_p["w1"].shape[1]
    tm = min(tm, M)

    w1 = mlp_p["w1"].astype(jnp.bfloat16)
    w2 = mlp_p["w2"].astype(jnp.bfloat16)
    b1 = mlp_p["b1"].reshape(1, Hd).astype(jnp.float32)
    b2 = mlp_p["b2"].reshape(1, D).astype(jnp.float32)
    g = norm_p["gamma"].reshape(1, D).astype(jnp.float32)
    bb = norm_p["beta"].reshape(1, D).astype(jnp.float32)

    out = pl.pallas_call(
        functools.partial(_mlp_ln_kernel, eps=eps),
        out_shape=jax.ShapeDtypeStruct((M, D), jnp.bfloat16),
        grid=(pl.cdiv(M, tm),),
        in_specs=[pl.BlockSpec((tm, D), lambda i: (i, 0)),
                  pl.BlockSpec((D, Hd), lambda i: (0, 0)),
                  pl.BlockSpec((1, Hd), lambda i: (0, 0)),
                  pl.BlockSpec((Hd, D), lambda i: (0, 0)),
                  pl.BlockSpec((1, D), lambda i: (0, 0)),
                  pl.BlockSpec((1, D), lambda i: (0, 0)),
                  pl.BlockSpec((1, D), lambda i: (0, 0))],
        out_specs=pl.BlockSpec((tm, D), lambda i: (i, 0)),
        compiler_params=pltpu.CompilerParams(
            dimension_semantics=("parallel",),
            vmem_limit_bytes=cfg["vmem_limit"]),
    )(x2, w1, b1, w2, b2, g, bb)
    return out.reshape(B, L, D)


# ----------------------------------------------------------------------------
# Module-level forward (glue only; all heavy work is inside the Pallas kernels)
# ----------------------------------------------------------------------------

def block_forward(params, query, key, query_pos, key_pos, *, num_heads,
                  skip_first_query_pos=False,
                  attn_tq=None, attn_tlk=None, mlp_tm=None):
    """Equivalent of Block.forward (dropout == identity, eval semantics)."""
    in_dtype = query.dtype
    bf16 = jnp.bfloat16
    query = query.astype(bf16)
    key = key.astype(bf16)
    query_pos = query_pos.astype(bf16)
    key_pos = key_pos.astype(bf16)

    # Self attention (+ norm1).
    if skip_first_query_pos:
        query = pallas_attention_block(
            query, None, query, None, params["self_attn"], params["norm1"],
            None, num_heads=num_heads, tq=attn_tq, tlk=attn_tlk)
    else:
        query = pallas_attention_block(
            query, query_pos, query, query_pos, params["self_attn"],
            params["norm1"], query, num_heads=num_heads, tq=attn_tq, tlk=attn_tlk)

    # Cross attention tokens -> image (+ norm2).
    query = pallas_attention_block(
        query, query_pos, key, key_pos, params["cross_t2i"], params["norm2"],
        query, num_heads=num_heads, tq=attn_tq, tlk=attn_tlk)

    # MLP (+ norm3).
    query = pallas_mlp_ln(query, params["mlp"], params["norm3"], tm=mlp_tm)

    # Cross attention image -> tokens (+ norm4): q-side = key(+pos),
    # k-side = updated query(+pos), v-side = updated query, residual = key.
    key = pallas_attention_block(
        key, key_pos, query, query_pos, params["cross_i2t"], params["norm4"],
        key, num_heads=num_heads, tq=attn_tq, tlk=attn_tlk)

    return query.astype(in_dtype), key.astype(in_dtype)


# ----------------------------------------------------------------------------
# Pure-JAX reference (f32) for validation
# ----------------------------------------------------------------------------

def _ref_attention(p, q, k, v, num_heads):
    qkv = p["wq"].shape[1]
    hd = qkv // num_heads
    scale = float(hd) ** -0.5
    B, Lq, _ = q.shape
    Lk = k.shape[1]
    qq = (q @ p["wq"] + p["bq"]).reshape(B, Lq, num_heads, hd)
    kk = (k @ p["wk"] + p["bk"]).reshape(B, Lk, num_heads, hd)
    vv = (v @ p["wv"] + p["bv"]).reshape(B, Lk, num_heads, hd)
    s = jnp.einsum('bqhd,bkhd->bhqk', qq, kk) * scale
    a = jax.nn.softmax(s, axis=-1)
    o = jnp.einsum('bhqk,bkhd->bqhd', a, vv).reshape(B, Lq, qkv)
    return o @ p["wo"] + p["bo"]


def _ref_ln(x, g, b, eps=_LN_EPS):
    m = x.mean(-1, keepdims=True)
    v = ((x - m) ** 2).mean(-1, keepdims=True)
    return (x - m) * jax.lax.rsqrt(v + eps) * g + b


def _ref_block(params, query, key, query_pos, key_pos, *, num_heads, skip=False):
    p = params
    if skip:
        query = _ref_ln(_ref_attention(p["self_attn"], query, query, query, num_heads),
                        p["norm1"]["gamma"], p["norm1"]["beta"])
    else:
        q = query + query_pos
        query = _ref_ln(_ref_attention(p["self_attn"], q, q, query, num_heads) + query,
                        p["norm1"]["gamma"], p["norm1"]["beta"])
    q, k = query + query_pos, key + key_pos
    query = _ref_ln(_ref_attention(p["cross_t2i"], q, k, key, num_heads) + query,
                    p["norm2"]["gamma"], p["norm2"]["beta"])
    h = jnp.maximum(query @ p["mlp"]["w1"] + p["mlp"]["b1"], 0.0)
    query = _ref_ln(h @ p["mlp"]["w2"] + p["mlp"]["b2"] + query,
                    p["norm3"]["gamma"], p["norm3"]["beta"])
    q = query + query_pos
    key = _ref_ln(_ref_attention(p["cross_i2t"], k, q, query, num_heads) + key,
                  p["norm4"]["gamma"], p["norm4"]["beta"])
    return query, key


# ----------------------------------------------------------------------------
# Deterministic parameter construction
# ----------------------------------------------------------------------------

def _init_linear(key, d_in, d_out):
    kw, _ = jax.random.split(key)
    w = jax.random.normal(kw, (d_in, d_out), jnp.float32) * 0.02
    b = jnp.zeros((1, d_out), jnp.float32)
    return w, b


def _init_attention(key, dim, attn_ratio):
    qkv_dim = int(dim * attn_ratio)
    ks = jax.random.split(key, 4)
    wq, bq = _init_linear(ks[0], dim, qkv_dim)
    wk, bk = _init_linear(ks[1], dim, qkv_dim)
    wv, bv = _init_linear(ks[2], dim, qkv_dim)
    wo, bo = _init_linear(ks[3], qkv_dim, dim)
    return dict(wq=wq, bq=bq, wk=wk, bk=bk, wv=wv, bv=bv, wo=wo, bo=bo)


def _init_layernorm(dim):
    return dict(gamma=jnp.ones((1, dim), jnp.float32),
                beta=jnp.zeros((1, dim), jnp.float32))


def init_block_params(key, dim, mlp_dim, attn_ratio):
    ks = jax.random.split(key, 5)
    w1, b1 = _init_linear(ks[3], dim, mlp_dim)
    w2, b2 = _init_linear(ks[4], mlp_dim, dim)
    return dict(
        self_attn=_init_attention(ks[0], dim, 1.0),
        cross_t2i=_init_attention(ks[1], dim, attn_ratio),
        cross_i2t=_init_attention(ks[2], dim, attn_ratio),
        mlp=dict(w1=w1, b1=b1, w2=w2, b2=b2),
        norm1=_init_layernorm(dim),
        norm2=_init_layernorm(dim),
        norm3=_init_layernorm(dim),
        norm4=_init_layernorm(dim),
    )


# ----------------------------------------------------------------------------
# Main
# ----------------------------------------------------------------------------

if __name__ == "__main__":
    # Small, lane-dense analogue of Block(dim=256, num_heads=8, attn_ratio=0.5,
    # mlp_dim=2048).  Lk=40 with attn_tlk=16 exercises the online-softmax Lk
    # tiling (3 key tiles, masked last tile) and query tiling with padding.
    dim, num_heads, attn_ratio, mlp_dim = 128, 4, 0.5, 256
    B, Lq, Lk = 2, 8, 40

    root = jax.random.PRNGKey(0)
    kp, kq, kk, kqp, kkp = jax.random.split(root, 5)

    params = init_block_params(kp, dim, mlp_dim, attn_ratio)
    query = jax.random.normal(kq, (B, Lq, dim), jnp.float32)
    key = jax.random.normal(kk, (B, Lk, dim), jnp.float32)
    query_pos = jax.random.normal(kqp, (B, Lq, dim), jnp.float32)
    key_pos = jax.random.normal(kkp, (B, Lk, dim), jnp.float32)

    fwd = jax.jit(functools.partial(block_forward, num_heads=num_heads,
                                    attn_tq=16, attn_tlk=16))
    out_q, out_k = fwd(params, query, key, query_pos, key_pos)
    jax.block_until_ready((out_q, out_k))
    assert out_q.shape == (B, Lq, dim) and out_k.shape == (B, Lk, dim)

    ref_q, ref_k = _ref_block(params, query, key, query_pos, key_pos,
                              num_heads=num_heads)
    err_q = float(jnp.max(jnp.abs(out_q.astype(jnp.float32) - ref_q)))
    err_k = float(jnp.max(jnp.abs(out_k.astype(jnp.float32) - ref_k)))
    assert err_q < 0.15 and err_k < 0.15, (err_q, err_k)

    # Also exercise the skip_first_query_pos path (no-pos / no-residual kernel)
    # with the default generation-dependent tile sizes.
    fwd_skip = jax.jit(functools.partial(block_forward, num_heads=num_heads,
                                         skip_first_query_pos=True))
    oq2, ok2 = fwd_skip(params, query, key, query_pos, key_pos)
    jax.block_until_ready((oq2, ok2))
    ref_q2, ref_k2 = _ref_block(params, query, key, query_pos, key_pos,
                                num_heads=num_heads, skip=True)
    assert float(jnp.max(jnp.abs(oq2.astype(jnp.float32) - ref_q2))) < 0.15
    assert float(jnp.max(jnp.abs(ok2.astype(jnp.float32) - ref_k2))) < 0.15

    print("KERNEL_OK")
</pallas_src>

<mosaic_0001>
module attributes {stable_mosaic.version = 11 : i64} {
  func.func @kernel(%arg0: i32, %arg1: i32, %arg2: i32, %arg3: memref<1x8x128xbf16, #tpu.memory_space<vmem>>, %arg4: memref<1x8x128xbf16, #tpu.memory_space<vmem>>, %arg5: memref<1x8x128xbf16, #tpu.memory_space<vmem>>, %arg6: memref<1x8x128xbf16, #tpu.memory_space<vmem>>, %arg7: memref<4x128x32xbf16, #tpu.memory_space<vmem>>, %arg8: memref<4x1x32xf32, #tpu.memory_space<vmem>>, %arg9: memref<128x128xbf16, #tpu.memory_space<vmem>>, %arg10: memref<128x1xf32, #tpu.memory_space<vmem>>, %arg11: memref<128x128xbf16, #tpu.memory_space<vmem>>, %arg12: memref<128x1xf32, #tpu.memory_space<vmem>>, %arg13: memref<4x32x128xbf16, #tpu.memory_space<vmem>>, %arg14: memref<1x128xf32, #tpu.memory_space<vmem>>, %arg15: memref<1x8x128xbf16, #tpu.memory_space<vmem>>, %arg16: memref<1x128xf32, #tpu.memory_space<vmem>>, %arg17: memref<1x128xf32, #tpu.memory_space<vmem>>, %arg18: memref<1x8x128xbf16, #tpu.memory_space<vmem>>, %arg19: memref<4x8x32xbf16, #tpu.memory_space<vmem>>, %arg20: memref<4x8x1xf32, #tpu.memory_space<vmem>>, %arg21: memref<4x8x1xf32, #tpu.memory_space<vmem>>, %arg22: memref<4x8x32xf32, #tpu.memory_space<vmem>>) attributes {dimension_semantics = [#tpu.dimension_semantics<parallel>, #tpu.dimension_semantics<parallel>, #tpu.dimension_semantics<arbitrary>], iteration_bounds = array<i64: 2, 1, 1>, scalar_prefetch = 0 : i64, scratch_operands = 4 : i64, tpu.core_type = #tpu.core_type<tc>, window_params = [{transform_indices = @transform_0, window_bounds = array<i64: 1, 8, 128>}, {transform_indices = @transform_1, window_bounds = array<i64: 1, 8, 128>}, {transform_indices = @transform_2, window_bounds = array<i64: 1, 8, 128>}, {transform_indices = @transform_3, window_bounds = array<i64: 1, 8, 128>}, {pipeline_mode = #tpu.pipeline_mode<synchronous>, transform_indices = @transform_4, window_bounds = array<i64: 4, 128, 32>}, {pipeline_mode = #tpu.pipeline_mode<synchronous>, transform_indices = @transform_5, window_bounds = array<i64: 4, 1, 32>}, {pipeline_mode = #tpu.pipeline_mode<synchronous>, transform_indices = @transform_6, window_bounds = array<i64: 128, 128>}, {pipeline_mode = #tpu.pipeline_mode<synchronous>, transform_indices = @transform_7, window_bounds = array<i64: 128, 1>}, {pipeline_mode = #tpu.pipeline_mode<synchronous>, transform_indices = @transform_8, window_bounds = array<i64: 128, 128>}, {pipeline_mode = #tpu.pipeline_mode<synchronous>, transform_indices = @transform_9, window_bounds = array<i64: 128, 1>}, {pipeline_mode = #tpu.pipeline_mode<synchronous>, transform_indices = @transform_10, window_bounds = array<i64: 4, 32, 128>}, {pipeline_mode = #tpu.pipeline_mode<synchronous>, transform_indices = @transform_11, window_bounds = array<i64: 1, 128>}, {transform_indices = @transform_12, window_bounds = array<i64: 1, 8, 128>}, {pipeline_mode = #tpu.pipeline_mode<synchronous>, transform_indices = @transform_13, window_bounds = array<i64: 1, 128>}, {pipeline_mode = #tpu.pipeline_mode<synchronous>, transform_indices = @transform_14, window_bounds = array<i64: 1, 128>}, {transform_indices = @transform_15, window_bounds = array<i64: 1, 8, 128>}]} {
    %c0_i32 = arith.constant 0 : i32
    %0 = arith.cmpi eq, %arg2, %c0_i32 : i32
    %1 = arith.extui %0 : i1 to i32
    %c0_i32_0 = arith.constant 0 : i32
    %2 = arith.cmpi ne, %1, %c0_i32_0 : i32
    scf.if %2 {
      %c0_42 = arith.constant 0 : index
      %c0_43 = arith.constant 0 : index
      %c0_44 = arith.constant 0 : index
      %50 = vector.load %arg3[%c0_42, %c0_43, %c0_44] : memref<1x8x128xbf16, #tpu.memory_space<vmem>>, vector<1x8x128xbf16>
      %51 = vector.shape_cast %50 : vector<1x8x128xbf16> to vector<8x128xbf16>
      %c0_45 = arith.constant 0 : index
      %c0_46 = arith.constant 0 : index
      %c0_47 = arith.constant 0 : index
      %52 = vector.load %arg4[%c0_45, %c0_46, %c0_47] : memref<1x8x128xbf16, #tpu.memory_space<vmem>>, vector<1x8x128xbf16>
      %53 = vector.shape_cast %52 : vector<1x8x128xbf16> to vector<8x128xbf16>
      %54 = arith.addf %51, %53 : vector<8x128xbf16>
      %c0_48 = arith.constant 0 : index
      %c0_49 = arith.constant 0 : index
      %c0_50 = arith.constant 0 : index
      %55 = vector.load %arg7[%c0_48, %c0_49, %c0_50] : memref<4x128x32xbf16, #tpu.memory_space<vmem>>, vector<1x128x32xbf16>
      %56 = vector.shape_cast %55 : vector<1x128x32xbf16> to vector<128x32xbf16>
      %cst_51 = arith.constant dense<0.000000e+00> : vector<8x32xf32>
      %57 = tpu.matmul %54, %56, %cst_51 {dimension_numbers = #tpu.dot_dimension_numbers<[1], [0], [0], [1], [0, 0, 1, 1], [], []>} : vector<8x128xbf16>, vector<128x32xbf16>, vector<8x32xf32> -> vector<8x32xf32>
      %c0_52 = arith.constant 0 : index
      %c0_53 = arith.constant 0 : index
      %c0_54 = arith.constant 0 : index
      %58 = vector.load %arg8[%c0_52, %c0_53, %c0_54] : memref<4x1x32xf32, #tpu.memory_space<vmem>>, vector<1x1x32xf32>
      %59 = vector.shape_cast %58 : vector<1x1x32xf32> to vector<1x32xf32>
      %60 = vector.broadcast %59 : vector<1x32xf32> to vector<8x32xf32>
      %61 = arith.addf %57, %60 : vector<8x32xf32>
      %cst_55 = arith.constant 0.176776692 : f32
      %62 = vector.broadcast %cst_55 : f32 to vector<8x32xf32>
      %63 = arith.mulf %61, %62 : vector<8x32xf32>
      %64 = arith.truncf %63 : vector<8x32xf32> to vector<8x32xbf16>
      %c0_56 = arith.constant 0 : index
      %c0_57 = arith.constant 0 : index
      %c0_58 = arith.constant 0 : index
      %65 = vector.load %arg19[%c0_56, %c0_57, %c0_58] : memref<4x8x32xbf16, #tpu.memory_space<vmem>>, vector<1x8x32xbf16>
      %66 = vector.shape_cast %65 : vector<1x8x32xbf16> to vector<8x32xbf16>
      %67 = vector.shape_cast %64 : vector<8x32xbf16> to vector<1x8x32xbf16>
      tpu.vector_store %arg19[%c0_56, %c0_57, %c0_58], %67 {strides = array<i32>} : memref<4x8x32xbf16, #tpu.memory_space<vmem>>, vector<1x8x32xbf16>,
      %c1 = arith.constant 1 : index
      %c0_59 = arith.constant 0 : index
      %c0_60 = arith.constant 0 : index
      %68 = vector.load %arg7[%c1, %c0_59, %c0_60] : memref<4x128x32xbf16, #tpu.memory_space<vmem>>, vector<1x128x32xbf16>
      %69 = vector.shape_cast %68 : vector<1x128x32xbf16> to vector<128x32xbf16>
      %cst_61 = arith.constant dense<0.000000e+00> : vector<8x32xf32>
      %70 = tpu.matmul %54, %69, %cst_61 {dimension_numbers = #tpu.dot_dimension_numbers<[1], [0], [0], [1], [0, 0, 1, 1], [], []>} : vector<8x128xbf16>, vector<128x32xbf16>, vector<8x32xf32> -> vector<8x32xf32>
      %c1_62 = arith.constant 1 : index
      %c0_63 = arith.constant 0 : index
      %c0_64 = arith.constant 0 : index
      %71 = vector.load %arg8[%c1_62, %c0_63, %c0_64] : memref<4x1x32xf32, #tpu.memory_space<vmem>>, vector<1x1x32xf32>
      %72 = vector.shape_cast %71 : vector<1x1x32xf32> to vector<1x32xf32>
      %73 = vector.broadcast %72 : vector<1x32xf32> to vector<8x32xf32>
      %74 = arith.addf %70, %73 : vector<8x32xf32>
      %cst_65 = arith.constant 0.176776692 : f32
      %75 = vector.broadcast %cst_65 : f32 to vector<8x32xf32>
      %76 = arith.mulf %74, %75 : vector<8x32xf32>
      %77 = arith.truncf %76 : vector<8x32xf32> to vector<8x32xbf16>
      %c1_66 = arith.constant 1 : index
      %c0_67 = arith.constant 0 : index
      %c0_68 = arith.constant 0 : index
      %78 = vector.load %arg19[%c1_66, %c0_67, %c0_68] : memref<4x8x32xbf16, #tpu.memory_space<vmem>>, vector<1x8x32xbf16>
      %79 = vector.shape_cast %78 : vector<1x8x32xbf16> to vector<8x32xbf16>
      %80 = vector.shape_cast %77 : vector<8x32xbf16> to vector<1x8x32xbf16>
      tpu.vector_store %arg19[%c1_66, %c0_67, %c0_68], %80 {strides = array<i32>} : memref<4x8x32xbf16, #tpu.memory_space<vmem>>, vector<1x8x32xbf16>,
      %c2 = arith.constant 2 : index
      %c0_69 = arith.constant 0 : index
      %c0_70 = arith.constant 0 : index
      %81 = vector.load %arg7[%c2, %c0_69, %c0_70] : memref<4x128x32xbf16, #tpu.memory_space<vmem>>, vector<1x128x32xbf16>
      %82 = vector.shape_cast %81 : vector<1x128x32xbf16> to vector<128x32xbf16>
      %cst_71 = arith.constant dense<0.000000e+00> : vector<8x32xf32>
      %83 = tpu.matmul %54, %82, %cst_71 {dimension_numbers = #tpu.dot_dimension_numbers<[1], [0], [0], [1], [0, 0, 1, 1], [], []>} : vector<8x128xbf16>, vector<128x32xbf16>, vector<8x32xf32> -> vector<8x32xf32>
      %c2_72 = arith.constant 2 : index
      %c0_73 = arith.constant 0 : index
      %c0_74 = arith.constant 0 : index
      %84 = vector.load %arg8[%c2_72, %c0_73, %c0_74] : memref<4x1x32xf32, #tpu.memory_space<vmem>>, vector<1x1x32xf32>
      %85 = vector.shape_cast %84 : vector<1x1x32xf32> to vector<1x32xf32>
      %86 = vector.broadcast %85 : vector<1x32xf32> to vector<8x32xf32>
      %87 = arith.addf %83, %86 : vector<8x32xf32>
      %cst_75 = arith.constant 0.176776692 : f32
      %88 = vector.broadcast %cst_75 : f32 to vector<8x32xf32>
      %89 = arith.mulf %87, %88 : vector<8x32xf32>
      %90 = arith.truncf %89 : vector<8x32xf32> to vector<8x32xbf16>
      %c2_76 = arith.constant 2 : index
      %c0_77 = arith.constant 0 : index
      %c0_78 = arith.constant 0 : index
      %91 = vector.load %arg19[%c2_76, %c0_77, %c0_78] : memref<4x8x32xbf16, #tpu.memory_space<vmem>>, vector<1x8x32xbf16>
      %92 = vector.shape_cast %91 : vector<1x8x32xbf16> to vector<8x32xbf16>
      %93 = vector.shape_cast %90 : vector<8x32xbf16> to vector<1x8x32xbf16>
      tpu.vector_store %arg19[%c2_76, %c0_77, %c0_78], %93 {strides = array<i32>} : memref<4x8x32xbf16, #tpu.memory_space<vmem>>, vector<1x8x32xbf16>,
      %c3 = arith.constant 3 : index
      %c0_79 = arith.constant 0 : index
      %c0_80 = arith.constant 0 : index
      %94 = vector.load %arg7[%c3, %c0_79, %c0_80] : memref<4x128x32xbf16, #tpu.memory_space<vmem>>, vector<1x128x32xbf16>
      %95 = vector.shape_cast %94 : vector<1x128x32xbf16> to vector<128x32xbf16>
      %cst_81 = arith.constant dense<0.000000e+00> : vector<8x32xf32>
      %96 = tpu.matmul %54, %95, %cst_81 {dimension_numbers = #tpu.dot_dimension_numbers<[1], [0], [0], [1], [0, 0, 1, 1], [], []>} : vector<8x128xbf16>, vector<128x32xbf16>, vector<8x32xf32> -> vector<8x32xf32>
      %c3_82 = arith.constant 3 : index
      %c0_83 = arith.constant 0 : index
      %c0_84 = arith.constant 0 : index
      %97 = vector.load %arg8[%c3_82, %c0_83, %c0_84] : memref<4x1x32xf32, #tpu.memory_space<vmem>>, vector<1x1x32xf32>
      %98 = vector.shape_cast %97 : vector<1x1x32xf32> to vector<1x32xf32>
      %99 = vector.broadcast %98 : vector<1x32xf32> to vector<8x32xf32>
      %100 = arith.addf %96, %99 : vector<8x32xf32>
      %cst_85 = arith.constant 0.176776692 : f32
      %101 = vector.broadcast %cst_85 : f32 to vector<8x32xf32>
      %102 = arith.mulf %100, %101 : vector<8x32xf32>
      %103 = arith.truncf %102 : vector<8x32xf32> to vector<8x32xbf16>
      %c3_86 = arith.constant 3 : index
      %c0_87 = arith.constant 0 : index
      %c0_88 = arith.constant 0 : index
      %104 = vector.load %arg19[%c3_86, %c0_87, %c0_88] : memref<4x8x32xbf16, #tpu.memory_space<vmem>>, vector<1x8x32xbf16>
      %105 = vector.shape_cast %104 : vector<1x8x32xbf16> to vector<8x32xbf16>
      %106 = vector.shape_cast %103 : vector<8x32xbf16> to vector<1x8x32xbf16>
      tpu.vector_store %arg19[%c3_86, %c0_87, %c0_88], %106 {strides = array<i32>} : memref<4x8x32xbf16, #tpu.memory_space<vmem>>, vector<1x8x32xbf16>,
      %cst_89 = arith.constant 0xFF800000 : f32
      %107 = vector.broadcast %cst_89 : f32 to vector<4x8x1xf32>
      %c0_90 = arith.constant 0 : index
      %c0_91 = arith.constant 0 : index
      %c0_92 = arith.constant 0 : index
      %108 = vector.load %arg20[%c0_90, %c0_91, %c0_92] : memref<4x8x1xf32, #tpu.memory_space<vmem>>, vector<4x8x1xf32>
      tpu.vector_store %arg20[%c0_90, %c0_91, %c0_92], %107 {strides = array<i32>} : memref<4x8x1xf32, #tpu.memory_space<vmem>>, vector<4x8x1xf32>,
      %cst_93 = arith.constant 0.000000e+00 : f32
      %109 = vector.broadcast %cst_93 : f32 to vector<4x8x1xf32>
      %c0_94 = arith.constant 0 : index
      %c0_95 = arith.constant 0 : index
      %c0_96 = arith.constant 0 : index
      %110 = vector.load %arg21[%c0_94, %c0_95, %c0_96] : memref<4x8x1xf32, #tpu.memory_space<vmem>>, vector<4x8x1xf32>
      tpu.vector_store %arg21[%c0_94, %c0_95, %c0_96], %109 {strides = array<i32>} : memref<4x8x1xf32, #tpu.memory_space<vmem>>, vector<4x8x1xf32>,
      %cst_97 = arith.constant 0.000000e+00 : f32
      %111 = vector.broadcast %cst_97 : f32 to vector<4x8x32xf32>
      %c0_98 = arith.constant 0 : index
      %c0_99 = arith.constant 0 : index
      %c0_100 = arith.constant 0 : index
      %112 = vector.load %arg22[%c0_98, %c0_99, %c0_100] : memref<4x8x32xf32, #tpu.memory_space<vmem>>, vector<4x8x32xf32>
      tpu.vector_store %arg22[%c0_98, %c0_99, %c0_100], %111 {strides = array<i32>} : memref<4x8x32xf32, #tpu.memory_space<vmem>>, vector<4x8x32xf32>,
    } else {
    }
    %c0 = arith.constant 0 : index
    %c0_1 = arith.constant 0 : index
    %c0_2 = arith.constant 0 : index
    %3 = vector.load %arg5[%c0, %c0_1, %c0_2] : memref<1x8x128xbf16, #tpu.memory_space<vmem>>, vector<1x8x128xbf16>
    %4 = vector.shape_cast %3 : vector<1x8x128xbf16> to vector<8x128xbf16>
    %c0_3 = arith.constant 0 : index
    %c0_4 = arith.constant 0 : index
    %c0_5 = arith.constant 0 : index
    %5 = vector.load %arg6[%c0_3, %c0_4, %c0_5] : memref<1x8x128xbf16, #tpu.memory_space<vmem>>, vector<1x8x128xbf16>
    %6 = vector.shape_cast %5 : vector<1x8x128xbf16> to vector<8x128xbf16>
    %7 = arith.addf %4, %6 : vector<8x128xbf16>
    %c0_6 = arith.constant 0 : index
    %c0_7 = arith.constant 0 : index
    %8 = vector.load %arg9[%c0_6, %c0_7] : memref<128x128xbf16, #tpu.memory_space<vmem>>, vector<128x128xbf16>
    %cst = arith.constant dense<0.000000e+00> : vector<128x8xf32>
    %9 = tpu.matmul %8, %7, %cst {dimension_numbers = #tpu.dot_dimension_numbers<[1], [1], [0], [0], [0, 0, 1, 0], [], []>} : vector<128x128xbf16>, vector<8x128xbf16>, vector<128x8xf32> -> vector<128x8xf32>
    %c0_8 = arith.constant 0 : index
    %c0_9 = arith.constant 0 : index
    %10 = vector.load %arg10[%c0_8, %c0_9] : memref<128x1xf32, #tpu.memory_space<vmem>>, vector<128x1xf32>
    %11 = vector.broadcast %10 : vector<128x1xf32> to vector<128x8xf32>
    %12 = arith.addf %9, %11 : vector<128x8xf32>
    %c0_10 = arith.constant 0 : index
    %c0_11 = arith.constant 0 : index
    %13 = vector.load %arg11[%c0_10, %c0_11] : memref<128x128xbf16, #tpu.memory_space<vmem>>, vector<128x128xbf16>
    %cst_12 = arith.constant dense<0.000000e+00> : vector<128x8xf32>
    %14 = tpu.matmul %13, %4, %cst_12 {dimension_numbers = #tpu.dot_dimension_numbers<[1], [1], [0], [0], [0, 0, 1, 0], [], []>} : vector<128x128xbf16>, vector<8x128xbf16>, vector<128x8xf32> -> vector<128x8xf32>
    %c0_13 = arith.constant 0 : index
    %c0_14 = arith.constant 0 : index
    %15 = vector.load %arg12[%c0_13, %c0_14] : memref<128x1xf32, #tpu.memory_space<vmem>>, vector<128x1xf32>
    %16 = vector.broadcast %15 : vector<128x1xf32> to vector<128x8xf32>
    %17 = arith.addf %14, %16 : vector<128x8xf32>
    %18 = arith.truncf %12 : vector<128x8xf32> to vector<128x8xbf16>
    %19 = vector.shape_cast %18 : vector<128x8xbf16> to vector<4x32x8xbf16>
    %20 = arith.truncf %17 : vector<128x8xf32> to vector<128x8xbf16>
    %21 = vector.shape_cast %20 : vector<128x8xbf16> to vector<4x32x8xbf16>
    %c0_15 = arith.constant 0 : index
    %c0_16 = arith.constant 0 : index
    %c0_17 = arith.constant 0 : index
    %22 = vector.load %arg19[%c0_15, %c0_16, %c0_17] : memref<4x8x32xbf16, #tpu.memory_space<vmem>>, vector<4x8x32xbf16>
    %cst_18 = arith.constant dense<0.000000e+00> : vector<4x8x8xf32>
    %23 = tpu.matmul %22, %19, %cst_18 {dimension_numbers = #tpu.dot_dimension_numbers<[2], [1], [1], [2], [0, 0, 0, 1, 1, 2], [0], [0]>} : vector<4x8x32xbf16>, vector<4x32x8xbf16>, vector<4x8x8xf32> -> vector<4x8x8xf32>
    %c0_19 = arith.constant 0 : index
    %c0_20 = arith.constant 0 : index
    %c0_21 = arith.constant 0 : index
    %24 = vector.load %arg20[%c0_19, %c0_20, %c0_21] : memref<4x8x1xf32, #tpu.memory_space<vmem>>, vector<4x8x1xf32>
    %cst_22 = arith.constant dense<0xFF800000> : vector<4x8xf32>
    %25 = vector.multi_reduction <maximumf>, %23, %cst_22 [2] : vector<4x8x8xf32> to vector<4x8xf32>
    %26 = vector.shape_cast %25 : vector<4x8xf32> to vector<4x8x1xf32>
    %27 = arith.maximumf %24, %26 : vector<4x8x1xf32>
    %28 = arith.subf %24, %27 : vector<4x8x1xf32>
    %29 = math.exp %28 : vector<4x8x1xf32>
    %30 = vector.broadcast %27 : vector<4x8x1xf32> to vector<4x8x8xf32>
    %31 = arith.subf %23, %30 : vector<4x8x8xf32>
    %32 = math.exp %31 : vector<4x8x8xf32>
    %c0_23 = arith.constant 0 : index
    %c0_24 = arith.constant 0 : index
    %c0_25 = arith.constant 0 : index
    %33 = vector.load %arg21[%c0_23, %c0_24, %c0_25] : memref<4x8x1xf32, #tpu.memory_space<vmem>>, vector<4x8x1xf32>
    %34 = arith.mulf %29, %33 : vector<4x8x1xf32>
    %cst_26 = arith.constant dense<0.000000e+00> : vector<4x8xf32>
    %35 = vector.multi_reduction <add>, %32, %cst_26 [2] : vector<4x8x8xf32> to vector<4x8xf32>
    %36 = vector.shape_cast %35 : vector<4x8xf32> to vector<4x8x1xf32>
    %37 = arith.addf %34, %36 : vector<4x8x1xf32>
    %c0_27 = arith.constant 0 : index
    %c0_28 = arith.constant 0 : index
    %c0_29 = arith.constant 0 : index
    %38 = vector.load %arg21[%c0_27, %c0_28, %c0_29] : memref<4x8x1xf32, #tpu.memory_space<vmem>>, vector<4x8x1xf32>
    tpu.vector_store %arg21[%c0_27, %c0_28, %c0_29], %37 {strides = array<i32>} : memref<4x8x1xf32, #tpu.memory_space<vmem>>, vector<4x8x1xf32>,
    %39 = arith.truncf %32 : vector<4x8x8xf32> to vector<4x8x8xbf16>
    %cst_30 = arith.constant dense<0.000000e+00> : vector<4x8x32xf32>
    %40 = tpu.matmul %39, %21, %cst_30 {dimension_numbers = #tpu.dot_dimension_numbers<[2], [2], [1], [1], [0, 0, 0, 1, 1, 1], [0], [0]>} : vector<4x8x8xbf16>, vector<4x32x8xbf16>, vector<4x8x32xf32> -> vector<4x8x32xf32>
    %c0_31 = arith.constant 0 : index
    %c0_32 = arith.constant 0 : index
    %c0_33 = arith.constant 0 : index
    %41 = vector.load %arg22[%c0_31, %c0_32, %c0_33] : memref<4x8x32xf32, #tpu.memory_space<vmem>>, vector<4x8x32xf32>
    %42 = vector.broadcast %29 : vector<4x8x1xf32> to vector<4x8x32xf32>
    %43 = arith.mulf %42, %41 : vector<4x8x32xf32>
    %44 = arith.addf %43, %40 : vector<4x8x32xf32>
    %c0_34 = arith.constant 0 : index
    %c0_35 = arith.constant 0 : index
    %c0_36 = arith.constant 0 : index
    %45 = vector.load %arg22[%c0_34, %c0_35, %c0_36] : memref<4x8x32xf32, #tpu.memory_space<vmem>>, vector<4x8x32xf32>
    tpu.vector_store %arg22[%c0_34, %c0_35, %c0_36], %44 {strides = array<i32>} : memref<4x8x32xf32, #tpu.memory_space<vmem>>, vector<4x8x32xf32>,
    %c0_37 = arith.constant 0 : index
    %c0_38 = arith.constant 0 : index
    %c0_39 = arith.constant 0 : index
    %46 = vector.load %arg20[%c0_37, %c0_38, %c0_39] : memref<4x8x1xf32, #tpu.memory_space<vmem>>, vector<4x8x1xf32>
    tpu.vector_store %arg20[%c0_37, %c0_38, %c0_39], %27 {strides = array<i32>} : memref<4x8x1xf32, #tpu.memory_space<vmem>>, vector<4x8x1xf32>,
    %c0_i32_40 = arith.constant 0 : i32
    %47 = arith.cmpi eq, %arg2, %c0_i32_40 : i32
    %48 = arith.extui %47 : i1 to i32
    %c0_i32_41 = arith.constant 0 : i32
    %49 = arith.cmpi ne, %48, %c0_i32_41 : i32
    scf.if %49 {
      %c0_42 = arith.constant 0 : index
      %c0_43 = arith.constant 0 : index
      %c0_44 = arith.constant 0 : index
      %50 = vector.load %arg22[%c0_42, %c0_43, %c0_44] : memref<4x8x32xf32, #tpu.memory_space<vmem>>, vector<4x8x32xf32>
      %c0_45 = arith.constant 0 : index
      %c0_46 = arith.constant 0 : index
      %c0_47 = arith.constant 0 : index
      %51 = vector.load %arg21[%c0_45, %c0_46, %c0_47] : memref<4x8x1xf32, #tpu.memory_space<vmem>>, vector<4x8x1xf32>
      %52 = tpu.reciprocal %51 {approx = true} : vector<4x8x1xf32> -> vector<4x8x1xf32>
      %53 = vector.broadcast %52 : vector<4x8x1xf32> to vector<4x8x32xf32>
      %54 = arith.mulf %50, %53 : vector<4x8x32xf32>
      %55 = arith.truncf %54 : vector<4x8x32xf32> to vector<4x8x32xbf16>
      %c0_48 = arith.constant 0 : index
      %c0_49 = arith.constant 0 : index
      %c0_50 = arith.constant 0 : index
      %56 = vector.load %arg13[%c0_48, %c0_49, %c0_50] : memref<4x32x128xbf16, #tpu.memory_space<vmem>>, vector<4x32x128xbf16>
      %cst_51 = arith.constant dense<0.000000e+00> : vector<4x8x128xf32>
      %57 = tpu.matmul %55, %56, %cst_51 {dimension_numbers = #tpu.dot_dimension_numbers<[2], [1], [1], [2], [0, 0, 0, 1, 1, 2], [0], [0]>} : vector<4x8x32xbf16>, vector<4x32x128xbf16>, vector<4x8x128xf32> -> vector<4x8x128xf32>
      %cst_52 = arith.constant dense<0.000000e+00> : vector<8x128xf32>
      %58 = vector.multi_reduction <add>, %57, %cst_52 [0] : vector<4x8x128xf32> to vector<8x128xf32>
      %c0_53 = arith.constant 0 : index
      %c0_54 = arith.constant 0 : index
      %59 = vector.load %arg14[%c0_53, %c0_54] : memref<1x128xf32, #tpu.memory_space<vmem>>, vector<1x128xf32>
      %60 = vector.broadcast %59 : vector<1x128xf32> to vector<8x128xf32>
      %61 = arith.addf %58, %60 : vector<8x128xf32>
      %c0_55 = arith.constant 0 : index
      %c0_56 = arith.constant 0 : index
      %c0_57 = arith.constant 0 : index
      %62 = vector.load %arg15[%c0_55, %c0_56, %c0_57] : memref<1x8x128xbf16, #tpu.memory_space<vmem>>, vector<1x8x128xbf16>
      %63 = vector.shape_cast %62 : vector<1x8x128xbf16> to vector<8x128xbf16>
      %64 = arith.extf %63 : vector<8x128xbf16> to vector<8x128xf32>
      %65 = arith.addf %61, %64 : vector<8x128xf32>
      %c0_58 = arith.constant 0 : index
      %c0_59 = arith.constant 0 : index
      %66 = vector.load %arg16[%c0_58, %c0_59] : memref<1x128xf32, #tpu.memory_space<vmem>>, vector<1x128xf32>
      %c0_60 = arith.constant 0 : index
      %c0_61 = arith.constant 0 : index
      %67 = vector.load %arg17[%c0_60, %c0_61] : memref<1x128xf32, #tpu.memory_space<vmem>>, vector<1x128xf32>
      %cst_62 = arith.constant dense<0.000000e+00> : vector<8xf32>
      %68 = vector.multi_reduction <add>, %65, %cst_62 [1] : vector<8x128xf32> to vector<8xf32>
      %69 = vector.shape_cast %68 : vector<8xf32> to vector<8x1xf32>
      %cst_63 = arith.constant 1.280000e+02 : f32
      %70 = vector.broadcast %cst_63 : f32 to vector<8x1xf32>
      %71 = arith.divf %69, %70 : vector<8x1xf32>
      %72 = vector.broadcast %71 : vector<8x1xf32> to vector<8x128xf32>
      %73 = arith.subf %65, %72 : vector<8x128xf32>
      %74 = arith.mulf %73, %73 : vector<8x128xf32>
      %cst_64 = arith.constant dense<0.000000e+00> : vector<8xf32>
      %75 = vector.multi_reduction <add>, %74, %cst_64 [1] : vector<8x128xf32> to vector<8xf32>
      %76 = vector.shape_cast %75 : vector<8xf32> to vector<8x1xf32>
      %cst_65 = arith.constant 1.280000e+02 : f32
      %77 = vector.broadcast %cst_65 : f32 to vector<8x1xf32>
      %78 = arith.divf %76, %77 : vector<8x1xf32>
      %cst_66 = arith.constant 9.99999974E-6 : f32
      %79 = vector.broadcast %cst_66 : f32 to vector<8x1xf32>
      %80 = arith.addf %78, %79 : vector<8x1xf32>
      %81 = math.rsqrt %80 : vector<8x1xf32>
      %82 = vector.broadcast %81 : vector<8x1xf32> to vector<8x128xf32>
      %83 = arith.mulf %73, %82 : vector<8x128xf32>
      %84 = vector.broadcast %66 : vector<1x128xf32> to vector<8x128xf32>
      %85 = arith.mulf %83, %84 : vector<8x128xf32>
      %86 = vector.broadcast %67 : vector<1x128xf32> to vector<8x128xf32>
      %87 = arith.addf %85, %86 : vector<8x128xf32>
      %88 = arith.truncf %87 : vector<8x128xf32> to vector<8x128xbf16>
      %c0_67 = arith.constant 0 : index
      %c0_68 = arith.constant 0 : index
      %c0_69 = arith.constant 0 : index
      %89 = vector.load %arg18[%c0_67, %c0_68, %c0_69] : memref<1x8x128xbf16, #tpu.memory_space<vmem>>, vector<1x8x128xbf16>
      %90 = vector.shape_cast %89 : vector<1x8x128xbf16> to vector<8x128xbf16>
      %91 = vector.shape_cast %88 : vector<8x128xbf16> to vector<1x8x128xbf16>
      tpu.vector_store %arg18[%c0_67, %c0_68, %c0_69], %91 {strides = array<i32>} : memref<1x8x128xbf16, #tpu.memory_space<vmem>>, vector<1x8x128xbf16>,
    } else {
    }
    return
  }
  func.func @transform_0(%arg0: i32, %arg1: i32, %arg2: i32) -> (i32, i32, i32) {
    %c0_i32 = arith.constant 0 : i32
    %c0_i32_0 = arith.constant 0 : i32
    return %arg0, %arg1, %c0_i32 : i32, i32, i32
  }
  func.func @transform_1(%arg0: i32, %arg1: i32, %arg2: i32) -> (i32, i32, i32) {
    %c0_i32 = arith.constant 0 : i32
    %c0_i32_0 = arith.constant 0 : i32
    return %arg0, %arg1, %c0_i32 : i32, i32, i32
  }
  func.func @transform_2(%arg0: i32, %arg1: i32, %arg2: i32) -> (i32, i32, i32) {
    %c0_i32 = arith.constant 0 : i32
    %c0_i32_0 = arith.constant 0 : i32
    return %arg0, %arg2, %c0_i32 : i32, i32, i32
  }
  func.func @transform_3(%arg0: i32, %arg1: i32, %arg2: i32) -> (i32, i32, i32) {
    %c0_i32 = arith.constant 0 : i32
    %c0_i32_0 = arith.constant 0 : i32
    return %arg0, %arg2, %c0_i32 : i32, i32, i32
  }
  func.func @transform_4(%arg0: i32, %arg1: i32, %arg2: i32) -> (i32, i32, i32) {
    %c0_i32 = arith.constant 0 : i32
    %c0_i32_0 = arith.constant 0 : i32
    %c0_i32_1 = arith.constant 0 : i32
    %c0_i32_2 = arith.constant 0 : i32
    return %c0_i32, %c0_i32_0, %c0_i32_1 : i32, i32, i32
  }
  func.func @transform_5(%arg0: i32, %arg1: i32, %arg2: i32) -> (i32, i32, i32) {
    %c0_i32 = arith.constant 0 : i32
    %c0_i32_0 = arith.constant 0 : i32
    %c0_i32_1 = arith.constant 0 : i32
    %c0_i32_2 = arith.constant 0 : i32
    return %c0_i32, %c0_i32_0, %c0_i32_1 : i32, i32, i32
  }
  func.func @transform_6(%arg0: i32, %arg1: i32, %arg2: i32) -> (i32, i32) {
    %c0_i32 = arith.constant 0 : i32
    %c0_i32_0 = arith.constant 0 : i32
    %c0_i32_1 = arith.constant 0 : i32
    return %c0_i32, %c0_i32_0 : i32, i32
  }
  func.func @transform_7(%arg0: i32, %arg1: i32, %arg2: i32) -> (i32, i32) {
    %c0_i32 = arith.constant 0 : i32
    %c0_i32_0 = arith.constant 0 : i32
    %c0_i32_1 = arith.constant 0 : i32
    return %c0_i32, %c0_i32_0 : i32, i32
  }
  func.func @transform_8(%arg0: i32, %arg1: i32, %arg2: i32) -> (i32, i32) {
    %c0_i32 = arith.constant 0 : i32
    %c0_i32_0 = arith.constant 0 : i32
    %c0_i32_1 = arith.constant 0 : i32
    return %c0_i32, %c0_i32_0 : i32, i32
  }
  func.func @transform_9(%arg0: i32, %arg1: i32, %arg2: i32) -> (i32, i32) {
    %c0_i32 = arith.constant 0 : i32
    %c0_i32_0 = arith.constant 0 : i32
    %c0_i32_1 = arith.constant 0 : i32
    return %c0_i32, %c0_i32_0 : i32, i32
  }
  func.func @transform_10(%arg0: i32, %arg1: i32, %arg2: i32) -> (i32, i32, i32) {
    %c0_i32 = arith.constant 0 : i32
    %c0_i32_0 = arith.constant 0 : i32
    %c0_i32_1 = arith.constant 0 : i32
    %c0_i32_2 = arith.constant 0 : i32
    return %c0_i32, %c0_i32_0, %c0_i32_1 : i32, i32, i32
  }
  func.func @transform_11(%arg0: i32, %arg1: i32, %arg2: i32) -> (i32, i32) {
    %c0_i32 = arith.constant 0 : i32
    %c0_i32_0 = arith.constant 0 : i32
    %c0_i32_1 = arith.constant 0 : i32
    return %c0_i32, %c0_i32_0 : i32, i32
  }
  func.func @transform_12(%arg0: i32, %arg1: i32, %arg2: i32) -> (i32, i32, i32) {
    %c0_i32 = arith.constant 0 : i32
    %c0_i32_0 = arith.constant 0 : i32
    return %arg0, %arg1, %c0_i32 : i32, i32, i32
  }
  func.func @transform_13(%arg0: i32, %arg1: i32, %arg2: i32) -> (i32, i32) {
    %c0_i32 = arith.constant 0 : i32
    %c0_i32_0 = arith.constant 0 : i32
    %c0_i32_1 = arith.constant 0 : i32
    return %c0_i32, %c0_i32_0 : i32, i32
  }
  func.func @transform_14(%arg0: i32, %arg1: i32, %arg2: i32) -> (i32, i32) {
    %c0_i32 = arith.constant 0 : i32
    %c0_i32_0 = arith.constant 0 : i32
    %c0_i32_1 = arith.constant 0 : i32
    return %c0_i32, %c0_i32_0 : i32, i32
  }
  func.func @transform_15(%arg0: i32, %arg1: i32, %arg2: i32) -> (i32, i32, i32) {
    %c0_i32 = arith.constant 0 : i32
    %c0_i32_0 = arith.constant 0 : i32
    return %arg0, %arg1, %c0_i32 : i32, i32, i32
  }
}

module attributes {stable_mosaic.version = 11 : i64} {
  func.func @kernel(%arg0: i32, %arg1: i32, %arg2: i32, %arg3: memref<1x8x128xbf16, #tpu.memory_space<vmem>>, %arg4: memref<1x8x128xbf16, #tpu.memory_space<vmem>>, %arg5: memref<1x16x128xbf16, #tpu.memory_space<vmem>>, %arg6: memref<1x16x128xbf16, #tpu.memory_space<vmem>>, %arg7: memref<4x128x16xbf16, #tpu.memory_space<vmem>>, %arg8: memref<4x1x16xf32, #tpu.memory_space<vmem>>, %arg9: memref<64x128xbf16, #tpu.memory_space<vmem>>, %arg10: memref<64x1xf32, #tpu.memory_space<vmem>>, %arg11: memref<64x128xbf16, #tpu.memory_space<vmem>>, %arg12: memref<64x1xf32, #tpu.memory_space<vmem>>, %arg13: memref<4x16x128xbf16, #tpu.memory_space<vmem>>, %arg14: memref<1x128xf32, #tpu.memory_space<vmem>>, %arg15: memref<1x8x128xbf16, #tpu.memory_space<vmem>>, %arg16: memref<1x128xf32, #tpu.memory_space<vmem>>, %arg17: memref<1x128xf32, #tpu.memory_space<vmem>>, %arg18: memref<1x8x128xbf16, #tpu.memory_space<vmem>>, %arg19: memref<4x8x16xbf16, #tpu.memory_space<vmem>>, %arg20: memref<4x8x1xf32, #tpu.memory_space<vmem>>, %arg21: memref<4x8x1xf32, #tpu.memory_space<vmem>>, %arg22: memref<4x8x16xf32, #tpu.memory_space<vmem>>) attributes {dimension_semantics = [#tpu.dimension_semantics<parallel>, #tpu.dimension_semantics<parallel>, #tpu.dimension_semantics<arbitrary>], iteration_bounds = array<i64: 2, 1, 3>, scalar_prefetch = 0 : i64, scratch_operands = 4 : i64, tpu.core_type = #tpu.core_type<tc>, window_params = [{transform_indices = @transform_0, window_bounds = array<i64: 1, 8, 128>}, {transform_indices = @transform_1, window_bounds = array<i64: 1, 8, 128>}, {transform_indices = @transform_2, window_bounds = array<i64: 1, 16, 128>}, {transform_indices = @transform_3, window_bounds = array<i64: 1, 16, 128>}, {pipeline_mode = #tpu.pipeline_mode<synchronous>, transform_indices = @transform_4, window_bounds = array<i64: 4, 128, 16>}, {pipeline_mode = #tpu.pipeline_mode<synchronous>, transform_indices = @transform_5, window_bounds = array<i64: 4, 1, 16>}, {pipeline_mode = #tpu.pipeline_mode<synchronous>, transform_indices = @transform_6, window_bounds = array<i64: 64, 128>}, {pipeline_mode = #tpu.pipeline_mode<synchronous>, transform_indices = @transform_7, window_bounds = array<i64: 64, 1>}, {pipeline_mode = #tpu.pipeline_mode<synchronous>, transform_indices = @transform_8, window_bounds = array<i64: 64, 128>}, {pipeline_mode = #tpu.pipeline_mode<synchronous>, transform_indices = @transform_9, window_bounds = array<i64: 64, 1>}, {pipeline_mode = #tpu.pipeline_mode<synchronous>, transform_indices = @transform_10, window_bounds = array<i64: 4, 16, 128>}, {pipeline_mode = #tpu.pipeline_mode<synchronous>, transform_indices = @transform_11, window_bounds = array<i64: 1, 128>}, {transform_indices = @transform_12, window_bounds = array<i64: 1, 8, 128>}, {pipeline_mode = #tpu.pipeline_mode<synchronous>, transform_indices = @transform_13, window_bounds = array<i64: 1, 128>}, {pipeline_mode = #tpu.pipeline_mode<synchronous>, transform_indices = @transform_14, window_bounds = array<i64: 1, 128>}, {transform_indices = @transform_15, window_bounds = array<i64: 1, 8, 128>}]} {
    %c0_i32 = arith.constant 0 : i32
    %0 = arith.cmpi eq, %arg2, %c0_i32 : i32
    %1 = arith.extui %0 : i1 to i32
    %c0_i32_0 = arith.constant 0 : i32
    %2 = arith.cmpi ne, %1, %c0_i32_0 : i32
    scf.if %2 {
      %c0_43 = arith.constant 0 : index
      %c0_44 = arith.constant 0 : index
      %c0_45 = arith.constant 0 : index
      %65 = vector.load %arg3[%c0_43, %c0_44, %c0_45] : memref<1x8x128xbf16, #tpu.memory_space<vmem>>, vector<1x8x128xbf16>
      %66 = vector.shape_cast %65 : vector<1x8x128xbf16> to vector<8x128xbf16>
      %c0_46 = arith.constant 0 : index
      %c0_47 = arith.constant 0 : index
      %c0_48 = arith.constant 0 : index
      %67 = vector.load %arg4[%c0_46, %c0_47, %c0_48] : memref<1x8x128xbf16, #tpu.memory_space<vmem>>, vector<1x8x128xbf16>
      %68 = vector.shape_cast %67 : vector<1x8x128xbf16> to vector<8x128xbf16>
      %69 = arith.addf %66, %68 : vector<8x128xbf16>
      %c0_49 = arith.constant 0 : index
      %c0_50 = arith.constant 0 : index
      %c0_51 = arith.constant 0 : index
      %70 = vector.load %arg7[%c0_49, %c0_50, %c0_51] : memref<4x128x16xbf16, #tpu.memory_space<vmem>>, vector<1x128x16xbf16>
      %71 = vector.shape_cast %70 : vector<1x128x16xbf16> to vector<128x16xbf16>
      %cst_52 = arith.constant dense<0.000000e+00> : vector<8x16xf32>
      %72 = tpu.matmul %69, %71, %cst_52 {dimension_numbers = #tpu.dot_dimension_numbers<[1], [0], [0], [1], [0, 0, 1, 1], [], []>} : vector<8x128xbf16>, vector<128x16xbf16>, vector<8x16xf32> -> vector<8x16xf32>
      %c0_53 = arith.constant 0 : index
      %c0_54 = arith.constant 0 : index
      %c0_55 = arith.constant 0 : index
      %73 = vector.load %arg8[%c0_53, %c0_54, %c0_55] : memref<4x1x16xf32, #tpu.memory_space<vmem>>, vector<1x1x16xf32>
      %74 = vector.shape_cast %73 : vector<1x1x16xf32> to vector<1x16xf32>
      %75 = vector.broadcast %74 : vector<1x16xf32> to vector<8x16xf32>
      %76 = arith.addf %72, %75 : vector<8x16xf32>
      %cst_56 = arith.constant 2.500000e-01 : f32
      %77 = vector.broadcast %cst_56 : f32 to vector<8x16xf32>
      %78 = arith.mulf %76, %77 : vector<8x16xf32>
      %79 = arith.truncf %78 : vector<8x16xf32> to vector<8x16xbf16>
      %c0_57 = arith.constant 0 : index
      %c0_58 = arith.constant 0 : index
      %c0_59 = arith.constant 0 : index
      %80 = vector.load %arg19[%c0_57, %c0_58, %c0_59] : memref<4x8x16xbf16, #tpu.memory_space<vmem>>, vector<1x8x16xbf16>
      %81 = vector.shape_cast %80 : vector<1x8x16xbf16> to vector<8x16xbf16>
      %82 = vector.shape_cast %79 : vector<8x16xbf16> to vector<1x8x16xbf16>
      tpu.vector_store %arg19[%c0_57, %c0_58, %c0_59], %82 {strides = array<i32>} : memref<4x8x16xbf16, #tpu.memory_space<vmem>>, vector<1x8x16xbf16>,
      %c1 = arith.constant 1 : index
      %c0_60 = arith.constant 0 : index
      %c0_61 = arith.constant 0 : index
      %83 = vector.load %arg7[%c1, %c0_60, %c0_61] : memref<4x128x16xbf16, #tpu.memory_space<vmem>>, vector<1x128x16xbf16>
      %84 = vector.shape_cast %83 : vector<1x128x16xbf16> to vector<128x16xbf16>
      %cst_62 = arith.constant dense<0.000000e+00> : vector<8x16xf32>
      %85 = tpu.matmul %69, %84, %cst_62 {dimension_numbers = #tpu.dot_dimension_numbers<[1], [0], [0], [1], [0, 0, 1, 1], [], []>} : vector<8x128xbf16>, vector<128x16xbf16>, vector<8x16xf32> -> vector<8x16xf32>
      %c1_63 = arith.constant 1 : index
      %c0_64 = arith.constant 0 : index
      %c0_65 = arith.constant 0 : index
      %86 = vector.load %arg8[%c1_63, %c0_64, %c0_65] : memref<4x1x16xf32, #tpu.memory_space<vmem>>, vector<1x1x16xf32>
      %87 = vector.shape_cast %86 : vector<1x1x16xf32> to vector<1x16xf32>
      %88 = vector.broadcast %87 : vector<1x16xf32> to vector<8x16xf32>
      %89 = arith.addf %85, %88 : vector<8x16xf32>
      %cst_66 = arith.constant 2.500000e-01 : f32
      %90 = vector.broadcast %cst_66 : f32 to vector<8x16xf32>
      %91 = arith.mulf %89, %90 : vector<8x16xf32>
      %92 = arith.truncf %91 : vector<8x16xf32> to vector<8x16xbf16>
      %c1_67 = arith.constant 1 : index
      %c0_68 = arith.constant 0 : index
      %c0_69 = arith.constant 0 : index
      %93 = vector.load %arg19[%c1_67, %c0_68, %c0_69] : memref<4x8x16xbf16, #tpu.memory_space<vmem>>, vector<1x8x16xbf16>
      %94 = vector.shape_cast %93 : vector<1x8x16xbf16> to vector<8x16xbf16>
      %95 = vector.shape_cast %92 : vector<8x16xbf16> to vector<1x8x16xbf16>
      tpu.vector_store %arg19[%c1_67, %c0_68, %c0_69], %95 {strides = array<i32>} : memref<4x8x16xbf16, #tpu.memory_space<vmem>>, vector<1x8x16xbf16>,
      %c2 = arith.constant 2 : index
      %c0_70 = arith.constant 0 : index
      %c0_71 = arith.constant 0 : index
      %96 = vector.load %arg7[%c2, %c0_70, %c0_71] : memref<4x128x16xbf16, #tpu.memory_space<vmem>>, vector<1x128x16xbf16>
      %97 = vector.shape_cast %96 : vector<1x128x16xbf16> to vector<128x16xbf16>
      %cst_72 = arith.constant dense<0.000000e+00> : vector<8x16xf32>
      %98 = tpu.matmul %69, %97, %cst_72 {dimension_numbers = #tpu.dot_dimension_numbers<[1], [0], [0], [1], [0, 0, 1, 1], [], []>} : vector<8x128xbf16>, vector<128x16xbf16>, vector<8x16xf32> -> vector<8x16xf32>
      %c2_73 = arith.constant 2 : index
      %c0_74 = arith.constant 0 : index
      %c0_75 = arith.constant 0 : index
      %99 = vector.load %arg8[%c2_73, %c0_74, %c0_75] : memref<4x1x16xf32, #tpu.memory_space<vmem>>, vector<1x1x16xf32>
      %100 = vector.shape_cast %99 : vector<1x1x16xf32> to vector<1x16xf32>
      %101 = vector.broadcast %100 : vector<1x16xf32> to vector<8x16xf32>
      %102 = arith.addf %98, %101 : vector<8x16xf32>
      %cst_76 = arith.constant 2.500000e-01 : f32
      %103 = vector.broadcast %cst_76 : f32 to vector<8x16xf32>
      %104 = arith.mulf %102, %103 : vector<8x16xf32>
      %105 = arith.truncf %104 : vector<8x16xf32> to vector<8x16xbf16>
      %c2_77 = arith.constant 2 : index
      %c0_78 = arith.constant 0 : index
      %c0_79 = arith.constant 0 : index
      %106 = vector.load %arg19[%c2_77, %c0_78, %c0_79] : memref<4x8x16xbf16, #tpu.memory_space<vmem>>, vector<1x8x16xbf16>
      %107 = vector.shape_cast %106 : vector<1x8x16xbf16> to vector<8x16xbf16>
      %108 = vector.shape_cast %105 : vector<8x16xbf16> to vector<1x8x16xbf16>
      tpu.vector_store %arg19[%c2_77, %c0_78, %c0_79], %108 {strides = array<i32>} : memref<4x8x16xbf16, #tpu.memory_space<vmem>>, vector<1x8x16xbf16>,
      %c3 = arith.constant 3 : index
      %c0_80 = arith.constant 0 : index
      %c0_81 = arith.constant 0 : index
      %109 = vector.load %arg7[%c3, %c0_80, %c0_81] : memref<4x128x16xbf16, #tpu.memory_space<vmem>>, vector<1x128x16xbf16>
      %110 = vector.shape_cast %109 : vector<1x128x16xbf16> to vector<128x16xbf16>
      %cst_82 = arith.constant dense<0.000000e+00> : vector<8x16xf32>
      %111 = tpu.matmul %69, %110, %cst_82 {dimension_numbers = #tpu.dot_dimension_numbers<[1], [0], [0], [1], [0, 0, 1, 1], [], []>} : vector<8x128xbf16>, vector<128x16xbf16>, vector<8x16xf32> -> vector<8x16xf32>
      %c3_83 = arith.constant 3 : index
      %c0_84 = arith.constant 0 : index
      %c0_85 = arith.constant 0 : index
      %112 = vector.load %arg8[%c3_83, %c0_84, %c0_85] : memref<4x1x16xf32, #tpu.memory_space<vmem>>, vector<1x1x16xf32>
      %113 = vector.shape_cast %112 : vector<1x1x16xf32> to vector<1x16xf32>
      %114 = vector.broadcast %113 : vector<1x16xf32> to vector<8x16xf32>
      %115 = arith.addf %111, %114 : vector<8x16xf32>
      %cst_86 = arith.constant 2.500000e-01 : f32
      %116 = vector.broadcast %cst_86 : f32 to vector<8x16xf32>
      %117 = arith.mulf %115, %116 : vector<8x16xf32>
      %118 = arith.truncf %117 : vector<8x16xf32> to vector<8x16xbf16>
      %c3_87 = arith.constant 3 : index
      %c0_88 = arith.constant 0 : index
      %c0_89 = arith.constant 0 : index
      %119 = vector.load %arg19[%c3_87, %c0_88, %c0_89] : memref<4x8x16xbf16, #tpu.memory_space<vmem>>, vector<1x8x16xbf16>
      %120 = vector.shape_cast %119 : vector<1x8x16xbf16> to vector<8x16xbf16>
      %121 = vector.shape_cast %118 : vector<8x16xbf16> to vector<1x8x16xbf16>
      tpu.vector_store %arg19[%c3_87, %c0_88, %c0_89], %121 {strides = array<i32>} : memref<4x8x16xbf16, #tpu.memory_space<vmem>>, vector<1x8x16xbf16>,
      %cst_90 = arith.constant 0xFF800000 : f32
      %122 = vector.broadcast %cst_90 : f32 to vector<4x8x1xf32>
      %c0_91 = arith.constant 0 : index
      %c0_92 = arith.constant 0 : index
      %c0_93 = arith.constant 0 : index
      %123 = vector.load %arg20[%c0_91, %c0_92, %c0_93] : memref<4x8x1xf32, #tpu.memory_space<vmem>>, vector<4x8x1xf32>
      tpu.vector_store %arg20[%c0_91, %c0_92, %c0_93], %122 {strides = array<i32>} : memref<4x8x1xf32, #tpu.memory_space<vmem>>, vector<4x8x1xf32>,
      %cst_94 = arith.constant 0.000000e+00 : f32
      %124 = vector.broadcast %cst_94 : f32 to vector<4x8x1xf32>
      %c0_95 = arith.constant 0 : index
      %c0_96 = arith.constant 0 : index
      %c0_97 = arith.constant 0 : index
      %125 = vector.load %arg21[%c0_95, %c0_96, %c0_97] : memref<4x8x1xf32, #tpu.memory_space<vmem>>, vector<4x8x1xf32>
      tpu.vector_store %arg21[%c0_95, %c0_96, %c0_97], %124 {strides = array<i32>} : memref<4x8x1xf32, #tpu.memory_space<vmem>>, vector<4x8x1xf32>,
      %cst_98 = arith.constant 0.000000e+00 : f32
      %126 = vector.broadcast %cst_98 : f32 to vector<4x8x16xf32>
      %c0_99 = arith.constant 0 : index
      %c0_100 = arith.constant 0 : index
      %c0_101 = arith.constant 0 : index
      %127 = vector.load %arg22[%c0_99, %c0_100, %c0_101] : memref<4x8x16xf32, #tpu.memory_space<vmem>>, vector<4x8x16xf32>
      tpu.vector_store %arg22[%c0_99, %c0_100, %c0_101], %126 {strides = array<i32>} : memref<4x8x16xf32, #tpu.memory_space<vmem>>, vector<4x8x16xf32>,
    } else {
    }
    %c0 = arith.constant 0 : index
    %c0_1 = arith.constant 0 : index
    %c0_2 = arith.constant 0 : index
    %3 = vector.load %arg5[%c0, %c0_1, %c0_2] : memref<1x16x128xbf16, #tpu.memory_space<vmem>>, vector<1x16x128xbf16>
    %4 = vector.shape_cast %3 : vector<1x16x128xbf16> to vector<16x128xbf16>
    %c0_3 = arith.constant 0 : index
    %c0_4 = arith.constant 0 : index
    %c0_5 = arith.constant 0 : index
    %5 = vector.load %arg6[%c0_3, %c0_4, %c0_5] : memref<1x16x128xbf16, #tpu.memory_space<vmem>>, vector<1x16x128xbf16>
    %6 = vector.shape_cast %5 : vector<1x16x128xbf16> to vector<16x128xbf16>
    %7 = arith.addf %4, %6 : vector<16x128xbf16>
    %c0_6 = arith.constant 0 : index
    %c0_7 = arith.constant 0 : index
    %8 = vector.load %arg9[%c0_6, %c0_7] : memref<64x128xbf16, #tpu.memory_space<vmem>>, vector<64x128xbf16>
    %cst = arith.constant dense<0.000000e+00> : vector<64x16xf32>
    %9 = tpu.matmul %8, %7, %cst {dimension_numbers = #tpu.dot_dimension_numbers<[1], [1], [0], [0], [0, 0, 1, 0], [], []>} : vector<64x128xbf16>, vector<16x128xbf16>, vector<64x16xf32> -> vector<64x16xf32>
    %c0_8 = arith.constant 0 : index
    %c0_9 = arith.constant 0 : index
    %10 = vector.load %arg10[%c0_8, %c0_9] : memref<64x1xf32, #tpu.memory_space<vmem>>, vector<64x1xf32>
    %11 = vector.broadcast %10 : vector<64x1xf32> to vector<64x16xf32>
    %12 = arith.addf %9, %11 : vector<64x16xf32>
    %c0_10 = arith.constant 0 : index
    %c0_11 = arith.constant 0 : index
    %13 = vector.load %arg11[%c0_10, %c0_11] : memref<64x128xbf16, #tpu.memory_space<vmem>>, vector<64x128xbf16>
    %cst_12 = arith.constant dense<0.000000e+00> : vector<64x16xf32>
    %14 = tpu.matmul %13, %4, %cst_12 {dimension_numbers = #tpu.dot_dimension_numbers<[1], [1], [0], [0], [0, 0, 1, 0], [], []>} : vector<64x128xbf16>, vector<16x128xbf16>, vector<64x16xf32> -> vector<64x16xf32>
    %c0_13 = arith.constant 0 : index
    %c0_14 = arith.constant 0 : index
    %15 = vector.load %arg12[%c0_13, %c0_14] : memref<64x1xf32, #tpu.memory_space<vmem>>, vector<64x1xf32>
    %16 = vector.broadcast %15 : vector<64x1xf32> to vector<64x16xf32>
    %17 = arith.addf %14, %16 : vector<64x16xf32>
    %18 = tpu.iota {dimensions = array<i32: 1>} : vector<1x16xi32>
    %c16_i32 = arith.constant 16 : i32
    %19 = arith.muli %arg2, %c16_i32 : i32
    %20 = vector.broadcast %19 : i32 to vector<1x16xi32>
    %21 = arith.addi %18, %20 : vector<1x16xi32>
    %c40_i32 = arith.constant 40 : i32
    %22 = vector.broadcast %c40_i32 : i32 to vector<1x16xi32>
    %23 = arith.cmpi slt, %21, %22 : vector<1x16xi32>
    %cst_15 = arith.constant 0.000000e+00 : f32
    %24 = vector.shape_cast %23 : vector<1x16xi1> to vector<1x16xi1>
    %25 = vector.broadcast %24 : vector<1x16xi1> to vector<64x16xi1>
    %26 = vector.broadcast %cst_15 : f32 to vector<64x16xf32>
    %27 = arith.select %25, %17, %26 : vector<64x16xi1>, vector<64x16xf32>
    %28 = arith.truncf %12 : vector<64x16xf32> to vector<64x16xbf16>
    %29 = vector.shape_cast %28 : vector<64x16xbf16> to vector<4x16x16xbf16>
    %30 = arith.truncf %27 : vector<64x16xf32> to vector<64x16xbf16>
    %31 = vector.shape_cast %30 : vector<64x16xbf16> to vector<4x16x16xbf16>
    %c0_16 = arith.constant 0 : index
    %c0_17 = arith.constant 0 : index
    %c0_18 = arith.constant 0 : index
    %32 = vector.load %arg19[%c0_16, %c0_17, %c0_18] : memref<4x8x16xbf16, #tpu.memory_space<vmem>>, vector<4x8x16xbf16>
    %cst_19 = arith.constant dense<0.000000e+00> : vector<4x8x16xf32>
    %33 = tpu.matmul %32, %29, %cst_19 {dimension_numbers = #tpu.dot_dimension_numbers<[2], [1], [1], [2], [0, 0, 0, 1, 1, 2], [0], [0]>} : vector<4x8x16xbf16>, vector<4x16x16xbf16>, vector<4x8x16xf32> -> vector<4x8x16xf32>
    %34 = vector.shape_cast %23 : vector<1x16xi1> to vector<1x1x16xi1>
    %cst_20 = arith.constant 0xFF800000 : f32
    %35 = vector.shape_cast %34 : vector<1x1x16xi1> to vector<1x1x16xi1>
    %36 = vector.broadcast %35 : vector<1x1x16xi1> to vector<4x8x16xi1>
    %37 = vector.broadcast %cst_20 : f32 to vector<4x8x16xf32>
    %38 = arith.select %36, %33, %37 : vector<4x8x16xi1>, vector<4x8x16xf32>
    %c0_21 = arith.constant 0 : index
    %c0_22 = arith.constant 0 : index
    %c0_23 = arith.constant 0 : index
    %39 = vector.load %arg20[%c0_21, %c0_22, %c0_23] : memref<4x8x1xf32, #tpu.memory_space<vmem>>, vector<4x8x1xf32>
    %cst_24 = arith.constant dense<0xFF800000> : vector<4x8xf32>
    %40 = vector.multi_reduction <maximumf>, %38, %cst_24 [2] : vector<4x8x16xf32> to vector<4x8xf32>
    %41 = vector.shape_cast %40 : vector<4x8xf32> to vector<4x8x1xf32>
    %42 = arith.maximumf %39, %41 : vector<4x8x1xf32>
    %43 = arith.subf %39, %42 : vector<4x8x1xf32>
    %44 = math.exp %43 : vector<4x8x1xf32>
    %45 = vector.broadcast %42 : vector<4x8x1xf32> to vector<4x8x16xf32>
    %46 = arith.subf %38, %45 : vector<4x8x16xf32>
    %47 = math.exp %46 : vector<4x8x16xf32>
    %c0_25 = arith.constant 0 : index
    %c0_26 = arith.constant 0 : index
    %c0_27 = arith.constant 0 : index
    %48 = vector.load %arg21[%c0_25, %c0_26, %c0_27] : memref<4x8x1xf32, #tpu.memory_space<vmem>>, vector<4x8x1xf32>
    %49 = arith.mulf %44, %48 : vector<4x8x1xf32>
    %cst_28 = arith.constant dense<0.000000e+00> : vector<4x8xf32>
    %50 = vector.multi_reduction <add>, %47, %cst_28 [2] : vector<4x8x16xf32> to vector<4x8xf32>
    %51 = vector.shape_cast %50 : vector<4x8xf32> to vector<4x8x1xf32>
    %52 = arith.addf %49, %51 : vector<4x8x1xf32>
    %c0_29 = arith.constant 0 : index
    %c0_30 = arith.constant 0 : index
    %c0_31 = arith.constant 0 : index
    %53 = vector.load %arg21[%c0_29, %c0_30, %c0_31] : memref<4x8x1xf32, #tpu.memory_space<vmem>>, vector<4x8x1xf32>
    tpu.vector_store %arg21[%c0_29, %c0_30, %c0_31], %52 {strides = array<i32>} : memref<4x8x1xf32, #tpu.memory_space<vmem>>, vector<4x8x1xf32>,
    %54 = arith.truncf %47 : vector<4x8x16xf32> to vector<4x8x16xbf16>
    %cst_32 = arith.constant dense<0.000000e+00> : vector<4x8x16xf32>
    %55 = tpu.matmul %54, %31, %cst_32 {dimension_numbers = #tpu.dot_dimension_numbers<[2], [2], [1], [1], [0, 0, 0, 1, 1, 1], [0], [0]>} : vector<4x8x16xbf16>, vector<4x16x16xbf16>, vector<4x8x16xf32> -> vector<4x8x16xf32>
    %c0_33 = arith.constant 0 : index
    %c0_34 = arith.constant 0 : index
    %c0_35 = arith.constant 0 : index
    %56 = vector.load %arg22[%c0_33, %c0_34, %c0_35] : memref<4x8x16xf32, #tpu.memory_space<vmem>>, vector<4x8x16xf32>
    %57 = vector.broadcast %44 : vector<4x8x1xf32> to vector<4x8x16xf32>
    %58 = arith.mulf %57, %56 : vector<4x8x16xf32>
    %59 = arith.addf %58, %55 : vector<4x8x16xf32>
    %c0_36 = arith.constant 0 : index
    %c0_37 = arith.constant 0 : index
    %c0_38 = arith.constant 0 : index
    %60 = vector.load %arg22[%c0_36, %c0_37, %c0_38] : memref<4x8x16xf32, #tpu.memory_space<vmem>>, vector<4x8x16xf32>
    tpu.vector_store %arg22[%c0_36, %c0_37, %c0_38], %59 {strides = array<i32>} : memref<4x8x16xf32, #tpu.memory_space<vmem>>, vector<4x8x16xf32>,
    %c0_39 = arith.constant 0 : index
    %c0_40 = arith.constant 0 : index
    %c0_41 = arith.constant 0 : index
    %61 = vector.load %arg20[%c0_39, %c0_40, %c0_41] : memref<4x8x1xf32, #tpu.memory_space<vmem>>, vector<4x8x1xf32>
    tpu.vector_store %arg20[%c0_39, %c0_40, %c0_41], %42 {strides = array<i32>} : memref<4x8x1xf32, #tpu.memory_space<vmem>>, vector<4x8x1xf32>,
    %c2_i32 = arith.constant 2 : i32
    %62 = arith.cmpi eq, %arg2, %c2_i32 : i32
    %63 = arith.extui %62 : i1 to i32
    %c0_i32_42 = arith.constant 0 : i32
    %64 = arith.cmpi ne, %63, %c0_i32_42 : i32
    scf.if %64 {
      %c0_43 = arith.constant 0 : index
      %c0_44 = arith.constant 0 : index
      %c0_45 = arith.constant 0 : index
      %65 = vector.load %arg22[%c0_43, %c0_44, %c0_45] : memref<4x8x16xf32, #tpu.memory_space<vmem>>, vector<4x8x16xf32>
      %c0_46 = arith.constant 0 : index
      %c0_47 = arith.constant 0 : index
      %c0_48 = arith.constant 0 : index
      %66 = vector.load %arg21[%c0_46, %c0_47, %c0_48] : memref<4x8x1xf32, #tpu.memory_space<vmem>>, vector<4x8x1xf32>
      %67 = tpu.reciprocal %66 {approx = true} : vector<4x8x1xf32> -> vector<4x8x1xf32>
      %68 = vector.broadcast %67 : vector<4x8x1xf32> to vector<4x8x16xf32>
      %69 = arith.mulf %65, %68 : vector<4x8x16xf32>
      %70 = arith.truncf %69 : vector<4x8x16xf32> to vector<4x8x16xbf16>
      %c0_49 = arith.constant 0 : index
      %c0_50 = arith.constant 0 : index
      %c0_51 = arith.constant 0 : index
      %71 = vector.load %arg13[%c0_49, %c0_50, %c0_51] : memref<4x16x128xbf16, #tpu.memory_space<vmem>>, vector<4x16x128xbf16>
      %cst_52 = arith.constant dense<0.000000e+00> : vector<4x8x128xf32>
      %72 = tpu.matmul %70, %71, %cst_52 {dimension_numbers = #tpu.dot_dimension_numbers<[2], [1], [1], [2], [0, 0, 0, 1, 1, 2], [0], [0]>} : vector<4x8x16xbf16>, vector<4x16x128xbf16>, vector<4x8x128xf32> -> vector<4x8x128xf32>
      %cst_53 = arith.constant dense<0.000000e+00> : vector<8x128xf32>
      %73 = vector.multi_reduction <add>, %72, %cst_53 [0] : vector<4x8x128xf32> to vector<8x128xf32>
      %c0_54 = arith.constant 0 : index
      %c0_55 = arith.constant 0 : index
      %74 = vector.load %arg14[%c0_54, %c0_55] : memref<1x128xf32, #tpu.memory_space<vmem>>, vector<1x128xf32>
      %75 = vector.broadcast %74 : vector<1x128xf32> to vector<8x128xf32>
      %76 = arith.addf %73, %75 : vector<8x128xf32>
      %c0_56 = arith.constant 0 : index
      %c0_57 = arith.constant 0 : index
      %c0_58 = arith.constant 0 : index
      %77 = vector.load %arg15[%c0_56, %c0_57, %c0_58] : memref<1x8x128xbf16, #tpu.memory_space<vmem>>, vector<1x8x128xbf16>
      %78 = vector.shape_cast %77 : vector<1x8x128xbf16> to vector<8x128xbf16>
      %79 = arith.extf %78 : vector<8x128xbf16> to vector<8x128xf32>
      %80 = arith.addf %76, %79 : vector<8x128xf32>
      %c0_59 = arith.constant 0 : index
      %c0_60 = arith.constant 0 : index
      %81 = vector.load %arg16[%c0_59, %c0_60] : memref<1x128xf32, #tpu.memory_space<vmem>>, vector<1x128xf32>
      %c0_61 = arith.constant 0 : index
      %c0_62 = arith.constant 0 : index
      %82 = vector.load %arg17[%c0_61, %c0_62] : memref<1x128xf32, #tpu.memory_space<vmem>>, vector<1x128xf32>
      %cst_63 = arith.constant dense<0.000000e+00> : vector<8xf32>
      %83 = vector.multi_reduction <add>, %80, %cst_63 [1] : vector<8x128xf32> to vector<8xf32>
      %84 = vector.shape_cast %83 : vector<8xf32> to vector<8x1xf32>
      %cst_64 = arith.constant 1.280000e+02 : f32
      %85 = vector.broadcast %cst_64 : f32 to vector<8x1xf32>
      %86 = arith.divf %84, %85 : vector<8x1xf32>
      %87 = vector.broadcast %86 : vector<8x1xf32> to vector<8x128xf32>
      %88 = arith.subf %80, %87 : vector<8x128xf32>
      %89 = arith.mulf %88, %88 : vector<8x128xf32>
      %cst_65 = arith.constant dense<0.000000e+00> : vector<8xf32>
      %90 = vector.multi_reduction <add>, %89, %cst_65 [1] : vector<8x128xf32> to vector<8xf32>
      %91 = vector.shape_cast %90 : vector<8xf32> to vector<8x1xf32>
      %cst_66 = arith.constant 1.280000e+02 : f32
      %92 = vector.broadcast %cst_66 : f32 to vector<8x1xf32>
      %93 = arith.divf %91, %92 : vector<8x1xf32>
      %cst_67 = arith.constant 9.99999974E-6 : f32
      %94 = vector.broadcast %cst_67 : f32 to vector<8x1xf32>
      %95 = arith.addf %93, %94 : vector<8x1xf32>
      %96 = math.rsqrt %95 : vector<8x1xf32>
      %97 = vector.broadcast %96 : vector<8x1xf32> to vector<8x128xf32>
      %98 = arith.mulf %88, %97 : vector<8x128xf32>
      %99 = vector.broadcast %81 : vector<1x128xf32> to vector<8x128xf32>
      %100 = arith.mulf %98, %99 : vector<8x128xf32>
      %101 = vector.broadcast %82 : vector<1x128xf32> to vector<8x128xf32>
      %102 = arith.addf %100, %101 : vector<8x128xf32>
      %103 = arith.truncf %102 : vector<8x128xf32> to vector<8x128xbf16>
      %c0_68 = arith.constant 0 : index
      %c0_69 = arith.constant 0 : index
      %c0_70 = arith.constant 0 : index
      %104 = vector.load %arg18[%c0_68, %c0_69, %c0_70] : memref<1x8x128xbf16, #tpu.memory_space<vmem>>, vector<1x8x128xbf16>
      %105 = vector.shape_cast %104 : vector<1x8x128xbf16> to vector<8x128xbf16>
      %106 = vector.shape_cast %103 : vector<8x128xbf16> to vector<1x8x128xbf16>
      tpu.vector_store %arg18[%c0_68, %c0_69, %c0_70], %106 {strides = array<i32>} : memref<1x8x128xbf16, #tpu.memory_space<vmem>>, vector<1x8x128xbf16>,
    } else {
    }
    return
  }
  func.func @transform_0(%arg0: i32, %arg1: i32, %arg2: i32) -> (i32, i32, i32) {
    %c0_i32 = arith.constant 0 : i32
    %c0_i32_0 = arith.constant 0 : i32
    return %arg0, %arg1, %c0_i32 : i32, i32, i32
  }
  func.func @transform_1(%arg0: i32, %arg1: i32, %arg2: i32) -> (i32, i32, i32) {
    %c0_i32 = arith.constant 0 : i32
    %c0_i32_0 = arith.constant 0 : i32
    return %arg0, %arg1, %c0_i32 : i32, i32, i32
  }
  func.func @transform_2(%arg0: i32, %arg1: i32, %arg2: i32) -> (i32, i32, i32) {
    %c0_i32 = arith.constant 0 : i32
    %c0_i32_0 = arith.constant 0 : i32
    return %arg0, %arg2, %c0_i32 : i32, i32, i32
  }
  func.func @transform_3(%arg0: i32, %arg1: i32, %arg2: i32) -> (i32, i32, i32) {
    %c0_i32 = arith.constant 0 : i32
    %c0_i32_0 = arith.constant 0 : i32
    return %arg0, %arg2, %c0_i32 : i32, i32, i32
  }
  func.func @transform_4(%arg0: i32, %arg1: i32, %arg2: i32) -> (i32, i32, i32) {
    %c0_i32 = arith.constant 0 : i32
    %c0_i32_0 = arith.constant 0 : i32
    %c0_i32_1 = arith.constant 0 : i32
    %c0_i32_2 = arith.constant 0 : i32
    return %c0_i32, %c0_i32_0, %c0_i32_1 : i32, i32, i32
  }
  func.func @transform_5(%arg0: i32, %arg1: i32, %arg2: i32) -> (i32, i32, i32) {
    %c0_i32 = arith.constant 0 : i32
    %c0_i32_0 = arith.constant 0 : i32
    %c0_i32_1 = arith.constant 0 : i32
    %c0_i32_2 = arith.constant 0 : i32
    return %c0_i32, %c0_i32_0, %c0_i32_1 : i32, i32, i32
  }
  func.func @transform_6(%arg0: i32, %arg1: i32, %arg2: i32) -> (i32, i32) {
    %c0_i32 = arith.constant 0 : i32
    %c0_i32_0 = arith.constant 0 : i32
    %c0_i32_1 = arith.constant 0 : i32
    return %c0_i32, %c0_i32_0 : i32, i32
  }
  func.func @transform_7(%arg0: i32, %arg1: i32, %arg2: i32) -> (i32, i32) {
    %c0_i32 = arith.constant 0 : i32
    %c0_i32_0 = arith.constant 0 : i32
    %c0_i32_1 = arith.constant 0 : i32
    return %c0_i32, %c0_i32_0 : i32, i32
  }
  func.func @transform_8(%arg0: i32, %arg1: i32, %arg2: i32) -> (i32, i32) {
    %c0_i32 = arith.constant 0 : i32
    %c0_i32_0 = arith.constant 0 : i32
    %c0_i32_1 = arith.constant 0 : i32
    return %c0_i32, %c0_i32_0 : i32, i32
  }
  func.func @transform_9(%arg0: i32, %arg1: i32, %arg2: i32) -> (i32, i32) {
    %c0_i32 = arith.constant 0 : i32
    %c0_i32_0 = arith.constant 0 : i32
    %c0_i32_1 = arith.constant 0 : i32
    return %c0_i32, %c0_i32_0 : i32, i32
  }
  func.func @transform_10(%arg0: i32, %arg1: i32, %arg2: i32) -> (i32, i32, i32) {
    %c0_i32 = arith.constant 0 : i32
    %c0_i32_0 = arith.constant 0 : i32
    %c0_i32_1 = arith.constant 0 : i32
    %c0_i32_2 = arith.constant 0 : i32
    return %c0_i32, %c0_i32_0, %c0_i32_1 : i32, i32, i32
  }
  func.func @transform_11(%arg0: i32, %arg1: i32, %arg2: i32) -> (i32, i32) {
    %c0_i32 = arith.constant 0 : i32
    %c0_i32_0 = arith.constant 0 : i32
    %c0_i32_1 = arith.constant 0 : i32
    return %c0_i32, %c0_i32_0 : i32, i32
  }
  func.func @transform_12(%arg0: i32, %arg1: i32, %arg2: i32) -> (i32, i32, i32) {
    %c0_i32 = arith.constant 0 : i32
    %c0_i32_0 = arith.constant 0 : i32
    return %arg0, %arg1, %c0_i32 : i32, i32, i32
  }
  func.func @transform_13(%arg0: i32, %arg1: i32, %arg2: i32) -> (i32, i32) {
    %c0_i32 = arith.constant 0 : i32
    %c0_i32_0 = arith.constant 0 : i32
    %c0_i32_1 = arith.constant 0 : i32
    return %c0_i32, %c0_i32_0 : i32, i32
  }
  func.func @transform_14(%arg0: i32, %arg1: i32, %arg2: i32) -> (i32, i32) {
    %c0_i32 = arith.constant 0 : i32
    %c0_i32_0 = arith.constant 0 : i32
    %c0_i32_1 = arith.constant 0 : i32
    return %c0_i32, %c0_i32_0 : i32, i32
  }
  func.func @transform_15(%arg0: i32, %arg1: i32, %arg2: i32) -> (i32, i32, i32) {
    %c0_i32 = arith.constant 0 : i32
    %c0_i32_0 = arith.constant 0 : i32
    return %arg0, %arg1, %c0_i32 : i32, i32, i32
  }
}

module attributes {stable_mosaic.version = 11 : i64} {
  func.func @_mlp_ln_kernel(%arg0: i32, %arg1: memref<16x128xbf16, #tpu.memory_space<vmem>>, %arg2: memref<128x256xbf16, #tpu.memory_space<vmem>>, %arg3: memref<1x256xf32, #tpu.memory_space<vmem>>, %arg4: memref<256x128xbf16, #tpu.memory_space<vmem>>, %arg5: memref<1x128xf32, #tpu.memory_space<vmem>>, %arg6: memref<1x128xf32, #tpu.memory_space<vmem>>, %arg7: memref<1x128xf32, #tpu.memory_space<vmem>>, %arg8: memref<16x128xbf16, #tpu.memory_space<vmem>>) attributes {dimension_semantics = [#tpu.dimension_semantics<parallel>], iteration_bounds = array<i64: 1>, scalar_prefetch = 0 : i64, scratch_operands = 0 : i64, tpu.core_type = #tpu.core_type<tc>, window_params = [{transform_indices = @transform_0, window_bounds = array<i64: 16, 128>}, {pipeline_mode = #tpu.pipeline_mode<synchronous>, transform_indices = @transform_1, window_bounds = array<i64: 128, 256>}, {pipeline_mode = #tpu.pipeline_mode<synchronous>, transform_indices = @transform_2, window_bounds = array<i64: 1, 256>}, {pipeline_mode = #tpu.pipeline_mode<synchronous>, transform_indices = @transform_3, window_bounds = array<i64: 256, 128>}, {pipeline_mode = #tpu.pipeline_mode<synchronous>, transform_indices = @transform_4, window_bounds = array<i64: 1, 128>}, {pipeline_mode = #tpu.pipeline_mode<synchronous>, transform_indices = @transform_5, window_bounds = array<i64: 1, 128>}, {pipeline_mode = #tpu.pipeline_mode<synchronous>, transform_indices = @transform_6, window_bounds = array<i64: 1, 128>}, {transform_indices = @transform_7, window_bounds = array<i64: 16, 128>}]} {
    %c0 = arith.constant 0 : index
    %c0_0 = arith.constant 0 : index
    %0 = vector.load %arg1[%c0, %c0_0] : memref<16x128xbf16, #tpu.memory_space<vmem>>, vector<16x128xbf16>
    %c0_1 = arith.constant 0 : index
    %c0_2 = arith.constant 0 : index
    %1 = vector.load %arg2[%c0_1, %c0_2] : memref<128x256xbf16, #tpu.memory_space<vmem>>, vector<128x256xbf16>
    %cst = arith.constant dense<0.000000e+00> : vector<16x256xf32>
    %2 = tpu.matmul %0, %1, %cst {dimension_numbers = #tpu.dot_dimension_numbers<[1], [0], [0], [1], [0, 0, 1, 1], [], []>} : vector<16x128xbf16>, vector<128x256xbf16>, vector<16x256xf32> -> vector<16x256xf32>
    %c0_3 = arith.constant 0 : index
    %c0_4 = arith.constant 0 : index
    %3 = vector.load %arg3[%c0_3, %c0_4] : memref<1x256xf32, #tpu.memory_space<vmem>>, vector<1x256xf32>
    %4 = vector.broadcast %3 : vector<1x256xf32> to vector<16x256xf32>
    %5 = arith.addf %2, %4 : vector<16x256xf32>
    %cst_5 = arith.constant 0.000000e+00 : f32
    %6 = vector.broadcast %cst_5 : f32 to vector<16x256xf32>
    %7 = arith.maximumf %5, %6 : vector<16x256xf32>
    %8 = arith.truncf %7 : vector<16x256xf32> to vector<16x256xbf16>
    %c0_6 = arith.constant 0 : index
    %c0_7 = arith.constant 0 : index
    %9 = vector.load %arg4[%c0_6, %c0_7] : memref<256x128xbf16, #tpu.memory_space<vmem>>, vector<256x128xbf16>
    %cst_8 = arith.constant dense<0.000000e+00> : vector<16x128xf32>
    %10 = tpu.matmul %8, %9, %cst_8 {dimension_numbers = #tpu.dot_dimension_numbers<[1], [0], [0], [1], [0, 0, 1, 1], [], []>} : vector<16x256xbf16>, vector<256x128xbf16>, vector<16x128xf32> -> vector<16x128xf32>
    %c0_9 = arith.constant 0 : index
    %c0_10 = arith.constant 0 : index
    %11 = vector.load %arg5[%c0_9, %c0_10] : memref<1x128xf32, #tpu.memory_space<vmem>>, vector<1x128xf32>
    %12 = vector.broadcast %11 : vector<1x128xf32> to vector<16x128xf32>
    %13 = arith.addf %10, %12 : vector<16x128xf32>
    %14 = arith.extf %0 : vector<16x128xbf16> to vector<16x128xf32>
    %15 = arith.addf %13, %14 : vector<16x128xf32>
    %c0_11 = arith.constant 0 : index
    %c0_12 = arith.constant 0 : index
    %16 = vector.load %arg6[%c0_11, %c0_12] : memref<1x128xf32, #tpu.memory_space<vmem>>, vector<1x128xf32>
    %c0_13 = arith.constant 0 : index
    %c0_14 = arith.constant 0 : index
    %17 = vector.load %arg7[%c0_13, %c0_14] : memref<1x128xf32, #tpu.memory_space<vmem>>, vector<1x128xf32>
    %cst_15 = arith.constant dense<0.000000e+00> : vector<16xf32>
    %18 = vector.multi_reduction <add>, %15, %cst_15 [1] : vector<16x128xf32> to vector<16xf32>
    %19 = vector.shape_cast %18 : vector<16xf32> to vector<16x1xf32>
    %cst_16 = arith.constant 1.280000e+02 : f32
    %20 = vector.broadcast %cst_16 : f32 to vector<16x1xf32>
    %21 = arith.divf %19, %20 : vector<16x1xf32>
    %22 = vector.broadcast %21 : vector<16x1xf32> to vector<16x128xf32>
    %23 = arith.subf %15, %22 : vector<16x128xf32>
    %24 = arith.mulf %23, %23 : vector<16x128xf32>
    %cst_17 = arith.constant dense<0.000000e+00> : vector<16xf32>
    %25 = vector.multi_reduction <add>, %24, %cst_17 [1] : vector<16x128xf32> to vector<16xf32>
    %26 = vector.shape_cast %25 : vector<16xf32> to vector<16x1xf32>
    %cst_18 = arith.constant 1.280000e+02 : f32
    %27 = vector.broadcast %cst_18 : f32 to vector<16x1xf32>
    %28 = arith.divf %26, %27 : vector<16x1xf32>
    %cst_19 = arith.constant 9.99999974E-6 : f32
    %29 = vector.broadcast %cst_19 : f32 to vector<16x1xf32>
    %30 = arith.addf %28, %29 : vector<16x1xf32>
    %31 = math.rsqrt %30 : vector<16x1xf32>
    %32 = vector.broadcast %31 : vector<16x1xf32> to vector<16x128xf32>
    %33 = arith.mulf %23, %32 : vector<16x128xf32>
    %34 = vector.broadcast %16 : vector<1x128xf32> to vector<16x128xf32>
    %35 = arith.mulf %33, %34 : vector<16x128xf32>
    %36 = vector.broadcast %17 : vector<1x128xf32> to vector<16x128xf32>
    %37 = arith.addf %35, %36 : vector<16x128xf32>
    %38 = arith.truncf %37 : vector<16x128xf32> to vector<16x128xbf16>
    %c0_20 = arith.constant 0 : index
    %c0_21 = arith.constant 0 : index
    %39 = vector.load %arg8[%c0_20, %c0_21] : memref<16x128xbf16, #tpu.memory_space<vmem>>, vector<16x128xbf16>
    tpu.vector_store %arg8[%c0_20, %c0_21], %38 {strides = array<i32>} : memref<16x128xbf16, #tpu.memory_space<vmem>>, vector<16x128xbf16>,
    return
  }
  func.func @transform_0(%arg0: i32) -> (i32, i32) {
    %c0_i32 = arith.constant 0 : i32
    %c0_i32_0 = arith.constant 0 : i32
    return %arg0, %c0_i32 : i32, i32
  }
  func.func @transform_1(%arg0: i32) -> (i32, i32) {
    %c0_i32 = arith.constant 0 : i32
    %c0_i32_0 = arith.constant 0 : i32
    %c0_i32_1 = arith.constant 0 : i32
    return %c0_i32, %c0_i32_0 : i32, i32
  }
  func.func @transform_2(%arg0: i32) -> (i32, i32) {
    %c0_i32 = arith.constant 0 : i32
    %c0_i32_0 = arith.constant 0 : i32
    %c0_i32_1 = arith.constant 0 : i32
    return %c0_i32, %c0_i32_0 : i32, i32
  }
  func.func @transform_3(%arg0: i32) -> (i32, i32) {
    %c0_i32 = arith.constant 0 : i32
    %c0_i32_0 = arith.constant 0 : i32
    %c0_i32_1 = arith.constant 0 : i32
    return %c0_i32, %c0_i32_0 : i32, i32
  }
  func.func @transform_4(%arg0: i32) -> (i32, i32) {
    %c0_i32 = arith.constant 0 : i32
    %c0_i32_0 = arith.constant 0 : i32
    %c0_i32_1 = arith.constant 0 : i32
    return %c0_i32, %c0_i32_0 : i32, i32
  }
  func.func @transform_5(%arg0: i32) -> (i32, i32) {
    %c0_i32 = arith.constant 0 : i32
    %c0_i32_0 = arith.constant 0 : i32
    %c0_i32_1 = arith.constant 0 : i32
    return %c0_i32, %c0_i32_0 : i32, i32
  }
  func.func @transform_6(%arg0: i32) -> (i32, i32) {
    %c0_i32 = arith.constant 0 : i32
    %c0_i32_0 = arith.constant 0 : i32
    %c0_i32_1 = arith.constant 0 : i32
    return %c0_i32, %c0_i32_0 : i32, i32
  }
  func.func @transform_7(%arg0: i32) -> (i32, i32) {
    %c0_i32 = arith.constant 0 : i32
    %c0_i32_0 = arith.constant 0 : i32
    return %arg0, %c0_i32 : i32, i32
  }
}

module attributes {stable_mosaic.version = 11 : i64} {
  func.func @kernel(%arg0: i32, %arg1: i32, %arg2: i32, %arg3: memref<1x16x128xbf16, #tpu.memory_space<vmem>>, %arg4: memref<1x16x128xbf16, #tpu.memory_space<vmem>>, %arg5: memref<1x8x128xbf16, #tpu.memory_space<vmem>>, %arg6: memref<1x8x128xbf16, #tpu.memory_space<vmem>>, %arg7: memref<4x128x16xbf16, #tpu.memory_space<vmem>>, %arg8: memref<4x1x16xf32, #tpu.memory_space<vmem>>, %arg9: memref<64x128xbf16, #tpu.memory_space<vmem>>, %arg10: memref<64x1xf32, #tpu.memory_space<vmem>>, %arg11: memref<64x128xbf16, #tpu.memory_space<vmem>>, %arg12: memref<64x1xf32, #tpu.memory_space<vmem>>, %arg13: memref<4x16x128xbf16, #tpu.memory_space<vmem>>, %arg14: memref<1x128xf32, #tpu.memory_space<vmem>>, %arg15: memref<1x16x128xbf16, #tpu.memory_space<vmem>>, %arg16: memref<1x128xf32, #tpu.memory_space<vmem>>, %arg17: memref<1x128xf32, #tpu.memory_space<vmem>>, %arg18: memref<1x16x128xbf16, #tpu.memory_space<vmem>>, %arg19: memref<4x16x16xbf16, #tpu.memory_space<vmem>>, %arg20: memref<4x16x1xf32, #tpu.memory_space<vmem>>, %arg21: memref<4x16x1xf32, #tpu.memory_space<vmem>>, %arg22: memref<4x16x16xf32, #tpu.memory_space<vmem>>) attributes {dimension_semantics = [#tpu.dimension_semantics<parallel>, #tpu.dimension_semantics<parallel>, #tpu.dimension_semantics<arbitrary>], iteration_bounds = array<i64: 2, 3, 1>, scalar_prefetch = 0 : i64, scratch_operands = 4 : i64, tpu.core_type = #tpu.core_type<tc>, window_params = [{transform_indices = @transform_0, window_bounds = array<i64: 1, 16, 128>}, {transform_indices = @transform_1, window_bounds = array<i64: 1, 16, 128>}, {transform_indices = @transform_2, window_bounds = array<i64: 1, 8, 128>}, {transform_indices = @transform_3, window_bounds = array<i64: 1, 8, 128>}, {pipeline_mode = #tpu.pipeline_mode<synchronous>, transform_indices = @transform_4, window_bounds = array<i64: 4, 128, 16>}, {pipeline_mode = #tpu.pipeline_mode<synchronous>, transform_indices = @transform_5, window_bounds = array<i64: 4, 1, 16>}, {pipeline_mode = #tpu.pipeline_mode<synchronous>, transform_indices = @transform_6, window_bounds = array<i64: 64, 128>}, {pipeline_mode = #tpu.pipeline_mode<synchronous>, transform_indices = @transform_7, window_bounds = array<i64: 64, 1>}, {pipeline_mode = #tpu.pipeline_mode<synchronous>, transform_indices = @transform_8, window_bounds = array<i64: 64, 128>}, {pipeline_mode = #tpu.pipeline_mode<synchronous>, transform_indices = @transform_9, window_bounds = array<i64: 64, 1>}, {pipeline_mode = #tpu.pipeline_mode<synchronous>, transform_indices = @transform_10, window_bounds = array<i64: 4, 16, 128>}, {pipeline_mode = #tpu.pipeline_mode<synchronous>, transform_indices = @transform_11, window_bounds = array<i64: 1, 128>}, {transform_indices = @transform_12, window_bounds = array<i64: 1, 16, 128>}, {pipeline_mode = #tpu.pipeline_mode<synchronous>, transform_indices = @transform_13, window_bounds = array<i64: 1, 128>}, {pipeline_mode = #tpu.pipeline_mode<synchronous>, transform_indices = @transform_14, window_bounds = array<i64: 1, 128>}, {transform_indices = @transform_15, window_bounds = array<i64: 1, 16, 128>}]} {
    %c0_i32 = arith.constant 0 : i32
    %0 = arith.cmpi eq, %arg2, %c0_i32 : i32
    %1 = arith.extui %0 : i1 to i32
    %c0_i32_0 = arith.constant 0 : i32
    %2 = arith.cmpi ne, %1, %c0_i32_0 : i32
    scf.if %2 {
      %c0_42 = arith.constant 0 : index
      %c0_43 = arith.constant 0 : index
      %c0_44 = arith.constant 0 : index
      %50 = vector.load %arg3[%c0_42, %c0_43, %c0_44] : memref<1x16x128xbf16, #tpu.memory_space<vmem>>, vector<1x16x128xbf16>
      %51 = vector.shape_cast %50 : vector<1x16x128xbf16> to vector<16x128xbf16>
      %c0_45 = arith.constant 0 : index
      %c0_46 = arith.constant 0 : index
      %c0_47 = arith.constant 0 : index
      %52 = vector.load %arg4[%c0_45, %c0_46, %c0_47] : memref<1x16x128xbf16, #tpu.memory_space<vmem>>, vector<1x16x128xbf16>
      %53 = vector.shape_cast %52 : vector<1x16x128xbf16> to vector<16x128xbf16>
      %54 = arith.addf %51, %53 : vector<16x128xbf16>
      %c0_48 = arith.constant 0 : index
      %c0_49 = arith.constant 0 : index
      %c0_50 = arith.constant 0 : index
      %55 = vector.load %arg7[%c0_48, %c0_49, %c0_50] : memref<4x128x16xbf16, #tpu.memory_space<vmem>>, vector<1x128x16xbf16>
      %56 = vector.shape_cast %55 : vector<1x128x16xbf16> to vector<128x16xbf16>
      %cst_51 = arith.constant dense<0.000000e+00> : vector<16x16xf32>
      %57 = tpu.matmul %54, %56, %cst_51 {dimension_numbers = #tpu.dot_dimension_numbers<[1], [0], [0], [1], [0, 0, 1, 1], [], []>} : vector<16x128xbf16>, vector<128x16xbf16>, vector<16x16xf32> -> vector<16x16xf32>
      %c0_52 = arith.constant 0 : index
      %c0_53 = arith.constant 0 : index
      %c0_54 = arith.constant 0 : index
      %58 = vector.load %arg8[%c0_52, %c0_53, %c0_54] : memref<4x1x16xf32, #tpu.memory_space<vmem>>, vector<1x1x16xf32>
      %59 = vector.shape_cast %58 : vector<1x1x16xf32> to vector<1x16xf32>
      %60 = vector.broadcast %59 : vector<1x16xf32> to vector<16x16xf32>
      %61 = arith.addf %57, %60 : vector<16x16xf32>
      %cst_55 = arith.constant 2.500000e-01 : f32
      %62 = vector.broadcast %cst_55 : f32 to vector<16x16xf32>
      %63 = arith.mulf %61, %62 : vector<16x16xf32>
      %64 = arith.truncf %63 : vector<16x16xf32> to vector<16x16xbf16>
      %c0_56 = arith.constant 0 : index
      %c0_57 = arith.constant 0 : index
      %c0_58 = arith.constant 0 : index
      %65 = vector.load %arg19[%c0_56, %c0_57, %c0_58] : memref<4x16x16xbf16, #tpu.memory_space<vmem>>, vector<1x16x16xbf16>
      %66 = vector.shape_cast %65 : vector<1x16x16xbf16> to vector<16x16xbf16>
      %67 = vector.shape_cast %64 : vector<16x16xbf16> to vector<1x16x16xbf16>
      tpu.vector_store %arg19[%c0_56, %c0_57, %c0_58], %67 {strides = array<i32>} : memref<4x16x16xbf16, #tpu.memory_space<vmem>>, vector<1x16x16xbf16>,
      %c1 = arith.constant 1 : index
      %c0_59 = arith.constant 0 : index
      %c0_60 = arith.constant 0 : index
      %68 = vector.load %arg7[%c1, %c0_59, %c0_60] : memref<4x128x16xbf16, #tpu.memory_space<vmem>>, vector<1x128x16xbf16>
      %69 = vector.shape_cast %68 : vector<1x128x16xbf16> to vector<128x16xbf16>
      %cst_61 = arith.constant dense<0.000000e+00> : vector<16x16xf32>
      %70 = tpu.matmul %54, %69, %cst_61 {dimension_numbers = #tpu.dot_dimension_numbers<[1], [0], [0], [1], [0, 0, 1, 1], [], []>} : vector<16x128xbf16>, vector<128x16xbf16>, vector<16x16xf32> -> vector<16x16xf32>
      %c1_62 = arith.constant 1 : index
      %c0_63 = arith.constant 0 : index
      %c0_64 = arith.constant 0 : index
      %71 = vector.load %arg8[%c1_62, %c0_63, %c0_64] : memref<4x1x16xf32, #tpu.memory_space<vmem>>, vector<1x1x16xf32>
      %72 = vector.shape_cast %71 : vector<1x1x16xf32> to vector<1x16xf32>
      %73 = vector.broadcast %72 : vector<1x16xf32> to vector<16x16xf32>
      %74 = arith.addf %70, %73 : vector<16x16xf32>
      %cst_65 = arith.constant 2.500000e-01 : f32
      %75 = vector.broadcast %cst_65 : f32 to vector<16x16xf32>
      %76 = arith.mulf %74, %75 : vector<16x16xf32>
      %77 = arith.truncf %76 : vector<16x16xf32> to vector<16x16xbf16>
      %c1_66 = arith.constant 1 : index
      %c0_67 = arith.constant 0 : index
      %c0_68 = arith.constant 0 : index
      %78 = vector.load %arg19[%c1_66, %c0_67, %c0_68] : memref<4x16x16xbf16, #tpu.memory_space<vmem>>, vector<1x16x16xbf16>
      %79 = vector.shape_cast %78 : vector<1x16x16xbf16> to vector<16x16xbf16>
      %80 = vector.shape_cast %77 : vector<16x16xbf16> to vector<1x16x16xbf16>
      tpu.vector_store %arg19[%c1_66, %c0_67, %c0_68], %80 {strides = array<i32>} : memref<4x16x16xbf16, #tpu.memory_space<vmem>>, vector<1x16x16xbf16>,
      %c2 = arith.constant 2 : index
      %c0_69 = arith.constant 0 : index
      %c0_70 = arith.constant 0 : index
      %81 = vector.load %arg7[%c2, %c0_69, %c0_70] : memref<4x128x16xbf16, #tpu.memory_space<vmem>>, vector<1x128x16xbf16>
      %82 = vector.shape_cast %81 : vector<1x128x16xbf16> to vector<128x16xbf16>
      %cst_71 = arith.constant dense<0.000000e+00> : vector<16x16xf32>
      %83 = tpu.matmul %54, %82, %cst_71 {dimension_numbers = #tpu.dot_dimension_numbers<[1], [0], [0], [1], [0, 0, 1, 1], [], []>} : vector<16x128xbf16>, vector<128x16xbf16>, vector<16x16xf32> -> vector<16x16xf32>
      %c2_72 = arith.constant 2 : index
      %c0_73 = arith.constant 0 : index
      %c0_74 = arith.constant 0 : index
      %84 = vector.load %arg8[%c2_72, %c0_73, %c0_74] : memref<4x1x16xf32, #tpu.memory_space<vmem>>, vector<1x1x16xf32>
      %85 = vector.shape_cast %84 : vector<1x1x16xf32> to vector<1x16xf32>
      %86 = vector.broadcast %85 : vector<1x16xf32> to vector<16x16xf32>
      %87 = arith.addf %83, %86 : vector<16x16xf32>
      %cst_75 = arith.constant 2.500000e-01 : f32
      %88 = vector.broadcast %cst_75 : f32 to vector<16x16xf32>
      %89 = arith.mulf %87, %88 : vector<16x16xf32>
      %90 = arith.truncf %89 : vector<16x16xf32> to vector<16x16xbf16>
      %c2_76 = arith.constant 2 : index
      %c0_77 = arith.constant 0 : index
      %c0_78 = arith.constant 0 : index
      %91 = vector.load %arg19[%c2_76, %c0_77, %c0_78] : memref<4x16x16xbf16, #tpu.memory_space<vmem>>, vector<1x16x16xbf16>
      %92 = vector.shape_cast %91 : vector<1x16x16xbf16> to vector<16x16xbf16>
      %93 = vector.shape_cast %90 : vector<16x16xbf16> to vector<1x16x16xbf16>
      tpu.vector_store %arg19[%c2_76, %c0_77, %c0_78], %93 {strides = array<i32>} : memref<4x16x16xbf16, #tpu.memory_space<vmem>>, vector<1x16x16xbf16>,
      %c3 = arith.constant 3 : index
      %c0_79 = arith.constant 0 : index
      %c0_80 = arith.constant 0 : index
      %94 = vector.load %arg7[%c3, %c0_79, %c0_80] : memref<4x128x16xbf16, #tpu.memory_space<vmem>>, vector<1x128x16xbf16>
      %95 = vector.shape_cast %94 : vector<1x128x16xbf16> to vector<128x16xbf16>
      %cst_81 = arith.constant dense<0.000000e+00> : vector<16x16xf32>
      %96 = tpu.matmul %54, %95, %cst_81 {dimension_numbers = #tpu.dot_dimension_numbers<[1], [0], [0], [1], [0, 0, 1, 1], [], []>} : vector<16x128xbf16>, vector<128x16xbf16>, vector<16x16xf32> -> vector<16x16xf32>
      %c3_82 = arith.constant 3 : index
      %c0_83 = arith.constant 0 : index
      %c0_84 = arith.constant 0 : index
      %97 = vector.load %arg8[%c3_82, %c0_83, %c0_84] : memref<4x1x16xf32, #tpu.memory_space<vmem>>, vector<1x1x16xf32>
      %98 = vector.shape_cast %97 : vector<1x1x16xf32> to vector<1x16xf32>
      %99 = vector.broadcast %98 : vector<1x16xf32> to vector<16x16xf32>
      %100 = arith.addf %96, %99 : vector<16x16xf32>
      %cst_85 = arith.constant 2.500000e-01 : f32
      %101 = vector.broadcast %cst_85 : f32 to vector<16x16xf32>
      %102 = arith.mulf %100, %101 : vector<16x16xf32>
      %103 = arith.truncf %102 : vector<16x16xf32> to vector<16x16xbf16>
      %c3_86 = arith.constant 3 : index
      %c0_87 = arith.constant 0 : index
      %c0_88 = arith.constant 0 : index
      %104 = vector.load %arg19[%c3_86, %c0_87, %c0_88] : memref<4x16x16xbf16, #tpu.memory_space<vmem>>, vector<1x16x16xbf16>
      %105 = vector.shape_cast %104 : vector<1x16x16xbf16> to vector<16x16xbf16>
      %106 = vector.shape_cast %103 : vector<16x16xbf16> to vector<1x16x16xbf16>
      tpu.vector_store %arg19[%c3_86, %c0_87, %c0_88], %106 {strides = array<i32>} : memref<4x16x16xbf16, #tpu.memory_space<vmem>>, vector<1x16x16xbf16>,
      %cst_89 = arith.constant 0xFF800000 : f32
      %107 = vector.broadcast %cst_89 : f32 to vector<4x16x1xf32>
      %c0_90 = arith.constant 0 : index
      %c0_91 = arith.constant 0 : index
      %c0_92 = arith.constant 0 : index
      %108 = vector.load %arg20[%c0_90, %c0_91, %c0_92] : memref<4x16x1xf32, #tpu.memory_space<vmem>>, vector<4x16x1xf32>
      tpu.vector_store %arg20[%c0_90, %c0_91, %c0_92], %107 {strides = array<i32>} : memref<4x16x1xf32, #tpu.memory_space<vmem>>, vector<4x16x1xf32>,
      %cst_93 = arith.constant 0.000000e+00 : f32
      %109 = vector.broadcast %cst_93 : f32 to vector<4x16x1xf32>
      %c0_94 = arith.constant 0 : index
      %c0_95 = arith.constant 0 : index
      %c0_96 = arith.constant 0 : index
      %110 = vector.load %arg21[%c0_94, %c0_95, %c0_96] : memref<4x16x1xf32, #tpu.memory_space<vmem>>, vector<4x16x1xf32>
      tpu.vector_store %arg21[%c0_94, %c0_95, %c0_96], %109 {strides = array<i32>} : memref<4x16x1xf32, #tpu.memory_space<vmem>>, vector<4x16x1xf32>,
      %cst_97 = arith.constant 0.000000e+00 : f32
      %111 = vector.broadcast %cst_97 : f32 to vector<4x16x16xf32>
      %c0_98 = arith.constant 0 : index
      %c0_99 = arith.constant 0 : index
      %c0_100 = arith.constant 0 : index
      %112 = vector.load %arg22[%c0_98, %c0_99, %c0_100] : memref<4x16x16xf32, #tpu.memory_space<vmem>>, vector<4x16x16xf32>
      tpu.vector_store %arg22[%c0_98, %c0_99, %c0_100], %111 {strides = array<i32>} : memref<4x16x16xf32, #tpu.memory_space<vmem>>, vector<4x16x16xf32>,
    } else {
    }
    %c0 = arith.constant 0 : index
    %c0_1 = arith.constant 0 : index
    %c0_2 = arith.constant 0 : index
    %3 = vector.load %arg5[%c0, %c0_1, %c0_2] : memref<1x8x128xbf16, #tpu.memory_space<vmem>>, vector<1x8x128xbf16>
    %4 = vector.shape_cast %3 : vector<1x8x128xbf16> to vector<8x128xbf16>
    %c0_3 = arith.constant 0 : index
    %c0_4 = arith.constant 0 : index
    %c0_5 = arith.constant 0 : index
    %5 = vector.load %arg6[%c0_3, %c0_4, %c0_5] : memref<1x8x128xbf16, #tpu.memory_space<vmem>>, vector<1x8x128xbf16>
    %6 = vector.shape_cast %5 : vector<1x8x128xbf16> to vector<8x128xbf16>
    %7 = arith.addf %4, %6 : vector<8x128xbf16>
    %c0_6 = arith.constant 0 : index
    %c0_7 = arith.constant 0 : index
    %8 = vector.load %arg9[%c0_6, %c0_7] : memref<64x128xbf16, #tpu.memory_space<vmem>>, vector<64x128xbf16>
    %cst = arith.constant dense<0.000000e+00> : vector<64x8xf32>
    %9 = tpu.matmul %8, %7, %cst {dimension_numbers = #tpu.dot_dimension_numbers<[1], [1], [0], [0], [0, 0, 1, 0], [], []>} : vector<64x128xbf16>, vector<8x128xbf16>, vector<64x8xf32> -> vector<64x8xf32>
    %c0_8 = arith.constant 0 : index
    %c0_9 = arith.constant 0 : index
    %10 = vector.load %arg10[%c0_8, %c0_9] : memref<64x1xf32, #tpu.memory_space<vmem>>, vector<64x1xf32>
    %11 = vector.broadcast %10 : vector<64x1xf32> to vector<64x8xf32>
    %12 = arith.addf %9, %11 : vector<64x8xf32>
    %c0_10 = arith.constant 0 : index
    %c0_11 = arith.constant 0 : index
    %13 = vector.load %arg11[%c0_10, %c0_11] : memref<64x128xbf16, #tpu.memory_space<vmem>>, vector<64x128xbf16>
    %cst_12 = arith.constant dense<0.000000e+00> : vector<64x8xf32>
    %14 = tpu.matmul %13, %4, %cst_12 {dimension_numbers = #tpu.dot_dimension_numbers<[1], [1], [0], [0], [0, 0, 1, 0], [], []>} : vector<64x128xbf16>, vector<8x128xbf16>, vector<64x8xf32> -> vector<64x8xf32>
    %c0_13 = arith.constant 0 : index
    %c0_14 = arith.constant 0 : index
    %15 = vector.load %arg12[%c0_13, %c0_14] : memref<64x1xf32, #tpu.memory_space<vmem>>, vector<64x1xf32>
    %16 = vector.broadcast %15 : vector<64x1xf32> to vector<64x8xf32>
    %17 = arith.addf %14, %16 : vector<64x8xf32>
    %18 = arith.truncf %12 : vector<64x8xf32> to vector<64x8xbf16>
    %19 = vector.shape_cast %18 : vector<64x8xbf16> to vector<4x16x8xbf16>
    %20 = arith.truncf %17 : vector<64x8xf32> to vector<64x8xbf16>
    %21 = vector.shape_cast %20 : vector<64x8xbf16> to vector<4x16x8xbf16>
    %c0_15 = arith.constant 0 : index
    %c0_16 = arith.constant 0 : index
    %c0_17 = arith.constant 0 : index
    %22 = vector.load %arg19[%c0_15, %c0_16, %c0_17] : memref<4x16x16xbf16, #tpu.memory_space<vmem>>, vector<4x16x16xbf16>
    %cst_18 = arith.constant dense<0.000000e+00> : vector<4x16x8xf32>
    %23 = tpu.matmul %22, %19, %cst_18 {dimension_numbers = #tpu.dot_dimension_numbers<[2], [1], [1], [2], [0, 0, 0, 1, 1, 2], [0], [0]>} : vector<4x16x16xbf16>, vector<4x16x8xbf16>, vector<4x16x8xf32> -> vector<4x16x8xf32>
    %c0_19 = arith.constant 0 : index
    %c0_20 = arith.constant 0 : index
    %c0_21 = arith.constant 0 : index
    %24 = vector.load %arg20[%c0_19, %c0_20, %c0_21] : memref<4x16x1xf32, #tpu.memory_space<vmem>>, vector<4x16x1xf32>
    %cst_22 = arith.constant dense<0xFF800000> : vector<4x16xf32>
    %25 = vector.multi_reduction <maximumf>, %23, %cst_22 [2] : vector<4x16x8xf32> to vector<4x16xf32>
    %26 = vector.shape_cast %25 : vector<4x16xf32> to vector<4x16x1xf32>
    %27 = arith.maximumf %24, %26 : vector<4x16x1xf32>
    %28 = arith.subf %24, %27 : vector<4x16x1xf32>
    %29 = math.exp %28 : vector<4x16x1xf32>
    %30 = vector.broadcast %27 : vector<4x16x1xf32> to vector<4x16x8xf32>
    %31 = arith.subf %23, %30 : vector<4x16x8xf32>
    %32 = math.exp %31 : vector<4x16x8xf32>
    %c0_23 = arith.constant 0 : index
    %c0_24 = arith.constant 0 : index
    %c0_25 = arith.constant 0 : index
    %33 = vector.load %arg21[%c0_23, %c0_24, %c0_25] : memref<4x16x1xf32, #tpu.memory_space<vmem>>, vector<4x16x1xf32>
    %34 = arith.mulf %29, %33 : vector<4x16x1xf32>
    %cst_26 = arith.constant dense<0.000000e+00> : vector<4x16xf32>
    %35 = vector.multi_reduction <add>, %32, %cst_26 [2] : vector<4x16x8xf32> to vector<4x16xf32>
    %36 = vector.shape_cast %35 : vector<4x16xf32> to vector<4x16x1xf32>
    %37 = arith.addf %34, %36 : vector<4x16x1xf32>
    %c0_27 = arith.constant 0 : index
    %c0_28 = arith.constant 0 : index
    %c0_29 = arith.constant 0 : index
    %38 = vector.load %arg21[%c0_27, %c0_28, %c0_29] : memref<4x16x1xf32, #tpu.memory_space<vmem>>, vector<4x16x1xf32>
    tpu.vector_store %arg21[%c0_27, %c0_28, %c0_29], %37 {strides = array<i32>} : memref<4x16x1xf32, #tpu.memory_space<vmem>>, vector<4x16x1xf32>,
    %39 = arith.truncf %32 : vector<4x16x8xf32> to vector<4x16x8xbf16>
    %cst_30 = arith.constant dense<0.000000e+00> : vector<4x16x16xf32>
    %40 = tpu.matmul %39, %21, %cst_30 {dimension_numbers = #tpu.dot_dimension_numbers<[2], [2], [1], [1], [0, 0, 0, 1, 1, 1], [0], [0]>} : vector<4x16x8xbf16>, vector<4x16x8xbf16>, vector<4x16x16xf32> -> vector<4x16x16xf32>
    %c0_31 = arith.constant 0 : index
    %c0_32 = arith.constant 0 : index
    %c0_33 = arith.constant 0 : index
    %41 = vector.load %arg22[%c0_31, %c0_32, %c0_33] : memref<4x16x16xf32, #tpu.memory_space<vmem>>, vector<4x16x16xf32>
    %42 = vector.broadcast %29 : vector<4x16x1xf32> to vector<4x16x16xf32>
    %43 = arith.mulf %42, %41 : vector<4x16x16xf32>
    %44 = arith.addf %43, %40 : vector<4x16x16xf32>
    %c0_34 = arith.constant 0 : index
    %c0_35 = arith.constant 0 : index
    %c0_36 = arith.constant 0 : index
    %45 = vector.load %arg22[%c0_34, %c0_35, %c0_36] : memref<4x16x16xf32, #tpu.memory_space<vmem>>, vector<4x16x16xf32>
    tpu.vector_store %arg22[%c0_34, %c0_35, %c0_36], %44 {strides = array<i32>} : memref<4x16x16xf32, #tpu.memory_space<vmem>>, vector<4x16x16xf32>,
    %c0_37 = arith.constant 0 : index
    %c0_38 = arith.constant 0 : index
    %c0_39 = arith.constant 0 : index
    %46 = vector.load %arg20[%c0_37, %c0_38, %c0_39] : memref<4x16x1xf32, #tpu.memory_space<vmem>>, vector<4x16x1xf32>
    tpu.vector_store %arg20[%c0_37, %c0_38, %c0_39], %27 {strides = array<i32>} : memref<4x16x1xf32, #tpu.memory_space<vmem>>, vector<4x16x1xf32>,
    %c0_i32_40 = arith.constant 0 : i32
    %47 = arith.cmpi eq, %arg2, %c0_i32_40 : i32
    %48 = arith.extui %47 : i1 to i32
    %c0_i32_41 = arith.constant 0 : i32
    %49 = arith.cmpi ne, %48, %c0_i32_41 : i32
    scf.if %49 {
      %c0_42 = arith.constant 0 : index
      %c0_43 = arith.constant 0 : index
      %c0_44 = arith.constant 0 : index
      %50 = vector.load %arg22[%c0_42, %c0_43, %c0_44] : memref<4x16x16xf32, #tpu.memory_space<vmem>>, vector<4x16x16xf32>
      %c0_45 = arith.constant 0 : index
      %c0_46 = arith.constant 0 : index
      %c0_47 = arith.constant 0 : index
      %51 = vector.load %arg21[%c0_45, %c0_46, %c0_47] : memref<4x16x1xf32, #tpu.memory_space<vmem>>, vector<4x16x1xf32>
      %52 = tpu.reciprocal %51 {approx = true} : vector<4x16x1xf32> -> vector<4x16x1xf32>
      %53 = vector.broadcast %52 : vector<4x16x1xf32> to vector<4x16x16xf32>
      %54 = arith.mulf %50, %53 : vector<4x16x16xf32>
      %55 = arith.truncf %54 : vector<4x16x16xf32> to vector<4x16x16xbf16>
      %c0_48 = arith.constant 0 : index
      %c0_49 = arith.constant 0 : index
      %c0_50 = arith.constant 0 : index
      %56 = vector.load %arg13[%c0_48, %c0_49, %c0_50] : memref<4x16x128xbf16, #tpu.memory_space<vmem>>, vector<4x16x128xbf16>
      %cst_51 = arith.constant dense<0.000000e+00> : vector<4x16x128xf32>
      %57 = tpu.matmul %55, %56, %cst_51 {dimension_numbers = #tpu.dot_dimension_numbers<[2], [1], [1], [2], [0, 0, 0, 1, 1, 2], [0], [0]>} : vector<4x16x16xbf16>, vector<4x16x128xbf16>, vector<4x16x128xf32> -> vector<4x16x128xf32>
      %cst_52 = arith.constant dense<0.000000e+00> : vector<16x128xf32>
      %58 = vector.multi_reduction <add>, %57, %cst_52 [0] : vector<4x16x128xf32> to vector<16x128xf32>
      %c0_53 = arith.constant 0 : index
      %c0_54 = arith.constant 0 : index
      %59 = vector.load %arg14[%c0_53, %c0_54] : memref<1x128xf32, #tpu.memory_space<vmem>>, vector<1x128xf32>
      %60 = vector.broadcast %59 : vector<1x128xf32> to vector<16x128xf32>
      %61 = arith.addf %58, %60 : vector<16x128xf32>
      %c0_55 = arith.constant 0 : index
      %c0_56 = arith.constant 0 : index
      %c0_57 = arith.constant 0 : index
      %62 = vector.load %arg15[%c0_55, %c0_56, %c0_57] : memref<1x16x128xbf16, #tpu.memory_space<vmem>>, vector<1x16x128xbf16>
      %63 = vector.shape_cast %62 : vector<1x16x128xbf16> to vector<16x128xbf16>
      %64 = arith.extf %63 : vector<16x128xbf16> to vector<16x128xf32>
      %65 = arith.addf %61, %64 : vector<16x128xf32>
      %c0_58 = arith.constant 0 : index
      %c0_59 = arith.constant 0 : index
      %66 = vector.load %arg16[%c0_58, %c0_59] : memref<1x128xf32, #tpu.memory_space<vmem>>, vector<1x128xf32>
      %c0_60 = arith.constant 0 : index
      %c0_61 = arith.constant 0 : index
      %67 = vector.load %arg17[%c0_60, %c0_61] : memref<1x128xf32, #tpu.memory_space<vmem>>, vector<1x128xf32>
      %cst_62 = arith.constant dense<0.000000e+00> : vector<16xf32>
      %68 = vector.multi_reduction <add>, %65, %cst_62 [1] : vector<16x128xf32> to vector<16xf32>
      %69 = vector.shape_cast %68 : vector<16xf32> to vector<16x1xf32>
      %cst_63 = arith.constant 1.280000e+02 : f32
      %70 = vector.broadcast %cst_63 : f32 to vector<16x1xf32>
      %71 = arith.divf %69, %70 : vector<16x1xf32>
      %72 = vector.broadcast %71 : vector<16x1xf32> to vector<16x128xf32>
      %73 = arith.subf %65, %72 : vector<16x128xf32>
      %74 = arith.mulf %73, %73 : vector<16x128xf32>
      %cst_64 = arith.constant dense<0.000000e+00> : vector<16xf32>
      %75 = vector.multi_reduction <add>, %74, %cst_64 [1] : vector<16x128xf32> to vector<16xf32>
      %76 = vector.shape_cast %75 : vector<16xf32> to vector<16x1xf32>
      %cst_65 = arith.constant 1.280000e+02 : f32
      %77 = vector.broadcast %cst_65 : f32 to vector<16x1xf32>
      %78 = arith.divf %76, %77 : vector<16x1xf32>
      %cst_66 = arith.constant 9.99999974E-6 : f32
      %79 = vector.broadcast %cst_66 : f32 to vector<16x1xf32>
      %80 = arith.addf %78, %79 : vector<16x1xf32>
      %81 = math.rsqrt %80 : vector<16x1xf32>
      %82 = vector.broadcast %81 : vector<16x1xf32> to vector<16x128xf32>
      %83 = arith.mulf %73, %82 : vector<16x128xf32>
      %84 = vector.broadcast %66 : vector<1x128xf32> to vector<16x128xf32>
      %85 = arith.mulf %83, %84 : vector<16x128xf32>
      %86 = vector.broadcast %67 : vector<1x128xf32> to vector<16x128xf32>
      %87 = arith.addf %85, %86 : vector<16x128xf32>
      %88 = arith.truncf %87 : vector<16x128xf32> to vector<16x128xbf16>
      %c0_67 = arith.constant 0 : index
      %c0_68 = arith.constant 0 : index
      %c0_69 = arith.constant 0 : index
      %89 = vector.load %arg18[%c0_67, %c0_68, %c0_69] : memref<1x16x128xbf16, #tpu.memory_space<vmem>>, vector<1x16x128xbf16>
      %90 = vector.shape_cast %89 : vector<1x16x128xbf16> to vector<16x128xbf16>
      %91 = vector.shape_cast %88 : vector<16x128xbf16> to vector<1x16x128xbf16>
      tpu.vector_store %arg18[%c0_67, %c0_68, %c0_69], %91 {strides = array<i32>} : memref<1x16x128xbf16, #tpu.memory_space<vmem>>, vector<1x16x128xbf16>,
    } else {
    }
    return
  }
  func.func @transform_0(%arg0: i32, %arg1: i32, %arg2: i32) -> (i32, i32, i32) {
    %c0_i32 = arith.constant 0 : i32
    %c0_i32_0 = arith.constant 0 : i32
    return %arg0, %arg1, %c0_i32 : i32, i32, i32
  }
  func.func @transform_1(%arg0: i32, %arg1: i32, %arg2: i32) -> (i32, i32, i32) {
    %c0_i32 = arith.constant 0 : i32
    %c0_i32_0 = arith.constant 0 : i32
    return %arg0, %arg1, %c0_i32 : i32, i32, i32
  }
  func.func @transform_2(%arg0: i32, %arg1: i32, %arg2: i32) -> (i32, i32, i32) {
    %c0_i32 = arith.constant 0 : i32
    %c0_i32_0 = arith.constant 0 : i32
    return %arg0, %arg2, %c0_i32 : i32, i32, i32
  }
  func.func @transform_3(%arg0: i32, %arg1: i32, %arg2: i32) -> (i32, i32, i32) {
    %c0_i32 = arith.constant 0 : i32
    %c0_i32_0 = arith.constant 0 : i32
    return %arg0, %arg2, %c0_i32 : i32, i32, i32
  }
  func.func @transform_4(%arg0: i32, %arg1: i32, %arg2: i32) -> (i32, i32, i32) {
    %c0_i32 = arith.constant 0 : i32
    %c0_i32_0 = arith.constant 0 : i32
    %c0_i32_1 = arith.constant 0 : i32
    %c0_i32_2 = arith.constant 0 : i32
    return %c0_i32, %c0_i32_0, %c0_i32_1 : i32, i32, i32
  }
  func.func @transform_5(%arg0: i32, %arg1: i32, %arg2: i32) -> (i32, i32, i32) {
    %c0_i32 = arith.constant 0 : i32
    %c0_i32_0 = arith.constant 0 : i32
    %c0_i32_1 = arith.constant 0 : i32
    %c0_i32_2 = arith.constant 0 : i32
    return %c0_i32, %c0_i32_0, %c0_i32_1 : i32, i32, i32
  }
  func.func @transform_6(%arg0: i32, %arg1: i32, %arg2: i32) -> (i32, i32) {
    %c0_i32 = arith.constant 0 : i32
    %c0_i32_0 = arith.constant 0 : i32
    %c0_i32_1 = arith.constant 0 : i32
    return %c0_i32, %c0_i32_0 : i32, i32
  }
  func.func @transform_7(%arg0: i32, %arg1: i32, %arg2: i32) -> (i32, i32) {
    %c0_i32 = arith.constant 0 : i32
    %c0_i32_0 = arith.constant 0 : i32
    %c0_i32_1 = arith.constant 0 : i32
    return %c0_i32, %c0_i32_0 : i32, i32
  }
  func.func @transform_8(%arg0: i32, %arg1: i32, %arg2: i32) -> (i32, i32) {
    %c0_i32 = arith.constant 0 : i32
    %c0_i32_0 = arith.constant 0 : i32
    %c0_i32_1 = arith.constant 0 : i32
    return %c0_i32, %c0_i32_0 : i32, i32
  }
  func.func @transform_9(%arg0: i32, %arg1: i32, %arg2: i32) -> (i32, i32) {
    %c0_i32 = arith.constant 0 : i32
    %c0_i32_0 = arith.constant 0 : i32
    %c0_i32_1 = arith.constant 0 : i32
    return %c0_i32, %c0_i32_0 : i32, i32
  }
  func.func @transform_10(%arg0: i32, %arg1: i32, %arg2: i32) -> (i32, i32, i32) {
    %c0_i32 = arith.constant 0 : i32
    %c0_i32_0 = arith.constant 0 : i32
    %c0_i32_1 = arith.constant 0 : i32
    %c0_i32_2 = arith.constant 0 : i32
    return %c0_i32, %c0_i32_0, %c0_i32_1 : i32, i32, i32
  }
  func.func @transform_11(%arg0: i32, %arg1: i32, %arg2: i32) -> (i32, i32) {
    %c0_i32 = arith.constant 0 : i32
    %c0_i32_0 = arith.constant 0 : i32
    %c0_i32_1 = arith.constant 0 : i32
    return %c0_i32, %c0_i32_0 : i32, i32
  }
  func.func @transform_12(%arg0: i32, %arg1: i32, %arg2: i32) -> (i32, i32, i32) {
    %c0_i32 = arith.constant 0 : i32
    %c0_i32_0 = arith.constant 0 : i32
    return %arg0, %arg1, %c0_i32 : i32, i32, i32
  }
  func.func @transform_13(%arg0: i32, %arg1: i32, %arg2: i32) -> (i32, i32) {
    %c0_i32 = arith.constant 0 : i32
    %c0_i32_0 = arith.constant 0 : i32
    %c0_i32_1 = arith.constant 0 : i32
    return %c0_i32, %c0_i32_0 : i32, i32
  }
  func.func @transform_14(%arg0: i32, %arg1: i32, %arg2: i32) -> (i32, i32) {
    %c0_i32 = arith.constant 0 : i32
    %c0_i32_0 = arith.constant 0 : i32
    %c0_i32_1 = arith.constant 0 : i32
    return %c0_i32, %c0_i32_0 : i32, i32
  }
  func.func @transform_15(%arg0: i32, %arg1: i32, %arg2: i32) -> (i32, i32, i32) {
    %c0_i32 = arith.constant 0 : i32
    %c0_i32_0 = arith.constant 0 : i32
    return %arg0, %arg1, %c0_i32 : i32, i32, i32
  }
}

</mosaic_0001>

<llo_original>
// kernel: block_forward.6
$region0: #{block_forward.6}
  #allocation0 [shape = 'u32[]', space=smem, size = 0x4, offset = 0x4, fixed_abs, tag = 'smem constant byte address 0x4 - core index']
  #allocation1 [shape = 'u32[144,128]{1,0:T(1,128)}', space=vmem, size = 0x12000, scoped, tag = 'internal scratch']
  %s0 = inlined_call_operand.vmem [shape: bf16[16,128], index: 0, kind: input, shape index: {}]
  %s1 = inlined_call_operand.vmem [shape: bf16[128,256], index: 1, kind: input, shape index: {}]
  %s2 = inlined_call_operand.vmem [shape: f32[1,256], index: 2, kind: input, shape index: {}]
  %s3 = inlined_call_operand.vmem [shape: bf16[256,128], index: 3, kind: input, shape index: {}]
  %s4 = inlined_call_operand.vmem [shape: f32[1,128], index: 4, kind: input, shape index: {}]
  %s5 = inlined_call_operand.vmem [shape: f32[1,128], index: 5, kind: input, shape index: {}]
  %s6 = inlined_call_operand.vmem [shape: f32[1,128], index: 6, kind: input, shape index: {}]
  %s7 = inlined_call_operand.vmem [shape: bf16[16,128], index: 7, kind: output, shape index: {}]
  %s8 = sld [smem:[#allocation0]]
  $region38: #{block_forward.6} parent=0
    _
  %s10 = ssub.s32 1, %s8
  %s11 = scalar_select 0, %s10, %s8
  // Predicated region
  $region2: #{block_forward.6} parent=0 // pred_check
    _
  $region3: #{block_forward.6} parent=0 // pred_check_branch
    %13 = sbr.rel (0) target = $region5
  $region4: #{block_forward.6} parent=0 // pred_region
    _
  $region5: #{block_forward.6} parent=0 // pred_fallthru
    _
  // Predicated region
  $region6: #{block_forward.6} parent=0 // pred_check
    _
  $region7: #{block_forward.6} parent=0 // pred_check_branch
    %15 = sbr.rel (0) target = $region9
  $region8: #{block_forward.6} parent=0 // pred_region
    _
  $region9: #{block_forward.6} parent=0 // pred_fallthru
    _
  // Predicated region
  $region10: #{block_forward.6} parent=0 // pred_check
    _
  $region11: #{block_forward.6} parent=0 // pred_check_branch
    %17 = sbr.rel (0) target = $region13
  $region12: #{block_forward.6} parent=0 // pred_region
    _
  $region13: #{block_forward.6} parent=0 // pred_fallthru
    _
  // Predicated region
  $region14: #{block_forward.6} parent=0 // pred_check
    _
  $region15: #{block_forward.6} parent=0 // pred_check_branch
    %19 = sbr.rel (0) target = $region17
  $region16: #{block_forward.6} parent=0 // pred_region
    _
  $region17: #{block_forward.6} parent=0 // pred_fallthru
    _
  // Predicated region
  $region18: #{block_forward.6} parent=0 // pred_check
    _
  $region19: #{block_forward.6} parent=0 // pred_check_branch
    %21 = sbr.rel (0) target = $region21
  $region20: #{block_forward.6} parent=0 // pred_region
    _
  $region21: #{block_forward.6} parent=0 // pred_fallthru
    _
  // Predicated region
  $region22: #{block_forward.6} parent=0 // pred_check
    _
  $region23: #{block_forward.6} parent=0 // pred_check_branch
    %23 = sbr.rel (0) target = $region25
  $region24: #{block_forward.6} parent=0 // pred_region
    _
  $region25: #{block_forward.6} parent=0 // pred_fallthru
    _
  // Predicated region
  $region26: #{block_forward.6} parent=0 // pred_check
    _
  $region27: #{block_forward.6} parent=0 // pred_check_branch
    %25 = sbr.rel (0) target = $region29
  $region28: #{block_forward.6} parent=0 // pred_region
    _
  $region29: #{block_forward.6} parent=0 // pred_fallthru
    _
  %v27 = vld [vmem:[%s0] sm:$0xf]
  %v28 = vld [vmem:[%s0 + $0x4] sm:$0xf]
  %v29 = vld [vmem:[%s1] sm:$0xff]
  %v30 = vld [vmem:[%s1 + $0x8] sm:$0xff]
  %v31 = vld [vmem:[%s1 + $0x10] sm:$0xff]
  %v32 = vld [vmem:[%s1 + $0x18] sm:$0xff]
  %v33 = vld [vmem:[%s1 + $0x20] sm:$0xff]
  %v34 = vld [vmem:[%s1 + $0x28] sm:$0xff]
  %v35 = vld [vmem:[%s1 + $0x30] sm:$0xff]
  %v36 = vld [vmem:[%s1 + $0x38] sm:$0xff]
  %v37 = vld [vmem:[%s1 + $0x40] sm:$0xff]
  %v38 = vld [vmem:[%s1 + $0x48] sm:$0xff]
  %v39 = vld [vmem:[%s1 + $0x50] sm:$0xff]
  %v40 = vld [vmem:[%s1 + $0x58] sm:$0xff]
  %v41 = vld [vmem:[%s1 + $0x60] sm:$0xff]
  %v42 = vld [vmem:[%s1 + $0x68] sm:$0xff]
  %v43 = vld [vmem:[%s1 + $0x70] sm:$0xff]
  %v44 = vld [vmem:[%s1 + $0x78] sm:$0xff]
  %v45 = vld [vmem:[%s2] sm:$0x3]
  %v47 = vlaneseq
  %v48 = vshrl.u32 %v47, 7
  %v49 = vsub.s32 0, %v48
  %v50 = vrot.slane %v45, %v49
  %v51 = vlaneseq
  %v52 = vshrl.u32 %v51, 7
  %v53 = vsub.s32 1, %v52
  %v54 = vrot.slane %v45, %v53
  %v59 = vunpack.c.l.b16 %v27
  %v60 = vunpack.c.l.b16 %v28
  %v61 = vpack.c.b16 %v60, %v59
  %v79 = vunpack.c.l.b16 %v29
  %v80 = vunpack.c.h.b16 %v29
  %v81 = vunpack.c.l.b16 %v30
  %v82 = vunpack.c.h.b16 %v30
  %v83 = vunpack.c.l.b16 %v31
  %v84 = vunpack.c.h.b16 %v31
  %v85 = vunpack.c.l.b16 %v32
  %v86 = vunpack.c.h.b16 %v32
  %v87 = vunpack.c.l.b16 %v33
  %v88 = vunpack.c.h.b16 %v33
  %v89 = vunpack.c.l.b16 %v34
  %v90 = vunpack.c.h.b16 %v34
  %v91 = vunpack.c.l.b16 %v35
  %v92 = vunpack.c.h.b16 %v35
  %v93 = vunpack.c.l.b16 %v36
  %v94 = vunpack.c.h.b16 %v36
  %v95 = vunpack.c.l.b16 %v37
  %v96 = vunpack.c.h.b16 %v37
  %v97 = vunpack.c.l.b16 %v38
  %v98 = vunpack.c.h.b16 %v38
  %v99 = vunpack.c.l.b16 %v39
  %v100 = vunpack.c.h.b16 %v39
  %v101 = vunpack.c.l.b16 %v40
  %v102 = vunpack.c.h.b16 %v40
  %v103 = vunpack.c.l.b16 %v41
  %v104 = vunpack.c.h.b16 %v41
  %v105 = vunpack.c.l.b16 %v42
  %v106 = vunpack.c.h.b16 %v42
  %v107 = vunpack.c.l.b16 %v43
  %v108 = vunpack.c.h.b16 %v43
  %v109 = vunpack.c.l.b16 %v44
  %v110 = vunpack.c.h.b16 %v44
  %v111 = vpack.c.b16 %v81, %v79
  %v112 = vpack.c.b16 %v82, %v80
  %v113 = vpack.c.b16 %v85, %v83
  %v114 = vpack.c.b16 %v86, %v84
  %v115 = vpack.c.b16 %v89, %v87
  %v116 = vpack.c.b16 %v90, %v88
  %v117 = vpack.c.b16 %v93, %v91
  %v118 = vpack.c.b16 %v94, %v92
  %v119 = vpack.c.b16 %v97, %v95
  %v120 = vpack.c.b16 %v98, %v96
  %v121 = vpack.c.b16 %v101, %v99
  %v122 = vpack.c.b16 %v102, %v100
  %v123 = vpack.c.b16 %v105, %v103
  %v124 = vpack.c.b16 %v106, %v104
  %v125 = vpack.c.b16 %v109, %v107
  %v126 = vpack.c.b16 %v110, %v108
  %143 = vmatprep.subr.bf16.mxu0 %v112
  %144 = vmatpush1.bf16.msra.mxu0 %v111
  %145 = vmatprep.subr.bf16.mxu0 %v114
  %146 = vmatpush1.bf16.msra.mxu0 %v113
  %147 = vmatprep.subr.bf16.mxu0 %v116
  %148 = vmatpush1.bf16.msra.mxu0 %v115
  %149 = vmatprep.subr.bf16.mxu0 %v118
  %150 = vmatpush1.bf16.msra.mxu0 %v117
  %151 = vmatprep.subr.bf16.mxu0 %v120
  %152 = vmatpush1.bf16.msra.mxu0 %v119
  %153 = vmatprep.subr.bf16.mxu0 %v122
  %154 = vmatpush1.bf16.msra.mxu0 %v121
  %155 = vmatprep.subr.bf16.mxu0 %v124
  %156 = vmatpush1.bf16.msra.mxu0 %v123
  %157 = vmatprep.subr.bf16.mxu0 %v126
  %158 = vmatpush1.bf16.msra.mxu0 %v125
  %159 = vmatprep.subr.bf16.mxu0 0
  %160 = vmatpush1.bf16.msra.mxu0 0
  %161 = vmatprep.subr.bf16.mxu0 0
  %162 = vmatpush1.bf16.msra.mxu0 0
  %163 = vmatprep.subr.bf16.mxu0 0
  %164 = vmatpush1.bf16.msra.mxu0 0
  %165 = vmatprep.subr.bf16.mxu0 0
  %166 = vmatpush1.bf16.msra.mxu0 0
  %167 = vmatprep.subr.bf16.mxu0 0
  %168 = vmatpush1.bf16.msra.mxu0 0
  %169 = vmatprep.subr.bf16.mxu0 0
  %170 = vmatpush1.bf16.msra.mxu0 0
  %171 = vmatprep.subr.bf16.mxu0 0
  %172 = vmatpush1.bf16.msra.mxu0 0
  %173 = vmatprep.subr.bf16.mxu0 0
  %174 = vmatpush1.bf16.msra.mxu0 0
  %175 = vmatprep.mubr.bf16.mxu0 0
  %176 = vmatmul.mubr.bf16.gmra.mrb[0].mxu0 %v61
  %v177 = vpop.f32.mrb[0].mxu0
  %v178 = vadd.f32 %v50, %v177
  %v179 = vpop.f32.mrb[0].mxu0
  %v180 = vadd.f32 %v54, %v179
  %v181 = vpop.f32.mrb[0].mxu0
  %v182 = vadd.f32 %v50, %v181
  %v183 = vpop.f32.mrb[0].mxu0
  %v184 = vadd.f32 %v54, %v183
  %185 = vdwg.mxu0
  %v186 = vmax.f32 %v178, 0.0
  %v187 = vmax.f32 %v180, 0.0
  %v188 = vmax.f32 %v182, 0.0
  %v189 = vmax.f32 %v184, 0.0
  %v190 = vpack.c.bf16 %v188, %v186
  %v191 = vpack.c.bf16 %v189, %v187
  %v192 = vld [vmem:[%s3] sm:$0xf]
  %v193 = vld [vmem:[%s3 + $0x4] sm:$0xf]
  %v194 = vld [vmem:[%s3 + $0x8] sm:$0xf]
  %v195 = vld [vmem:[%s3 + $0xc] sm:$0xf]
  %v196 = vld [vmem:[%s3 + $0x10] sm:$0xf]
  %v197 = vld [vmem:[%s3 + $0x14] sm:$0xf]
  %v198 = vld [vmem:[%s3 + $0x18] sm:$0xf]
  %v199 = vld [vmem:[%s3 + $0x1c] sm:$0xf]
  %v200 = vld [vmem:[%s3 + $0x20] sm:$0xf]
  %v201 = vld [vmem:[%s3 + $0x24] sm:$0xf]
  %v202 = vld [vmem:[%s3 + $0x28] sm:$0xf]
  %v203 = vld [vmem:[%s3 + $0x2c] sm:$0xf]
  %v204 = vld [vmem:[%s3 + $0x30] sm:$0xf]
  %v205 = vld [vmem:[%s3 + $0x34] sm:$0xf]
  %v206 = vld [vmem:[%s3 + $0x38] sm:$0xf]
  %v207 = vld [vmem:[%s3 + $0x3c] sm:$0xf]
  %v208 = vld [vmem:[%s3 + $0x40] sm:$0xf]
  %v209 = vld [vmem:[%s3 + $0x44] sm:$0xf]
  %v210 = vld [vmem:[%s3 + $0x48] sm:$0xf]
  %v211 = vld [vmem:[%s3 + $0x4c] sm:$0xf]
  %v212 = vld [vmem:[%s3 + $0x50] sm:$0xf]
  %v213 = vld [vmem:[%s3 + $0x54] sm:$0xf]
  %v214 = vld [vmem:[%s3 + $0x58] sm:$0xf]
  %v215 = vld [vmem:[%s3 + $0x5c] sm:$0xf]
  %v216 = vld [vmem:[%s3 + $0x60] sm:$0xf]
  %v217 = vld [vmem:[%s3 + $0x64] sm:$0xf]
  %v218 = vld [vmem:[%s3 + $0x68] sm:$0xf]
  %v219 = vld [vmem:[%s3 + $0x6c] sm:$0xf]
  %v220 = vld [vmem:[%s3 + $0x70] sm:$0xf]
  %v221 = vld [vmem:[%s3 + $0x74] sm:$0xf]
  %v222 = vld [vmem:[%s3 + $0x78] sm:$0xf]
  %v223 = vld [vmem:[%s3 + $0x7c] sm:$0xf]
  %v224 = vld [vmem:[%s4] sm:$0x1]
  %v226 = vlaneseq
  %v227 = vshrl.u32 %v226, 7
  %v228 = vsub.s32 0, %v227
  %v229 = vrot.slane %v224, %v228
  %v263 = vunpack.c.l.b16 %v192
  %v264 = vunpack.c.l.b16 %v193
  %v265 = vunpack.c.l.b16 %v194
  %v266 = vunpack.c.l.b16 %v195
  %v267 = vunpack.c.l.b16 %v196
  %v268 = vunpack.c.l.b16 %v197
  %v269 = vunpack.c.l.b16 %v198
  %v270 = vunpack.c.l.b16 %v199
  %v271 = vunpack.c.l.b16 %v200
  %v272 = vunpack.c.l.b16 %v201
  %v273 = vunpack.c.l.b16 %v202
  %v274 = vunpack.c.l.b16 %v203
  %v275 = vunpack.c.l.b16 %v204
  %v276 = vunpack.c.l.b16 %v205
  %v277 = vunpack.c.l.b16 %v206
  %v278 = vunpack.c.l.b16 %v207
  %v279 = vunpack.c.l.b16 %v208
  %v280 = vunpack.c.l.b16 %v209
  %v281 = vunpack.c.l.b16 %v210
  %v282 = vunpack.c.l.b16 %v211
  %v283 = vunpack.c.l.b16 %v212
  %v284 = vunpack.c.l.b16 %v213
  %v285 = vunpack.c.l.b16 %v214
  %v286 = vunpack.c.l.b16 %v215
  %v287 = vunpack.c.l.b16 %v216
  %v288 = vunpack.c.l.b16 %v217
  %v289 = vunpack.c.l.b16 %v218
  %v290 = vunpack.c.l.b16 %v219
  %v291 = vunpack.c.l.b16 %v220
  %v292 = vunpack.c.l.b16 %v221
  %v293 = vunpack.c.l.b16 %v222
  %v294 = vunpack.c.l.b16 %v223
  %v295 = vpack.c.b16 %v264, %v263
  %v296 = vpack.c.b16 %v266, %v265
  %v297 = vpack.c.b16 %v268, %v267
  %v298 = vpack.c.b16 %v270, %v269
  %v299 = vpack.c.b16 %v272, %v271
  %v300 = vpack.c.b16 %v274, %v273
  %v301 = vpack.c.b16 %v276, %v275
  %v302 = vpack.c.b16 %v278, %v277
  %v303 = vpack.c.b16 %v280, %v279
  %v304 = vpack.c.b16 %v282, %v281
  %v305 = vpack.c.b16 %v284, %v283
  %v306 = vpack.c.b16 %v286, %v285
  %v307 = vpack.c.b16 %v288, %v287
  %v308 = vpack.c.b16 %v290, %v289
  %v309 = vpack.c.b16 %v292, %v291
  %v310 = vpack.c.b16 %v294, %v293
  %327 = vmatprep.subr.bf16.mxu0 0
  %328 = vmatpush1.bf16.msra.mxu0 %v295
  %329 = vmatprep.subr.bf16.mxu0 0
  %330 = vmatpush1.bf16.msra.mxu0 %v296
  %331 = vmatprep.subr.bf16.mxu0 0
  %332 = vmatpush1.bf16.msra.mxu0 %v297
  %333 = vmatprep.subr.bf16.mxu0 0
  %334 = vmatpush1.bf16.msra.mxu0 %v298
  %335 = vmatprep.subr.bf16.mxu0 0
  %336 = vmatpush1.bf16.msra.mxu0 %v299
  %337 = vmatprep.subr.bf16.mxu0 0
  %338 = vmatpush1.bf16.msra.mxu0 %v300
  %339 = vmatprep.subr.bf16.mxu0 0
  %340 = vmatpush1.bf16.msra.mxu0 %v301
  %341 = vmatprep.subr.bf16.mxu0 0
  %342 = vmatpush1.bf16.msra.mxu0 %v302
  %343 = vmatprep.subr.bf16.mxu0 0
  %344 = vmatpush1.bf16.msra.mxu0 %v303
  %345 = vmatprep.subr.bf16.mxu0 0
  %346 = vmatpush1.bf16.msra.mxu0 %v304
  %347 = vmatprep.subr.bf16.mxu0 0
  %348 = vmatpush1.bf16.msra.mxu0 %v305
  %349 = vmatprep.subr.bf16.mxu0 0
  %350 = vmatpush1.bf16.msra.mxu0 %v306
  %351 = vmatprep.subr.bf16.mxu0 0
  %352 = vmatpush1.bf16.msra.mxu0 %v307
  %353 = vmatprep.subr.bf16.mxu0 0
  %354 = vmatpush1.bf16.msra.mxu0 %v308
  %355 = vmatprep.subr.bf16.mxu0 0
  %356 = vmatpush1.bf16.msra.mxu0 %v309
  %357 = vmatprep.subr.bf16.mxu0 0
  %358 = vmatpush1.bf16.msra.mxu0 %v310
  %359 = vmatprep.mubr.bf16.mxu0 %v191
  %360 = vmatmul.mubr.bf16.gmra.mrb[0].mxu0 %v190
  %v361 = vpop.f32.mrb[0].mxu0
  %v362 = vadd.f32 %v229, %v361
  %v363 = vpop.f32.mrb[0].mxu0
  %v364 = vpop.f32.mrb[0].mxu0
  %v365 = vadd.f32 %v229, %v364
  %v366 = vpop.f32.mrb[0].mxu0
  %367 = vdwg.mxu0
  %v368 = vunpack.c.l.bf16 %v27
  %v369 = vunpack.c.l.bf16 %v28
  %v370 = vadd.f32 %v362, %v368
  %v371 = vadd.f32 %v365, %v369
  %v372 = vld [vmem:[%s5] sm:$0x1]
  %v373 = vld [vmem:[%s6] sm:$0x1]
  %374 = vadd.xlane.f32.xlu0 %v370
  %v375 = vpop.xlane.xlu0 %374
  %376 = vadd.xlane.f32.xlu0 %v371
  %v377 = vpop.xlane.xlu0 %376
  %v378 = vrcp.pop 128.0
  %v379 = vmul.f32 %v375, %v378
  %v380 = vmul.f32 %v377, %v378
  %v381 = vsub.f32 %v370, %v379
  %v382 = vsub.f32 %v371, %v380
  %v383 = vmul.f32 %v381, %v381
  %v384 = vmul.f32 %v382, %v382
  %385 = vadd.xlane.f32.xlu0 %v383
  %v386 = vpop.xlane.xlu0 %385
  %387 = vadd.xlane.f32.xlu0 %v384
  %v388 = vpop.xlane.xlu0 %387
  %v389 = vmul.f32 %v386, %v378
  %v390 = vmul.f32 %v388, %v378
  %v391 = vadd.f32 %v389, 1e-05
  %v392 = vadd.f32 %v390, 1e-05
  %v393 = vrsqrt.pop %v391
  %v394 = vrsqrt.pop %v392
  %v395 = vmul.f32 %v381, %v393
  %v396 = vmul.f32 %v382, %v394
  %v398 = vlaneseq
  %v399 = vshrl.u32 %v398, 7
  %v400 = vsub.s32 0, %v399
  %v401 = vrot.slane %v372, %v400
  %v403 = vmul.f32 %v395, %v401
  %v404 = vmul.f32 %v396, %v401
  %v406 = vlaneseq
  %v407 = vshrl.u32 %v406, 7
  %v408 = vsub.s32 0, %v407
  %v409 = vrot.slane %v373, %v408
  %v411 = vadd.f32 %v403, %v409
  %v412 = vadd.f32 %v404, %v409
  %v413 = vpack.c.bf16 %v412, %v411
  %v415 = vunpack.c.l.b16 %v413
  %v416 = vunpack.c.h.b16 %v413
  %v417 = vpack.c.b16 %v415, %v415
  %v418 = vpack.c.b16 %v416, %v416
  %421 = vst [vmem:[%s7] sm:$0xf] %v417
  %422 = vst [vmem:[%s7 + $0x4] sm:$0xf] %v418
  // Predicated region
  $region30: #{block_forward.6} parent=0 // pred_check
    _
  $region31: #{block_forward.6} parent=0 // pred_check_branch
    %424 = sbr.rel (0) target = $region33
  $region32: #{block_forward.6} parent=0 // pred_region
    _
  $region33: #{block_forward.6} parent=0 // pred_fallthru
    _
  // Predicated region
  $region34: #{block_forward.6} parent=0 // pred_check
    _
  $region35: #{block_forward.6} parent=0 // pred_check_branch
    %426 = sbr.rel (0) target = $region37
  $region36: #{block_forward.6} parent=0 // pred_region
    _
  $region37: #{block_forward.6} parent=0 // pred_fallthru
    _

// kernel: block_forward.4
$region0: #{block_forward.4}
  #allocation0 [shape = 'u32[]', space=smem, size = 0x4, offset = 0x4, fixed_abs, tag = 'smem constant byte address 0x4 - core index']
  #allocation1 [shape = 'u32[144,128]{1,0:T(1,128)}', space=vmem, size = 0x12000, scoped, tag = 'internal scratch']
  #allocation2 [shape = 'bf16[4,8,32]{2,1,0:T(8,128)(2,1)}', space=vmem, size = 0x2000, scoped, tag = 'scratch operand']
  #allocation3 [shape = 'f32[4,8,1]{2,1,0:T(8,128)}', space=vmem, size = 0x4000, scoped, tag = 'scratch operand']
  #allocation4 [shape = 'f32[4,8,1]{2,1,0:T(8,128)}', space=vmem, size = 0x4000, scoped, tag = 'scratch operand']
  #allocation5 [shape = 'f32[4,8,32]{2,1,0:T(8,128)}', space=vmem, size = 0x4000, scoped, tag = 'scratch operand']
  %s0 = inlined_call_operand.vmem [shape: bf16[2,8,128], index: 0, kind: input, shape index: {}, may-alias: {0,2,12}]
  %s1 = inlined_call_operand.vmem [shape: bf16[2,8,128], index: 1, kind: input, shape index: {}, may-alias: {1,3}]
  %s2 = inlined_call_operand.vmem [shape: bf16[2,8,128], index: 2, kind: input, shape index: {}, may-alias: {0,2,12}]
  %s3 = inlined_call_operand.vmem [shape: bf16[2,8,128], index: 3, kind: input, shape index: {}, may-alias: {1,3}]
  %s4 = inlined_call_operand.vmem [shape: bf16[4,128,32], index: 4, kind: input, shape index: {}]
  %s5 = inlined_call_operand.vmem [shape: f32[4,1,32], index: 5, kind: input, shape index: {}]
  %s6 = inlined_call_operand.vmem [shape: bf16[128,128], index: 6, kind: input, shape index: {}]
  %s7 = inlined_call_operand.vmem [shape: f32[128,1], index: 7, kind: input, shape index: {}]
  %s8 = inlined_call_operand.vmem [shape: bf16[128,128], index: 8, kind: input, shape index: {}]
  %s9 = inlined_call_operand.vmem [shape: f32[128,1], index: 9, kind: input, shape index: {}]
  %s10 = inlined_call_operand.vmem [shape: bf16[4,32,128], index: 10, kind: input, shape index: {}]
  %s11 = inlined_call_operand.vmem [shape: f32[1,128], index: 11, kind: input, shape index: {}]
  %s12 = inlined_call_operand.vmem [shape: bf16[2,8,128], index: 12, kind: input, shape index: {}, may-alias: {0,2,12}]
  %s13 = inlined_call_operand.vmem [shape: f32[1,128], index: 13, kind: input, shape index: {}]
  %s14 = inlined_call_operand.vmem [shape: f32[1,128], index: 14, kind: input, shape index: {}]
  %s15 = inlined_call_operand.vmem [shape: bf16[2,8,128], index: 15, kind: output, shape index: {}]
  %s16 = sld [smem:[#allocation0]]
  $region101: #{block_forward.4} parent=0
    _
  %s18 = ssub.s32 1, %s16
  %s19 = scalar_select 0, %s18, %s16
  loop: start=0, step=1, limit=4
  $region2: #{block_forward.4} parent=0 // loop_pre_header
    _
  $region3: #{block_forward.4} parent=0 // loop_header
    %s21 = sphi 0, %s25
    %p22 = scmp.ge.s32.totalorder %s21, 4
    %s28 = sphi 0, %s47
    %s29 = sphi 0, %s43
    %s30 = sphi 0, %s39
    %s31 = sphi 0, %s28
    %s32 = sphi 0, %s29
    %s33 = sphi 0, %s30
    %s34 = sphi 0, %s31
    %s35 = sphi 0, %s32
    %s36 = sphi 0, %s33
    %s52 = sphi 0, %s54
    %s55 = sphi 0, %s52
    %s56 = sphi 0, %s55
    %s72 = sphi 0, %s56
    %s80 = sphi 0, %s82
    %s83 = sphi 0, %s80
    %s84 = sphi 0, %s83
    %s100 = sphi 0, %s84
    %s108 = sphi 0, %s110
    %s111 = sphi 0, %s108
    %s112 = sphi 0, %s111
    %s128 = sphi 0, %s112
    %s136 = sphi 0, %s138
    %s139 = sphi 0, %s136
    %s140 = sphi 0, %s139
    %s156 = sphi 0, %s140
    %s160 = sphi 0, %s160
    %s162 = sphi 0, %s160
    %s163 = sphi 0, %s162
    %s177 = sphi 0, %s163
    %s181 = sphi 0, %s181
    %s183 = sphi 0, %s181
    %s184 = sphi 0, %s183
    %s198 = sphi 0, %s184
    %s202 = sphi 0, %s202
    %s204 = sphi 0, %s202
    %s205 = sphi 0, %s204
    %s219 = sphi 0, %s205
    %s223 = sphi 0, %s223
    %s225 = sphi 0, %s223
    %s226 = sphi 0, %s225
    %s240 = sphi 0, %s226
    %s244 = sphi 0, %s244
    %s246 = sphi 0, %s244
    %s247 = sphi 0, %s246
    %s261 = sphi 0, %s247
    %s265 = sphi 0, %s265
    %s267 = sphi 0, %s265
    %s268 = sphi 0, %s267
    %s282 = sphi 0, %s268
    %s286 = sphi 0, %s286
    %s288 = sphi 0, %s286
    %s289 = sphi 0, %s288
    %s303 = sphi 0, %s289
    %s307 = sphi 0, %s307
    %s309 = sphi 0, %s307
    %s310 = sphi 0, %s309
    %s324 = sphi 0, %s310
    %s332 = sphi 0, %s334
    %s335 = sphi 0, %s332
    %s336 = sphi 0, %s335
    %s352 = sphi 0, %s336
    %s356 = sphi 0, %s356
    %s358 = sphi 0, %s356
    %s359 = sphi 0, %s358
    %s373 = sphi 0, %s359
    %s377 = sphi 0, %s377
    %s379 = sphi 0, %s377
    %s380 = sphi 0, %s379
    %s394 = sphi 0, %s380
    %s402 = sphi 0, %s404
    %s405 = sphi 0, %s402
    %s406 = sphi 0, %s405
    %s422 = sphi 0, %s406
  $region4: #{block_forward.4} parent=0 // loop_header_branch
    %24 = sbr.rel (%p22) target = $region8
  $region5: #{block_forward.4} parent=0 // loop_body
    %s26 = ssub.s32 %s21, 1
    %s27 = ssub.s32 %s21, 2
    %s37 = sadd.s32 1, %s30
    %p38 = scmp.ge.s32.totalorder %s37, 1
    %s39 = scalar_select %p38, 0, %s37
    %s40 = sadd.s32 1, %s29
    %s41 = scalar_select %p38, %s40, %s29
    %p42 = scmp.ge.s32.totalorder %s41, 1
    %s43 = scalar_select %p42, 0, %s41
    %s44 = sadd.s32 1, %s28
    %s45 = scalar_select %p42, %s44, %s28
    %p46 = scmp.ge.s32.totalorder %s45, 2
    %s47 = scalar_select %p46, 0, %s45
    %s48 = ssub.s32 %s28, %s47
    %s49 = ssub.s32 %s29, %s43
    %s50 = sor.u32 %s48, %s49
    %p51 = scmp.eq.s32.totalorder %s50, 0
    %s53 = sadd.s32 %s52, 1
    %s54 = scalar_select %p51, %s52, %s53
    %p57 = pneg %p51
    %p58 = scmp.eq.s32.totalorder %s21, 1
    %p59 = por %p57, %p58
    %p60 = scmp.ne.s32.totalorder %s52, %s55
    %p61 = scmp.eq.s32.totalorder %s21, 0
    %p62 = por %p60, %p61
    %p63 = scmp.ne.s32.totalorder %s52, %s55
    %p64 = scmp.eq.s32.totalorder %s26, 1
    %p65 = por %p63, %p64
    %p66 = scmp.ne.s32.totalorder %s55, %s56
    %p67 = scmp.eq.s32.totalorder %s26, 0
    %p68 = por %p66, %p67
    %p69 = scmp.ne.s32.totalorder %s55, %s56
    %p70 = scmp.eq.s32.totalorder %s27, 1
    %p71 = por %p69, %p70
    %p73 = scmp.ne.s32.totalorder %s56, %s72
    %p74 = scmp.eq.s32.totalorder %s27, 0
    %p75 = por %p73, %p74
    %s76 = ssub.s32 %s28, %s47
    %s77 = ssub.s32 %s29, %s43
    %s78 = sor.u32 %s76, %s77
    %p79 = scmp.eq.s32.totalorder %s78, 0
    %s81 = sadd.s32 %s80, 1
    %s82 = scalar_select %p79, %s80, %s81
    %p85 = pneg %p79
    %p86 = scmp.eq.s32.totalorder %s21, 1
    %p87 = por %p85, %p86
    %p88 = scmp.ne.s32.totalorder %s80, %s83
    %p89 = scmp.eq.s32.totalorder %s21, 0
    %p90 = por %p88, %p89
    %p91 = scmp.ne.s32.totalorder %s80, %s83
    %p92 = scmp.eq.s32.totalorder %s26, 1
    %p93 = por %p91, %p92
    %p94 = scmp.ne.s32.totalorder %s83, %s84
    %p95 = scmp.eq.s32.totalorder %s26, 0
    %p96 = por %p94, %p95
    %p97 = scmp.ne.s32.totalorder %s83, %s84
    %p98 = scmp.eq.s32.totalorder %s27, 1
    %p99 = por %p97, %p98
    %p101 = scmp.ne.s32.totalorder %s84, %s100
    %p102 = scmp.eq.s32.totalorder %s27, 0
    %p103 = por %p101, %p102
    %s104 = ssub.s32 %s28, %s47
    %s105 = ssub.s32 %s30, %s39
    %s106 = sor.u32 %s104, %s105
    %p107 = scmp.eq.s32.totalorder %s106, 0
    %s109 = sadd.s32 %s108, 1
    %s110 = scalar_select %p107, %s108, %s109
    %p113 = pneg %p107
    %p114 = scmp.eq.s32.totalorder %s21, 1
    %p115 = por %p113, %p114
    %p116 = scmp.ne.s32.totalorder %s108, %s111
    %p117 = scmp.eq.s32.totalorder %s21, 0
    %p118 = por %p116, %p117
    %p119 = scmp.ne.s32.totalorder %s108, %s111
    %p120 = scmp.eq.s32.totalorder %s26, 1
    %p121 = por %p119, %p120
    %p122 = scmp.ne.s32.totalorder %s111, %s112
    %p123 = scmp.eq.s32.totalorder %s26, 0
    %p124 = por %p122, %p123
    %p125 = scmp.ne.s32.totalorder %s111, %s112
    %p126 = scmp.eq.s32.totalorder %s27, 1
    %p127 = por %p125, %p126
    %p129 = scmp.ne.s32.totalorder %s112, %s128
    %p130 = scmp.eq.s32.totalorder %s27, 0
    %p131 = por %p129, %p130
    %s132 = ssub.s32 %s28, %s47
    %s133 = ssub.s32 %s30, %s39
    %s134 = sor.u32 %s132, %s133
    %p135 = scmp.eq.s32.totalorder %s134, 0
    %s137 = sadd.s32 %s136, 1
    %s138 = scalar_select %p135, %s136, %s137
    %p141 = pneg %p135
    %p142 = scmp.eq.s32.totalorder %s21, 1
    %p143 = por %p141, %p142
    %p144 = scmp.ne.s32.totalorder %s136, %s139
    %p145 = scmp.eq.s32.totalorder %s21, 0
    %p146 = por %p144, %p145
    %p147 = scmp.ne.s32.totalorder %s136, %s139
    %p148 = scmp.eq.s32.totalorder %s26, 1
    %p149 = por %p147, %p148
    %p150 = scmp.ne.s32.totalorder %s139, %s140
    %p151 = scmp.eq.s32.totalorder %s26, 0
    %p152 = por %p150, %p151
    %p153 = scmp.ne.s32.totalorder %s139, %s140
    %p154 = scmp.eq.s32.totalorder %s27, 1
    %p155 = por %p153, %p154
    %p157 = scmp.ne.s32.totalorder %s140, %s156
    %p158 = scmp.eq.s32.totalorder %s27, 0
    %p159 = por %p157, %p158
    %s161 = sadd.s32 %s160, 1
    %p164 = scmp.eq.s32.totalorder %s21, 1
    %p165 = scmp.ne.s32.totalorder %s160, %s162
    %p166 = scmp.eq.s32.totalorder %s21, 0
    %p167 = por %p165, %p166
    %p168 = scmp.ne.s32.totalorder %s160, %s162
    %p169 = scmp.eq.s32.totalorder %s26, 1
    %p170 = por %p168, %p169
    %p171 = scmp.ne.s32.totalorder %s162, %s163
    %p172 = scmp.eq.s32.totalorder %s26, 0
    %p173 = por %p171, %p172
    %p174 = scmp.ne.s32.totalorder %s162, %s163
    %p175 = scmp.eq.s32.totalorder %s27, 1
    %p176 = por %p174, %p175
    %p178 = scmp.ne.s32.totalorder %s163, %s177
    %p179 = scmp.eq.s32.totalorder %s27, 0
    %p180 = por %p178, %p179
    %s182 = sadd.s32 %s181, 1
    %p185 = scmp.eq.s32.totalorder %s21, 1
    %p186 = scmp.ne.s32.totalorder %s181, %s183
    %p187 = scmp.eq.s32.totalorder %s21, 0
    %p188 = por %p186, %p187
    %p189 = scmp.ne.s32.totalorder %s181, %s183
    %p190 = scmp.eq.s32.totalorder %s26, 1
    %p191 = por %p189, %p190
    %p192 = scmp.ne.s32.totalorder %s183, %s184
    %p193 = scmp.eq.s32.totalorder %s26, 0
    %p194 = por %p192, %p193
    %p195 = scmp.ne.s32.totalorder %s183, %s184
    %p196 = scmp.eq.s32.totalorder %s27, 1
    %p197 = por %p195, %p196
    %p199 = scmp.ne.s32.totalorder %s184, %s198
    %p200 = scmp.eq.s32.totalorder %s27, 0
    %p201 = por %p199, %p200
    %s203 = sadd.s32 %s202, 1
    %p206 = scmp.eq.s32.totalorder %s21, 1
    %p207 = scmp.ne.s32.totalorder %s202, %s204
    %p208 = scmp.eq.s32.totalorder %s21, 0
    %p209 = por %p207, %p208
    %p210 = scmp.ne.s32.totalorder %s202, %s204
    %p211 = scmp.eq.s32.totalorder %s26, 1
    %p212 = por %p210, %p211
    %p213 = scmp.ne.s32.totalorder %s204, %s205
    %p214 = scmp.eq.s32.totalorder %s26, 0
    %p215 = por %p213, %p214
    %p216 = scmp.ne.s32.totalorder %s204, %s205
    %p217 = scmp.eq.s32.totalorder %s27, 1
    %p218 = por %p216, %p217
    %p220 = scmp.ne.s32.totalorder %s205, %s219
    %p221 = scmp.eq.s32.totalorder %s27, 0
    %p222 = por %p220, %p221
    %s224 = sadd.s32 %s223, 1
    %p227 = scmp.eq.s32.totalorder %s21, 1
    %p228 = scmp.ne.s32.totalorder %s223, %s225
    %p229 = scmp.eq.s32.totalorder %s21, 0
    %p230 = por %p228, %p229
    %p231 = scmp.ne.s32.totalorder %s223, %s225
    %p232 = scmp.eq.s32.totalorder %s26, 1
    %p233 = por %p231, %p232
    %p234 = scmp.ne.s32.totalorder %s225, %s226
    %p235 = scmp.eq.s32.totalorder %s26, 0
    %p236 = por %p234, %p235
    %p237 = scmp.ne.s32.totalorder %s225, %s226
    %p238 = scmp.eq.s32.totalorder %s27, 1
    %p239 = por %p237, %p238
    %p241 = scmp.ne.s32.totalorder %s226, %s240
    %p242 = scmp.eq.s32.totalorder %s27, 0
    %p243 = por %p241, %p242
    %s245 = sadd.s32 %s244, 1
    %p248 = scmp.eq.s32.totalorder %s21, 1
    %p249 = scmp.ne.s32.totalorder %s244, %s246
    %p250 = scmp.eq.s32.totalorder %s21, 0
    %p251 = por %p249, %p250
    %p252 = scmp.ne.s32.totalorder %s244, %s246
    %p253 = scmp.eq.s32.totalorder %s26, 1
    %p254 = por %p252, %p253
    %p255 = scmp.ne.s32.totalorder %s246, %s247
    %p256 = scmp.eq.s32.totalorder %s26, 0
    %p257 = por %p255, %p256
    %p258 = scmp.ne.s32.totalorder %s246, %s247
    %p259 = scmp.eq.s32.totalorder %s27, 1
    %p260 = por %p258, %p259
    %p262 = scmp.ne.s32.totalorder %s247, %s261
    %p263 = scmp.eq.s32.totalorder %s27, 0
    %p264 = por %p262, %p263
    %s266 = sadd.s32 %s265, 1
    %p269 = scmp.eq.s32.totalorder %s21, 1
    %p270 = scmp.ne.s32.totalorder %s265, %s267
    %p271 = scmp.eq.s32.totalorder %s21, 0
    %p272 = por %p270, %p271
    %p273 = scmp.ne.s32.totalorder %s265, %s267
    %p274 = scmp.eq.s32.totalorder %s26, 1
    %p275 = por %p273, %p274
    %p276 = scmp.ne.s32.totalorder %s267, %s268
    %p277 = scmp.eq.s32.totalorder %s26, 0
    %p278 = por %p276, %p277
    %p279 = scmp.ne.s32.totalorder %s267, %s268
    %p280 = scmp.eq.s32.totalorder %s27, 1
    %p281 = por %p279, %p280
    %p283 = scmp.ne.s32.totalorder %s268, %s282
    %p284 = scmp.eq.s32.totalorder %s27, 0
    %p285 = por %p283, %p284
    %s287 = sadd.s32 %s286, 1
    %p290 = scmp.eq.s32.totalorder %s21, 1
    %p291 = scmp.ne.s32.totalorder %s286, %s288
    %p292 = scmp.eq.s32.totalorder %s21, 0
    %p293 = por %p291, %p292
    %p294 = scmp.ne.s32.totalorder %s286, %s288
    %p295 = scmp.eq.s32.totalorder %s26, 1
    %p296 = por %p294, %p295
    %p297 = scmp.ne.s32.totalorder %s288, %s289
    %p298 = scmp.eq.s32.totalorder %s26, 0
    %p299 = por %p297, %p298
    %p300 = scmp.ne.s32.totalorder %s288, %s289
    %p301 = scmp.eq.s32.totalorder %s27, 1
    %p302 = por %p300, %p301
    %p304 = scmp.ne.s32.totalorder %s289, %s303
    %p305 = scmp.eq.s32.totalorder %s27, 0
    %p306 = por %p304, %p305
    %s308 = sadd.s32 %s307, 1
    %p311 = scmp.eq.s32.totalorder %s21, 1
    %p312 = scmp.ne.s32.totalorder %s307, %s309
    %p313 = scmp.eq.s32.totalorder %s21, 0
    %p314 = por %p312, %p313
    %p315 = scmp.ne.s32.totalorder %s307, %s309
    %p316 = scmp.eq.s32.totalorder %s26, 1
    %p317 = por %p315, %p316
    %p318 = scmp.ne.s32.totalorder %s309, %s310
    %p319 = scmp.eq.s32.totalorder %s26, 0
    %p320 = por %p318, %p319
    %p321 = scmp.ne.s32.totalorder %s309, %s310
    %p322 = scmp.eq.s32.totalorder %s27, 1
    %p323 = por %p321, %p322
    %p325 = scmp.ne.s32.totalorder %s310, %s324
    %p326 = scmp.eq.s32.totalorder %s27, 0
    %p327 = por %p325, %p326
    %s328 = ssub.s32 %s28, %s47
    %s329 = ssub.s32 %s29, %s43
    %s330 = sor.u32 %s328, %s329
    %p331 = scmp.eq.s32.totalorder %s330, 0
    %s333 = sadd.s32 %s332, 1
    %s334 = scalar_select %p331, %s332, %s333
    %p337 = pneg %p331
    %p338 = scmp.eq.s32.totalorder %s21, 1
    %p339 = por %p337, %p338
    %p340 = scmp.ne.s32.totalorder %s332, %s335
    %p341 = scmp.eq.s32.totalorder %s21, 0
    %p342 = por %p340, %p341
    %p343 = scmp.ne.s32.totalorder %s332, %s335
    %p344 = scmp.eq.s32.totalorder %s26, 1
    %p345 = por %p343, %p344
    %p346 = scmp.ne.s32.totalorder %s335, %s336
    %p347 = scmp.eq.s32.totalorder %s26, 0
    %p348 = por %p346, %p347
    %p349 = scmp.ne.s32.totalorder %s335, %s336
    %p350 = scmp.eq.s32.totalorder %s27, 1
    %p351 = por %p349, %p350
    %p353 = scmp.ne.s32.totalorder %s336, %s352
    %p354 = scmp.eq.s32.totalorder %s27, 0
    %p355 = por %p353, %p354
    %s357 = sadd.s32 %s356, 1
    %p360 = scmp.eq.s32.totalorder %s21, 1
    %p361 = scmp.ne.s32.totalorder %s356, %s358
    %p362 = scmp.eq.s32.totalorder %s21, 0
    %p363 = por %p361, %p362
    %p364 = scmp.ne.s32.totalorder %s356, %s358
    %p365 = scmp.eq.s32.totalorder %s26, 1
    %p366 = por %p364, %p365
    %p367 = scmp.ne.s32.totalorder %s358, %s359
    %p368 = scmp.eq.s32.totalorder %s26, 0
    %p369 = por %p367, %p368
    %p370 = scmp.ne.s32.totalorder %s358, %s359
    %p371 = scmp.eq.s32.totalorder %s27, 1
    %p372 = por %p370, %p371
    %p374 = scmp.ne.s32.totalorder %s359, %s373
    %p375 = scmp.eq.s32.totalorder %s27, 0
    %p376 = por %p374, %p375
    %s378 = sadd.s32 %s377, 1
    %p381 = scmp.eq.s32.totalorder %s21, 1
    %p382 = scmp.ne.s32.totalorder %s377, %s379
    %p383 = scmp.eq.s32.totalorder %s21, 0
    %p384 = por %p382, %p383
    %p385 = scmp.ne.s32.totalorder %s377, %s379
    %p386 = scmp.eq.s32.totalorder %s26, 1
    %p387 = por %p385, %p386
    %p388 = scmp.ne.s32.totalorder %s379, %s380
    %p389 = scmp.eq.s32.totalorder %s26, 0
    %p390 = por %p388, %p389
    %p391 = scmp.ne.s32.totalorder %s379, %s380
    %p392 = scmp.eq.s32.totalorder %s27, 1
    %p393 = por %p391, %p392
    %p395 = scmp.ne.s32.totalorder %s380, %s394
    %p396 = scmp.eq.s32.totalorder %s27, 0
    %p397 = por %p395, %p396
    %s398 = ssub.s32 %s28, %s47
    %s399 = ssub.s32 %s29, %s43
    %s400 = sor.u32 %s398, %s399
    %p401 = scmp.eq.s32.totalorder %s400, 0
    %s403 = sadd.s32 %s402, 1
    %s404 = scalar_select %p401, %s402, %s403
    %p407 = pneg %p401
    %p408 = scmp.eq.s32.totalorder %s21, 1
    %p409 = por %p407, %p408
    %p410 = scmp.ne.s32.totalorder %s402, %s405
    %p411 = scmp.eq.s32.totalorder %s21, 0
    %p412 = por %p410, %p411
    %p413 = scmp.ne.s32.totalorder %s402, %s405
    %p414 = scmp.eq.s32.totalorder %s26, 1
    %p415 = por %p413, %p414
    %p416 = scmp.ne.s32.totalorder %s405, %s406
    %p417 = scmp.eq.s32.totalorder %s26, 0
    %p418 = por %p416, %p417
    %p419 = scmp.ne.s32.totalorder %s405, %s406
    %p420 = scmp.eq.s32.totalorder %s27, 1
    %p421 = por %p419, %p420
    %p423 = scmp.ne.s32.totalorder %s406, %s422
    %p424 = scmp.eq.s32.totalorder %s27, 0
    %p425 = por %p423, %p424
    %p426 = scmp.le.s32.totalorder 1, %s21
    %p427 = scmp.lt.s32.totalorder %s21, 3
    %p428 = pnand %p426, %p427
    %p429 = pneg %p428
    // Predicated region
    $region9: #{block_forward.4} parent=5 // pred_check
      _
    $region10: #{block_forward.4} parent=5 // pred_check_branch
      %431 = sbr.rel (%p428) target = $region12
    $region11: #{block_forward.4} parent=5 // pred_region
      %s432 = ssub.s32 %s21, 1
      // Predicated region
      $region13: #{block_forward.4} parent=11 // pred_check
        %p433 = pneg %p173
      $region14: #{block_forward.4} parent=11 // pred_check_branch
        %435 = sbr.rel (%p433) target = $region16
      $region15: #{block_forward.4} parent=11 // pred_region
        _
      $region16: #{block_forward.4} parent=11 // pred_fallthru
        _
      // Predicated region
      $region17: #{block_forward.4} parent=11 // pred_check
        %p436 = pneg %p194
      $region18: #{block_forward.4} parent=11 // pred_check_branch
        %438 = sbr.rel (%p436) target = $region20
      $region19: #{block_forward.4} parent=11 // pred_region
        _
      $region20: #{block_forward.4} parent=11 // pred_fallthru
        _
      // Predicated region
      $region21: #{block_forward.4} parent=11 // pred_check
        %p439 = pneg %p215
      $region22: #{block_forward.4} parent=11 // pred_check_branch
        %441 = sbr.rel (%p439) target = $region24
      $region23: #{block_forward.4} parent=11 // pred_region
        _
      $region24: #{block_forward.4} parent=11 // pred_fallthru
        _
      // Predicated region
      $region25: #{block_forward.4} parent=11 // pred_check
        %p442 = pneg %p236
      $region26: #{block_forward.4} parent=11 // pred_check_branch
        %444 = sbr.rel (%p442) target = $region28
      $region27: #{block_forward.4} parent=11 // pred_region
        _
      $region28: #{block_forward.4} parent=11 // pred_fallthru
        _
      // Predicated region
      $region29: #{block_forward.4} parent=11 // pred_check
        %p445 = pneg %p257
      $region30: #{block_forward.4} parent=11 // pred_check_branch
        %447 = sbr.rel (%p445) target = $region32
      $region31: #{block_forward.4} parent=11 // pred_region
        _
      $region32: #{block_forward.4} parent=11 // pred_fallthru
        _
      // Predicated region
      $region33: #{block_forward.4} parent=11 // pred_check
        %p448 = pneg %p278
      $region34: #{block_forward.4} parent=11 // pred_check_branch
        %450 = sbr.rel (%p448) target = $region36
      $region35: #{block_forward.4} parent=11 // pred_region
        _
      $region36: #{block_forward.4} parent=11 // pred_fallthru
        _
      // Predicated region
      $region37: #{block_forward.4} parent=11 // pred_check
        %p451 = pneg %p299
      $region38: #{block_forward.4} parent=11 // pred_check_branch
        %453 = sbr.rel (%p451) target = $region40
      $region39: #{block_forward.4} parent=11 // pred_region
        _
      $region40: #{block_forward.4} parent=11 // pred_fallthru
        _
      // Predicated region
      $region41: #{block_forward.4} parent=11 // pred_check
        %p454 = pneg %p320
      $region42: #{block_forward.4} parent=11 // pred_check_branch
        %456 = sbr.rel (%p454) target = $region44
      $region43: #{block_forward.4} parent=11 // pred_region
        _
      $region44: #{block_forward.4} parent=11 // pred_fallthru
        _
      // Predicated region
      $region45: #{block_forward.4} parent=11 // pred_check
        %p457 = pneg %p369
      $region46: #{block_forward.4} parent=11 // pred_check_branch
        %459 = sbr.rel (%p457) target = $region48
      $region47: #{block_forward.4} parent=11 // pred_region
        _
      $region48: #{block_forward.4} parent=11 // pred_fallthru
        _
      // Predicated region
      $region49: #{block_forward.4} parent=11 // pred_check
        %p460 = pneg %p390
      $region50: #{block_forward.4} parent=11 // pred_check_branch
        %462 = sbr.rel (%p460) target = $region52
      $region51: #{block_forward.4} parent=11 // pred_region
        _
      $region52: #{block_forward.4} parent=11 // pred_fallthru
        _
    $region12: #{block_forward.4} parent=5 // pred_fallthru
      _
    %p463 = scmp.lt.s32.totalorder %s21, 2
    // Predicated region
    $region53: #{block_forward.4} parent=5 // pred_check
      %p464 = pneg %p463
    $region54: #{block_forward.4} parent=5 // pred_check_branch
      %466 = sbr.rel (%p464) target = $region56
    $region55: #{block_forward.4} parent=5 // pred_region
      // Predicated region
      $region57: #{block_forward.4} parent=55 // pred_check
        %p467 = pneg %p62
      $region58: #{block_forward.4} parent=55 // pred_check_branch
        %469 = sbr.rel (%p467) target = $region60
      $region59: #{block_forward.4} parent=55 // pred_region
        %p470 = scmp.lt.s32.totalorder %s28, 1
        %s471 = scalar_select %p470, %s28, 1
        %p472 = scmp.lt.s32.totalorder %s29, 0
        %s473 = scalar_select %p472, %s29, 0
        %s474 = sadd.s32 %s473, %s471
        %s475 = smul.addr %s474, 4
        %s476 = scalar_lea.vmem %s0, %s475
      $region60: #{block_forward.4} parent=55 // pred_fallthru
        _
      // Predicated region
      $region61: #{block_forward.4} parent=55 // pred_check
        %p477 = pneg %p90
      $region62: #{block_forward.4} parent=55 // pred_check_branch
        %479 = sbr.rel (%p477) target = $region64
      $region63: #{block_forward.4} parent=55 // pred_region
        %p480 = scmp.lt.s32.totalorder %s28, 1
        %s481 = scalar_select %p480, %s28, 1
        %p482 = scmp.lt.s32.totalorder %s29, 0
        %s483 = scalar_select %p482, %s29, 0
        %s484 = sadd.s32 %s483, %s481
        %s485 = smul.addr %s484, 4
        %s486 = scalar_lea.vmem %s1, %s485
      $region64: #{block_forward.4} parent=55 // pred_fallthru
        _
      // Predicated region
      $region65: #{block_forward.4} parent=55 // pred_check
        %p487 = pneg %p118
      $region66: #{block_forward.4} parent=55 // pred_check_branch
        %489 = sbr.rel (%p487) target = $region68
      $region67: #{block_forward.4} parent=55 // pred_region
        %p490 = scmp.lt.s32.totalorder %s28, 1
        %s491 = scalar_select %p490, %s28, 1
        %p492 = scmp.lt.s32.totalorder %s30, 0
        %s493 = scalar_select %p492, %s30, 0
        %s494 = sadd.s32 %s493, %s491
        %s495 = smul.addr %s494, 4
        %s496 = scalar_lea.vmem %s2, %s495
      $region68: #{block_forward.4} parent=55 // pred_fallthru
        _
      // Predicated region
      $region69: #{block_forward.4} parent=55 // pred_check
        %p497 = pneg %p146
      $region70: #{block_forward.4} parent=55 // pred_check_branch
        %499 = sbr.rel (%p497) target = $region72
      $region71: #{block_forward.4} parent=55 // pred_region
        %p500 = scmp.lt.s32.totalorder %s28, 1
        %s501 = scalar_select %p500, %s28, 1
        %p502 = scmp.lt.s32.totalorder %s30, 0
        %s503 = scalar_select %p502, %s30, 0
        %s504 = sadd.s32 %s503, %s501
        %s505 = smul.addr %s504, 4
        %s506 = scalar_lea.vmem %s3, %s505
      $region72: #{block_forward.4} parent=55 // pred_fallthru
        _
      // Predicated region
      $region73: #{block_forward.4} parent=55 // pred_check
        %p507 = pneg %p342
      $region74: #{block_forward.4} parent=55 // pred_check_branch
        %509 = sbr.rel (%p507) target = $region76
      $region75: #{block_forward.4} parent=55 // pred_region
        %p510 = scmp.lt.s32.totalorder %s28, 1
        %s511 = scalar_select %p510, %s28, 1
        %p512 = scmp.lt.s32.totalorder %s29, 0
        %s513 = scalar_select %p512, %s29, 0
        %s514 = sadd.s32 %s513, %s511
        %s515 = smul.addr %s514, 4
        %s516 = scalar_lea.vmem %s12, %s515
      $region76: #{block_forward.4} parent=55 // pred_fallthru
        _
    $region56: #{block_forward.4} parent=5 // pred_fallthru
      _
    %p517 = scmp.le.s32.totalorder 1, %s21
    %p518 = scmp.lt.s32.totalorder %s21, 3
    %p519 = pnand %p517, %p518
    %p520 = pneg %p519
    // Predicated region
    $region77: #{block_forward.4} parent=5 // pred_check
      _
    $region78: #{block_forward.4} parent=5 // pred_check_branch
      %522 = sbr.rel (%p519) target = $region80
    $region79: #{block_forward.4} parent=5 // pred_region
      %s523 = ssub.s32 %s21, 1
      %p524 = scmp.lt.s32.totalorder %s31, 1
      %s525 = scalar_select %p524, %s31, 1
      %p526 = scmp.lt.s32.totalorder %s32, 0
      %s527 = scalar_select %p526, %s32, 0
      %s528 = sadd.s32 %s527, %s525
      %s529 = smul.addr %s528, 4
      %s530 = scalar_lea.vmem %s0, %s529
      %p531 = pneg %p68
      %p532 = pneg %p65
      %p533 = scmp.lt.s32.totalorder %s31, 1
      %s534 = scalar_select %p533, %s31, 1
      %p535 = scmp.lt.s32.totalorder %s32, 0
      %s536 = scalar_select %p535, %s32, 0
      %s537 = sadd.s32 %s536, %s534
      %s538 = smul.addr %s537, 4
      %s539 = scalar_lea.vmem %s1, %s538
      %p540 = pneg %p96
      %p541 = pneg %p93
      %p542 = scmp.lt.s32.totalorder %s31, 1
      %s543 = scalar_select %p542, %s31, 1
      %p544 = scmp.lt.s32.totalorder %s33, 0
      %s545 = scalar_select %p544, %s33, 0
      %s546 = sadd.s32 %s545, %s543
      %s547 = smul.addr %s546, 4
      %s548 = scalar_lea.vmem %s2, %s547
      %p549 = pneg %p124
      %p550 = pneg %p121
      %p551 = scmp.lt.s32.totalorder %s31, 1
      %s552 = scalar_select %p551, %s31, 1
      %p553 = scmp.lt.s32.totalorder %s33, 0
      %s554 = scalar_select %p553, %s33, 0
      %s555 = sadd.s32 %s554, %s552
      %s556 = smul.addr %s555, 4
      %s557 = scalar_lea.vmem %s3, %s556
      %p558 = pneg %p152
      %p559 = pneg %p149
      %p560 = pneg %p173
      %p561 = pneg %p170
      %p562 = pneg %p194
      %p563 = pneg %p191
      %p564 = pneg %p215
      %p565 = pneg %p212
      %p566 = pneg %p236
      %p567 = pneg %p233
      %p568 = pneg %p257
      %p569 = pneg %p254
      %p570 = pneg %p278
      %p571 = pneg %p275
      %p572 = pneg %p299
      %p573 = pneg %p296
      %p574 = pneg %p320
      %p575 = pneg %p317
      %p576 = scmp.lt.s32.totalorder %s31, 1
      %s577 = scalar_select %p576, %s31, 1
      %p578 = scmp.lt.s32.totalorder %s32, 0
      %s579 = scalar_select %p578, %s32, 0
      %s580 = sadd.s32 %s579, %s577
      %s581 = smul.addr %s580, 4
      %s582 = scalar_lea.vmem %s12, %s581
      %p583 = pneg %p348
      %p584 = pneg %p345
      %p585 = pneg %p369
      %p586 = pneg %p366
      %p587 = pneg %p390
      %p588 = pneg %p387
      %p589 = pneg %p418
      %p590 = pneg %p415
      %p591 = scmp.lt.s32.totalorder %s31, 1
      %s592 = scalar_select %p591, %s31, 1
      %p593 = scmp.lt.s32.totalorder %s32, 0
      %s594 = scalar_select %p593, %s32, 0
      %s595 = sadd.s32 %s594, %s592
      %s596 = smul.addr %s595, 4
      %s597 = scalar_lea.vmem %s15, %s596
      %p598 = scmp.lt.s32.totalorder %s31, 1
      %s599 = scalar_select %p598, %s31, 1
      %p600 = scmp.lt.s32.totalorder %s32, 0
      %s601 = scalar_select %p600, %s32, 0
      %s602 = sadd.s32 %s601, %s599
      %s603 = smul.addr %s602, 4
      %s604 = scalar_lea.vmem %s0, %s603
      %p605 = scmp.lt.s32.totalorder %s31, 1
      %s606 = scalar_select %p605, %s31, 1
      %p607 = scmp.lt.s32.totalorder %s32, 0
      %s608 = scalar_select %p607, %s32, 0
      %s609 = sadd.s32 %s608, %s606
      %s610 = smul.addr %s609, 4
      %s611 = scalar_lea.vmem %s1, %s610
      %p612 = scmp.lt.s32.totalorder %s31, 1
      %s613 = scalar_select %p612, %s31, 1
      %p614 = scmp.lt.s32.totalorder %s33, 0
      %s615 = scalar_select %p614, %s33, 0
      %s616 = sadd.s32 %s615, %s613
      %s617 = smul.addr %s616, 4
      %s618 = scalar_lea.vmem %s2, %s617
      %p619 = scmp.lt.s32.totalorder %s31, 1
      %s620 = scalar_select %p619, %s31, 1
      %p621 = scmp.lt.s32.totalorder %s33, 0
      %s622 = scalar_select %p621, %s33, 0
      %s623 = sadd.s32 %s622, %s620
      %s624 = smul.addr %s623, 4
      %s625 = scalar_lea.vmem %s3, %s624
      %p626 = scmp.lt.s32.totalorder %s31, 1
      %s627 = scalar_select %p626, %s31, 1
      %p628 = scmp.lt.s32.totalorder %s32, 0
      %s629 = scalar_select %p628, %s32, 0
      %s630 = sadd.s32 %s629, %s627
      %s631 = smul.addr %s630, 4
      %s632 = scalar_lea.vmem %s12, %s631
      %p633 = scmp.lt.s32.totalorder %s31, 1
      %s634 = scalar_select %p633, %s31, 1
      %p635 = scmp.lt.s32.totalorder %s32, 0
      %s636 = scalar_select %p635, %s32, 0
      %s637 = sadd.s32 %s636, %s634
      %s638 = smul.addr %s637, 4
      %s639 = scalar_lea.vmem %s15, %s638
      %p641 = scmp.eq.s32.totalorder %s33, 0
      // Predicated region
      $region81: #{block_forward.4} parent=79 // pred_check
        %p642 = pneg %p641
      $region82: #{block_forward.4} parent=79 // pred_check_branch
        %644 = sbr.rel (%p642) target = $region84
      $region83: #{block_forward.4} parent=79 // pred_region
        %v645 = vld [vmem:[%s604] sm:$0xf]
        %v646 = vld [vmem:[%s611] sm:$0xf]
        %v647 = vadd.bf16 %v645, %v646
        %v648 = vld [vmem:[%s4] sm:$0xf]
        %v649 = vld [vmem:[%s4 + $0x4] sm:$0xf]
        %v650 = vld [vmem:[%s4 + $0x8] sm:$0xf]
        %v651 = vld [vmem:[%s4 + $0xc] sm:$0xf]
        %v652 = vld [vmem:[%s4 + $0x10] sm:$0xf]
        %v653 = vld [vmem:[%s4 + $0x14] sm:$0xf]
        %v654 = vld [vmem:[%s4 + $0x18] sm:$0xf]
        %v655 = vld [vmem:[%s4 + $0x1c] sm:$0xf]
        %v656 = vld [vmem:[%s4 + $0x20] sm:$0xf]
        %v657 = vld [vmem:[%s4 + $0x24] sm:$0xf]
        %v658 = vld [vmem:[%s4 + $0x28] sm:$0xf]
        %v659 = vld [vmem:[%s4 + $0x2c] sm:$0xf]
        %v660 = vld [vmem:[%s4 + $0x30] sm:$0xf]
        %v661 = vld [vmem:[%s4 + $0x34] sm:$0xf]
        %v662 = vld [vmem:[%s4 + $0x38] sm:$0xf]
        %v663 = vld [vmem:[%s4 + $0x3c] sm:$0xf]
        %v664 = vld [vmem:[%s5] sm:$0x1]
        %v666 = vlaneseq
        %v667 = vshrl.u32 %v666, 7
        %v668 = vsub.s32 0, %v667
        %v669 = vrot.slane %v664, %v668
        %v687 = vunpack.c.l.b16 %v648
        %v688 = vunpack.c.l.b16 %v649
        %v689 = vunpack.c.l.b16 %v650
        %v690 = vunpack.c.l.b16 %v651
        %v691 = vunpack.c.l.b16 %v652
        %v692 = vunpack.c.l.b16 %v653
        %v693 = vunpack.c.l.b16 %v654
        %v694 = vunpack.c.l.b16 %v655
        %v695 = vunpack.c.l.b16 %v656
        %v696 = vunpack.c.l.b16 %v657
        %v697 = vunpack.c.l.b16 %v658
        %v698 = vunpack.c.l.b16 %v659
        %v699 = vunpack.c.l.b16 %v660
        %v700 = vunpack.c.l.b16 %v661
        %v701 = vunpack.c.l.b16 %v662
        %v702 = vunpack.c.l.b16 %v663
        %v703 = vpack.c.b16 %v688, %v687
        %v704 = vpack.c.b16 %v690, %v689
        %v705 = vpack.c.b16 %v692, %v691
        %v706 = vpack.c.b16 %v694, %v693
        %v707 = vpack.c.b16 %v696, %v695
        %v708 = vpack.c.b16 %v698, %v697
        %v709 = vpack.c.b16 %v700, %v699
        %v710 = vpack.c.b16 %v702, %v701
        %719 = vmatprep.subr.bf16.mxu0 0
        %720 = vmatpush1.bf16.msra.mxu0 %v703
        %721 = vmatprep.subr.bf16.mxu0 0
        %722 = vmatpush1.bf16.msra.mxu0 %v704
        %723 = vmatprep.subr.bf16.mxu0 0
        %724 = vmatpush1.bf16.msra.mxu0 %v705
        %725 = vmatprep.subr.bf16.mxu0 0
        %726 = vmatpush1.bf16.msra.mxu0 %v706
        %727 = vmatprep.subr.bf16.mxu0 0
        %728 = vmatpush1.bf16.msra.mxu0 %v707
        %729 = vmatprep.subr.bf16.mxu0 0
        %730 = vmatpush1.bf16.msra.mxu0 %v708
        %731 = vmatprep.subr.bf16.mxu0 0
        %732 = vmatpush1.bf16.msra.mxu0 %v709
        %733 = vmatprep.subr.bf16.mxu0 0
        %734 = vmatpush1.bf16.msra.mxu0 %v710
        %735 = vmatprep.subr.bf16.mxu0 0
        %736 = vmatpush1.bf16.msra.mxu0 0
        %737 = vmatprep.subr.bf16.mxu0 0
        %738 = vmatpush1.bf16.msra.mxu0 0
        %739 = vmatprep.subr.bf16.mxu0 0
        %740 = vmatpush1.bf16.msra.mxu0 0
        %741 = vmatprep.subr.bf16.mxu0 0
        %742 = vmatpush1.bf16.msra.mxu0 0
        %743 = vmatprep.subr.bf16.mxu0 0
        %744 = vmatpush1.bf16.msra.mxu0 0
        %745 = vmatprep.subr.bf16.mxu0 0
        %746 = vmatpush1.bf16.msra.mxu0 0
        %747 = vmatprep.subr.bf16.mxu0 0
        %748 = vmatpush1.bf16.msra.mxu0 0
        %749 = vmatprep.subr.bf16.mxu0 0
        %750 = vmatpush1.bf16.msra.mxu0 0
        %751 = vmatprep.mubr.bf16.mxu0 0
        %752 = vmatmul.mubr.bf16.gmra.mrb[0].mxu0 %v647
        %v753 = vpop.f32.mrb[0].mxu0
        %v754 = vadd.f32 %v669, %v753
        %v755 = vpop.f32.mrb[0].mxu0
        %v756 = vpop.f32.mrb[0].mxu0
        %v757 = vpop.f32.mrb[0].mxu0
        %758 = vdwg.mxu0
        %v759 = vmul.f32 %v754, 0.17677669
        %v760 = vpack.c.bf16 %v759, %v759
        %vm761 = vcmask 257024
        %762 = vst.msk [vmem:[#allocation2] sm:$0xf] %vm761, %v760
        %s763 = scalar_lea.vmem %s4, 64
        %v764 = vld [vmem:[%s763] sm:$0xf]
        %v765 = vld [vmem:[%s763 + $0x4] sm:$0xf]
        %v766 = vld [vmem:[%s763 + $0x8] sm:$0xf]
        %v767 = vld [vmem:[%s763 + $0xc] sm:$0xf]
        %v768 = vld [vmem:[%s763 + $0x10] sm:$0xf]
        %v769 = vld [vmem:[%s763 + $0x14] sm:$0xf]
        %v770 = vld [vmem:[%s763 + $0x18] sm:$0xf]
        %v771 = vld [vmem:[%s763 + $0x1c] sm:$0xf]
        %v772 = vld [vmem:[%s763 + $0x20] sm:$0xf]
        %v773 = vld [vmem:[%s763 + $0x24] sm:$0xf]
        %v774 = vld [vmem:[%s763 + $0x28] sm:$0xf]
        %v775 = vld [vmem:[%s763 + $0x2c] sm:$0xf]
        %v776 = vld [vmem:[%s763 + $0x30] sm:$0xf]
        %v777 = vld [vmem:[%s763 + $0x34] sm:$0xf]
        %v778 = vld [vmem:[%s763 + $0x38] sm:$0xf]
        %v779 = vld [vmem:[%s763 + $0x3c] sm:$0xf]
        %s780 = scalar_lea.vmem %s5, 1
        %v781 = vld [vmem:[%s780] sm:$0x1]
        %v783 = vlaneseq
        %v784 = vshrl.u32 %v783, 7
        %v785 = vsub.s32 0, %v784
        %v786 = vrot.slane %v781, %v785
        %v804 = vunpack.c.l.b16 %v764
        %v805 = vunpack.c.l.b16 %v765
        %v806 = vunpack.c.l.b16 %v766
        %v807 = vunpack.c.l.b16 %v767
        %v808 = vunpack.c.l.b16 %v768
        %v809 = vunpack.c.l.b16 %v769
        %v810 = vunpack.c.l.b16 %v770
        %v811 = vunpack.c.l.b16 %v771
        %v812 = vunpack.c.l.b16 %v772
        %v813 = vunpack.c.l.b16 %v773
        %v814 = vunpack.c.l.b16 %v774
        %v815 = vunpack.c.l.b16 %v775
        %v816 = vunpack.c.l.b16 %v776
        %v817 = vunpack.c.l.b16 %v777
        %v818 = vunpack.c.l.b16 %v778
        %v819 = vunpack.c.l.b16 %v779
        %v820 = vpack.c.b16 %v805, %v804
        %v821 = vpack.c.b16 %v807, %v806
        %v822 = vpack.c.b16 %v809, %v808
        %v823 = vpack.c.b16 %v811, %v810
        %v824 = vpack.c.b16 %v813, %v812
        %v825 = vpack.c.b16 %v815, %v814
        %v826 = vpack.c.b16 %v817, %v816
        %v827 = vpack.c.b16 %v819, %v818
        %836 = vmatprep.subr.bf16.mxu0 0
        %837 = vmatpush1.bf16.msra.mxu0 %v820
        %838 = vmatprep.subr.bf16.mxu0 0
        %839 = vmatpush1.bf16.msra.mxu0 %v821
        %840 = vmatprep.subr.bf16.mxu0 0
        %841 = vmatpush1.bf16.msra.mxu0 %v822
        %842 = vmatprep.subr.bf16.mxu0 0
        %843 = vmatpush1.bf16.msra.mxu0 %v823
        %844 = vmatprep.subr.bf16.mxu0 0
        %845 = vmatpush1.bf16.msra.mxu0 %v824
        %846 = vmatprep.subr.bf16.mxu0 0
        %847 = vmatpush1.bf16.msra.mxu0 %v825
        %848 = vmatprep.subr.bf16.mxu0 0
        %849 = vmatpush1.bf16.msra.mxu0 %v826
        %850 = vmatprep.subr.bf16.mxu0 0
        %851 = vmatpush1.bf16.msra.mxu0 %v827
        %852 = vmatprep.subr.bf16.mxu0 0
        %853 = vmatpush1.bf16.msra.mxu0 0
        %854 = vmatprep.subr.bf16.mxu0 0
        %855 = vmatpush1.bf16.msra.mxu0 0
        %856 = vmatprep.subr.bf16.mxu0 0
        %857 = vmatpush1.bf16.msra.mxu0 0
        %858 = vmatprep.subr.bf16.mxu0 0
        %859 = vmatpush1.bf16.msra.mxu0 0
        %860 = vmatprep.subr.bf16.mxu0 0
        %861 = vmatpush1.bf16.msra.mxu0 0
        %862 = vmatprep.subr.bf16.mxu0 0
        %863 = vmatpush1.bf16.msra.mxu0 0
        %864 = vmatprep.subr.bf16.mxu0 0
        %865 = vmatpush1.bf16.msra.mxu0 0
        %866 = vmatprep.subr.bf16.mxu0 0
        %867 = vmatpush1.bf16.msra.mxu0 0
        %868 = vmatprep.mubr.bf16.mxu0 0
        %869 = vmatmul.mubr.bf16.gmra.mrb[0].mxu0 %v647
        %v870 = vpop.f32.mrb[0].mxu0
        %v871 = vadd.f32 %v786, %v870
        %v872 = vpop.f32.mrb[0].mxu0
        %v873 = vpop.f32.mrb[0].mxu0
        %v874 = vpop.f32.mrb[0].mxu0
        %875 = vdwg.mxu0
        %v876 = vmul.f32 %v871, 0.17677669
        %v877 = vpack.c.bf16 %v876, %v876
        %s878 = scalar_lea.vmem [#allocation2], 4
        %879 = vst.msk [vmem:[%s878] sm:$0xf] %vm761, %v877
        %s880 = scalar_lea.vmem %s4, 128
        %v881 = vld [vmem:[%s880] sm:$0xf]
        %v882 = vld [vmem:[%s880 + $0x4] sm:$0xf]
        %v883 = vld [vmem:[%s880 + $0x8] sm:$0xf]
        %v884 = vld [vmem:[%s880 + $0xc] sm:$0xf]
        %v885 = vld [vmem:[%s880 + $0x10] sm:$0xf]
        %v886 = vld [vmem:[%s880 + $0x14] sm:$0xf]
        %v887 = vld [vmem:[%s880 + $0x18] sm:$0xf]
        %v888 = vld [vmem:[%s880 + $0x1c] sm:$0xf]
        %v889 = vld [vmem:[%s880 + $0x20] sm:$0xf]
        %v890 = vld [vmem:[%s880 + $0x24] sm:$0xf]
        %v891 = vld [vmem:[%s880 + $0x28] sm:$0xf]
        %v892 = vld [vmem:[%s880 + $0x2c] sm:$0xf]
        %v893 = vld [vmem:[%s880 + $0x30] sm:$0xf]
        %v894 = vld [vmem:[%s880 + $0x34] sm:$0xf]
        %v895 = vld [vmem:[%s880 + $0x38] sm:$0xf]
        %v896 = vld [vmem:[%s880 + $0x3c] sm:$0xf]
        %s897 = scalar_lea.vmem %s5, 2
        %v898 = vld [vmem:[%s897] sm:$0x1]
        %v900 = vlaneseq
        %v901 = vshrl.u32 %v900, 7
        %v902 = vsub.s32 0, %v901
        %v903 = vrot.slane %v898, %v902
        %v921 = vunpack.c.l.b16 %v881
        %v922 = vunpack.c.l.b16 %v882
        %v923 = vunpack.c.l.b16 %v883
        %v924 = vunpack.c.l.b16 %v884
        %v925 = vunpack.c.l.b16 %v885
        %v926 = vunpack.c.l.b16 %v886
        %v927 = vunpack.c.l.b16 %v887
        %v928 = vunpack.c.l.b16 %v888
        %v929 = vunpack.c.l.b16 %v889
        %v930 = vunpack.c.l.b16 %v890
        %v931 = vunpack.c.l.b16 %v891
        %v932 = vunpack.c.l.b16 %v892
        %v933 = vunpack.c.l.b16 %v893
        %v934 = vunpack.c.l.b16 %v894
        %v935 = vunpack.c.l.b16 %v895
        %v936 = vunpack.c.l.b16 %v896
        %v937 = vpack.c.b16 %v922, %v921
        %v938 = vpack.c.b16 %v924, %v923
        %v939 = vpack.c.b16 %v926, %v925
        %v940 = vpack.c.b16 %v928, %v927
        %v941 = vpack.c.b16 %v930, %v929
        %v942 = vpack.c.b16 %v932, %v931
        %v943 = vpack.c.b16 %v934, %v933
        %v944 = vpack.c.b16 %v936, %v935
        %953 = vmatprep.subr.bf16.mxu0 0
        %954 = vmatpush1.bf16.msra.mxu0 %v937
        %955 = vmatprep.subr.bf16.mxu0 0
        %956 = vmatpush1.bf16.msra.mxu0 %v938
        %957 = vmatprep.subr.bf16.mxu0 0
        %958 = vmatpush1.bf16.msra.mxu0 %v939
        %959 = vmatprep.subr.bf16.mxu0 0
        %960 = vmatpush1.bf16.msra.mxu0 %v940
        %961 = vmatprep.subr.bf16.mxu0 0
        %962 = vmatpush1.bf16.msra.mxu0 %v941
        %963 = vmatprep.subr.bf16.mxu0 0
        %964 = vmatpush1.bf16.msra.mxu0 %v942
        %965 = vmatprep.subr.bf16.mxu0 0
        %966 = vmatpush1.bf16.msra.mxu0 %v943
        %967 = vmatprep.subr.bf16.mxu0 0
        %968 = vmatpush1.bf16.msra.mxu0 %v944
        %969 = vmatprep.subr.bf16.mxu0 0
        %970 = vmatpush1.bf16.msra.mxu0 0
        %971 = vmatprep.subr.bf16.mxu0 0
        %972 = vmatpush1.bf16.msra.mxu0 0
        %973 = vmatprep.subr.bf16.mxu0 0
        %974 = vmatpush1.bf16.msra.mxu0 0
        %975 = vmatprep.subr.bf16.mxu0 0
        %976 = vmatpush1.bf16.msra.mxu0 0
        %977 = vmatprep.subr.bf16.mxu0 0
        %978 = vmatpush1.bf16.msra.mxu0 0
        %979 = vmatprep.subr.bf16.mxu0 0
        %980 = vmatpush1.bf16.msra.mxu0 0
        %981 = vmatprep.subr.bf16.mxu0 0
        %982 = vmatpush1.bf16.msra.mxu0 0
        %983 = vmatprep.subr.bf16.mxu0 0
        %984 = vmatpush1.bf16.msra.mxu0 0
        %985 = vmatprep.mubr.bf16.mxu0 0
        %986 = vmatmul.mubr.bf16.gmra.mrb[0].mxu0 %v647
        %v987 = vpop.f32.mrb[0].mxu0
        %v988 = vadd.f32 %v903, %v987
        %v989 = vpop.f32.mrb[0].mxu0
        %v990 = vpop.f32.mrb[0].mxu0
        %v991 = vpop.f32.mrb[0].mxu0
        %992 = vdwg.mxu0
        %v993 = vmul.f32 %v988, 0.17677669
        %v994 = vpack.c.bf16 %v993, %v993
        %s995 = scalar_lea.vmem [#allocation2], 8
        %996 = vst.msk [vmem:[%s995] sm:$0xf] %vm761, %v994
        %s997 = scalar_lea.vmem %s4, 192
        %v998 = vld [vmem:[%s997] sm:$0xf]
        %v999 = vld [vmem:[%s997 + $0x4] sm:$0xf]
        %v1000 = vld [vmem:[%s997 + $0x8] sm:$0xf]
        %v1001 = vld [vmem:[%s997 + $0xc] sm:$0xf]
        %v1002 = vld [vmem:[%s997 + $0x10] sm:$0xf]
        %v1003 = vld [vmem:[%s997 + $0x14] sm:$0xf]
        %v1004 = vld [vmem:[%s997 + $0x18] sm:$0xf]
        %v1005 = vld [vmem:[%s997 + $0x1c] sm:$0xf]
        %v1006 = vld [vmem:[%s997 + $0x20] sm:$0xf]
        %v1007 = vld [vmem:[%s997 + $0x24] sm:$0xf]
        %v1008 = vld [vmem:[%s997 + $0x28] sm:$0xf]
        %v1009 = vld [vmem:[%s997 + $0x2c] sm:$0xf]
        %v1010 = vld [vmem:[%s997 + $0x30] sm:$0xf]
        %v1011 = vld [vmem:[%s997 + $0x34] sm:$0xf]
        %v1012 = vld [vmem:[%s997 + $0x38] sm:$0xf]
        %v1013 = vld [vmem:[%s997 + $0x3c] sm:$0xf]
        %s1014 = scalar_lea.vmem %s5, 3
        %v1015 = vld [vmem:[%s1014] sm:$0x1]
        %v1017 = vlaneseq
        %v1018 = vshrl.u32 %v1017, 7
        %v1019 = vsub.s32 0, %v1018
        %v1020 = vrot.slane %v1015, %v1019
        %v1038 = vunpack.c.l.b16 %v998
        %v1039 = vunpack.c.l.b16 %v999
        %v1040 = vunpack.c.l.b16 %v1000
        %v1041 = vunpack.c.l.b16 %v1001
        %v1042 = vunpack.c.l.b16 %v1002
        %v1043 = vunpack.c.l.b16 %v1003
        %v1044 = vunpack.c.l.b16 %v1004
        %v1045 = vunpack.c.l.b16 %v1005
        %v1046 = vunpack.c.l.b16 %v1006
        %v1047 = vunpack.c.l.b16 %v1007
        %v1048 = vunpack.c.l.b16 %v1008
        %v1049 = vunpack.c.l.b16 %v1009
        %v1050 = vunpack.c.l.b16 %v1010
        %v1051 = vunpack.c.l.b16 %v1011
        %v1052 = vunpack.c.l.b16 %v1012
        %v1053 = vunpack.c.l.b16 %v1013
        %v1054 = vpack.c.b16 %v1039, %v1038
        %v1055 = vpack.c.b16 %v1041, %v1040
        %v1056 = vpack.c.b16 %v1043, %v1042
        %v1057 = vpack.c.b16 %v1045, %v1044
        %v1058 = vpack.c.b16 %v1047, %v1046
        %v1059 = vpack.c.b16 %v1049, %v1048
        %v1060 = vpack.c.b16 %v1051, %v1050
        %v1061 = vpack.c.b16 %v1053, %v1052
        %1070 = vmatprep.subr.bf16.mxu0 0
        %1071 = vmatpush1.bf16.msra.mxu0 %v1054
        %1072 = vmatprep.subr.bf16.mxu0 0
        %1073 = vmatpush1.bf16.msra.mxu0 %v1055
        %1074 = vmatprep.subr.bf16.mxu0 0
        %1075 = vmatpush1.bf16.msra.mxu0 %v1056
        %1076 = vmatprep.subr.bf16.mxu0 0
        %1077 = vmatpush1.bf16.msra.mxu0 %v1057
        %1078 = vmatprep.subr.bf16.mxu0 0
        %1079 = vmatpush1.bf16.msra.mxu0 %v1058
        %1080 = vmatprep.subr.bf16.mxu0 0
        %1081 = vmatpush1.bf16.msra.mxu0 %v1059
        %1082 = vmatprep.subr.bf16.mxu0 0
        %1083 = vmatpush1.bf16.msra.mxu0 %v1060
        %1084 = vmatprep.subr.bf16.mxu0 0
        %1085 = vmatpush1.bf16.msra.mxu0 %v1061
        %1086 = vmatprep.subr.bf16.mxu0 0
        %1087 = vmatpush1.bf16.msra.mxu0 0
        %1088 = vmatprep.subr.bf16.mxu0 0
        %1089 = vmatpush1.bf16.msra.mxu0 0
        %1090 = vmatprep.subr.bf16.mxu0 0
        %1091 = vmatpush1.bf16.msra.mxu0 0
        %1092 = vmatprep.subr.bf16.mxu0 0
        %1093 = vmatpush1.bf16.msra.mxu0 0
        %1094 = vmatprep.subr.bf16.mxu0 0
        %1095 = vmatpush1.bf16.msra.mxu0 0
        %1096 = vmatprep.subr.bf16.mxu0 0
        %1097 = vmatpush1.bf16.msra.mxu0 0
        %1098 = vmatprep.subr.bf16.mxu0 0
        %1099 = vmatpush1.bf16.msra.mxu0 0
        %1100 = vmatprep.subr.bf16.mxu0 0
        %1101 = vmatpush1.bf16.msra.mxu0 0
        %1102 = vmatprep.mubr.bf16.mxu0 0
        %1103 = vmatmul.mubr.bf16.gmra.mrb[0].mxu0 %v647
        %v1104 = vpop.f32.mrb[0].mxu0
        %v1105 = vadd.f32 %v1020, %v1104
        %v1106 = vpop.f32.mrb[0].mxu0
        %v1107 = vpop.f32.mrb[0].mxu0
        %v1108 = vpop.f32.mrb[0].mxu0
        %1109 = vdwg.mxu0
        %v1110 = vmul.f32 %v1105, 0.17677669
        %v1111 = vpack.c.bf16 %v1110, %v1110
        %s1112 = scalar_lea.vmem [#allocation2], 12
        %1113 = vst.msk [vmem:[%s1112] sm:$0xf] %vm761, %v1111
        %vm1114 = vcmask 7168
        %1115 = vst.msk [vmem:[#allocation3] sm:$0xff] %vm1114, -inf
        %1116 = vst.msk [vmem:[#allocation3 + $0x8] sm:$0xff] %vm1114, -inf
        %1117 = vst.msk [vmem:[#allocation3 + $0x10] sm:$0xff] %vm1114, -inf
        %1118 = vst.msk [vmem:[#allocation3 + $0x18] sm:$0xff] %vm1114, -inf
        %1119 = vst.msk [vmem:[#allocation4] sm:$0xff] %vm1114, 0.0
        %1120 = vst.msk [vmem:[#allocation4 + $0x8] sm:$0xff] %vm1114, 0.0
        %1121 = vst.msk [vmem:[#allocation4 + $0x10] sm:$0xff] %vm1114, 0.0
        %1122 = vst.msk [vmem:[#allocation4 + $0x18] sm:$0xff] %vm1114, 0.0
        %vm1123 = vcmask 261120
        %1124 = vst.msk [vmem:[#allocation5] sm:$0xff] %vm1123, 0.0
        %1125 = vst.msk [vmem:[#allocation5 + $0x8] sm:$0xff] %vm1123, 0.0
        %1126 = vst.msk [vmem:[#allocation5 + $0x10] sm:$0xff] %vm1123, 0.0
        %1127 = vst.msk [vmem:[#allocation5 + $0x18] sm:$0xff] %vm1123, 0.0
      $region84: #{block_forward.4} parent=79 // pred_fallthru
        _
      %v1128 = vld [vmem:[%s618] sm:$0xf]
      %v1129 = vld [vmem:[%s625] sm:$0xf]
      %v1130 = vadd.bf16 %v1128, %v1129
      %v1131 = vld [vmem:[%s6] sm:$0xf]
      %v1132 = vld [vmem:[%s6 + $0x4] sm:$0xf]
      %v1133 = vld [vmem:[%s6 + $0x8] sm:$0xf]
      %v1134 = vld [vmem:[%s6 + $0xc] sm:$0xf]
      %v1135 = vld [vmem:[%s6 + $0x10] sm:$0xf]
      %v1136 = vld [vmem:[%s6 + $0x14] sm:$0xf]
      %v1137 = vld [vmem:[%s6 + $0x18] sm:$0xf]
      %v1138 = vld [vmem:[%s6 + $0x1c] sm:$0xf]
      %v1139 = vld [vmem:[%s6 + $0x20] sm:$0xf]
      %v1140 = vld [vmem:[%s6 + $0x24] sm:$0xf]
      %v1141 = vld [vmem:[%s6 + $0x28] sm:$0xf]
      %v1142 = vld [vmem:[%s6 + $0x2c] sm:$0xf]
      %v1143 = vld [vmem:[%s6 + $0x30] sm:$0xf]
      %v1144 = vld [vmem:[%s6 + $0x34] sm:$0xf]
      %v1145 = vld [vmem:[%s6 + $0x38] sm:$0xf]
      %v1146 = vld [vmem:[%s6 + $0x3c] sm:$0xf]
      %v1147 = vld [vmem:[%s7] sm:$0xff]
      %v1148 = vld [vmem:[%s7 + $0x8] sm:$0xff]
      %v1149 = vld [vmem:[%s7 + $0x10] sm:$0xff]
      %v1150 = vld [vmem:[%s7 + $0x18] sm:$0xff]
      %v1151 = vld [vmem:[%s7 + $0x20] sm:$0xff]
      %v1152 = vld [vmem:[%s7 + $0x28] sm:$0xff]
      %v1153 = vld [vmem:[%s7 + $0x30] sm:$0xff]
      %v1154 = vld [vmem:[%s7 + $0x38] sm:$0xff]
      %v1155 = vld [vmem:[%s7 + $0x40] sm:$0xff]
      %v1156 = vld [vmem:[%s7 + $0x48] sm:$0xff]
      %v1157 = vld [vmem:[%s7 + $0x50] sm:$0xff]
      %v1158 = vld [vmem:[%s7 + $0x58] sm:$0xff]
      %v1159 = vld [vmem:[%s7 + $0x60] sm:$0xff]
      %v1160 = vld [vmem:[%s7 + $0x68] sm:$0xff]
      %v1161 = vld [vmem:[%s7 + $0x70] sm:$0xff]
      %v1162 = vld [vmem:[%s7 + $0x78] sm:$0xff]
      %1164 = vset.pattern.permute.xlu0 0
      %1165 = vperm.xlu0 %1164, %v1147
      %v1166 = vpop.permute.xlu0 %1165
      %1169 = vset.pattern.permute.xlu0 0
      %1170 = vperm.xlu0 %1169, %v1148
      %v1171 = vpop.permute.xlu0 %1170
      %1174 = vset.pattern.permute.xlu0 0
      %1175 = vperm.xlu0 %1174, %v1149
      %v1176 = vpop.permute.xlu0 %1175
      %1179 = vset.pattern.permute.xlu0 0
      %1180 = vperm.xlu0 %1179, %v1150
      %v1181 = vpop.permute.xlu0 %1180
      %1184 = vset.pattern.permute.xlu0 0
      %1185 = vperm.xlu0 %1184, %v1151
      %v1186 = vpop.permute.xlu0 %1185
      %1189 = vset.pattern.permute.xlu0 0
      %1190 = vperm.xlu0 %1189, %v1152
      %v1191 = vpop.permute.xlu0 %1190
      %1194 = vset.pattern.permute.xlu0 0
      %1195 = vperm.xlu0 %1194, %v1153
      %v1196 = vpop.permute.xlu0 %1195
      %1199 = vset.pattern.permute.xlu0 0
      %1200 = vperm.xlu0 %1199, %v1154
      %v1201 = vpop.permute.xlu0 %1200
      %1204 = vset.pattern.permute.xlu0 0
      %1205 = vperm.xlu0 %1204, %v1155
      %v1206 = vpop.permute.xlu0 %1205
      %1209 = vset.pattern.permute.xlu0 0
      %1210 = vperm.xlu0 %1209, %v1156
      %v1211 = vpop.permute.xlu0 %1210
      %1214 = vset.pattern.permute.xlu0 0
      %1215 = vperm.xlu0 %1214, %v1157
      %v1216 = vpop.permute.xlu0 %1215
      %1219 = vset.pattern.permute.xlu0 0
      %1220 = vperm.xlu0 %1219, %v1158
      %v1221 = vpop.permute.xlu0 %1220
      %1224 = vset.pattern.permute.xlu0 0
      %1225 = vperm.xlu0 %1224, %v1159
      %v1226 = vpop.permute.xlu0 %1225
      %1229 = vset.pattern.permute.xlu0 0
      %1230 = vperm.xlu0 %1229, %v1160
      %v1231 = vpop.permute.xlu0 %1230
      %1234 = vset.pattern.permute.xlu0 0
      %1235 = vperm.xlu0 %1234, %v1161
      %v1236 = vpop.permute.xlu0 %1235
      %1239 = vset.pattern.permute.xlu0 0
      %1240 = vperm.xlu0 %1239, %v1162
      %v1241 = vpop.permute.xlu0 %1240
      %v1259 = vunpack.c.l.b16 %v1131
      %v1260 = vunpack.c.l.b16 %v1132
      %v1261 = vunpack.c.l.b16 %v1133
      %v1262 = vunpack.c.l.b16 %v1134
      %v1263 = vunpack.c.l.b16 %v1135
      %v1264 = vunpack.c.l.b16 %v1136
      %v1265 = vunpack.c.l.b16 %v1137
      %v1266 = vunpack.c.l.b16 %v1138
      %v1267 = vunpack.c.l.b16 %v1139
      %v1268 = vunpack.c.l.b16 %v1140
      %v1269 = vunpack.c.l.b16 %v1141
      %v1270 = vunpack.c.l.b16 %v1142
      %v1271 = vunpack.c.l.b16 %v1143
      %v1272 = vunpack.c.l.b16 %v1144
      %v1273 = vunpack.c.l.b16 %v1145
      %v1274 = vunpack.c.l.b16 %v1146
      %v1275 = vpack.c.b16 %v1260, %v1259
      %v1276 = vpack.c.b16 %v1262, %v1261
      %v1277 = vpack.c.b16 %v1264, %v1263
      %v1278 = vpack.c.b16 %v1266, %v1265
      %v1279 = vpack.c.b16 %v1268, %v1267
      %v1280 = vpack.c.b16 %v1270, %v1269
      %v1281 = vpack.c.b16 %v1272, %v1271
      %v1282 = vpack.c.b16 %v1274, %v1273
      %1291 = vmatprep.subr.bf16.mxu0 0
      %1292 = vmatpush1.bf16.xpose.msra.mxu0 %v1130
      %1293 = vmatprep.subr.bf16.mxu0 0
      %1294 = vmatpush1.bf16.xpose.msra.mxu0 0
      %1295 = vmatprep.subr.bf16.mxu0 0
      %1296 = vmatpush1.bf16.xpose.msra.mxu0 0
      %1297 = vmatprep.subr.bf16.mxu0 0
      %1298 = vmatpush1.bf16.xpose.msra.mxu0 0
      %1299 = vmatprep.subr.bf16.mxu0 0
      %1300 = vmatpush1.bf16.xpose.msra.mxu0 0
      %1301 = vmatprep.subr.bf16.mxu0 0
      %1302 = vmatpush1.bf16.xpose.msra.mxu0 0
      %1303 = vmatprep.subr.bf16.mxu0 0
      %1304 = vmatpush1.bf16.xpose.msra.mxu0 0
      %1305 = vmatprep.subr.bf16.mxu0 0
      %1306 = vmatpush1.bf16.xpose.msra.mxu0 0
      %1307 = vmatprep.subr.bf16.mxu0 0
      %1308 = vmatpush1.bf16.xpose.msra.mxu0 0
      %1309 = vmatprep.subr.bf16.mxu0 0
      %1310 = vmatpush1.bf16.xpose.msra.mxu0 0
      %1311 = vmatprep.subr.bf16.mxu0 0
      %1312 = vmatpush1.bf16.xpose.msra.mxu0 0
      %1313 = vmatprep.subr.bf16.mxu0 0
      %1314 = vmatpush1.bf16.xpose.msra.mxu0 0
      %1315 = vmatprep.subr.bf16.mxu0 0
      %1316 = vmatpush1.bf16.xpose.msra.mxu0 0
      %1317 = vmatprep.subr.bf16.mxu0 0
      %1318 = vmatpush1.bf16.xpose.msra.mxu0 0
      %1319 = vmatprep.subr.bf16.mxu0 0
      %1320 = vmatpush1.bf16.xpose.msra.mxu0 0
      %1321 = vmatprep.subr.bf16.mxu0 0
      %1322 = vmatpush1.bf16.xpose.msra.mxu0 0
      %1323 = vmatprep.mubr.bf16.mxu0 0
      %1324 = vmatmul.mubr.bf16.gmra.mrb[0].mxu0 %v1275
      %v1325 = vpop.f32.mrb[0].mxu0
      %v1326 = vadd.f32 %v1166, %v1325
      %v1327 = vpop.f32.mrb[0].mxu0
      %v1328 = vpop.f32.mrb[0].mxu0
      %v1329 = vadd.f32 %v1171, %v1328
      %v1330 = vpop.f32.mrb[0].mxu0
      %1331 = vmatprep.mubr.bf16.mxu0 0
      %1332 = vmatmul.mubr.bf16.gmra.mrb[0].mxu0 %v1276
      %v1333 = vpop.f32.mrb[0].mxu0
      %v1334 = vadd.f32 %v1176, %v1333
      %v1335 = vpop.f32.mrb[0].mxu0
      %v1336 = vpop.f32.mrb[0].mxu0
      %v1337 = vadd.f32 %v1181, %v1336
      %v1338 = vpop.f32.mrb[0].mxu0
      %1339 = vmatprep.mubr.bf16.mxu0 0
      %1340 = vmatmul.mubr.bf16.gmra.mrb[0].mxu0 %v1277
      %v1341 = vpop.f32.mrb[0].mxu0
      %v1342 = vadd.f32 %v1186, %v1341
      %v1343 = vpop.f32.mrb[0].mxu0
      %v1344 = vpop.f32.mrb[0].mxu0
      %v1345 = vadd.f32 %v1191, %v1344
      %v1346 = vpop.f32.mrb[0].mxu0
      %1347 = vmatprep.mubr.bf16.mxu0 0
      %1348 = vmatmul.mubr.bf16.gmra.mrb[0].mxu0 %v1278
      %v1349 = vpop.f32.mrb[0].mxu0
      %v1350 = vadd.f32 %v1196, %v1349
      %v1351 = vpop.f32.mrb[0].mxu0
      %v1352 = vpop.f32.mrb[0].mxu0
      %v1353 = vadd.f32 %v1201, %v1352
      %v1354 = vpop.f32.mrb[0].mxu0
      %1355 = vmatprep.mubr.bf16.mxu0 0
      %1356 = vmatmul.mubr.bf16.gmra.mrb[0].mxu0 %v1279
      %v1357 = vpop.f32.mrb[0].mxu0
      %v1358 = vadd.f32 %v1206, %v1357
      %v1359 = vpop.f32.mrb[0].mxu0
      %v1360 = vpop.f32.mrb[0].mxu0
      %v1361 = vadd.f32 %v1211, %v1360
      %v1362 = vpop.f32.mrb[0].mxu0
      %1363 = vmatprep.mubr.bf16.mxu0 0
      %1364 = vmatmul.mubr.bf16.gmra.mrb[0].mxu0 %v1280
      %v1365 = vpop.f32.mrb[0].mxu0
      %v1366 = vadd.f32 %v1216, %v1365
      %v1367 = vpop.f32.mrb[0].mxu0
      %v1368 = vpop.f32.mrb[0].mxu0
      %v1369 = vadd.f32 %v1221, %v1368
      %v1370 = vpop.f32.mrb[0].mxu0
      %1371 = vmatprep.mubr.bf16.mxu0 0
      %1372 = vmatmul.mubr.bf16.gmra.mrb[0].mxu0 %v1281
      %v1373 = vpop.f32.mrb[0].mxu0
      %v1374 = vadd.f32 %v1226, %v1373
      %v1375 = vpop.f32.mrb[0].mxu0
      %v1376 = vpop.f32.mrb[0].mxu0
      %v1377 = vadd.f32 %v1231, %v1376
      %v1378 = vpop.f32.mrb[0].mxu0
      %1379 = vmatprep.mubr.bf16.mxu0 0
      %1380 = vmatmul.mubr.bf16.gmra.mrb[0].mxu0 %v1282
      %v1381 = vpop.f32.mrb[0].mxu0
      %v1382 = vadd.f32 %v1236, %v1381
      %v1383 = vpop.f32.mrb[0].mxu0
      %v1384 = vpop.f32.mrb[0].mxu0
      %v1385 = vadd.f32 %v1241, %v1384
      %v1386 = vpop.f32.mrb[0].mxu0
      %1387 = vdwg.mxu0
      %v1388 = vld [vmem:[%s8] sm:$0xf]
      %v1389 = vld [vmem:[%s8 + $0x4] sm:$0xf]
      %v1390 = vld [vmem:[%s8 + $0x8] sm:$0xf]
      %v1391 = vld [vmem:[%s8 + $0xc] sm:$0xf]
      %v1392 = vld [vmem:[%s8 + $0x10] sm:$0xf]
      %v1393 = vld [vmem:[%s8 + $0x14] sm:$0xf]
      %v1394 = vld [vmem:[%s8 + $0x18] sm:$0xf]
      %v1395 = vld [vmem:[%s8 + $0x1c] sm:$0xf]
      %v1396 = vld [vmem:[%s8 + $0x20] sm:$0xf]
      %v1397 = vld [vmem:[%s8 + $0x24] sm:$0xf]
      %v1398 = vld [vmem:[%s8 + $0x28] sm:$0xf]
      %v1399 = vld [vmem:[%s8 + $0x2c] sm:$0xf]
      %v1400 = vld [vmem:[%s8 + $0x30] sm:$0xf]
      %v1401 = vld [vmem:[%s8 + $0x34] sm:$0xf]
      %v1402 = vld [vmem:[%s8 + $0x38] sm:$0xf]
      %v1403 = vld [vmem:[%s8 + $0x3c] sm:$0xf]
      %v1404 = vld [vmem:[%s9] sm:$0xff]
      %v1405 = vld [vmem:[%s9 + $0x8] sm:$0xff]
      %v1406 = vld [vmem:[%s9 + $0x10] sm:$0xff]
      %v1407 = vld [vmem:[%s9 + $0x18] sm:$0xff]
      %v1408 = vld [vmem:[%s9 + $0x20] sm:$0xff]
      %v1409 = vld [vmem:[%s9 + $0x28] sm:$0xff]
      %v1410 = vld [vmem:[%s9 + $0x30] sm:$0xff]
      %v1411 = vld [vmem:[%s9 + $0x38] sm:$0xff]
      %v1412 = vld [vmem:[%s9 + $0x40] sm:$0xff]
      %v1413 = vld [vmem:[%s9 + $0x48] sm:$0xff]
      %v1414 = vld [vmem:[%s9 + $0x50] sm:$0xff]
      %v1415 = vld [vmem:[%s9 + $0x58] sm:$0xff]
      %v1416 = vld [vmem:[%s9 + $0x60] sm:$0xff]
      %v1417 = vld [vmem:[%s9 + $0x68] sm:$0xff]
      %v1418 = vld [vmem:[%s9 + $0x70] sm:$0xff]
      %v1419 = vld [vmem:[%s9 + $0x78] sm:$0xff]
      %1421 = vset.pattern.permute.xlu0 0
      %1422 = vperm.xlu0 %1421, %v1404
      %v1423 = vpop.permute.xlu0 %1422
      %1426 = vset.pattern.permute.xlu0 0
      %1427 = vperm.xlu0 %1426, %v1405
      %v1428 = vpop.permute.xlu0 %1427
      %1431 = vset.pattern.permute.xlu0 0
      %1432 = vperm.xlu0 %1431, %v1406
      %v1433 = vpop.permute.xlu0 %1432
      %1436 = vset.pattern.permute.xlu0 0
      %1437 = vperm.xlu0 %1436, %v1407
      %v1438 = vpop.permute.xlu0 %1437
      %1441 = vset.pattern.permute.xlu0 0
      %1442 = vperm.xlu0 %1441, %v1408
      %v1443 = vpop.permute.xlu0 %1442
      %1446 = vset.pattern.permute.xlu0 0
      %1447 = vperm.xlu0 %1446, %v1409
      %v1448 = vpop.permute.xlu0 %1447
      %1451 = vset.pattern.permute.xlu0 0
      %1452 = vperm.xlu0 %1451, %v1410
      %v1453 = vpop.permute.xlu0 %1452
      %1456 = vset.pattern.permute.xlu0 0
      %1457 = vperm.xlu0 %1456, %v1411
      %v1458 = vpop.permute.xlu0 %1457
      %1461 = vset.pattern.permute.xlu0 0
      %1462 = vperm.xlu0 %1461, %v1412
      %v1463 = vpop.permute.xlu0 %1462
      %1466 = vset.pattern.permute.xlu0 0
      %1467 = vperm.xlu0 %1466, %v1413
      %v1468 = vpop.permute.xlu0 %1467
      %1471 = vset.pattern.permute.xlu0 0
      %1472 = vperm.xlu0 %1471, %v1414
      %v1473 = vpop.permute.xlu0 %1472
      %1476 = vset.pattern.permute.xlu0 0
      %1477 = vperm.xlu0 %1476, %v1415
      %v1478 = vpop.permute.xlu0 %1477
      %1481 = vset.pattern.permute.xlu0 0
      %1482 = vperm.xlu0 %1481, %v1416
      %v1483 = vpop.permute.xlu0 %1482
      %1486 = vset.pattern.permute.xlu0 0
      %1487 = vperm.xlu0 %1486, %v1417
      %v1488 = vpop.permute.xlu0 %1487
      %1491 = vset.pattern.permute.xlu0 0
      %1492 = vperm.xlu0 %1491, %v1418
      %v1493 = vpop.permute.xlu0 %1492
      %1496 = vset.pattern.permute.xlu0 0
      %1497 = vperm.xlu0 %1496, %v1419
      %v1498 = vpop.permute.xlu0 %1497
      %v1516 = vunpack.c.l.b16 %v1388
      %v1517 = vunpack.c.l.b16 %v1389
      %v1518 = vunpack.c.l.b16 %v1390
      %v1519 = vunpack.c.l.b16 %v1391
      %v1520 = vunpack.c.l.b16 %v1392
      %v1521 = vunpack.c.l.b16 %v1393
      %v1522 = vunpack.c.l.b16 %v1394
      %v1523 = vunpack.c.l.b16 %v1395
      %v1524 = vunpack.c.l.b16 %v1396
      %v1525 = vunpack.c.l.b16 %v1397
      %v1526 = vunpack.c.l.b16 %v1398
      %v1527 = vunpack.c.l.b16 %v1399
      %v1528 = vunpack.c.l.b16 %v1400
      %v1529 = vunpack.c.l.b16 %v1401
      %v1530 = vunpack.c.l.b16 %v1402
      %v1531 = vunpack.c.l.b16 %v1403
      %v1532 = vpack.c.b16 %v1517, %v1516
      %v1533 = vpack.c.b16 %v1519, %v1518
      %v1534 = vpack.c.b16 %v1521, %v1520
      %v1535 = vpack.c.b16 %v1523, %v1522
      %v1536 = vpack.c.b16 %v1525, %v1524
      %v1537 = vpack.c.b16 %v1527, %v1526
      %v1538 = vpack.c.b16 %v1529, %v1528
      %v1539 = vpack.c.b16 %v1531, %v1530
      %1548 = vmatprep.subr.bf16.mxu0 0
      %1549 = vmatpush1.bf16.xpose.msra.mxu0 %v1128
      %1550 = vmatprep.subr.bf16.mxu0 0
      %1551 = vmatpush1.bf16.xpose.msra.mxu0 0
      %1552 = vmatprep.subr.bf16.mxu0 0
      %1553 = vmatpush1.bf16.xpose.msra.mxu0 0
      %1554 = vmatprep.subr.bf16.mxu0 0
      %1555 = vmatpush1.bf16.xpose.msra.mxu0 0
      %1556 = vmatprep.subr.bf16.mxu0 0
      %1557 = vmatpush1.bf16.xpose.msra.mxu0 0
      %1558 = vmatprep.subr.bf16.mxu0 0
      %1559 = vmatpush1.bf16.xpose.msra.mxu0 0
      %1560 = vmatprep.subr.bf16.mxu0 0
      %1561 = vmatpush1.bf16.xpose.msra.mxu0 0
      %1562 = vmatprep.subr.bf16.mxu0 0
      %1563 = vmatpush1.bf16.xpose.msra.mxu0 0
      %1564 = vmatprep.subr.bf16.mxu0 0
      %1565 = vmatpush1.bf16.xpose.msra.mxu0 0
      %1566 = vmatprep.subr.bf16.mxu0 0
      %1567 = vmatpush1.bf16.xpose.msra.mxu0 0
      %1568 = vmatprep.subr.bf16.mxu0 0
      %1569 = vmatpush1.bf16.xpose.msra.mxu0 0
      %1570 = vmatprep.subr.bf16.mxu0 0
      %1571 = vmatpush1.bf16.xpose.msra.mxu0 0
      %1572 = vmatprep.subr.bf16.mxu0 0
      %1573 = vmatpush1.bf16.xpose.msra.mxu0 0
      %1574 = vmatprep.subr.bf16.mxu0 0
      %1575 = vmatpush1.bf16.xpose.msra.mxu0 0
      %1576 = vmatprep.subr.bf16.mxu0 0
      %1577 = vmatpush1.bf16.xpose.msra.mxu0 0
      %1578 = vmatprep.subr.bf16.mxu0 0
      %1579 = vmatpush1.bf16.xpose.msra.mxu0 0
      %1580 = vmatprep.mubr.bf16.mxu0 0
      %1581 = vmatmul.mubr.bf16.gmra.mrb[0].mxu0 %v1532
      %v1582 = vpop.f32.mrb[0].mxu0
      %v1583 = vadd.f32 %v1423, %v1582
      %v1584 = vpop.f32.mrb[0].mxu0
      %v1585 = vpop.f32.mrb[0].mxu0
      %v1586 = vadd.f32 %v1428, %v1585
      %v1587 = vpop.f32.mrb[0].mxu0
      %1588 = vmatprep.mubr.bf16.mxu0 0
      %1589 = vmatmul.mubr.bf16.gmra.mrb[0].mxu0 %v1533
      %v1590 = vpop.f32.mrb[0].mxu0
      %v1591 = vadd.f32 %v1433, %v1590
      %v1592 = vpop.f32.mrb[0].mxu0
      %v1593 = vpop.f32.mrb[0].mxu0
      %v1594 = vadd.f32 %v1438, %v1593
      %v1595 = vpop.f32.mrb[0].mxu0
      %1596 = vmatprep.mubr.bf16.mxu0 0
      %1597 = vmatmul.mubr.bf16.gmra.mrb[0].mxu0 %v1534
      %v1598 = vpop.f32.mrb[0].mxu0
      %v1599 = vadd.f32 %v1443, %v1598
      %v1600 = vpop.f32.mrb[0].mxu0
      %v1601 = vpop.f32.mrb[0].mxu0
      %v1602 = vadd.f32 %v1448, %v1601
      %v1603 = vpop.f32.mrb[0].mxu0
      %1604 = vmatprep.mubr.bf16.mxu0 0
      %1605 = vmatmul.mubr.bf16.gmra.mrb[0].mxu0 %v1535
      %v1606 = vpop.f32.mrb[0].mxu0
      %v1607 = vadd.f32 %v1453, %v1606
      %v1608 = vpop.f32.mrb[0].mxu0
      %v1609 = vpop.f32.mrb[0].mxu0
      %v1610 = vadd.f32 %v1458, %v1609
      %v1611 = vpop.f32.mrb[0].mxu0
      %1612 = vmatprep.mubr.bf16.mxu0 0
      %1613 = vmatmul.mubr.bf16.gmra.mrb[0].mxu0 %v1536
      %v1614 = vpop.f32.mrb[0].mxu0
      %v1615 = vadd.f32 %v1463, %v1614
      %v1616 = vpop.f32.mrb[0].mxu0
      %v1617 = vpop.f32.mrb[0].mxu0
      %v1618 = vadd.f32 %v1468, %v1617
      %v1619 = vpop.f32.mrb[0].mxu0
      %1620 = vmatprep.mubr.bf16.mxu0 0
      %1621 = vmatmul.mubr.bf16.gmra.mrb[0].mxu0 %v1537
      %v1622 = vpop.f32.mrb[0].mxu0
      %v1623 = vadd.f32 %v1473, %v1622
      %v1624 = vpop.f32.mrb[0].mxu0
      %v1625 = vpop.f32.mrb[0].mxu0
      %v1626 = vadd.f32 %v1478, %v1625
      %v1627 = vpop.f32.mrb[0].mxu0
      %1628 = vmatprep.mubr.bf16.mxu0 0
      %1629 = vmatmul.mubr.bf16.gmra.mrb[0].mxu0 %v1538
      %v1630 = vpop.f32.mrb[0].mxu0
      %v1631 = vadd.f32 %v1483, %v1630
      %v1632 = vpop.f32.mrb[0].mxu0
      %v1633 = vpop.f32.mrb[0].mxu0
      %v1634 = vadd.f32 %v1488, %v1633
      %v1635 = vpop.f32.mrb[0].mxu0
      %1636 = vmatprep.mubr.bf16.mxu0 0
      %1637 = vmatmul.mubr.bf16.gmra.mrb[0].mxu0 %v1539
      %v1638 = vpop.f32.mrb[0].mxu0
      %v1639 = vadd.f32 %v1493, %v1638
      %v1640 = vpop.f32.mrb[0].mxu0
      %v1641 = vpop.f32.mrb[0].mxu0
      %v1642 = vadd.f32 %v1498, %v1641
      %v1643 = vpop.f32.mrb[0].mxu0
      %1644 = vdwg.mxu0
      %v1645 = vpack.c.bf16 %v1329, %v1326
      %v1646 = vpack.c.bf16 %v1337, %v1334
      %v1647 = vpack.c.bf16 %v1345, %v1342
      %v1648 = vpack.c.bf16 %v1353, %v1350
      %v1649 = vpack.c.bf16 %v1361, %v1358
      %v1650 = vpack.c.bf16 %v1369, %v1366
      %v1651 = vpack.c.bf16 %v1377, %v1374
      %v1652 = vpack.c.bf16 %v1385, %v1382
      %v1653 = vpack.c.bf16 %v1586, %v1583
      %v1654 = vpack.c.bf16 %v1594, %v1591
      %v1655 = vpack.c.bf16 %v1602, %v1599
      %v1656 = vpack.c.bf16 %v1610, %v1607
      %v1657 = vpack.c.bf16 %v1618, %v1615
      %v1658 = vpack.c.bf16 %v1626, %v1623
      %v1659 = vpack.c.bf16 %v1634, %v1631
      %v1660 = vpack.c.bf16 %v1642, %v1639
      %v1661 = vld [vmem:[#allocation2] sm:$0xf]
      %v1662 = vld [vmem:[#allocation2 + $0x4] sm:$0xf]
      %v1663 = vld [vmem:[#allocation2 + $0x8] sm:$0xf]
      %v1664 = vld [vmem:[#allocation2 + $0xc] sm:$0xf]
      %vm1665 = vcmask 261120
      %v1667 = vsel %vm1665, %v1661, 0
      %1669 = vmatprep.subr.bf16.mxu0 0
      %1670 = vmatpush1.bf16.msra.mxu0 %v1645
      %1671 = vmatprep.subr.bf16.mxu0 0
      %1672 = vmatpush1.bf16.msra.mxu0 %v1646
      %1673 = vmatprep.subr.bf16.mxu0 0
      %1674 = vmatpush1.bf16.msra.mxu0 0
      %1675 = vmatprep.subr.bf16.mxu0 0
      %1676 = vmatpush1.bf16.msra.mxu0 0
      %1677 = vmatprep.subr.bf16.mxu0 0
      %1678 = vmatpush1.bf16.msra.mxu0 0
      %1679 = vmatprep.subr.bf16.mxu0 0
      %1680 = vmatpush1.bf16.msra.mxu0 0
      %1681 = vmatprep.subr.bf16.mxu0 0
      %1682 = vmatpush1.bf16.msra.mxu0 0
      %1683 = vmatprep.subr.bf16.mxu0 0
      %1684 = vmatpush1.bf16.msra.mxu0 0
      %1685 = vmatprep.subr.bf16.mxu0 0
      %1686 = vmatpush1.bf16.msra.mxu0 0
      %1687 = vmatprep.subr.bf16.mxu0 0
      %1688 = vmatpush1.bf16.msra.mxu0 0
      %1689 = vmatprep.subr.bf16.mxu0 0
      %1690 = vmatpush1.bf16.msra.mxu0 0
      %1691 = vmatprep.subr.bf16.mxu0 0
      %1692 = vmatpush1.bf16.msra.mxu0 0
      %1693 = vmatprep.subr.bf16.mxu0 0
      %1694 = vmatpush1.bf16.msra.mxu0 0
      %1695 = vmatprep.subr.bf16.mxu0 0
      %1696 = vmatpush1.bf16.msra.mxu0 0
      %1697 = vmatprep.subr.bf16.mxu0 0
      %1698 = vmatpush1.bf16.msra.mxu0 0
      %1699 = vmatprep.subr.bf16.mxu0 0
      %1700 = vmatpush1.bf16.msra.mxu0 0
      %1701 = vmatprep.mubr.bf16.mxu0 0
      %1702 = vmatmul.mubr.bf16.gmra.mrb[0].mxu0 %v1667
      %v1703 = vpop.f32.mrb[0].mxu0
      %v1704 = vadd.f32 0.0, %v1703
      %v1705 = vpop.f32.mrb[0].mxu0
      %v1706 = vpop.f32.mrb[0].mxu0
      %v1707 = vpop.f32.mrb[0].mxu0
      %1708 = vdwg.mxu0
      %v1710 = vsel %vm1665, %v1662, 0
      %1712 = vmatprep.subr.bf16.mxu0 0
      %1713 = vmatpush1.bf16.msra.mxu0 %v1647
      %1714 = vmatprep.subr.bf16.mxu0 0
      %1715 = vmatpush1.bf16.msra.mxu0 %v1648
      %1716 = vmatprep.subr.bf16.mxu0 0
      %1717 = vmatpush1.bf16.msra.mxu0 0
      %1718 = vmatprep.subr.bf16.mxu0 0
      %1719 = vmatpush1.bf16.msra.mxu0 0
      %1720 = vmatprep.subr.bf16.mxu0 0
      %1721 = vmatpush1.bf16.msra.mxu0 0
      %1722 = vmatprep.subr.bf16.mxu0 0
      %1723 = vmatpush1.bf16.msra.mxu0 0
      %1724 = vmatprep.subr.bf16.mxu0 0
      %1725 = vmatpush1.bf16.msra.mxu0 0
      %1726 = vmatprep.subr.bf16.mxu0 0
      %1727 = vmatpush1.bf16.msra.mxu0 0
      %1728 = vmatprep.subr.bf16.mxu0 0
      %1729 = vmatpush1.bf16.msra.mxu0 0
      %1730 = vmatprep.subr.bf16.mxu0 0
      %1731 = vmatpush1.bf16.msra.mxu0 0
      %1732 = vmatprep.subr.bf16.mxu0 0
      %1733 = vmatpush1.bf16.msra.mxu0 0
      %1734 = vmatprep.subr.bf16.mxu0 0
      %1735 = vmatpush1.bf16.msra.mxu0 0
      %1736 = vmatprep.subr.bf16.mxu0 0
      %1737 = vmatpush1.bf16.msra.mxu0 0
      %1738 = vmatprep.subr.bf16.mxu0 0
      %1739 = vmatpush1.bf16.msra.mxu0 0
      %1740 = vmatprep.subr.bf16.mxu0 0
      %1741 = vmatpush1.bf16.msra.mxu0 0
      %1742 = vmatprep.subr.bf16.mxu0 0
      %1743 = vmatpush1.bf16.msra.mxu0 0
      %1744 = vmatprep.mubr.bf16.mxu0 0
      %1745 = vmatmul.mubr.bf16.gmra.mrb[0].mxu0 %v1710
      %v1746 = vpop.f32.mrb[0].mxu0
      %v1747 = vadd.f32 0.0, %v1746
      %v1748 = vpop.f32.mrb[0].mxu0
      %v1749 = vpop.f32.mrb[0].mxu0
      %v1750 = vpop.f32.mrb[0].mxu0
      %1751 = vdwg.mxu0
      %v1753 = vsel %vm1665, %v1663, 0
      %1755 = vmatprep.subr.bf16.mxu0 0
      %1756 = vmatpush1.bf16.msra.mxu0 %v1649
      %1757 = vmatprep.subr.bf16.mxu0 0
      %1758 = vmatpush1.bf16.msra.mxu0 %v1650
      %1759 = vmatprep.subr.bf16.mxu0 0
      %1760 = vmatpush1.bf16.msra.mxu0 0
      %1761 = vmatprep.subr.bf16.mxu0 0
      %1762 = vmatpush1.bf16.msra.mxu0 0
      %1763 = vmatprep.subr.bf16.mxu0 0
      %1764 = vmatpush1.bf16.msra.mxu0 0
      %1765 = vmatprep.subr.bf16.mxu0 0
      %1766 = vmatpush1.bf16.msra.mxu0 0
      %1767 = vmatprep.subr.bf16.mxu0 0
      %1768 = vmatpush1.bf16.msra.mxu0 0
      %1769 = vmatprep.subr.bf16.mxu0 0
      %1770 = vmatpush1.bf16.msra.mxu0 0
      %1771 = vmatprep.subr.bf16.mxu0 0
      %1772 = vmatpush1.bf16.msra.mxu0 0
      %1773 = vmatprep.subr.bf16.mxu0 0
      %1774 = vmatpush1.bf16.msra.mxu0 0
      %1775 = vmatprep.subr.bf16.mxu0 0
      %1776 = vmatpush1.bf16.msra.mxu0 0
      %1777 = vmatprep.subr.bf16.mxu0 0
      %1778 = vmatpush1.bf16.msra.mxu0 0
      %1779 = vmatprep.subr.bf16.mxu0 0
      %1780 = vmatpush1.bf16.msra.mxu0 0
      %1781 = vmatprep.subr.bf16.mxu0 0
      %1782 = vmatpush1.bf16.msra.mxu0 0
      %1783 = vmatprep.subr.bf16.mxu0 0
      %1784 = vmatpush1.bf16.msra.mxu0 0
      %1785 = vmatprep.subr.bf16.mxu0 0
      %1786 = vmatpush1.bf16.msra.mxu0 0
      %1787 = vmatprep.mubr.bf16.mxu0 0
      %1788 = vmatmul.mubr.bf16.gmra.mrb[0].mxu0 %v1753
      %v1789 = vpop.f32.mrb[0].mxu0
      %v1790 = vadd.f32 0.0, %v1789
      %v1791 = vpop.f32.mrb[0].mxu0
      %v1792 = vpop.f32.mrb[0].mxu0
      %v1793 = vpop.f32.mrb[0].mxu0
      %1794 = vdwg.mxu0
      %v1796 = vsel %vm1665, %v1664, 0
      %1798 = vmatprep.subr.bf16.mxu0 0
      %1799 = vmatpush1.bf16.msra.mxu0 %v1651
      %1800 = vmatprep.subr.bf16.mxu0 0
      %1801 = vmatpush1.bf16.msra.mxu0 %v1652
      %1802 = vmatprep.subr.bf16.mxu0 0
      %1803 = vmatpush1.bf16.msra.mxu0 0
      %1804 = vmatprep.subr.bf16.mxu0 0
      %1805 = vmatpush1.bf16.msra.mxu0 0
      %1806 = vmatprep.subr.bf16.mxu0 0
      %1807 = vmatpush1.bf16.msra.mxu0 0
      %1808 = vmatprep.subr.bf16.mxu0 0
      %1809 = vmatpush1.bf16.msra.mxu0 0
      %1810 = vmatprep.subr.bf16.mxu0 0
      %1811 = vmatpush1.bf16.msra.mxu0 0
      %1812 = vmatprep.subr.bf16.mxu0 0
      %1813 = vmatpush1.bf16.msra.mxu0 0
      %1814 = vmatprep.subr.bf16.mxu0 0
      %1815 = vmatpush1.bf16.msra.mxu0 0
      %1816 = vmatprep.subr.bf16.mxu0 0
      %1817 = vmatpush1.bf16.msra.mxu0 0
      %1818 = vmatprep.subr.bf16.mxu0 0
      %1819 = vmatpush1.bf16.msra.mxu0 0
      %1820 = vmatprep.subr.bf16.mxu0 0
      %1821 = vmatpush1.bf16.msra.mxu0 0
      %1822 = vmatprep.subr.bf16.mxu0 0
      %1823 = vmatpush1.bf16.msra.mxu0 0
      %1824 = vmatprep.subr.bf16.mxu0 0
      %1825 = vmatpush1.bf16.msra.mxu0 0
      %1826 = vmatprep.subr.bf16.mxu0 0
      %1827 = vmatpush1.bf16.msra.mxu0 0
      %1828 = vmatprep.subr.bf16.mxu0 0
      %1829 = vmatpush1.bf16.msra.mxu0 0
      %1830 = vmatprep.mubr.bf16.mxu0 0
      %1831 = vmatmul.mubr.bf16.gmra.mrb[0].mxu0 %v1796
      %v1832 = vpop.f32.mrb[0].mxu0
      %v1833 = vadd.f32 0.0, %v1832
      %v1834 = vpop.f32.mrb[0].mxu0
      %v1835 = vpop.f32.mrb[0].mxu0
      %v1836 = vpop.f32.mrb[0].mxu0
      %1837 = vdwg.mxu0
      %v1838 = vld [vmem:[#allocation3] sm:$0xff]
      %v1839 = vld [vmem:[#allocation3 + $0x8] sm:$0xff]
      %v1840 = vld [vmem:[#allocation3 + $0x10] sm:$0xff]
      %v1841 = vld [vmem:[#allocation3 + $0x18] sm:$0xff]
      %vm1842 = vcmask 64512
      %v1843 = vsel %vm1842, %v1704, -inf
      %1844 = vmax.xlane.f32.xlu0 %v1843
      %v1845 = vpop.xlane.xlu0 %1844
      %v1846 = vsel %vm1842, %v1747, -inf
      %1847 = vmax.xlane.f32.xlu0 %v1846
      %v1848 = vpop.xlane.xlu0 %1847
      %v1849 = vsel %vm1842, %v1790, -inf
      %1850 = vmax.xlane.f32.xlu0 %v1849
      %v1851 = vpop.xlane.xlu0 %1850
      %v1852 = vsel %vm1842, %v1833, -inf
      %1853 = vmax.xlane.f32.xlu0 %v1852
      %v1854 = vpop.xlane.xlu0 %1853
      %v1855 = vmax.f32 %v1838, %v1845
      %v1856 = vmax.f32 %v1839, %v1848
      %v1857 = vmax.f32 %v1840, %v1851
      %v1858 = vmax.f32 %v1841, %v1854
      %v1859 = vsub.f32 %v1838, %v1855
      %v1860 = vsub.f32 %v1839, %v1856
      %v1861 = vsub.f32 %v1840, %v1857
      %v1862 = vsub.f32 %v1841, %v1858
      %v1863 = vmul.f32 %v1859, 1.442695
      %v1864 = vpow.pop %v1863
      %v1865 = vmul.f32 %v1860, 1.442695
      %v1866 = vpow.pop %v1865
      %v1867 = vmul.f32 %v1861, 1.442695
      %v1868 = vpow.pop %v1867
      %v1869 = vmul.f32 %v1862, 1.442695
      %v1870 = vpow.pop %v1869
      %1872 = vset.pattern.permute.xlu0 0
      %1873 = vperm.xlu0 %1872, %v1855
      %v1874 = vpop.permute.xlu0 %1873
      %1877 = vset.pattern.permute.xlu0 0
      %1878 = vperm.xlu0 %1877, %v1856
      %v1879 = vpop.permute.xlu0 %1878
      %1882 = vset.pattern.permute.xlu0 0
      %1883 = vperm.xlu0 %1882, %v1857
      %v1884 = vpop.permute.xlu0 %1883
      %1887 = vset.pattern.permute.xlu0 0
      %1888 = vperm.xlu0 %1887, %v1858
      %v1889 = vpop.permute.xlu0 %1888
      %v1891 = vsub.f32 %v1704, %v1874
      %v1892 = vsub.f32 %v1747, %v1879
      %v1893 = vsub.f32 %v1790, %v1884
      %v1894 = vsub.f32 %v1833, %v1889
      %v1895 = vmul.f32 %v1891, 1.442695
      %v1896 = vpow.pop %v1895
      %v1897 = vmul.f32 %v1892, 1.442695
      %v1898 = vpow.pop %v1897
      %v1899 = vmul.f32 %v1893, 1.442695
      %v1900 = vpow.pop %v1899
      %v1901 = vmul.f32 %v1894, 1.442695
      %v1902 = vpow.pop %v1901
      %v1903 = vld [vmem:[#allocation4] sm:$0xff]
      %v1904 = vld [vmem:[#allocation4 + $0x8] sm:$0xff]
      %v1905 = vld [vmem:[#allocation4 + $0x10] sm:$0xff]
      %v1906 = vld [vmem:[#allocation4 + $0x18] sm:$0xff]
      %v1907 = vmul.f32 %v1864, %v1903
      %v1908 = vmul.f32 %v1866, %v1904
      %v1909 = vmul.f32 %v1868, %v1905
      %v1910 = vmul.f32 %v1870, %v1906
      %v1911 = vsel %vm1842, %v1896, 0.0
      %1912 = vadd.xlane.f32.xlu0 %v1911
      %v1913 = vpop.xlane.xlu0 %1912
      %v1914 = vsel %vm1842, %v1898, 0.0
      %1915 = vadd.xlane.f32.xlu0 %v1914
      %v1916 = vpop.xlane.xlu0 %1915
      %v1917 = vsel %vm1842, %v1900, 0.0
      %1918 = vadd.xlane.f32.xlu0 %v1917
      %v1919 = vpop.xlane.xlu0 %1918
      %v1920 = vsel %vm1842, %v1902, 0.0
      %1921 = vadd.xlane.f32.xlu0 %v1920
      %v1922 = vpop.xlane.xlu0 %1921
      %v1923 = vadd.f32 %v1907, %v1913
      %v1924 = vadd.f32 %v1908, %v1916
      %v1925 = vadd.f32 %v1909, %v1919
      %v1926 = vadd.f32 %v1910, %v1922
      %vm1927 = vcmask 7168
      %1928 = vst.msk [vmem:[#allocation4] sm:$0xff] %vm1927, %v1923
      %1929 = vst.msk [vmem:[#allocation4 + $0x8] sm:$0xff] %vm1927, %v1924
      %1930 = vst.msk [vmem:[#allocation4 + $0x10] sm:$0xff] %vm1927, %v1925
      %1931 = vst.msk [vmem:[#allocation4 + $0x18] sm:$0xff] %vm1927, %v1926
      %v1932 = vpack.c.bf16 %v1896, %v1896
      %v1933 = vpack.c.bf16 %v1898, %v1898
      %v1934 = vpack.c.bf16 %v1900, %v1900
      %v1935 = vpack.c.bf16 %v1902, %v1902
      %v1937 = vsel %vm1842, %v1932, 0
      %v1940 = vsel %vm1842, %v1653, 0
      %v1943 = vsel %vm1842, %v1654, 0
      %1945 = vmatprep.subr.bf16.mxu0 0
      %1946 = vmatpush1.bf16.xpose.msra.mxu0 %v1940
      %1947 = vmatprep.subr.bf16.mxu0 0
      %1948 = vmatpush1.bf16.xpose.msra.mxu0 %v1943
      %1949 = vmatprep.subr.bf16.mxu0 0
      %1950 = vmatpush1.bf16.xpose.msra.mxu0 0
      %1951 = vmatprep.subr.bf16.mxu0 0
      %1952 = vmatpush1.bf16.xpose.msra.mxu0 0
      %1953 = vmatprep.subr.bf16.mxu0 0
      %1954 = vmatpush1.bf16.xpose.msra.mxu0 0
      %1955 = vmatprep.subr.bf16.mxu0 0
      %1956 = vmatpush1.bf16.xpose.msra.mxu0 0
      %1957 = vmatprep.subr.bf16.mxu0 0
      %1958 = vmatpush1.bf16.xpose.msra.mxu0 0
      %1959 = vmatprep.subr.bf16.mxu0 0
      %1960 = vmatpush1.bf16.xpose.msra.mxu0 0
      %1961 = vmatprep.subr.bf16.mxu0 0
      %1962 = vmatpush1.bf16.xpose.msra.mxu0 0
      %1963 = vmatprep.subr.bf16.mxu0 0
      %1964 = vmatpush1.bf16.xpose.msra.mxu0 0
      %1965 = vmatprep.subr.bf16.mxu0 0
      %1966 = vmatpush1.bf16.xpose.msra.mxu0 0
      %1967 = vmatprep.subr.bf16.mxu0 0
      %1968 = vmatpush1.bf16.xpose.msra.mxu0 0
      %1969 = vmatprep.subr.bf16.mxu0 0
      %1970 = vmatpush1.bf16.xpose.msra.mxu0 0
      %1971 = vmatprep.subr.bf16.mxu0 0
      %1972 = vmatpush1.bf16.xpose.msra.mxu0 0
      %1973 = vmatprep.subr.bf16.mxu0 0
      %1974 = vmatpush1.bf16.xpose.msra.mxu0 0
      %1975 = vmatprep.subr.bf16.mxu0 0
      %1976 = vmatpush1.bf16.xpose.msra.mxu0 0
      %1977 = vmatprep.mubr.bf16.mxu0 0
      %1978 = vmatmul.mubr.bf16.gmra.mrb[0].mxu0 %v1937
      %v1979 = vpop.f32.mrb[0].mxu0
      %v1980 = vadd.f32 0.0, %v1979
      %v1981 = vpop.f32.mrb[0].mxu0
      %v1982 = vpop.f32.mrb[0].mxu0
      %v1983 = vpop.f32.mrb[0].mxu0
      %1984 = vdwg.mxu0
      %v1986 = vsel %vm1842, %v1933, 0
      %v1989 = vsel %vm1842, %v1655, 0
      %v1992 = vsel %vm1842, %v1656, 0
      %1994 = vmatprep.subr.bf16.mxu0 0
      %1995 = vmatpush1.bf16.xpose.msra.mxu0 %v1989
      %1996 = vmatprep.subr.bf16.mxu0 0
      %1997 = vmatpush1.bf16.xpose.msra.mxu0 %v1992
      %1998 = vmatprep.subr.bf16.mxu0 0
      %1999 = vmatpush1.bf16.xpose.msra.mxu0 0
      %2000 = vmatprep.subr.bf16.mxu0 0
      %2001 = vmatpush1.bf16.xpose.msra.mxu0 0
      %2002 = vmatprep.subr.bf16.mxu0 0
      %2003 = vmatpush1.bf16.xpose.msra.mxu0 0
      %2004 = vmatprep.subr.bf16.mxu0 0
      %2005 = vmatpush1.bf16.xpose.msra.mxu0 0
      %2006 = vmatprep.subr.bf16.mxu0 0
      %2007 = vmatpush1.bf16.xpose.msra.mxu0 0
      %2008 = vmatprep.subr.bf16.mxu0 0
      %2009 = vmatpush1.bf16.xpose.msra.mxu0 0
      %2010 = vmatprep.subr.bf16.mxu0 0
      %2011 = vmatpush1.bf16.xpose.msra.mxu0 0
      %2012 = vmatprep.subr.bf16.mxu0 0
      %2013 = vmatpush1.bf16.xpose.msra.mxu0 0
      %2014 = vmatprep.subr.bf16.mxu0 0
      %2015 = vmatpush1.bf16.xpose.msra.mxu0 0
      %2016 = vmatprep.subr.bf16.mxu0 0
      %2017 = vmatpush1.bf16.xpose.msra.mxu0 0
      %2018 = vmatprep.subr.bf16.mxu0 0
      %2019 = vmatpush1.bf16.xpose.msra.mxu0 0
      %2020 = vmatprep.subr.bf16.mxu0 0
      %2021 = vmatpush1.bf16.xpose.msra.mxu0 0
      %2022 = vmatprep.subr.bf16.mxu0 0
      %2023 = vmatpush1.bf16.xpose.msra.mxu0 0
      %2024 = vmatprep.subr.bf16.mxu0 0
      %2025 = vmatpush1.bf16.xpose.msra.mxu0 0
      %2026 = vmatprep.mubr.bf16.mxu0 0
      %2027 = vmatmul.mubr.bf16.gmra.mrb[0].mxu0 %v1986
      %v2028 = vpop.f32.mrb[0].mxu0
      %v2029 = vadd.f32 0.0, %v2028
      %v2030 = vpop.f32.mrb[0].mxu0
      %v2031 = vpop.f32.mrb[0].mxu0
      %v2032 = vpop.f32.mrb[0].mxu0
      %2033 = vdwg.mxu0
      %v2035 = vsel %vm1842, %v1934, 0
      %v2038 = vsel %vm1842, %v1657, 0
      %v2041 = vsel %vm1842, %v1658, 0
      %2043 = vmatprep.subr.bf16.mxu0 0
      %2044 = vmatpush1.bf16.xpose.msra.mxu0 %v2038
      %2045 = vmatprep.subr.bf16.mxu0 0
      %2046 = vmatpush1.bf16.xpose.msra.mxu0 %v2041
      %2047 = vmatprep.subr.bf16.mxu0 0
      %2048 = vmatpush1.bf16.xpose.msra.mxu0 0
      %2049 = vmatprep.subr.bf16.mxu0 0
      %2050 = vmatpush1.bf16.xpose.msra.mxu0 0
      %2051 = vmatprep.subr.bf16.mxu0 0
      %2052 = vmatpush1.bf16.xpose.msra.mxu0 0
      %2053 = vmatprep.subr.bf16.mxu0 0
      %2054 = vmatpush1.bf16.xpose.msra.mxu0 0
      %2055 = vmatprep.subr.bf16.mxu0 0
      %2056 = vmatpush1.bf16.xpose.msra.mxu0 0
      %2057 = vmatprep.subr.bf16.mxu0 0
      %2058 = vmatpush1.bf16.xpose.msra.mxu0 0
      %2059 = vmatprep.subr.bf16.mxu0 0
      %2060 = vmatpush1.bf16.xpose.msra.mxu0 0
      %2061 = vmatprep.subr.bf16.mxu0 0
      %2062 = vmatpush1.bf16.xpose.msra.mxu0 0
      %2063 = vmatprep.subr.bf16.mxu0 0
      %2064 = vmatpush1.bf16.xpose.msra.mxu0 0
      %2065 = vmatprep.subr.bf16.mxu0 0
      %2066 = vmatpush1.bf16.xpose.msra.mxu0 0
      %2067 = vmatprep.subr.bf16.mxu0 0
      %2068 = vmatpush1.bf16.xpose.msra.mxu0 0
      %2069 = vmatprep.subr.bf16.mxu0 0
      %2070 = vmatpush1.bf16.xpose.msra.mxu0 0
      %2071 = vmatprep.subr.bf16.mxu0 0
      %2072 = vmatpush1.bf16.xpose.msra.mxu0 0
      %2073 = vmatprep.subr.bf16.mxu0 0
      %2074 = vmatpush1.bf16.xpose.msra.mxu0 0
      %2075 = vmatprep.mubr.bf16.mxu0 0
      %2076 = vmatmul.mubr.bf16.gmra.mrb[0].mxu0 %v2035
      %v2077 = vpop.f32.mrb[0].mxu0
      %v2078 = vadd.f32 0.0, %v2077
      %v2079 = vpop.f32.mrb[0].mxu0
      %v2080 = vpop.f32.mrb[0].mxu0
      %v2081 = vpop.f32.mrb[0].mxu0
      %2082 = vdwg.mxu0
      %v2084 = vsel %vm1842, %v1935, 0
      %v2087 = vsel %vm1842, %v1659, 0
      %v2090 = vsel %vm1842, %v1660, 0
      %2092 = vmatprep.subr.bf16.mxu0 0
      %2093 = vmatpush1.bf16.xpose.msra.mxu0 %v2087
      %2094 = vmatprep.subr.bf16.mxu0 0
      %2095 = vmatpush1.bf16.xpose.msra.mxu0 %v2090
      %2096 = vmatprep.subr.bf16.mxu0 0
      %2097 = vmatpush1.bf16.xpose.msra.mxu0 0
      %2098 = vmatprep.subr.bf16.mxu0 0
      %2099 = vmatpush1.bf16.xpose.msra.mxu0 0
      %2100 = vmatprep.subr.bf16.mxu0 0
      %2101 = vmatpush1.bf16.xpose.msra.mxu0 0
      %2102 = vmatprep.subr.bf16.mxu0 0
      %2103 = vmatpush1.bf16.xpose.msra.mxu0 0
      %2104 = vmatprep.subr.bf16.mxu0 0
      %2105 = vmatpush1.bf16.xpose.msra.mxu0 0
      %2106 = vmatprep.subr.bf16.mxu0 0
      %2107 = vmatpush1.bf16.xpose.msra.mxu0 0
      %2108 = vmatprep.subr.bf16.mxu0 0
      %2109 = vmatpush1.bf16.xpose.msra.mxu0 0
      %2110 = vmatprep.subr.bf16.mxu0 0
      %2111 = vmatpush1.bf16.xpose.msra.mxu0 0
      %2112 = vmatprep.subr.bf16.mxu0 0
      %2113 = vmatpush1.bf16.xpose.msra.mxu0 0
      %2114 = vmatprep.subr.bf16.mxu0 0
      %2115 = vmatpush1.bf16.xpose.msra.mxu0 0
      %2116 = vmatprep.subr.bf16.mxu0 0
      %2117 = vmatpush1.bf16.xpose.msra.mxu0 0
      %2118 = vmatprep.subr.bf16.mxu0 0
      %2119 = vmatpush1.bf16.xpose.msra.mxu0 0
      %2120 = vmatprep.subr.bf16.mxu0 0
      %2121 = vmatpush1.bf16.xpose.msra.mxu0 0
      %2122 = vmatprep.subr.bf16.mxu0 0
      %2123 = vmatpush1.bf16.xpose.msra.mxu0 0
      %2124 = vmatprep.mubr.bf16.mxu0 0
      %2125 = vmatmul.mubr.bf16.gmra.mrb[0].mxu0 %v2084
      %v2126 = vpop.f32.mrb[0].mxu0
      %v2127 = vadd.f32 0.0, %v2126
      %v2128 = vpop.f32.mrb[0].mxu0
      %v2129 = vpop.f32.mrb[0].mxu0
      %v2130 = vpop.f32.mrb[0].mxu0
      %2131 = vdwg.mxu0
      %v2132 = vld [vmem:[#allocation5] sm:$0xff]
      %v2133 = vld [vmem:[#allocation5 + $0x8] sm:$0xff]
      %v2134 = vld [vmem:[#allocation5 + $0x10] sm:$0xff]
      %v2135 = vld [vmem:[#allocation5 + $0x18] sm:$0xff]
      %2137 = vset.pattern.permute.xlu0 0
      %2138 = vperm.xlu0 %2137, %v1864
      %v2139 = vpop.permute.xlu0 %2138
      %2142 = vset.pattern.permute.xlu0 0
      %2143 = vperm.xlu0 %2142, %v1866
      %v2144 = vpop.permute.xlu0 %2143
      %2147 = vset.pattern.permute.xlu0 0
      %2148 = vperm.xlu0 %2147, %v1868
      %v2149 = vpop.permute.xlu0 %2148
      %2152 = vset.pattern.permute.xlu0 0
      %2153 = vperm.xlu0 %2152, %v1870
      %v2154 = vpop.permute.xlu0 %2153
      %v2156 = vmul.f32 %v2139, %v2132
      %v2157 = vmul.f32 %v2144, %v2133
      %v2158 = vmul.f32 %v2149, %v2134
      %v2159 = vmul.f32 %v2154, %v2135
      %v2160 = vadd.f32 %v2156, %v1980
      %v2161 = vadd.f32 %v2157, %v2029
      %v2162 = vadd.f32 %v2158, %v2078
      %v2163 = vadd.f32 %v2159, %v2127
      %2164 = vst.msk [vmem:[#allocation5] sm:$0xff] %vm1665, %v2160
      %2165 = vst.msk [vmem:[#allocation5 + $0x8] sm:$0xff] %vm1665, %v2161
      %2166 = vst.msk [vmem:[#allocation5 + $0x10] sm:$0xff] %vm1665, %v2162
      %2167 = vst.msk [vmem:[#allocation5 + $0x18] sm:$0xff] %vm1665, %v2163
      %2168 = vst.msk [vmem:[#allocation3] sm:$0xff] %vm1927, %v1855
      %2169 = vst.msk [vmem:[#allocation3 + $0x8] sm:$0xff] %vm1927, %v1856
      %2170 = vst.msk [vmem:[#allocation3 + $0x10] sm:$0xff] %vm1927, %v1857
      %2171 = vst.msk [vmem:[#allocation3 + $0x18] sm:$0xff] %vm1927, %v1858
      // Predicated region
      $region85: #{block_forward.4} parent=79 // pred_check
        %p2172 = pneg %p641
      $region86: #{block_forward.4} parent=79 // pred_check_branch
        %2174 = sbr.rel (%p2172) target = $region88
      $region87: #{block_forward.4} parent=79 // pred_region
        %v2175 = vld [vmem:[#allocation5] sm:$0xff]
        %v2176 = vld [vmem:[#allocation5 + $0x8] sm:$0xff]
        %v2177 = vld [vmem:[#allocation5 + $0x10] sm:$0xff]
        %v2178 = vld [vmem:[#allocation5 + $0x18] sm:$0xff]
        %v2179 = vld [vmem:[#allocation4] sm:$0xff]
        %v2180 = vld [vmem:[#allocation4 + $0x8] sm:$0xff]
        %v2181 = vld [vmem:[#allocation4 + $0x10] sm:$0xff]
        %v2182 = vld [vmem:[#allocation4 + $0x18] sm:$0xff]
        %v2183 = vrcp.pop %v2179
        %v2184 = vrcp.pop %v2180
        %v2185 = vrcp.pop %v2181
        %v2186 = vrcp.pop %v2182
        %2188 = vset.pattern.permute.xlu0 0
        %2189 = vperm.xlu0 %2188, %v2183
        %v2190 = vpop.permute.xlu0 %2189
        %2193 = vset.pattern.permute.xlu0 0
        %2194 = vperm.xlu0 %2193, %v2184
        %v2195 = vpop.permute.xlu0 %2194
        %2198 = vset.pattern.permute.xlu0 0
        %2199 = vperm.xlu0 %2198, %v2185
        %v2200 = vpop.permute.xlu0 %2199
        %2203 = vset.pattern.permute.xlu0 0
        %2204 = vperm.xlu0 %2203, %v2186
        %v2205 = vpop.permute.xlu0 %2204
        %v2207 = vmul.f32 %v2175, %v2190
        %v2208 = vmul.f32 %v2176, %v2195
        %v2209 = vmul.f32 %v2177, %v2200
        %v2210 = vmul.f32 %v2178, %v2205
        %v2211 = vpack.c.bf16 %v2207, %v2207
        %v2212 = vpack.c.bf16 %v2208, %v2208
        %v2213 = vpack.c.bf16 %v2209, %v2209
        %v2214 = vpack.c.bf16 %v2210, %v2210
        %v2215 = vld [vmem:[%s10] sm:$0xf]
        %v2216 = vld [vmem:[%s10 + $0x4] sm:$0xf]
        %v2217 = vld [vmem:[%s10 + $0x8] sm:$0xf]
        %v2218 = vld [vmem:[%s10 + $0xc] sm:$0xf]
        %v2219 = vld [vmem:[%s10 + $0x10] sm:$0xf]
        %v2220 = vld [vmem:[%s10 + $0x14] sm:$0xf]
        %v2221 = vld [vmem:[%s10 + $0x18] sm:$0xf]
        %v2222 = vld [vmem:[%s10 + $0x1c] sm:$0xf]
        %v2223 = vld [vmem:[%s10 + $0x20] sm:$0xf]
        %v2224 = vld [vmem:[%s10 + $0x24] sm:$0xf]
        %v2225 = vld [vmem:[%s10 + $0x28] sm:$0xf]
        %v2226 = vld [vmem:[%s10 + $0x2c] sm:$0xf]
        %v2227 = vld [vmem:[%s10 + $0x30] sm:$0xf]
        %v2228 = vld [vmem:[%s10 + $0x34] sm:$0xf]
        %v2229 = vld [vmem:[%s10 + $0x38] sm:$0xf]
        %v2230 = vld [vmem:[%s10 + $0x3c] sm:$0xf]
        %v2235 = vunpack.c.l.b16 %v2215
        %v2236 = vunpack.c.l.b16 %v2216
        %v2237 = vunpack.c.l.b16 %v2217
        %v2238 = vunpack.c.l.b16 %v2218
        %v2239 = vpack.c.b16 %v2236, %v2235
        %v2240 = vpack.c.b16 %v2238, %v2237
        %v2244 = vsel %vm1665, %v2211, 0
        %2246 = vmatprep.subr.bf16.mxu0 0
        %2247 = vmatpush1.bf16.msra.mxu0 %v2239
        %2248 = vmatprep.subr.bf16.mxu0 0
        %2249 = vmatpush1.bf16.msra.mxu0 %v2240
        %2250 = vmatprep.subr.bf16.mxu0 0
        %2251 = vmatpush1.bf16.msra.mxu0 0
        %2252 = vmatprep.subr.bf16.mxu0 0
        %2253 = vmatpush1.bf16.msra.mxu0 0
        %2254 = vmatprep.subr.bf16.mxu0 0
        %2255 = vmatpush1.bf16.msra.mxu0 0
        %2256 = vmatprep.subr.bf16.mxu0 0
        %2257 = vmatpush1.bf16.msra.mxu0 0
        %2258 = vmatprep.subr.bf16.mxu0 0
        %2259 = vmatpush1.bf16.msra.mxu0 0
        %2260 = vmatprep.subr.bf16.mxu0 0
        %2261 = vmatpush1.bf16.msra.mxu0 0
        %2262 = vmatprep.subr.bf16.mxu0 0
        %2263 = vmatpush1.bf16.msra.mxu0 0
        %2264 = vmatprep.subr.bf16.mxu0 0
        %2265 = vmatpush1.bf16.msra.mxu0 0
        %2266 = vmatprep.subr.bf16.mxu0 0
        %2267 = vmatpush1.bf16.msra.mxu0 0
        %2268 = vmatprep.subr.bf16.mxu0 0
        %2269 = vmatpush1.bf16.msra.mxu0 0
        %2270 = vmatprep.subr.bf16.mxu0 0
        %2271 = vmatpush1.bf16.msra.mxu0 0
        %2272 = vmatprep.subr.bf16.mxu0 0
        %2273 = vmatpush1.bf16.msra.mxu0 0
        %2274 = vmatprep.subr.bf16.mxu0 0
        %2275 = vmatpush1.bf16.msra.mxu0 0
        %2276 = vmatprep.subr.bf16.mxu0 0
        %2277 = vmatpush1.bf16.msra.mxu0 0
        %2278 = vmatprep.mubr.bf16.mxu0 0
        %2279 = vmatmul.mubr.bf16.gmra.mrb[0].mxu0 %v2244
        %v2280 = vpop.f32.mrb[0].mxu0
        %v2281 = vadd.f32 0.0, %v2280
        %v2282 = vpop.f32.mrb[0].mxu0
        %v2283 = vpop.f32.mrb[0].mxu0
        %v2284 = vpop.f32.mrb[0].mxu0
        %2285 = vdwg.mxu0
        %v2290 = vunpack.c.l.b16 %v2219
        %v2291 = vunpack.c.l.b16 %v2220
        %v2292 = vunpack.c.l.b16 %v2221
        %v2293 = vunpack.c.l.b16 %v2222
        %v2294 = vpack.c.b16 %v2291, %v2290
        %v2295 = vpack.c.b16 %v2293, %v2292
        %v2299 = vsel %vm1665, %v2212, 0
        %2301 = vmatprep.subr.bf16.mxu0 0
        %2302 = vmatpush1.bf16.msra.mxu0 %v2294
        %2303 = vmatprep.subr.bf16.mxu0 0
        %2304 = vmatpush1.bf16.msra.mxu0 %v2295
        %2305 = vmatprep.subr.bf16.mxu0 0
        %2306 = vmatpush1.bf16.msra.mxu0 0
        %2307 = vmatprep.subr.bf16.mxu0 0
        %2308 = vmatpush1.bf16.msra.mxu0 0
        %2309 = vmatprep.subr.bf16.mxu0 0
        %2310 = vmatpush1.bf16.msra.mxu0 0
        %2311 = vmatprep.subr.bf16.mxu0 0
        %2312 = vmatpush1.bf16.msra.mxu0 0
        %2313 = vmatprep.subr.bf16.mxu0 0
        %2314 = vmatpush1.bf16.msra.mxu0 0
        %2315 = vmatprep.subr.bf16.mxu0 0
        %2316 = vmatpush1.bf16.msra.mxu0 0
        %2317 = vmatprep.subr.bf16.mxu0 0
        %2318 = vmatpush1.bf16.msra.mxu0 0
        %2319 = vmatprep.subr.bf16.mxu0 0
        %2320 = vmatpush1.bf16.msra.mxu0 0
        %2321 = vmatprep.subr.bf16.mxu0 0
        %2322 = vmatpush1.bf16.msra.mxu0 0
        %2323 = vmatprep.subr.bf16.mxu0 0
        %2324 = vmatpush1.bf16.msra.mxu0 0
        %2325 = vmatprep.subr.bf16.mxu0 0
        %2326 = vmatpush1.bf16.msra.mxu0 0
        %2327 = vmatprep.subr.bf16.mxu0 0
        %2328 = vmatpush1.bf16.msra.mxu0 0
        %2329 = vmatprep.subr.bf16.mxu0 0
        %2330 = vmatpush1.bf16.msra.mxu0 0
        %2331 = vmatprep.subr.bf16.mxu0 0
        %2332 = vmatpush1.bf16.msra.mxu0 0
        %2333 = vmatprep.mubr.bf16.mxu0 0
        %2334 = vmatmul.mubr.bf16.gmra.mrb[0].mxu0 %v2299
        %v2335 = vpop.f32.mrb[0].mxu0
        %v2336 = vadd.f32 0.0, %v2335
        %v2337 = vpop.f32.mrb[0].mxu0
        %v2338 = vpop.f32.mrb[0].mxu0
        %v2339 = vpop.f32.mrb[0].mxu0
        %2340 = vdwg.mxu0
        %v2345 = vunpack.c.l.b16 %v2223
        %v2346 = vunpack.c.l.b16 %v2224
        %v2347 = vunpack.c.l.b16 %v2225
        %v2348 = vunpack.c.l.b16 %v2226
        %v2349 = vpack.c.b16 %v2346, %v2345
        %v2350 = vpack.c.b16 %v2348, %v2347
        %v2354 = vsel %vm1665, %v2213, 0
        %2356 = vmatprep.subr.bf16.mxu0 0
        %2357 = vmatpush1.bf16.msra.mxu0 %v2349
        %2358 = vmatprep.subr.bf16.mxu0 0
        %2359 = vmatpush1.bf16.msra.mxu0 %v2350
        %2360 = vmatprep.subr.bf16.mxu0 0
        %2361 = vmatpush1.bf16.msra.mxu0 0
        %2362 = vmatprep.subr.bf16.mxu0 0
        %2363 = vmatpush1.bf16.msra.mxu0 0
        %2364 = vmatprep.subr.bf16.mxu0 0
        %2365 = vmatpush1.bf16.msra.mxu0 0
        %2366 = vmatprep.subr.bf16.mxu0 0
        %2367 = vmatpush1.bf16.msra.mxu0 0
        %2368 = vmatprep.subr.bf16.mxu0 0
        %2369 = vmatpush1.bf16.msra.mxu0 0
        %2370 = vmatprep.subr.bf16.mxu0 0
        %2371 = vmatpush1.bf16.msra.mxu0 0
        %2372 = vmatprep.subr.bf16.mxu0 0
        %2373 = vmatpush1.bf16.msra.mxu0 0
        %2374 = vmatprep.subr.bf16.mxu0 0
        %2375 = vmatpush1.bf16.msra.mxu0 0
        %2376 = vmatprep.subr.bf16.mxu0 0
        %2377 = vmatpush1.bf16.msra.mxu0 0
        %2378 = vmatprep.subr.bf16.mxu0 0
        %2379 = vmatpush1.bf16.msra.mxu0 0
        %2380 = vmatprep.subr.bf16.mxu0 0
        %2381 = vmatpush1.bf16.msra.mxu0 0
        %2382 = vmatprep.subr.bf16.mxu0 0
        %2383 = vmatpush1.bf16.msra.mxu0 0
        %2384 = vmatprep.subr.bf16.mxu0 0
        %2385 = vmatpush1.bf16.msra.mxu0 0
        %2386 = vmatprep.subr.bf16.mxu0 0
        %2387 = vmatpush1.bf16.msra.mxu0 0
        %2388 = vmatprep.mubr.bf16.mxu0 0
        %2389 = vmatmul.mubr.bf16.gmra.mrb[0].mxu0 %v2354
        %v2390 = vpop.f32.mrb[0].mxu0
        %v2391 = vadd.f32 0.0, %v2390
        %v2392 = vpop.f32.mrb[0].mxu0
        %v2393 = vpop.f32.mrb[0].mxu0
        %v2394 = vpop.f32.mrb[0].mxu0
        %2395 = vdwg.mxu0
        %v2400 = vunpack.c.l.b16 %v2227
        %v2401 = vunpack.c.l.b16 %v2228
        %v2402 = vunpack.c.l.b16 %v2229
        %v2403 = vunpack.c.l.b16 %v2230
        %v2404 = vpack.c.b16 %v2401, %v2400
        %v2405 = vpack.c.b16 %v2403, %v2402
        %v2409 = vsel %vm1665, %v2214, 0
        %2411 = vmatprep.subr.bf16.mxu0 0
        %2412 = vmatpush1.bf16.msra.mxu0 %v2404
        %2413 = vmatprep.subr.bf16.mxu0 0
        %2414 = vmatpush1.bf16.msra.mxu0 %v2405
        %2415 = vmatprep.subr.bf16.mxu0 0
        %2416 = vmatpush1.bf16.msra.mxu0 0
        %2417 = vmatprep.subr.bf16.mxu0 0
        %2418 = vmatpush1.bf16.msra.mxu0 0
        %2419 = vmatprep.subr.bf16.mxu0 0
        %2420 = vmatpush1.bf16.msra.mxu0 0
        %2421 = vmatprep.subr.bf16.mxu0 0
        %2422 = vmatpush1.bf16.msra.mxu0 0
        %2423 = vmatprep.subr.bf16.mxu0 0
        %2424 = vmatpush1.bf16.msra.mxu0 0
        %2425 = vmatprep.subr.bf16.mxu0 0
        %2426 = vmatpush1.bf16.msra.mxu0 0
        %2427 = vmatprep.subr.bf16.mxu0 0
        %2428 = vmatpush1.bf16.msra.mxu0 0
        %2429 = vmatprep.subr.bf16.mxu0 0
        %2430 = vmatpush1.bf16.msra.mxu0 0
        %2431 = vmatprep.subr.bf16.mxu0 0
        %2432 = vmatpush1.bf16.msra.mxu0 0
        %2433 = vmatprep.subr.bf16.mxu0 0
        %2434 = vmatpush1.bf16.msra.mxu0 0
        %2435 = vmatprep.subr.bf16.mxu0 0
        %2436 = vmatpush1.bf16.msra.mxu0 0
        %2437 = vmatprep.subr.bf16.mxu0 0
        %2438 = vmatpush1.bf16.msra.mxu0 0
        %2439 = vmatprep.subr.bf16.mxu0 0
        %2440 = vmatpush1.bf16.msra.mxu0 0
        %2441 = vmatprep.subr.bf16.mxu0 0
        %2442 = vmatpush1.bf16.msra.mxu0 0
        %2443 = vmatprep.mubr.bf16.mxu0 0
        %2444 = vmatmul.mubr.bf16.gmra.mrb[0].mxu0 %v2409
        %v2445 = vpop.f32.mrb[0].mxu0
        %v2446 = vadd.f32 0.0, %v2445
        %v2447 = vpop.f32.mrb[0].mxu0
        %v2448 = vpop.f32.mrb[0].mxu0
        %v2449 = vpop.f32.mrb[0].mxu0
        %2450 = vdwg.mxu0
        %v2451 = vadd.f32 %v2281, %v2336
        %v2452 = vadd.f32 %v2451, %v2391
        %v2453 = vadd.f32 %v2452, %v2446
        %v2454 = vld [vmem:[%s11] sm:$0x1]
        %v2456 = vlaneseq
        %v2457 = vshrl.u32 %v2456, 7
        %v2458 = vsub.s32 0, %v2457
        %v2459 = vrot.slane %v2454, %v2458
        %v2461 = vadd.f32 %v2453, %v2459
        %v2462 = vld [vmem:[%s632] sm:$0xf]
        %v2463 = vunpack.c.l.bf16 %v2462
        %v2464 = vadd.f32 %v2461, %v2463
        %v2465 = vld [vmem:[%s13] sm:$0x1]
        %v2466 = vld [vmem:[%s14] sm:$0x1]
        %2467 = vadd.xlane.f32.xlu0 %v2464
        %v2468 = vpop.xlane.xlu0 %2467
        %v2469 = vrcp.pop 128.0
        %v2470 = vmul.f32 %v2468, %v2469
        %v2471 = vsub.f32 %v2464, %v2470
        %v2472 = vmul.f32 %v2471, %v2471
        %2473 = vadd.xlane.f32.xlu0 %v2472
        %v2474 = vpop.xlane.xlu0 %2473
        %v2475 = vmul.f32 %v2474, %v2469
        %v2476 = vadd.f32 %v2475, 1e-05
        %v2477 = vrsqrt.pop %v2476
        %v2478 = vmul.f32 %v2471, %v2477
        %v2480 = vlaneseq
        %v2481 = vshrl.u32 %v2480, 7
        %v2482 = vsub.s32 0, %v2481
        %v2483 = vrot.slane %v2465, %v2482
        %v2485 = vmul.f32 %v2478, %v2483
        %v2487 = vlaneseq
        %v2488 = vshrl.u32 %v2487, 7
        %v2489 = vsub.s32 0, %v2488
        %v2490 = vrot.slane %v2466, %v2489
        %v2492 = vadd.f32 %v2485, %v2490
        %v2493 = vpack.c.bf16 %v2492, %v2492
        %2494 = vst [vmem:[%s639] sm:$0xf] %v2493
      $region88: #{block_forward.4} parent=79 // pred_fallthru
        _
      %p2495 = scmp.lt.s32.totalorder %s31, 1
      %s2496 = scalar_select %p2495, %s31, 1
      %p2497 = scmp.lt.s32.totalorder %s32, 0
      %s2498 = scalar_select %p2497, %s32, 0
      %s2499 = sadd.s32 %s2498, %s2496
      %s2500 = smul.addr %s2499, 4
      %s2501 = scalar_lea.vmem %s15, %s2500
      // Predicated region
      $region89: #{block_forward.4} parent=79 // pred_check
        %p2502 = pneg %p415
      $region90: #{block_forward.4} parent=79 // pred_check_branch
        %2504 = sbr.rel (%p2502) target = $region92
      $region91: #{block_forward.4} parent=79 // pred_region
        _
      $region92: #{block_forward.4} parent=79 // pred_fallthru
        _
    $region80: #{block_forward.4} parent=5 // pred_fallthru
      _
    %p2505 = scmp.le.s32.totalorder 2, %s21
    // Predicated region
    $region93: #{block_forward.4} parent=5 // pred_check
      %p2506 = pneg %p2505
    $region94: #{block_forward.4} parent=5 // pred_check_branch
      %2508 = sbr.rel (%p2506) target = $region96
    $region95: #{block_forward.4} parent=5 // pred_region
      %s2509 = ssub.s32 %s21, 2
      // Predicated region
      $region97: #{block_forward.4} parent=95 // pred_check
        %p2510 = pneg %p421
      $region98: #{block_forward.4} parent=95 // pred_check_branch
        %2512 = sbr.rel (%p2510) target = $region100
      $region99: #{block_forward.4} parent=95 // pred_region
        %p2513 = scmp.lt.s32.totalorder %s34, 1
        %s2514 = scalar_select %p2513, %s34, 1
        %p2515 = scmp.lt.s32.totalorder %s35, 0
        %s2516 = scalar_select %p2515, %s35, 0
        %s2517 = sadd.s32 %s2516, %s2514
        %s2518 = smul.addr %s2517, 4
        %s2519 = scalar_lea.vmem %s15, %s2518
      $region100: #{block_forward.4} parent=95 // pred_fallthru
        _
    $region96: #{block_forward.4} parent=5 // pred_fallthru
      _
  $region6: #{block_forward.4} parent=0 // loop_footer
    %s25 = sadd.s32 1, %s21
  $region7: #{block_forward.4} parent=0 // loop_footer_branch
    %20 = sbr.rel target = $region3
  $region8: #{block_forward.4} parent=0 // loop_exit
    _

// kernel: block_forward.5
$region0: #{block_forward.5}
  #allocation0 [shape = 'u32[]', space=smem, size = 0x4, offset = 0x4, fixed_abs, tag = 'smem constant byte address 0x4 - core index']
  #allocation1 [shape = 'u32[144,128]{1,0:T(1,128)}', space=vmem, size = 0x12000, scoped, tag = 'internal scratch']
  #allocation2 [shape = 'bf16[4,8,16]{2,1,0:T(8,128)(2,1)}', space=vmem, size = 0x2000, scoped, tag = 'scratch operand']
  #allocation3 [shape = 'f32[4,8,1]{2,1,0:T(8,128)}', space=vmem, size = 0x4000, scoped, tag = 'scratch operand']
  #allocation4 [shape = 'f32[4,8,1]{2,1,0:T(8,128)}', space=vmem, size = 0x4000, scoped, tag = 'scratch operand']
  #allocation5 [shape = 'f32[4,8,16]{2,1,0:T(8,128)}', space=vmem, size = 0x4000, scoped, tag = 'scratch operand']
  %s0 = inlined_call_operand.vmem [shape: bf16[2,8,128], index: 0, kind: input, shape index: {}, may-alias: {0,12}]
  %s1 = inlined_call_operand.vmem [shape: bf16[2,8,128], index: 1, kind: input, shape index: {}]
  %s2 = inlined_call_operand.vmem [shape: bf16[2,40,128], index: 2, kind: input, shape index: {}]
  %s3 = inlined_call_operand.vmem [shape: bf16[2,40,128], index: 3, kind: input, shape index: {}]
  %s4 = inlined_call_operand.vmem [shape: bf16[4,128,16], index: 4, kind: input, shape index: {}]
  %s5 = inlined_call_operand.vmem [shape: f32[4,1,16], index: 5, kind: input, shape index: {}]
  %s6 = inlined_call_operand.vmem [shape: bf16[64,128], index: 6, kind: input, shape index: {}]
  %s7 = inlined_call_operand.vmem [shape: f32[64,1], index: 7, kind: input, shape index: {}]
  %s8 = inlined_call_operand.vmem [shape: bf16[64,128], index: 8, kind: input, shape index: {}]
  %s9 = inlined_call_operand.vmem [shape: f32[64,1], index: 9, kind: input, shape index: {}]
  %s10 = inlined_call_operand.vmem [shape: bf16[4,16,128], index: 10, kind: input, shape index: {}]
  %s11 = inlined_call_operand.vmem [shape: f32[1,128], index: 11, kind: input, shape index: {}]
  %s12 = inlined_call_operand.vmem [shape: bf16[2,8,128], index: 12, kind: input, shape index: {}, may-alias: {0,12}]
  %s13 = inlined_call_operand.vmem [shape: f32[1,128], index: 13, kind: input, shape index: {}]
  %s14 = inlined_call_operand.vmem [shape: f32[1,128], index: 14, kind: input, shape index: {}]
  %s15 = inlined_call_operand.vmem [shape: bf16[2,8,128], index: 15, kind: output, shape index: {}]
  %s16 = sld [smem:[#allocation0]]
  $region101: #{block_forward.5} parent=0
    _
  %s18 = ssub.s32 1, %s16
  %s19 = scalar_select 0, %s18, %s16
  loop: start=0, step=1, limit=8
  $region2: #{block_forward.5} parent=0 // loop_pre_header
    _
  $region3: #{block_forward.5} parent=0 // loop_header
    %s21 = sphi 0, %s25
    %p22 = scmp.ge.s32.totalorder %s21, 8
    %s28 = sphi 0, %s47
    %s29 = sphi 0, %s43
    %s30 = sphi 0, %s39
    %s31 = sphi 0, %s28
    %s32 = sphi 0, %s29
    %s33 = sphi 0, %s30
    %s34 = sphi 0, %s31
    %s35 = sphi 0, %s32
    %s36 = sphi 0, %s33
    %s52 = sphi 0, %s54
    %s55 = sphi 0, %s52
    %s56 = sphi 0, %s55
    %s72 = sphi 0, %s56
    %s80 = sphi 0, %s82
    %s83 = sphi 0, %s80
    %s84 = sphi 0, %s83
    %s100 = sphi 0, %s84
    %s108 = sphi 0, %s110
    %s111 = sphi 0, %s108
    %s112 = sphi 0, %s111
    %s128 = sphi 0, %s112
    %s136 = sphi 0, %s138
    %s139 = sphi 0, %s136
    %s140 = sphi 0, %s139
    %s156 = sphi 0, %s140
    %s160 = sphi 0, %s160
    %s162 = sphi 0, %s160
    %s163 = sphi 0, %s162
    %s177 = sphi 0, %s163
    %s181 = sphi 0, %s181
    %s183 = sphi 0, %s181
    %s184 = sphi 0, %s183
    %s198 = sphi 0, %s184
    %s202 = sphi 0, %s202
    %s204 = sphi 0, %s202
    %s205 = sphi 0, %s204
    %s219 = sphi 0, %s205
    %s223 = sphi 0, %s223
    %s225 = sphi 0, %s223
    %s226 = sphi 0, %s225
    %s240 = sphi 0, %s226
    %s244 = sphi 0, %s244
    %s246 = sphi 0, %s244
    %s247 = sphi 0, %s246
    %s261 = sphi 0, %s247
    %s265 = sphi 0, %s265
    %s267 = sphi 0, %s265
    %s268 = sphi 0, %s267
    %s282 = sphi 0, %s268
    %s286 = sphi 0, %s286
    %s288 = sphi 0, %s286
    %s289 = sphi 0, %s288
    %s303 = sphi 0, %s289
    %s307 = sphi 0, %s307
    %s309 = sphi 0, %s307
    %s310 = sphi 0, %s309
    %s324 = sphi 0, %s310
    %s332 = sphi 0, %s334
    %s335 = sphi 0, %s332
    %s336 = sphi 0, %s335
    %s352 = sphi 0, %s336
    %s356 = sphi 0, %s356
    %s358 = sphi 0, %s356
    %s359 = sphi 0, %s358
    %s373 = sphi 0, %s359
    %s377 = sphi 0, %s377
    %s379 = sphi 0, %s377
    %s380 = sphi 0, %s379
    %s394 = sphi 0, %s380
    %s402 = sphi 0, %s404
    %s405 = sphi 0, %s402
    %s406 = sphi 0, %s405
    %s422 = sphi 0, %s406
  $region4: #{block_forward.5} parent=0 // loop_header_branch
    %24 = sbr.rel (%p22) target = $region8
  $region5: #{block_forward.5} parent=0 // loop_body
    %s26 = ssub.s32 %s21, 1
    %s27 = ssub.s32 %s21, 2
    %s37 = sadd.s32 1, %s30
    %p38 = scmp.ge.s32.totalorder %s37, 3
    %s39 = scalar_select %p38, 0, %s37
    %s40 = sadd.s32 1, %s29
    %s41 = scalar_select %p38, %s40, %s29
    %p42 = scmp.ge.s32.totalorder %s41, 1
    %s43 = scalar_select %p42, 0, %s41
    %s44 = sadd.s32 1, %s28
    %s45 = scalar_select %p42, %s44, %s28
    %p46 = scmp.ge.s32.totalorder %s45, 2
    %s47 = scalar_select %p46, 0, %s45
    %s48 = ssub.s32 %s28, %s47
    %s49 = ssub.s32 %s29, %s43
    %s50 = sor.u32 %s48, %s49
    %p51 = scmp.eq.s32.totalorder %s50, 0
    %s53 = sadd.s32 %s52, 1
    %s54 = scalar_select %p51, %s52, %s53
    %p57 = pneg %p51
    %p58 = scmp.eq.s32.totalorder %s21, 5
    %p59 = por %p57, %p58
    %p60 = scmp.ne.s32.totalorder %s52, %s55
    %p61 = scmp.eq.s32.totalorder %s21, 0
    %p62 = por %p60, %p61
    %p63 = scmp.ne.s32.totalorder %s52, %s55
    %p64 = scmp.eq.s32.totalorder %s26, 5
    %p65 = por %p63, %p64
    %p66 = scmp.ne.s32.totalorder %s55, %s56
    %p67 = scmp.eq.s32.totalorder %s26, 0
    %p68 = por %p66, %p67
    %p69 = scmp.ne.s32.totalorder %s55, %s56
    %p70 = scmp.eq.s32.totalorder %s27, 5
    %p71 = por %p69, %p70
    %p73 = scmp.ne.s32.totalorder %s56, %s72
    %p74 = scmp.eq.s32.totalorder %s27, 0
    %p75 = por %p73, %p74
    %s76 = ssub.s32 %s28, %s47
    %s77 = ssub.s32 %s29, %s43
    %s78 = sor.u32 %s76, %s77
    %p79 = scmp.eq.s32.totalorder %s78, 0
    %s81 = sadd.s32 %s80, 1
    %s82 = scalar_select %p79, %s80, %s81
    %p85 = pneg %p79
    %p86 = scmp.eq.s32.totalorder %s21, 5
    %p87 = por %p85, %p86
    %p88 = scmp.ne.s32.totalorder %s80, %s83
    %p89 = scmp.eq.s32.totalorder %s21, 0
    %p90 = por %p88, %p89
    %p91 = scmp.ne.s32.totalorder %s80, %s83
    %p92 = scmp.eq.s32.totalorder %s26, 5
    %p93 = por %p91, %p92
    %p94 = scmp.ne.s32.totalorder %s83, %s84
    %p95 = scmp.eq.s32.totalorder %s26, 0
    %p96 = por %p94, %p95
    %p97 = scmp.ne.s32.totalorder %s83, %s84
    %p98 = scmp.eq.s32.totalorder %s27, 5
    %p99 = por %p97, %p98
    %p101 = scmp.ne.s32.totalorder %s84, %s100
    %p102 = scmp.eq.s32.totalorder %s27, 0
    %p103 = por %p101, %p102
    %s104 = ssub.s32 %s28, %s47
    %s105 = ssub.s32 %s30, %s39
    %s106 = sor.u32 %s104, %s105
    %p107 = scmp.eq.s32.totalorder %s106, 0
    %s109 = sadd.s32 %s108, 1
    %s110 = scalar_select %p107, %s108, %s109
    %p113 = pneg %p107
    %p114 = scmp.eq.s32.totalorder %s21, 5
    %p115 = por %p113, %p114
    %p116 = scmp.ne.s32.totalorder %s108, %s111
    %p117 = scmp.eq.s32.totalorder %s21, 0
    %p118 = por %p116, %p117
    %p119 = scmp.ne.s32.totalorder %s108, %s111
    %p120 = scmp.eq.s32.totalorder %s26, 5
    %p121 = por %p119, %p120
    %p122 = scmp.ne.s32.totalorder %s111, %s112
    %p123 = scmp.eq.s32.totalorder %s26, 0
    %p124 = por %p122, %p123
    %p125 = scmp.ne.s32.totalorder %s111, %s112
    %p126 = scmp.eq.s32.totalorder %s27, 5
    %p127 = por %p125, %p126
    %p129 = scmp.ne.s32.totalorder %s112, %s128
    %p130 = scmp.eq.s32.totalorder %s27, 0
    %p131 = por %p129, %p130
    %s132 = ssub.s32 %s28, %s47
    %s133 = ssub.s32 %s30, %s39
    %s134 = sor.u32 %s132, %s133
    %p135 = scmp.eq.s32.totalorder %s134, 0
    %s137 = sadd.s32 %s136, 1
    %s138 = scalar_select %p135, %s136, %s137
    %p141 = pneg %p135
    %p142 = scmp.eq.s32.totalorder %s21, 5
    %p143 = por %p141, %p142
    %p144 = scmp.ne.s32.totalorder %s136, %s139
    %p145 = scmp.eq.s32.totalorder %s21, 0
    %p146 = por %p144, %p145
    %p147 = scmp.ne.s32.totalorder %s136, %s139
    %p148 = scmp.eq.s32.totalorder %s26, 5
    %p149 = por %p147, %p148
    %p150 = scmp.ne.s32.totalorder %s139, %s140
    %p151 = scmp.eq.s32.totalorder %s26, 0
    %p152 = por %p150, %p151
    %p153 = scmp.ne.s32.totalorder %s139, %s140
    %p154 = scmp.eq.s32.totalorder %s27, 5
    %p155 = por %p153, %p154
    %p157 = scmp.ne.s32.totalorder %s140, %s156
    %p158 = scmp.eq.s32.totalorder %s27, 0
    %p159 = por %p157, %p158
    %s161 = sadd.s32 %s160, 1
    %p164 = scmp.eq.s32.totalorder %s21, 5
    %p165 = scmp.ne.s32.totalorder %s160, %s162
    %p166 = scmp.eq.s32.totalorder %s21, 0
    %p167 = por %p165, %p166
    %p168 = scmp.ne.s32.totalorder %s160, %s162
    %p169 = scmp.eq.s32.totalorder %s26, 5
    %p170 = por %p168, %p169
    %p171 = scmp.ne.s32.totalorder %s162, %s163
    %p172 = scmp.eq.s32.totalorder %s26, 0
    %p173 = por %p171, %p172
    %p174 = scmp.ne.s32.totalorder %s162, %s163
    %p175 = scmp.eq.s32.totalorder %s27, 5
    %p176 = por %p174, %p175
    %p178 = scmp.ne.s32.totalorder %s163, %s177
    %p179 = scmp.eq.s32.totalorder %s27, 0
    %p180 = por %p178, %p179
    %s182 = sadd.s32 %s181, 1
    %p185 = scmp.eq.s32.totalorder %s21, 5
    %p186 = scmp.ne.s32.totalorder %s181, %s183
    %p187 = scmp.eq.s32.totalorder %s21, 0
    %p188 = por %p186, %p187
    %p189 = scmp.ne.s32.totalorder %s181, %s183
    %p190 = scmp.eq.s32.totalorder %s26, 5
    %p191 = por %p189, %p190
    %p192 = scmp.ne.s32.totalorder %s183, %s184
    %p193 = scmp.eq.s32.totalorder %s26, 0
    %p194 = por %p192, %p193
    %p195 = scmp.ne.s32.totalorder %s183, %s184
    %p196 = scmp.eq.s32.totalorder %s27, 5
    %p197 = por %p195, %p196
    %p199 = scmp.ne.s32.totalorder %s184, %s198
    %p200 = scmp.eq.s32.totalorder %s27, 0
    %p201 = por %p199, %p200
    %s203 = sadd.s32 %s202, 1
    %p206 = scmp.eq.s32.totalorder %s21, 5
    %p207 = scmp.ne.s32.totalorder %s202, %s204
    %p208 = scmp.eq.s32.totalorder %s21, 0
    %p209 = por %p207, %p208
    %p210 = scmp.ne.s32.totalorder %s202, %s204
    %p211 = scmp.eq.s32.totalorder %s26, 5
    %p212 = por %p210, %p211
    %p213 = scmp.ne.s32.totalorder %s204, %s205
    %p214 = scmp.eq.s32.totalorder %s26, 0
    %p215 = por %p213, %p214
    %p216 = scmp.ne.s32.totalorder %s204, %s205
    %p217 = scmp.eq.s32.totalorder %s27, 5
    %p218 = por %p216, %p217
    %p220 = scmp.ne.s32.totalorder %s205, %s219
    %p221 = scmp.eq.s32.totalorder %s27, 0
    %p222 = por %p220, %p221
    %s224 = sadd.s32 %s223, 1
    %p227 = scmp.eq.s32.totalorder %s21, 5
    %p228 = scmp.ne.s32.totalorder %s223, %s225
    %p229 = scmp.eq.s32.totalorder %s21, 0
    %p230 = por %p228, %p229
    %p231 = scmp.ne.s32.totalorder %s223, %s225
    %p232 = scmp.eq.s32.totalorder %s26, 5
    %p233 = por %p231, %p232
    %p234 = scmp.ne.s32.totalorder %s225, %s226
    %p235 = scmp.eq.s32.totalorder %s26, 0
    %p236 = por %p234, %p235
    %p237 = scmp.ne.s32.totalorder %s225, %s226
    %p238 = scmp.eq.s32.totalorder %s27, 5
    %p239 = por %p237, %p238
    %p241 = scmp.ne.s32.totalorder %s226, %s240
    %p242 = scmp.eq.s32.totalorder %s27, 0
    %p243 = por %p241, %p242
    %s245 = sadd.s32 %s244, 1
    %p248 = scmp.eq.s32.totalorder %s21, 5
    %p249 = scmp.ne.s32.totalorder %s244, %s246
    %p250 = scmp.eq.s32.totalorder %s21, 0
    %p251 = por %p249, %p250
    %p252 = scmp.ne.s32.totalorder %s244, %s246
    %p253 = scmp.eq.s32.totalorder %s26, 5
    %p254 = por %p252, %p253
    %p255 = scmp.ne.s32.totalorder %s246, %s247
    %p256 = scmp.eq.s32.totalorder %s26, 0
    %p257 = por %p255, %p256
    %p258 = scmp.ne.s32.totalorder %s246, %s247
    %p259 = scmp.eq.s32.totalorder %s27, 5
    %p260 = por %p258, %p259
    %p262 = scmp.ne.s32.totalorder %s247, %s261
    %p263 = scmp.eq.s32.totalorder %s27, 0
    %p264 = por %p262, %p263
    %s266 = sadd.s32 %s265, 1
    %p269 = scmp.eq.s32.totalorder %s21, 5
    %p270 = scmp.ne.s32.totalorder %s265, %s267
    %p271 = scmp.eq.s32.totalorder %s21, 0
    %p272 = por %p270, %p271
    %p273 = scmp.ne.s32.totalorder %s265, %s267
    %p274 = scmp.eq.s32.totalorder %s26, 5
    %p275 = por %p273, %p274
    %p276 = scmp.ne.s32.totalorder %s267, %s268
    %p277 = scmp.eq.s32.totalorder %s26, 0
    %p278 = por %p276, %p277
    %p279 = scmp.ne.s32.totalorder %s267, %s268
    %p280 = scmp.eq.s32.totalorder %s27, 5
    %p281 = por %p279, %p280
    %p283 = scmp.ne.s32.totalorder %s268, %s282
    %p284 = scmp.eq.s32.totalorder %s27, 0
    %p285 = por %p283, %p284
    %s287 = sadd.s32 %s286, 1
    %p290 = scmp.eq.s32.totalorder %s21, 5
    %p291 = scmp.ne.s32.totalorder %s286, %s288
    %p292 = scmp.eq.s32.totalorder %s21, 0
    %p293 = por %p291, %p292
    %p294 = scmp.ne.s32.totalorder %s286, %s288
    %p295 = scmp.eq.s32.totalorder %s26, 5
    %p296 = por %p294, %p295
    %p297 = scmp.ne.s32.totalorder %s288, %s289
    %p298 = scmp.eq.s32.totalorder %s26, 0
    %p299 = por %p297, %p298
    %p300 = scmp.ne.s32.totalorder %s288, %s289
    %p301 = scmp.eq.s32.totalorder %s27, 5
    %p302 = por %p300, %p301
    %p304 = scmp.ne.s32.totalorder %s289, %s303
    %p305 = scmp.eq.s32.totalorder %s27, 0
    %p306 = por %p304, %p305
    %s308 = sadd.s32 %s307, 1
    %p311 = scmp.eq.s32.totalorder %s21, 5
    %p312 = scmp.ne.s32.totalorder %s307, %s309
    %p313 = scmp.eq.s32.totalorder %s21, 0
    %p314 = por %p312, %p313
    %p315 = scmp.ne.s32.totalorder %s307, %s309
    %p316 = scmp.eq.s32.totalorder %s26, 5
    %p317 = por %p315, %p316
    %p318 = scmp.ne.s32.totalorder %s309, %s310
    %p319 = scmp.eq.s32.totalorder %s26, 0
    %p320 = por %p318, %p319
    %p321 = scmp.ne.s32.totalorder %s309, %s310
    %p322 = scmp.eq.s32.totalorder %s27, 5
    %p323 = por %p321, %p322
    %p325 = scmp.ne.s32.totalorder %s310, %s324
    %p326 = scmp.eq.s32.totalorder %s27, 0
    %p327 = por %p325, %p326
    %s328 = ssub.s32 %s28, %s47
    %s329 = ssub.s32 %s29, %s43
    %s330 = sor.u32 %s328, %s329
    %p331 = scmp.eq.s32.totalorder %s330, 0
    %s333 = sadd.s32 %s332, 1
    %s334 = scalar_select %p331, %s332, %s333
    %p337 = pneg %p331
    %p338 = scmp.eq.s32.totalorder %s21, 5
    %p339 = por %p337, %p338
    %p340 = scmp.ne.s32.totalorder %s332, %s335
    %p341 = scmp.eq.s32.totalorder %s21, 0
    %p342 = por %p340, %p341
    %p343 = scmp.ne.s32.totalorder %s332, %s335
    %p344 = scmp.eq.s32.totalorder %s26, 5
    %p345 = por %p343, %p344
    %p346 = scmp.ne.s32.totalorder %s335, %s336
    %p347 = scmp.eq.s32.totalorder %s26, 0
    %p348 = por %p346, %p347
    %p349 = scmp.ne.s32.totalorder %s335, %s336
    %p350 = scmp.eq.s32.totalorder %s27, 5
    %p351 = por %p349, %p350
    %p353 = scmp.ne.s32.totalorder %s336, %s352
    %p354 = scmp.eq.s32.totalorder %s27, 0
    %p355 = por %p353, %p354
    %s357 = sadd.s32 %s356, 1
    %p360 = scmp.eq.s32.totalorder %s21, 5
    %p361 = scmp.ne.s32.totalorder %s356, %s358
    %p362 = scmp.eq.s32.totalorder %s21, 0
    %p363 = por %p361, %p362
    %p364 = scmp.ne.s32.totalorder %s356, %s358
    %p365 = scmp.eq.s32.totalorder %s26, 5
    %p366 = por %p364, %p365
    %p367 = scmp.ne.s32.totalorder %s358, %s359
    %p368 = scmp.eq.s32.totalorder %s26, 0
    %p369 = por %p367, %p368
    %p370 = scmp.ne.s32.totalorder %s358, %s359
    %p371 = scmp.eq.s32.totalorder %s27, 5
    %p372 = por %p370, %p371
    %p374 = scmp.ne.s32.totalorder %s359, %s373
    %p375 = scmp.eq.s32.totalorder %s27, 0
    %p376 = por %p374, %p375
    %s378 = sadd.s32 %s377, 1
    %p381 = scmp.eq.s32.totalorder %s21, 5
    %p382 = scmp.ne.s32.totalorder %s377, %s379
    %p383 = scmp.eq.s32.totalorder %s21, 0
    %p384 = por %p382, %p383
    %p385 = scmp.ne.s32.totalorder %s377, %s379
    %p386 = scmp.eq.s32.totalorder %s26, 5
    %p387 = por %p385, %p386
    %p388 = scmp.ne.s32.totalorder %s379, %s380
    %p389 = scmp.eq.s32.totalorder %s26, 0
    %p390 = por %p388, %p389
    %p391 = scmp.ne.s32.totalorder %s379, %s380
    %p392 = scmp.eq.s32.totalorder %s27, 5
    %p393 = por %p391, %p392
    %p395 = scmp.ne.s32.totalorder %s380, %s394
    %p396 = scmp.eq.s32.totalorder %s27, 0
    %p397 = por %p395, %p396
    %s398 = ssub.s32 %s28, %s47
    %s399 = ssub.s32 %s29, %s43
    %s400 = sor.u32 %s398, %s399
    %p401 = scmp.eq.s32.totalorder %s400, 0
    %s403 = sadd.s32 %s402, 1
    %s404 = scalar_select %p401, %s402, %s403
    %p407 = pneg %p401
    %p408 = scmp.eq.s32.totalorder %s21, 5
    %p409 = por %p407, %p408
    %p410 = scmp.ne.s32.totalorder %s402, %s405
    %p411 = scmp.eq.s32.totalorder %s21, 0
    %p412 = por %p410, %p411
    %p413 = scmp.ne.s32.totalorder %s402, %s405
    %p414 = scmp.eq.s32.totalorder %s26, 5
    %p415 = por %p413, %p414
    %p416 = scmp.ne.s32.totalorder %s405, %s406
    %p417 = scmp.eq.s32.totalorder %s26, 0
    %p418 = por %p416, %p417
    %p419 = scmp.ne.s32.totalorder %s405, %s406
    %p420 = scmp.eq.s32.totalorder %s27, 5
    %p421 = por %p419, %p420
    %p423 = scmp.ne.s32.totalorder %s406, %s422
    %p424 = scmp.eq.s32.totalorder %s27, 0
    %p425 = por %p423, %p424
    %p426 = scmp.le.s32.totalorder 1, %s21
    %p427 = scmp.lt.s32.totalorder %s21, 7
    %p428 = pnand %p426, %p427
    %p429 = pneg %p428
    // Predicated region
    $region9: #{block_forward.5} parent=5 // pred_check
      _
    $region10: #{block_forward.5} parent=5 // pred_check_branch
      %431 = sbr.rel (%p428) target = $region12
    $region11: #{block_forward.5} parent=5 // pred_region
      %s432 = ssub.s32 %s21, 1
      // Predicated region
      $region13: #{block_forward.5} parent=11 // pred_check
        %p433 = pneg %p173
      $region14: #{block_forward.5} parent=11 // pred_check_branch
        %435 = sbr.rel (%p433) target = $region16
      $region15: #{block_forward.5} parent=11 // pred_region
        _
      $region16: #{block_forward.5} parent=11 // pred_fallthru
        _
      // Predicated region
      $region17: #{block_forward.5} parent=11 // pred_check
        %p436 = pneg %p194
      $region18: #{block_forward.5} parent=11 // pred_check_branch
        %438 = sbr.rel (%p436) target = $region20
      $region19: #{block_forward.5} parent=11 // pred_region
        _
      $region20: #{block_forward.5} parent=11 // pred_fallthru
        _
      // Predicated region
      $region21: #{block_forward.5} parent=11 // pred_check
        %p439 = pneg %p215
      $region22: #{block_forward.5} parent=11 // pred_check_branch
        %441 = sbr.rel (%p439) target = $region24
      $region23: #{block_forward.5} parent=11 // pred_region
        _
      $region24: #{block_forward.5} parent=11 // pred_fallthru
        _
      // Predicated region
      $region25: #{block_forward.5} parent=11 // pred_check
        %p442 = pneg %p236
      $region26: #{block_forward.5} parent=11 // pred_check_branch
        %444 = sbr.rel (%p442) target = $region28
      $region27: #{block_forward.5} parent=11 // pred_region
        _
      $region28: #{block_forward.5} parent=11 // pred_fallthru
        _
      // Predicated region
      $region29: #{block_forward.5} parent=11 // pred_check
        %p445 = pneg %p257
      $region30: #{block_forward.5} parent=11 // pred_check_branch
        %447 = sbr.rel (%p445) target = $region32
      $region31: #{block_forward.5} parent=11 // pred_region
        _
      $region32: #{block_forward.5} parent=11 // pred_fallthru
        _
      // Predicated region
      $region33: #{block_forward.5} parent=11 // pred_check
        %p448 = pneg %p278
      $region34: #{block_forward.5} parent=11 // pred_check_branch
        %450 = sbr.rel (%p448) target = $region36
      $region35: #{block_forward.5} parent=11 // pred_region
        _
      $region36: #{block_forward.5} parent=11 // pred_fallthru
        _
      // Predicated region
      $region37: #{block_forward.5} parent=11 // pred_check
        %p451 = pneg %p299
      $region38: #{block_forward.5} parent=11 // pred_check_branch
        %453 = sbr.rel (%p451) target = $region40
      $region39: #{block_forward.5} parent=11 // pred_region
        _
      $region40: #{block_forward.5} parent=11 // pred_fallthru
        _
      // Predicated region
      $region41: #{block_forward.5} parent=11 // pred_check
        %p454 = pneg %p320
      $region42: #{block_forward.5} parent=11 // pred_check_branch
        %456 = sbr.rel (%p454) target = $region44
      $region43: #{block_forward.5} parent=11 // pred_region
        _
      $region44: #{block_forward.5} parent=11 // pred_fallthru
        _
      // Predicated region
      $region45: #{block_forward.5} parent=11 // pred_check
        %p457 = pneg %p369
      $region46: #{block_forward.5} parent=11 // pred_check_branch
        %459 = sbr.rel (%p457) target = $region48
      $region47: #{block_forward.5} parent=11 // pred_region
        _
      $region48: #{block_forward.5} parent=11 // pred_fallthru
        _
      // Predicated region
      $region49: #{block_forward.5} parent=11 // pred_check
        %p460 = pneg %p390
      $region50: #{block_forward.5} parent=11 // pred_check_branch
        %462 = sbr.rel (%p460) target = $region52
      $region51: #{block_forward.5} parent=11 // pred_region
        _
      $region52: #{block_forward.5} parent=11 // pred_fallthru
        _
    $region12: #{block_forward.5} parent=5 // pred_fallthru
      _
    %p463 = scmp.lt.s32.totalorder %s21, 6
    // Predicated region
    $region53: #{block_forward.5} parent=5 // pred_check
      %p464 = pneg %p463
    $region54: #{block_forward.5} parent=5 // pred_check_branch
      %466 = sbr.rel (%p464) target = $region56
    $region55: #{block_forward.5} parent=5 // pred_region
      // Predicated region
      $region57: #{block_forward.5} parent=55 // pred_check
        %p467 = pneg %p62
      $region58: #{block_forward.5} parent=55 // pred_check_branch
        %469 = sbr.rel (%p467) target = $region60
      $region59: #{block_forward.5} parent=55 // pred_region
        %p470 = scmp.lt.s32.totalorder %s28, 1
        %s471 = scalar_select %p470, %s28, 1
        %p472 = scmp.lt.s32.totalorder %s29, 0
        %s473 = scalar_select %p472, %s29, 0
        %s474 = sadd.s32 %s473, %s471
        %s475 = smul.addr %s474, 4
        %s476 = scalar_lea.vmem %s0, %s475
      $region60: #{block_forward.5} parent=55 // pred_fallthru
        _
      // Predicated region
      $region61: #{block_forward.5} parent=55 // pred_check
        %p477 = pneg %p90
      $region62: #{block_forward.5} parent=55 // pred_check_branch
        %479 = sbr.rel (%p477) target = $region64
      $region63: #{block_forward.5} parent=55 // pred_region
        %p480 = scmp.lt.s32.totalorder %s28, 1
        %s481 = scalar_select %p480, %s28, 1
        %p482 = scmp.lt.s32.totalorder %s29, 0
        %s483 = scalar_select %p482, %s29, 0
        %s484 = sadd.s32 %s483, %s481
        %s485 = smul.addr %s484, 4
        %s486 = scalar_lea.vmem %s1, %s485
      $region64: #{block_forward.5} parent=55 // pred_fallthru
        _
      // Predicated region
      $region65: #{block_forward.5} parent=55 // pred_check
        %p487 = pneg %p118
      $region66: #{block_forward.5} parent=55 // pred_check_branch
        %489 = sbr.rel (%p487) target = $region68
      $region67: #{block_forward.5} parent=55 // pred_region
        %s490 = smul.u32 2, %s30
        %s491 = ssub.s32 5, %s490
        %p492 = scmp.lt.s32.totalorder %s491, 2
        %s493 = scalar_select %p492, %s491, 2
        %s494 = smul.u32 64, %s493
        %p495 = scmp.lt.s32.totalorder %s28, 1
        %s496 = scalar_select %p495, %s28, 1
        %p497 = scmp.lt.s32.totalorder %s490, 4
        %s498 = scalar_select %p497, %s490, 4
        %s499 = smul.addr %s496, 5
        %s500 = sadd.s32 %s498, %s499
        %s501 = smul.addr %s500, 4
        %s502 = scalar_lea.vmem %s2, %s501
        %s503 = smul.u32 2, %s30
        %s504 = ssub.s32 5, %s503
        %p505 = scmp.lt.s32.totalorder %s504, 2
        %s506 = scalar_select %p505, %s504, 2
        %s507 = smul.u32 64, %s506
      $region68: #{block_forward.5} parent=55 // pred_fallthru
        _
      // Predicated region
      $region69: #{block_forward.5} parent=55 // pred_check
        %p508 = pneg %p146
      $region70: #{block_forward.5} parent=55 // pred_check_branch
        %510 = sbr.rel (%p508) target = $region72
      $region71: #{block_forward.5} parent=55 // pred_region
        %s511 = smul.u32 2, %s30
        %s512 = ssub.s32 5, %s511
        %p513 = scmp.lt.s32.totalorder %s512, 2
        %s514 = scalar_select %p513, %s512, 2
        %s515 = smul.u32 64, %s514
        %p516 = scmp.lt.s32.totalorder %s28, 1
        %s517 = scalar_select %p516, %s28, 1
        %p518 = scmp.lt.s32.totalorder %s511, 4
        %s519 = scalar_select %p518, %s511, 4
        %s520 = smul.addr %s517, 5
        %s521 = sadd.s32 %s519, %s520
        %s522 = smul.addr %s521, 4
        %s523 = scalar_lea.vmem %s3, %s522
        %s524 = smul.u32 2, %s30
        %s525 = ssub.s32 5, %s524
        %p526 = scmp.lt.s32.totalorder %s525, 2
        %s527 = scalar_select %p526, %s525, 2
        %s528 = smul.u32 64, %s527
      $region72: #{block_forward.5} parent=55 // pred_fallthru
        _
      // Predicated region
      $region73: #{block_forward.5} parent=55 // pred_check
        %p529 = pneg %p342
      $region74: #{block_forward.5} parent=55 // pred_check_branch
        %531 = sbr.rel (%p529) target = $region76
      $region75: #{block_forward.5} parent=55 // pred_region
        %p532 = scmp.lt.s32.totalorder %s28, 1
        %s533 = scalar_select %p532, %s28, 1
        %p534 = scmp.lt.s32.totalorder %s29, 0
        %s535 = scalar_select %p534, %s29, 0
        %s536 = sadd.s32 %s535, %s533
        %s537 = smul.addr %s536, 4
        %s538 = scalar_lea.vmem %s12, %s537
      $region76: #{block_forward.5} parent=55 // pred_fallthru
        _
    $region56: #{block_forward.5} parent=5 // pred_fallthru
      _
    %p539 = scmp.le.s32.totalorder 1, %s21
    %p540 = scmp.lt.s32.totalorder %s21, 7
    %p541 = pnand %p539, %p540
    %p542 = pneg %p541
    // Predicated region
    $region77: #{block_forward.5} parent=5 // pred_check
      _
    $region78: #{block_forward.5} parent=5 // pred_check_branch
      %544 = sbr.rel (%p541) target = $region80
    $region79: #{block_forward.5} parent=5 // pred_region
      %s545 = ssub.s32 %s21, 1
      %p546 = scmp.lt.s32.totalorder %s31, 1
      %s547 = scalar_select %p546, %s31, 1
      %p548 = scmp.lt.s32.totalorder %s32, 0
      %s549 = scalar_select %p548, %s32, 0
      %s550 = sadd.s32 %s549, %s547
      %s551 = smul.addr %s550, 4
      %s552 = scalar_lea.vmem %s0, %s551
      %p553 = pneg %p68
      %p554 = pneg %p65
      %p555 = scmp.lt.s32.totalorder %s31, 1
      %s556 = scalar_select %p555, %s31, 1
      %p557 = scmp.lt.s32.totalorder %s32, 0
      %s558 = scalar_select %p557, %s32, 0
      %s559 = sadd.s32 %s558, %s556
      %s560 = smul.addr %s559, 4
      %s561 = scalar_lea.vmem %s1, %s560
      %p562 = pneg %p96
      %p563 = pneg %p93
      %s564 = smul.u32 2, %s33
      %s565 = ssub.s32 5, %s564
      %p566 = scmp.lt.s32.totalorder %s565, 2
      %s567 = scalar_select %p566, %s565, 2
      %s568 = smul.u32 64, %s567
      %p569 = scmp.lt.s32.totalorder %s31, 1
      %s570 = scalar_select %p569, %s31, 1
      %p571 = scmp.lt.s32.totalorder %s564, 4
      %s572 = scalar_select %p571, %s564, 4
      %s573 = smul.addr %s570, 5
      %s574 = sadd.s32 %s572, %s573
      %s575 = smul.addr %s574, 4
      %s576 = scalar_lea.vmem %s2, %s575
      %p577 = pneg %p124
      %p578 = pneg %p121
      %s579 = smul.u32 2, %s33
      %s580 = ssub.s32 5, %s579
      %p581 = scmp.lt.s32.totalorder %s580, 2
      %s582 = scalar_select %p581, %s580, 2
      %s583 = smul.u32 64, %s582
      %p584 = scmp.lt.s32.totalorder %s31, 1
      %s585 = scalar_select %p584, %s31, 1
      %p586 = scmp.lt.s32.totalorder %s579, 4
      %s587 = scalar_select %p586, %s579, 4
      %s588 = smul.addr %s585, 5
      %s589 = sadd.s32 %s587, %s588
      %s590 = smul.addr %s589, 4
      %s591 = scalar_lea.vmem %s3, %s590
      %p592 = pneg %p152
      %p593 = pneg %p149
      %p594 = pneg %p173
      %p595 = pneg %p170
      %p596 = pneg %p194
      %p597 = pneg %p191
      %p598 = pneg %p215
      %p599 = pneg %p212
      %p600 = pneg %p236
      %p601 = pneg %p233
      %p602 = pneg %p257
      %p603 = pneg %p254
      %p604 = pneg %p278
      %p605 = pneg %p275
      %p606 = pneg %p299
      %p607 = pneg %p296
      %p608 = pneg %p320
      %p609 = pneg %p317
      %p610 = scmp.lt.s32.totalorder %s31, 1
      %s611 = scalar_select %p610, %s31, 1
      %p612 = scmp.lt.s32.totalorder %s32, 0
      %s613 = scalar_select %p612, %s32, 0
      %s614 = sadd.s32 %s613, %s611
      %s615 = smul.addr %s614, 4
      %s616 = scalar_lea.vmem %s12, %s615
      %p617 = pneg %p348
      %p618 = pneg %p345
      %p619 = pneg %p369
      %p620 = pneg %p366
      %p621 = pneg %p390
      %p622 = pneg %p387
      %p623 = pneg %p418
      %p624 = pneg %p415
      %p625 = scmp.lt.s32.totalorder %s31, 1
      %s626 = scalar_select %p625, %s31, 1
      %p627 = scmp.lt.s32.totalorder %s32, 0
      %s628 = scalar_select %p627, %s32, 0
      %s629 = sadd.s32 %s628, %s626
      %s630 = smul.addr %s629, 4
      %s631 = scalar_lea.vmem %s15, %s630
      %p632 = scmp.lt.s32.totalorder %s31, 1
      %s633 = scalar_select %p632, %s31, 1
      %p634 = scmp.lt.s32.totalorder %s32, 0
      %s635 = scalar_select %p634, %s32, 0
      %s636 = sadd.s32 %s635, %s633
      %s637 = smul.addr %s636, 4
      %s638 = scalar_lea.vmem %s0, %s637
      %p639 = scmp.lt.s32.totalorder %s31, 1
      %s640 = scalar_select %p639, %s31, 1
      %p641 = scmp.lt.s32.totalorder %s32, 0
      %s642 = scalar_select %p641, %s32, 0
      %s643 = sadd.s32 %s642, %s640
      %s644 = smul.addr %s643, 4
      %s645 = scalar_lea.vmem %s1, %s644
      %s646 = smul.u32 2, %s33
      %s647 = ssub.s32 5, %s646
      %p648 = scmp.lt.s32.totalorder %s647, 2
      %s649 = scalar_select %p648, %s647, 2
      %s650 = smul.u32 64, %s649
      %p651 = scmp.lt.s32.totalorder %s31, 1
      %s652 = scalar_select %p651, %s31, 1
      %p653 = scmp.lt.s32.totalorder %s646, 4
      %s654 = scalar_select %p653, %s646, 4
      %s655 = smul.addr %s652, 5
      %s656 = sadd.s32 %s654, %s655
      %s657 = smul.addr %s656, 4
      %s658 = scalar_lea.vmem %s2, %s657
      %s659 = smul.u32 2, %s33
      %s660 = ssub.s32 5, %s659
      %p661 = scmp.lt.s32.totalorder %s660, 2
      %s662 = scalar_select %p661, %s660, 2
      %s663 = smul.u32 64, %s662
      %s664 = smul.u32 2, %s33
      %s665 = ssub.s32 5, %s664
      %p666 = scmp.lt.s32.totalorder %s665, 2
      %s667 = scalar_select %p666, %s665, 2
      %s668 = smul.u32 64, %s667
      %p669 = scmp.lt.s32.totalorder %s31, 1
      %s670 = scalar_select %p669, %s31, 1
      %p671 = scmp.lt.s32.totalorder %s664, 4
      %s672 = scalar_select %p671, %s664, 4
      %s673 = smul.addr %s670, 5
      %s674 = sadd.s32 %s672, %s673
      %s675 = smul.addr %s674, 4
      %s676 = scalar_lea.vmem %s3, %s675
      %s677 = smul.u32 2, %s33
      %s678 = ssub.s32 5, %s677
      %p679 = scmp.lt.s32.totalorder %s678, 2
      %s680 = scalar_select %p679, %s678, 2
      %s681 = smul.u32 64, %s680
      %p682 = scmp.lt.s32.totalorder %s31, 1
      %s683 = scalar_select %p682, %s31, 1
      %p684 = scmp.lt.s32.totalorder %s32, 0
      %s685 = scalar_select %p684, %s32, 0
      %s686 = sadd.s32 %s685, %s683
      %s687 = smul.addr %s686, 4
      %s688 = scalar_lea.vmem %s12, %s687
      %p689 = scmp.lt.s32.totalorder %s31, 1
      %s690 = scalar_select %p689, %s31, 1
      %p691 = scmp.lt.s32.totalorder %s32, 0
      %s692 = scalar_select %p691, %s32, 0
      %s693 = sadd.s32 %s692, %s690
      %s694 = smul.addr %s693, 4
      %s695 = scalar_lea.vmem %s15, %s694
      %p697 = scmp.eq.s32.totalorder %s33, 0
      // Predicated region
      $region81: #{block_forward.5} parent=79 // pred_check
        %p698 = pneg %p697
      $region82: #{block_forward.5} parent=79 // pred_check_branch
        %700 = sbr.rel (%p698) target = $region84
      $region83: #{block_forward.5} parent=79 // pred_region
        %v701 = vld [vmem:[%s638] sm:$0xf]
        %v702 = vld [vmem:[%s645] sm:$0xf]
        %v703 = vadd.bf16 %v701, %v702
        %v704 = vld [vmem:[%s4] sm:$0xf]
        %v705 = vld [vmem:[%s4 + $0x4] sm:$0xf]
        %v706 = vld [vmem:[%s4 + $0x8] sm:$0xf]
        %v707 = vld [vmem:[%s4 + $0xc] sm:$0xf]
        %v708 = vld [vmem:[%s4 + $0x10] sm:$0xf]
        %v709 = vld [vmem:[%s4 + $0x14] sm:$0xf]
        %v710 = vld [vmem:[%s4 + $0x18] sm:$0xf]
        %v711 = vld [vmem:[%s4 + $0x1c] sm:$0xf]
        %v712 = vld [vmem:[%s4 + $0x20] sm:$0xf]
        %v713 = vld [vmem:[%s4 + $0x24] sm:$0xf]
        %v714 = vld [vmem:[%s4 + $0x28] sm:$0xf]
        %v715 = vld [vmem:[%s4 + $0x2c] sm:$0xf]
        %v716 = vld [vmem:[%s4 + $0x30] sm:$0xf]
        %v717 = vld [vmem:[%s4 + $0x34] sm:$0xf]
        %v718 = vld [vmem:[%s4 + $0x38] sm:$0xf]
        %v719 = vld [vmem:[%s4 + $0x3c] sm:$0xf]
        %v720 = vld [vmem:[%s5] sm:$0x1]
        %v722 = vlaneseq
        %v723 = vshrl.u32 %v722, 7
        %v724 = vsub.s32 0, %v723
        %v725 = vrot.slane %v720, %v724
        %v743 = vunpack.c.l.b16 %v704
        %v744 = vunpack.c.l.b16 %v705
        %v745 = vunpack.c.l.b16 %v706
        %v746 = vunpack.c.l.b16 %v707
        %v747 = vunpack.c.l.b16 %v708
        %v748 = vunpack.c.l.b16 %v709
        %v749 = vunpack.c.l.b16 %v710
        %v750 = vunpack.c.l.b16 %v711
        %v751 = vunpack.c.l.b16 %v712
        %v752 = vunpack.c.l.b16 %v713
        %v753 = vunpack.c.l.b16 %v714
        %v754 = vunpack.c.l.b16 %v715
        %v755 = vunpack.c.l.b16 %v716
        %v756 = vunpack.c.l.b16 %v717
        %v757 = vunpack.c.l.b16 %v718
        %v758 = vunpack.c.l.b16 %v719
        %v759 = vpack.c.b16 %v744, %v743
        %v760 = vpack.c.b16 %v746, %v745
        %v761 = vpack.c.b16 %v748, %v747
        %v762 = vpack.c.b16 %v750, %v749
        %v763 = vpack.c.b16 %v752, %v751
        %v764 = vpack.c.b16 %v754, %v753
        %v765 = vpack.c.b16 %v756, %v755
        %v766 = vpack.c.b16 %v758, %v757
        %775 = vmatprep.subr.bf16.mxu0 0
        %776 = vmatpush1.bf16.msra.mxu0 %v759
        %777 = vmatprep.subr.bf16.mxu0 0
        %778 = vmatpush1.bf16.msra.mxu0 %v760
        %779 = vmatprep.subr.bf16.mxu0 0
        %780 = vmatpush1.bf16.msra.mxu0 %v761
        %781 = vmatprep.subr.bf16.mxu0 0
        %782 = vmatpush1.bf16.msra.mxu0 %v762
        %783 = vmatprep.subr.bf16.mxu0 0
        %784 = vmatpush1.bf16.msra.mxu0 %v763
        %785 = vmatprep.subr.bf16.mxu0 0
        %786 = vmatpush1.bf16.msra.mxu0 %v764
        %787 = vmatprep.subr.bf16.mxu0 0
        %788 = vmatpush1.bf16.msra.mxu0 %v765
        %789 = vmatprep.subr.bf16.mxu0 0
        %790 = vmatpush1.bf16.msra.mxu0 %v766
        %791 = vmatprep.subr.bf16.mxu0 0
        %792 = vmatpush1.bf16.msra.mxu0 0
        %793 = vmatprep.subr.bf16.mxu0 0
        %794 = vmatpush1.bf16.msra.mxu0 0
        %795 = vmatprep.subr.bf16.mxu0 0
        %796 = vmatpush1.bf16.msra.mxu0 0
        %797 = vmatprep.subr.bf16.mxu0 0
        %798 = vmatpush1.bf16.msra.mxu0 0
        %799 = vmatprep.subr.bf16.mxu0 0
        %800 = vmatpush1.bf16.msra.mxu0 0
        %801 = vmatprep.subr.bf16.mxu0 0
        %802 = vmatpush1.bf16.msra.mxu0 0
        %803 = vmatprep.subr.bf16.mxu0 0
        %804 = vmatpush1.bf16.msra.mxu0 0
        %805 = vmatprep.subr.bf16.mxu0 0
        %806 = vmatpush1.bf16.msra.mxu0 0
        %807 = vmatprep.mubr.bf16.mxu0 0
        %808 = vmatmul.mubr.bf16.gmra.mrb[0].mxu0 %v703
        %v809 = vpop.f32.mrb[0].mxu0
        %v810 = vadd.f32 %v725, %v809
        %v811 = vpop.f32.mrb[0].mxu0
        %v812 = vpop.f32.mrb[0].mxu0
        %v813 = vpop.f32.mrb[0].mxu0
        %814 = vdwg.mxu0
        %v815 = vmul.f32 %v810, 0.25
        %v816 = vpack.c.bf16 %v815, %v815
        %vm817 = vcmask 125952
        %818 = vst.msk [vmem:[#allocation2] sm:$0xf] %vm817, %v816
        %s819 = scalar_lea.vmem %s4, 64
        %v820 = vld [vmem:[%s819] sm:$0xf]
        %v821 = vld [vmem:[%s819 + $0x4] sm:$0xf]
        %v822 = vld [vmem:[%s819 + $0x8] sm:$0xf]
        %v823 = vld [vmem:[%s819 + $0xc] sm:$0xf]
        %v824 = vld [vmem:[%s819 + $0x10] sm:$0xf]
        %v825 = vld [vmem:[%s819 + $0x14] sm:$0xf]
        %v826 = vld [vmem:[%s819 + $0x18] sm:$0xf]
        %v827 = vld [vmem:[%s819 + $0x1c] sm:$0xf]
        %v828 = vld [vmem:[%s819 + $0x20] sm:$0xf]
        %v829 = vld [vmem:[%s819 + $0x24] sm:$0xf]
        %v830 = vld [vmem:[%s819 + $0x28] sm:$0xf]
        %v831 = vld [vmem:[%s819 + $0x2c] sm:$0xf]
        %v832 = vld [vmem:[%s819 + $0x30] sm:$0xf]
        %v833 = vld [vmem:[%s819 + $0x34] sm:$0xf]
        %v834 = vld [vmem:[%s819 + $0x38] sm:$0xf]
        %v835 = vld [vmem:[%s819 + $0x3c] sm:$0xf]
        %s836 = scalar_lea.vmem %s5, 1
        %v837 = vld [vmem:[%s836] sm:$0x1]
        %v839 = vlaneseq
        %v840 = vshrl.u32 %v839, 7
        %v841 = vsub.s32 0, %v840
        %v842 = vrot.slane %v837, %v841
        %v860 = vunpack.c.l.b16 %v820
        %v861 = vunpack.c.l.b16 %v821
        %v862 = vunpack.c.l.b16 %v822
        %v863 = vunpack.c.l.b16 %v823
        %v864 = vunpack.c.l.b16 %v824
        %v865 = vunpack.c.l.b16 %v825
        %v866 = vunpack.c.l.b16 %v826
        %v867 = vunpack.c.l.b16 %v827
        %v868 = vunpack.c.l.b16 %v828
        %v869 = vunpack.c.l.b16 %v829
        %v870 = vunpack.c.l.b16 %v830
        %v871 = vunpack.c.l.b16 %v831
        %v872 = vunpack.c.l.b16 %v832
        %v873 = vunpack.c.l.b16 %v833
        %v874 = vunpack.c.l.b16 %v834
        %v875 = vunpack.c.l.b16 %v835
        %v876 = vpack.c.b16 %v861, %v860
        %v877 = vpack.c.b16 %v863, %v862
        %v878 = vpack.c.b16 %v865, %v864
        %v879 = vpack.c.b16 %v867, %v866
        %v880 = vpack.c.b16 %v869, %v868
        %v881 = vpack.c.b16 %v871, %v870
        %v882 = vpack.c.b16 %v873, %v872
        %v883 = vpack.c.b16 %v875, %v874
        %892 = vmatprep.subr.bf16.mxu0 0
        %893 = vmatpush1.bf16.msra.mxu0 %v876
        %894 = vmatprep.subr.bf16.mxu0 0
        %895 = vmatpush1.bf16.msra.mxu0 %v877
        %896 = vmatprep.subr.bf16.mxu0 0
        %897 = vmatpush1.bf16.msra.mxu0 %v878
        %898 = vmatprep.subr.bf16.mxu0 0
        %899 = vmatpush1.bf16.msra.mxu0 %v879
        %900 = vmatprep.subr.bf16.mxu0 0
        %901 = vmatpush1.bf16.msra.mxu0 %v880
        %902 = vmatprep.subr.bf16.mxu0 0
        %903 = vmatpush1.bf16.msra.mxu0 %v881
        %904 = vmatprep.subr.bf16.mxu0 0
        %905 = vmatpush1.bf16.msra.mxu0 %v882
        %906 = vmatprep.subr.bf16.mxu0 0
        %907 = vmatpush1.bf16.msra.mxu0 %v883
        %908 = vmatprep.subr.bf16.mxu0 0
        %909 = vmatpush1.bf16.msra.mxu0 0
        %910 = vmatprep.subr.bf16.mxu0 0
        %911 = vmatpush1.bf16.msra.mxu0 0
        %912 = vmatprep.subr.bf16.mxu0 0
        %913 = vmatpush1.bf16.msra.mxu0 0
        %914 = vmatprep.subr.bf16.mxu0 0
        %915 = vmatpush1.bf16.msra.mxu0 0
        %916 = vmatprep.subr.bf16.mxu0 0
        %917 = vmatpush1.bf16.msra.mxu0 0
        %918 = vmatprep.subr.bf16.mxu0 0
        %919 = vmatpush1.bf16.msra.mxu0 0
        %920 = vmatprep.subr.bf16.mxu0 0
        %921 = vmatpush1.bf16.msra.mxu0 0
        %922 = vmatprep.subr.bf16.mxu0 0
        %923 = vmatpush1.bf16.msra.mxu0 0
        %924 = vmatprep.mubr.bf16.mxu0 0
        %925 = vmatmul.mubr.bf16.gmra.mrb[0].mxu0 %v703
        %v926 = vpop.f32.mrb[0].mxu0
        %v927 = vadd.f32 %v842, %v926
        %v928 = vpop.f32.mrb[0].mxu0
        %v929 = vpop.f32.mrb[0].mxu0
        %v930 = vpop.f32.mrb[0].mxu0
        %931 = vdwg.mxu0
        %v932 = vmul.f32 %v927, 0.25
        %v933 = vpack.c.bf16 %v932, %v932
        %s934 = scalar_lea.vmem [#allocation2], 4
        %935 = vst.msk [vmem:[%s934] sm:$0xf] %vm817, %v933
        %s936 = scalar_lea.vmem %s4, 128
        %v937 = vld [vmem:[%s936] sm:$0xf]
        %v938 = vld [vmem:[%s936 + $0x4] sm:$0xf]
        %v939 = vld [vmem:[%s936 + $0x8] sm:$0xf]
        %v940 = vld [vmem:[%s936 + $0xc] sm:$0xf]
        %v941 = vld [vmem:[%s936 + $0x10] sm:$0xf]
        %v942 = vld [vmem:[%s936 + $0x14] sm:$0xf]
        %v943 = vld [vmem:[%s936 + $0x18] sm:$0xf]
        %v944 = vld [vmem:[%s936 + $0x1c] sm:$0xf]
        %v945 = vld [vmem:[%s936 + $0x20] sm:$0xf]
        %v946 = vld [vmem:[%s936 + $0x24] sm:$0xf]
        %v947 = vld [vmem:[%s936 + $0x28] sm:$0xf]
        %v948 = vld [vmem:[%s936 + $0x2c] sm:$0xf]
        %v949 = vld [vmem:[%s936 + $0x30] sm:$0xf]
        %v950 = vld [vmem:[%s936 + $0x34] sm:$0xf]
        %v951 = vld [vmem:[%s936 + $0x38] sm:$0xf]
        %v952 = vld [vmem:[%s936 + $0x3c] sm:$0xf]
        %s953 = scalar_lea.vmem %s5, 2
        %v954 = vld [vmem:[%s953] sm:$0x1]
        %v956 = vlaneseq
        %v957 = vshrl.u32 %v956, 7
        %v958 = vsub.s32 0, %v957
        %v959 = vrot.slane %v954, %v958
        %v977 = vunpack.c.l.b16 %v937
        %v978 = vunpack.c.l.b16 %v938
        %v979 = vunpack.c.l.b16 %v939
        %v980 = vunpack.c.l.b16 %v940
        %v981 = vunpack.c.l.b16 %v941
        %v982 = vunpack.c.l.b16 %v942
        %v983 = vunpack.c.l.b16 %v943
        %v984 = vunpack.c.l.b16 %v944
        %v985 = vunpack.c.l.b16 %v945
        %v986 = vunpack.c.l.b16 %v946
        %v987 = vunpack.c.l.b16 %v947
        %v988 = vunpack.c.l.b16 %v948
        %v989 = vunpack.c.l.b16 %v949
        %v990 = vunpack.c.l.b16 %v950
        %v991 = vunpack.c.l.b16 %v951
        %v992 = vunpack.c.l.b16 %v952
        %v993 = vpack.c.b16 %v978, %v977
        %v994 = vpack.c.b16 %v980, %v979
        %v995 = vpack.c.b16 %v982, %v981
        %v996 = vpack.c.b16 %v984, %v983
        %v997 = vpack.c.b16 %v986, %v985
        %v998 = vpack.c.b16 %v988, %v987
        %v999 = vpack.c.b16 %v990, %v989
        %v1000 = vpack.c.b16 %v992, %v991
        %1009 = vmatprep.subr.bf16.mxu0 0
        %1010 = vmatpush1.bf16.msra.mxu0 %v993
        %1011 = vmatprep.subr.bf16.mxu0 0
        %1012 = vmatpush1.bf16.msra.mxu0 %v994
        %1013 = vmatprep.subr.bf16.mxu0 0
        %1014 = vmatpush1.bf16.msra.mxu0 %v995
        %1015 = vmatprep.subr.bf16.mxu0 0
        %1016 = vmatpush1.bf16.msra.mxu0 %v996
        %1017 = vmatprep.subr.bf16.mxu0 0
        %1018 = vmatpush1.bf16.msra.mxu0 %v997
        %1019 = vmatprep.subr.bf16.mxu0 0
        %1020 = vmatpush1.bf16.msra.mxu0 %v998
        %1021 = vmatprep.subr.bf16.mxu0 0
        %1022 = vmatpush1.bf16.msra.mxu0 %v999
        %1023 = vmatprep.subr.bf16.mxu0 0
        %1024 = vmatpush1.bf16.msra.mxu0 %v1000
        %1025 = vmatprep.subr.bf16.mxu0 0
        %1026 = vmatpush1.bf16.msra.mxu0 0
        %1027 = vmatprep.subr.bf16.mxu0 0
        %1028 = vmatpush1.bf16.msra.mxu0 0
        %1029 = vmatprep.subr.bf16.mxu0 0
        %1030 = vmatpush1.bf16.msra.mxu0 0
        %1031 = vmatprep.subr.bf16.mxu0 0
        %1032 = vmatpush1.bf16.msra.mxu0 0
        %1033 = vmatprep.subr.bf16.mxu0 0
        %1034 = vmatpush1.bf16.msra.mxu0 0
        %1035 = vmatprep.subr.bf16.mxu0 0
        %1036 = vmatpush1.bf16.msra.mxu0 0
        %1037 = vmatprep.subr.bf16.mxu0 0
        %1038 = vmatpush1.bf16.msra.mxu0 0
        %1039 = vmatprep.subr.bf16.mxu0 0
        %1040 = vmatpush1.bf16.msra.mxu0 0
        %1041 = vmatprep.mubr.bf16.mxu0 0
        %1042 = vmatmul.mubr.bf16.gmra.mrb[0].mxu0 %v703
        %v1043 = vpop.f32.mrb[0].mxu0
        %v1044 = vadd.f32 %v959, %v1043
        %v1045 = vpop.f32.mrb[0].mxu0
        %v1046 = vpop.f32.mrb[0].mxu0
        %v1047 = vpop.f32.mrb[0].mxu0
        %1048 = vdwg.mxu0
        %v1049 = vmul.f32 %v1044, 0.25
        %v1050 = vpack.c.bf16 %v1049, %v1049
        %s1051 = scalar_lea.vmem [#allocation2], 8
        %1052 = vst.msk [vmem:[%s1051] sm:$0xf] %vm817, %v1050
        %s1053 = scalar_lea.vmem %s4, 192
        %v1054 = vld [vmem:[%s1053] sm:$0xf]
        %v1055 = vld [vmem:[%s1053 + $0x4] sm:$0xf]
        %v1056 = vld [vmem:[%s1053 + $0x8] sm:$0xf]
        %v1057 = vld [vmem:[%s1053 + $0xc] sm:$0xf]
        %v1058 = vld [vmem:[%s1053 + $0x10] sm:$0xf]
        %v1059 = vld [vmem:[%s1053 + $0x14] sm:$0xf]
        %v1060 = vld [vmem:[%s1053 + $0x18] sm:$0xf]
        %v1061 = vld [vmem:[%s1053 + $0x1c] sm:$0xf]
        %v1062 = vld [vmem:[%s1053 + $0x20] sm:$0xf]
        %v1063 = vld [vmem:[%s1053 + $0x24] sm:$0xf]
        %v1064 = vld [vmem:[%s1053 + $0x28] sm:$0xf]
        %v1065 = vld [vmem:[%s1053 + $0x2c] sm:$0xf]
        %v1066 = vld [vmem:[%s1053 + $0x30] sm:$0xf]
        %v1067 = vld [vmem:[%s1053 + $0x34] sm:$0xf]
        %v1068 = vld [vmem:[%s1053 + $0x38] sm:$0xf]
        %v1069 = vld [vmem:[%s1053 + $0x3c] sm:$0xf]
        %s1070 = scalar_lea.vmem %s5, 3
        %v1071 = vld [vmem:[%s1070] sm:$0x1]
        %v1073 = vlaneseq
        %v1074 = vshrl.u32 %v1073, 7
        %v1075 = vsub.s32 0, %v1074
        %v1076 = vrot.slane %v1071, %v1075
        %v1094 = vunpack.c.l.b16 %v1054
        %v1095 = vunpack.c.l.b16 %v1055
        %v1096 = vunpack.c.l.b16 %v1056
        %v1097 = vunpack.c.l.b16 %v1057
        %v1098 = vunpack.c.l.b16 %v1058
        %v1099 = vunpack.c.l.b16 %v1059
        %v1100 = vunpack.c.l.b16 %v1060
        %v1101 = vunpack.c.l.b16 %v1061
        %v1102 = vunpack.c.l.b16 %v1062
        %v1103 = vunpack.c.l.b16 %v1063
        %v1104 = vunpack.c.l.b16 %v1064
        %v1105 = vunpack.c.l.b16 %v1065
        %v1106 = vunpack.c.l.b16 %v1066
        %v1107 = vunpack.c.l.b16 %v1067
        %v1108 = vunpack.c.l.b16 %v1068
        %v1109 = vunpack.c.l.b16 %v1069
        %v1110 = vpack.c.b16 %v1095, %v1094
        %v1111 = vpack.c.b16 %v1097, %v1096
        %v1112 = vpack.c.b16 %v1099, %v1098
        %v1113 = vpack.c.b16 %v1101, %v1100
        %v1114 = vpack.c.b16 %v1103, %v1102
        %v1115 = vpack.c.b16 %v1105, %v1104
        %v1116 = vpack.c.b16 %v1107, %v1106
        %v1117 = vpack.c.b16 %v1109, %v1108
        %1126 = vmatprep.subr.bf16.mxu0 0
        %1127 = vmatpush1.bf16.msra.mxu0 %v1110
        %1128 = vmatprep.subr.bf16.mxu0 0
        %1129 = vmatpush1.bf16.msra.mxu0 %v1111
        %1130 = vmatprep.subr.bf16.mxu0 0
        %1131 = vmatpush1.bf16.msra.mxu0 %v1112
        %1132 = vmatprep.subr.bf16.mxu0 0
        %1133 = vmatpush1.bf16.msra.mxu0 %v1113
        %1134 = vmatprep.subr.bf16.mxu0 0
        %1135 = vmatpush1.bf16.msra.mxu0 %v1114
        %1136 = vmatprep.subr.bf16.mxu0 0
        %1137 = vmatpush1.bf16.msra.mxu0 %v1115
        %1138 = vmatprep.subr.bf16.mxu0 0
        %1139 = vmatpush1.bf16.msra.mxu0 %v1116
        %1140 = vmatprep.subr.bf16.mxu0 0
        %1141 = vmatpush1.bf16.msra.mxu0 %v1117
        %1142 = vmatprep.subr.bf16.mxu0 0
        %1143 = vmatpush1.bf16.msra.mxu0 0
        %1144 = vmatprep.subr.bf16.mxu0 0
        %1145 = vmatpush1.bf16.msra.mxu0 0
        %1146 = vmatprep.subr.bf16.mxu0 0
        %1147 = vmatpush1.bf16.msra.mxu0 0
        %1148 = vmatprep.subr.bf16.mxu0 0
        %1149 = vmatpush1.bf16.msra.mxu0 0
        %1150 = vmatprep.subr.bf16.mxu0 0
        %1151 = vmatpush1.bf16.msra.mxu0 0
        %1152 = vmatprep.subr.bf16.mxu0 0
        %1153 = vmatpush1.bf16.msra.mxu0 0
        %1154 = vmatprep.subr.bf16.mxu0 0
        %1155 = vmatpush1.bf16.msra.mxu0 0
        %1156 = vmatprep.subr.bf16.mxu0 0
        %1157 = vmatpush1.bf16.msra.mxu0 0
        %1158 = vmatprep.mubr.bf16.mxu0 0
        %1159 = vmatmul.mubr.bf16.gmra.mrb[0].mxu0 %v703
        %v1160 = vpop.f32.mrb[0].mxu0
        %v1161 = vadd.f32 %v1076, %v1160
        %v1162 = vpop.f32.mrb[0].mxu0
        %v1163 = vpop.f32.mrb[0].mxu0
        %v1164 = vpop.f32.mrb[0].mxu0
        %1165 = vdwg.mxu0
        %v1166 = vmul.f32 %v1161, 0.25
        %v1167 = vpack.c.bf16 %v1166, %v1166
        %s1168 = scalar_lea.vmem [#allocation2], 12
        %1169 = vst.msk [vmem:[%s1168] sm:$0xf] %vm817, %v1167
        %vm1170 = vcmask 7168
        %1171 = vst.msk [vmem:[#allocation3] sm:$0xff] %vm1170, -inf
        %1172 = vst.msk [vmem:[#allocation3 + $0x8] sm:$0xff] %vm1170, -inf
        %1173 = vst.msk [vmem:[#allocation3 + $0x10] sm:$0xff] %vm1170, -inf
        %1174 = vst.msk [vmem:[#allocation3 + $0x18] sm:$0xff] %vm1170, -inf
        %1175 = vst.msk [vmem:[#allocation4] sm:$0xff] %vm1170, 0.0
        %1176 = vst.msk [vmem:[#allocation4 + $0x8] sm:$0xff] %vm1170, 0.0
        %1177 = vst.msk [vmem:[#allocation4 + $0x10] sm:$0xff] %vm1170, 0.0
        %1178 = vst.msk [vmem:[#allocation4 + $0x18] sm:$0xff] %vm1170, 0.0
        %vm1179 = vcmask 130048
        %1180 = vst.msk [vmem:[#allocation5] sm:$0xff] %vm1179, 0.0
        %1181 = vst.msk [vmem:[#allocation5 + $0x8] sm:$0xff] %vm1179, 0.0
        %1182 = vst.msk [vmem:[#allocation5 + $0x10] sm:$0xff] %vm1179, 0.0
        %1183 = vst.msk [vmem:[#allocation5 + $0x18] sm:$0xff] %vm1179, 0.0
      $region84: #{block_forward.5} parent=79 // pred_fallthru
        _
      %v1184 = vld [vmem:[%s658] sm:$0xf]
      %v1185 = vld [vmem:[%s658 + $0x4] sm:$0xf]
      %v1186 = vld [vmem:[%s676] sm:$0xf]
      %v1187 = vld [vmem:[%s676 + $0x4] sm:$0xf]
      %v1188 = vadd.bf16 %v1184, %v1186
      %v1189 = vadd.bf16 %v1185, %v1187
      %v1190 = vld [vmem:[%s6] sm:$0xf]
      %v1191 = vld [vmem:[%s6 + $0x4] sm:$0xf]
      %v1192 = vld [vmem:[%s6 + $0x8] sm:$0xf]
      %v1193 = vld [vmem:[%s6 + $0xc] sm:$0xf]
      %v1194 = vld [vmem:[%s6 + $0x10] sm:$0xf]
      %v1195 = vld [vmem:[%s6 + $0x14] sm:$0xf]
      %v1196 = vld [vmem:[%s6 + $0x18] sm:$0xf]
      %v1197 = vld [vmem:[%s6 + $0x1c] sm:$0xf]
      %v1198 = vld [vmem:[%s7] sm:$0xff]
      %v1199 = vld [vmem:[%s7 + $0x8] sm:$0xff]
      %v1200 = vld [vmem:[%s7 + $0x10] sm:$0xff]
      %v1201 = vld [vmem:[%s7 + $0x18] sm:$0xff]
      %v1202 = vld [vmem:[%s7 + $0x20] sm:$0xff]
      %v1203 = vld [vmem:[%s7 + $0x28] sm:$0xff]
      %v1204 = vld [vmem:[%s7 + $0x30] sm:$0xff]
      %v1205 = vld [vmem:[%s7 + $0x38] sm:$0xff]
      %1207 = vset.pattern.permute.xlu0 0
      %1208 = vperm.xlu0 %1207, %v1198
      %v1209 = vpop.permute.xlu0 %1208
      %1212 = vset.pattern.permute.xlu0 0
      %1213 = vperm.xlu0 %1212, %v1199
      %v1214 = vpop.permute.xlu0 %1213
      %1217 = vset.pattern.permute.xlu0 0
      %1218 = vperm.xlu0 %1217, %v1200
      %v1219 = vpop.permute.xlu0 %1218
      %1222 = vset.pattern.permute.xlu0 0
      %1223 = vperm.xlu0 %1222, %v1201
      %v1224 = vpop.permute.xlu0 %1223
      %1227 = vset.pattern.permute.xlu0 0
      %1228 = vperm.xlu0 %1227, %v1202
      %v1229 = vpop.permute.xlu0 %1228
      %1232 = vset.pattern.permute.xlu0 0
      %1233 = vperm.xlu0 %1232, %v1203
      %v1234 = vpop.permute.xlu0 %1233
      %1237 = vset.pattern.permute.xlu0 0
      %1238 = vperm.xlu0 %1237, %v1204
      %v1239 = vpop.permute.xlu0 %1238
      %1242 = vset.pattern.permute.xlu0 0
      %1243 = vperm.xlu0 %1242, %v1205
      %v1244 = vpop.permute.xlu0 %1243
      %v1254 = vunpack.c.l.b16 %v1190
      %v1255 = vunpack.c.l.b16 %v1191
      %v1256 = vunpack.c.l.b16 %v1192
      %v1257 = vunpack.c.l.b16 %v1193
      %v1258 = vunpack.c.l.b16 %v1194
      %v1259 = vunpack.c.l.b16 %v1195
      %v1260 = vunpack.c.l.b16 %v1196
      %v1261 = vunpack.c.l.b16 %v1197
      %v1262 = vpack.c.b16 %v1255, %v1254
      %v1263 = vpack.c.b16 %v1257, %v1256
      %v1264 = vpack.c.b16 %v1259, %v1258
      %v1265 = vpack.c.b16 %v1261, %v1260
      %v1272 = vunpack.c.l.b16 %v1188
      %v1273 = vunpack.c.l.b16 %v1189
      %v1274 = vpack.c.b16 %v1273, %v1272
      %1276 = vmatprep.subr.bf16.mxu0 0
      %1277 = vmatpush1.bf16.xpose.msra.mxu0 %v1274
      %1278 = vmatprep.subr.bf16.mxu0 0
      %1279 = vmatpush1.bf16.xpose.msra.mxu0 0
      %1280 = vmatprep.subr.bf16.mxu0 0
      %1281 = vmatpush1.bf16.xpose.msra.mxu0 0
      %1282 = vmatprep.subr.bf16.mxu0 0
      %1283 = vmatpush1.bf16.xpose.msra.mxu0 0
      %1284 = vmatprep.subr.bf16.mxu0 0
      %1285 = vmatpush1.bf16.xpose.msra.mxu0 0
      %1286 = vmatprep.subr.bf16.mxu0 0
      %1287 = vmatpush1.bf16.xpose.msra.mxu0 0
      %1288 = vmatprep.subr.bf16.mxu0 0
      %1289 = vmatpush1.bf16.xpose.msra.mxu0 0
      %1290 = vmatprep.subr.bf16.mxu0 0
      %1291 = vmatpush1.bf16.xpose.msra.mxu0 0
      %1292 = vmatprep.subr.bf16.mxu0 0
      %1293 = vmatpush1.bf16.xpose.msra.mxu0 0
      %1294 = vmatprep.subr.bf16.mxu0 0
      %1295 = vmatpush1.bf16.xpose.msra.mxu0 0
      %1296 = vmatprep.subr.bf16.mxu0 0
      %1297 = vmatpush1.bf16.xpose.msra.mxu0 0
      %1298 = vmatprep.subr.bf16.mxu0 0
      %1299 = vmatpush1.bf16.xpose.msra.mxu0 0
      %1300 = vmatprep.subr.bf16.mxu0 0
      %1301 = vmatpush1.bf16.xpose.msra.mxu0 0
      %1302 = vmatprep.subr.bf16.mxu0 0
      %1303 = vmatpush1.bf16.xpose.msra.mxu0 0
      %1304 = vmatprep.subr.bf16.mxu0 0
      %1305 = vmatpush1.bf16.xpose.msra.mxu0 0
      %1306 = vmatprep.subr.bf16.mxu0 0
      %1307 = vmatpush1.bf16.xpose.msra.mxu0 0
      %1308 = vmatprep.mubr.bf16.mxu0 0
      %1309 = vmatmul.mubr.bf16.gmra.mrb[0].mxu0 %v1262
      %v1310 = vpop.f32.mrb[0].mxu0
      %v1311 = vadd.f32 %v1209, %v1310
      %v1312 = vpop.f32.mrb[0].mxu0
      %v1313 = vpop.f32.mrb[0].mxu0
      %v1314 = vadd.f32 %v1214, %v1313
      %v1315 = vpop.f32.mrb[0].mxu0
      %1316 = vmatprep.mubr.bf16.mxu0 0
      %1317 = vmatmul.mubr.bf16.gmra.mrb[0].mxu0 %v1263
      %v1318 = vpop.f32.mrb[0].mxu0
      %v1319 = vadd.f32 %v1219, %v1318
      %v1320 = vpop.f32.mrb[0].mxu0
      %v1321 = vpop.f32.mrb[0].mxu0
      %v1322 = vadd.f32 %v1224, %v1321
      %v1323 = vpop.f32.mrb[0].mxu0
      %1324 = vmatprep.mubr.bf16.mxu0 0
      %1325 = vmatmul.mubr.bf16.gmra.mrb[0].mxu0 %v1264
      %v1326 = vpop.f32.mrb[0].mxu0
      %v1327 = vadd.f32 %v1229, %v1326
      %v1328 = vpop.f32.mrb[0].mxu0
      %v1329 = vpop.f32.mrb[0].mxu0
      %v1330 = vadd.f32 %v1234, %v1329
      %v1331 = vpop.f32.mrb[0].mxu0
      %1332 = vmatprep.mubr.bf16.mxu0 0
      %1333 = vmatmul.mubr.bf16.gmra.mrb[0].mxu0 %v1265
      %v1334 = vpop.f32.mrb[0].mxu0
      %v1335 = vadd.f32 %v1239, %v1334
      %v1336 = vpop.f32.mrb[0].mxu0
      %v1337 = vpop.f32.mrb[0].mxu0
      %v1338 = vadd.f32 %v1244, %v1337
      %v1339 = vpop.f32.mrb[0].mxu0
      %1340 = vdwg.mxu0
      %v1341 = vld [vmem:[%s8] sm:$0xf]
      %v1342 = vld [vmem:[%s8 + $0x4] sm:$0xf]
      %v1343 = vld [vmem:[%s8 + $0x8] sm:$0xf]
      %v1344 = vld [vmem:[%s8 + $0xc] sm:$0xf]
      %v1345 = vld [vmem:[%s8 + $0x10] sm:$0xf]
      %v1346 = vld [vmem:[%s8 + $0x14] sm:$0xf]
      %v1347 = vld [vmem:[%s8 + $0x18] sm:$0xf]
      %v1348 = vld [vmem:[%s8 + $0x1c] sm:$0xf]
      %v1349 = vld [vmem:[%s9] sm:$0xff]
      %v1350 = vld [vmem:[%s9 + $0x8] sm:$0xff]
      %v1351 = vld [vmem:[%s9 + $0x10] sm:$0xff]
      %v1352 = vld [vmem:[%s9 + $0x18] sm:$0xff]
      %v1353 = vld [vmem:[%s9 + $0x20] sm:$0xff]
      %v1354 = vld [vmem:[%s9 + $0x28] sm:$0xff]
      %v1355 = vld [vmem:[%s9 + $0x30] sm:$0xff]
      %v1356 = vld [vmem:[%s9 + $0x38] sm:$0xff]
      %1358 = vset.pattern.permute.xlu0 0
      %1359 = vperm.xlu0 %1358, %v1349
      %v1360 = vpop.permute.xlu0 %1359
      %1363 = vset.pattern.permute.xlu0 0
      %1364 = vperm.xlu0 %1363, %v1350
      %v1365 = vpop.permute.xlu0 %1364
      %1368 = vset.pattern.permute.xlu0 0
      %1369 = vperm.xlu0 %1368, %v1351
      %v1370 = vpop.permute.xlu0 %1369
      %1373 = vset.pattern.permute.xlu0 0
      %1374 = vperm.xlu0 %1373, %v1352
      %v1375 = vpop.permute.xlu0 %1374
      %1378 = vset.pattern.permute.xlu0 0
      %1379 = vperm.xlu0 %1378, %v1353
      %v1380 = vpop.permute.xlu0 %1379
      %1383 = vset.pattern.permute.xlu0 0
      %1384 = vperm.xlu0 %1383, %v1354
      %v1385 = vpop.permute.xlu0 %1384
      %1388 = vset.pattern.permute.xlu0 0
      %1389 = vperm.xlu0 %1388, %v1355
      %v1390 = vpop.permute.xlu0 %1389
      %1393 = vset.pattern.permute.xlu0 0
      %1394 = vperm.xlu0 %1393, %v1356
      %v1395 = vpop.permute.xlu0 %1394
      %v1405 = vunpack.c.l.b16 %v1341
      %v1406 = vunpack.c.l.b16 %v1342
      %v1407 = vunpack.c.l.b16 %v1343
      %v1408 = vunpack.c.l.b16 %v1344
      %v1409 = vunpack.c.l.b16 %v1345
      %v1410 = vunpack.c.l.b16 %v1346
      %v1411 = vunpack.c.l.b16 %v1347
      %v1412 = vunpack.c.l.b16 %v1348
      %v1413 = vpack.c.b16 %v1406, %v1405
      %v1414 = vpack.c.b16 %v1408, %v1407
      %v1415 = vpack.c.b16 %v1410, %v1409
      %v1416 = vpack.c.b16 %v1412, %v1411
      %v1423 = vunpack.c.l.b16 %v1184
      %v1424 = vunpack.c.l.b16 %v1185
      %v1425 = vpack.c.b16 %v1424, %v1423
      %1427 = vmatprep.subr.bf16.mxu0 0
      %1428 = vmatpush1.bf16.xpose.msra.mxu0 %v1425
      %1429 = vmatprep.subr.bf16.mxu0 0
      %1430 = vmatpush1.bf16.xpose.msra.mxu0 0
      %1431 = vmatprep.subr.bf16.mxu0 0
      %1432 = vmatpush1.bf16.xpose.msra.mxu0 0
      %1433 = vmatprep.subr.bf16.mxu0 0
      %1434 = vmatpush1.bf16.xpose.msra.mxu0 0
      %1435 = vmatprep.subr.bf16.mxu0 0
      %1436 = vmatpush1.bf16.xpose.msra.mxu0 0
      %1437 = vmatprep.subr.bf16.mxu0 0
      %1438 = vmatpush1.bf16.xpose.msra.mxu0 0
      %1439 = vmatprep.subr.bf16.mxu0 0
      %1440 = vmatpush1.bf16.xpose.msra.mxu0 0
      %1441 = vmatprep.subr.bf16.mxu0 0
      %1442 = vmatpush1.bf16.xpose.msra.mxu0 0
      %1443 = vmatprep.subr.bf16.mxu0 0
      %1444 = vmatpush1.bf16.xpose.msra.mxu0 0
      %1445 = vmatprep.subr.bf16.mxu0 0
      %1446 = vmatpush1.bf16.xpose.msra.mxu0 0
      %1447 = vmatprep.subr.bf16.mxu0 0
      %1448 = vmatpush1.bf16.xpose.msra.mxu0 0
      %1449 = vmatprep.subr.bf16.mxu0 0
      %1450 = vmatpush1.bf16.xpose.msra.mxu0 0
      %1451 = vmatprep.subr.bf16.mxu0 0
      %1452 = vmatpush1.bf16.xpose.msra.mxu0 0
      %1453 = vmatprep.subr.bf16.mxu0 0
      %1454 = vmatpush1.bf16.xpose.msra.mxu0 0
      %1455 = vmatprep.subr.bf16.mxu0 0
      %1456 = vmatpush1.bf16.xpose.msra.mxu0 0
      %1457 = vmatprep.subr.bf16.mxu0 0
      %1458 = vmatpush1.bf16.xpose.msra.mxu0 0
      %1459 = vmatprep.mubr.bf16.mxu0 0
      %1460 = vmatmul.mubr.bf16.gmra.mrb[0].mxu0 %v1413
      %v1461 = vpop.f32.mrb[0].mxu0
      %v1462 = vadd.f32 %v1360, %v1461
      %v1463 = vpop.f32.mrb[0].mxu0
      %v1464 = vpop.f32.mrb[0].mxu0
      %v1465 = vadd.f32 %v1365, %v1464
      %v1466 = vpop.f32.mrb[0].mxu0
      %1467 = vmatprep.mubr.bf16.mxu0 0
      %1468 = vmatmul.mubr.bf16.gmra.mrb[0].mxu0 %v1414
      %v1469 = vpop.f32.mrb[0].mxu0
      %v1470 = vadd.f32 %v1370, %v1469
      %v1471 = vpop.f32.mrb[0].mxu0
      %v1472 = vpop.f32.mrb[0].mxu0
      %v1473 = vadd.f32 %v1375, %v1472
      %v1474 = vpop.f32.mrb[0].mxu0
      %1475 = vmatprep.mubr.bf16.mxu0 0
      %1476 = vmatmul.mubr.bf16.gmra.mrb[0].mxu0 %v1415
      %v1477 = vpop.f32.mrb[0].mxu0
      %v1478 = vadd.f32 %v1380, %v1477
      %v1479 = vpop.f32.mrb[0].mxu0
      %v1480 = vpop.f32.mrb[0].mxu0
      %v1481 = vadd.f32 %v1385, %v1480
      %v1482 = vpop.f32.mrb[0].mxu0
      %1483 = vmatprep.mubr.bf16.mxu0 0
      %1484 = vmatmul.mubr.bf16.gmra.mrb[0].mxu0 %v1416
      %v1485 = vpop.f32.mrb[0].mxu0
      %v1486 = vadd.f32 %v1390, %v1485
      %v1487 = vpop.f32.mrb[0].mxu0
      %v1488 = vpop.f32.mrb[0].mxu0
      %v1489 = vadd.f32 %v1395, %v1488
      %v1490 = vpop.f32.mrb[0].mxu0
      %1491 = vdwg.mxu0
      %v1492 = vlaneseq
      %v1493 = vand.u32 %v1492, 127
      %s1494 = smul.u32 %s33, 16
      %v1495 = vstv %s1494
      %v1496 = vadd.s32 %v1493, %v1495
      %vm1497 = vcmp.lt.s32.totalorder %v1496, 40
      %v1498 = vsel %vm1497, 1, 0
      %vm1499 = vcmp.eq.s32.totalorder %v1498, 1
      %v1500 = vsel %vm1499, %v1462, 0.0
      %v1501 = vsel %vm1499, %v1465, 0.0
      %v1502 = vsel %vm1499, %v1470, 0.0
      %v1503 = vsel %vm1499, %v1473, 0.0
      %v1504 = vsel %vm1499, %v1478, 0.0
      %v1505 = vsel %vm1499, %v1481, 0.0
      %v1506 = vsel %vm1499, %v1486, 0.0
      %v1507 = vsel %vm1499, %v1489, 0.0
      %v1508 = vpack.c.bf16 %v1314, %v1311
      %v1509 = vpack.c.bf16 %v1322, %v1319
      %v1510 = vpack.c.bf16 %v1330, %v1327
      %v1511 = vpack.c.bf16 %v1338, %v1335
      %v1512 = vpack.c.bf16 %v1501, %v1500
      %v1513 = vpack.c.bf16 %v1503, %v1502
      %v1514 = vpack.c.bf16 %v1505, %v1504
      %v1515 = vpack.c.bf16 %v1507, %v1506
      %v1516 = vld [vmem:[#allocation2] sm:$0xf]
      %v1517 = vld [vmem:[#allocation2 + $0x4] sm:$0xf]
      %v1518 = vld [vmem:[#allocation2 + $0x8] sm:$0xf]
      %v1519 = vld [vmem:[#allocation2 + $0xc] sm:$0xf]
      %vm1520 = vcmask 130048
      %v1522 = vsel %vm1520, %v1516, 0
      %1524 = vmatprep.subr.bf16.mxu0 0
      %1525 = vmatpush1.bf16.msra.mxu0 %v1508
      %1526 = vmatprep.subr.bf16.mxu0 0
      %1527 = vmatpush1.bf16.msra.mxu0 0
      %1528 = vmatprep.subr.bf16.mxu0 0
      %1529 = vmatpush1.bf16.msra.mxu0 0
      %1530 = vmatprep.subr.bf16.mxu0 0
      %1531 = vmatpush1.bf16.msra.mxu0 0
      %1532 = vmatprep.subr.bf16.mxu0 0
      %1533 = vmatpush1.bf16.msra.mxu0 0
      %1534 = vmatprep.subr.bf16.mxu0 0
      %1535 = vmatpush1.bf16.msra.mxu0 0
      %1536 = vmatprep.subr.bf16.mxu0 0
      %1537 = vmatpush1.bf16.msra.mxu0 0
      %1538 = vmatprep.subr.bf16.mxu0 0
      %1539 = vmatpush1.bf16.msra.mxu0 0
      %1540 = vmatprep.subr.bf16.mxu0 0
      %1541 = vmatpush1.bf16.msra.mxu0 0
      %1542 = vmatprep.subr.bf16.mxu0 0
      %1543 = vmatpush1.bf16.msra.mxu0 0
      %1544 = vmatprep.subr.bf16.mxu0 0
      %1545 = vmatpush1.bf16.msra.mxu0 0
      %1546 = vmatprep.subr.bf16.mxu0 0
      %1547 = vmatpush1.bf16.msra.mxu0 0
      %1548 = vmatprep.subr.bf16.mxu0 0
      %1549 = vmatpush1.bf16.msra.mxu0 0
      %1550 = vmatprep.subr.bf16.mxu0 0
      %1551 = vmatpush1.bf16.msra.mxu0 0
      %1552 = vmatprep.subr.bf16.mxu0 0
      %1553 = vmatpush1.bf16.msra.mxu0 0
      %1554 = vmatprep.subr.bf16.mxu0 0
      %1555 = vmatpush1.bf16.msra.mxu0 0
      %1556 = vmatprep.mubr.bf16.mxu0 0
      %1557 = vmatmul.mubr.bf16.gmra.mrb[0].mxu0 %v1522
      %v1558 = vpop.f32.mrb[0].mxu0
      %v1559 = vadd.f32 0.0, %v1558
      %v1560 = vpop.f32.mrb[0].mxu0
      %v1561 = vpop.f32.mrb[0].mxu0
      %v1562 = vpop.f32.mrb[0].mxu0
      %1563 = vdwg.mxu0
      %v1565 = vsel %vm1520, %v1517, 0
      %1567 = vmatprep.subr.bf16.mxu0 0
      %1568 = vmatpush1.bf16.msra.mxu0 %v1509
      %1569 = vmatprep.subr.bf16.mxu0 0
      %1570 = vmatpush1.bf16.msra.mxu0 0
      %1571 = vmatprep.subr.bf16.mxu0 0
      %1572 = vmatpush1.bf16.msra.mxu0 0
      %1573 = vmatprep.subr.bf16.mxu0 0
      %1574 = vmatpush1.bf16.msra.mxu0 0
      %1575 = vmatprep.subr.bf16.mxu0 0
      %1576 = vmatpush1.bf16.msra.mxu0 0
      %1577 = vmatprep.subr.bf16.mxu0 0
      %1578 = vmatpush1.bf16.msra.mxu0 0
      %1579 = vmatprep.subr.bf16.mxu0 0
      %1580 = vmatpush1.bf16.msra.mxu0 0
      %1581 = vmatprep.subr.bf16.mxu0 0
      %1582 = vmatpush1.bf16.msra.mxu0 0
      %1583 = vmatprep.subr.bf16.mxu0 0
      %1584 = vmatpush1.bf16.msra.mxu0 0
      %1585 = vmatprep.subr.bf16.mxu0 0
      %1586 = vmatpush1.bf16.msra.mxu0 0
      %1587 = vmatprep.subr.bf16.mxu0 0
      %1588 = vmatpush1.bf16.msra.mxu0 0
      %1589 = vmatprep.subr.bf16.mxu0 0
      %1590 = vmatpush1.bf16.msra.mxu0 0
      %1591 = vmatprep.subr.bf16.mxu0 0
      %1592 = vmatpush1.bf16.msra.mxu0 0
      %1593 = vmatprep.subr.bf16.mxu0 0
      %1594 = vmatpush1.bf16.msra.mxu0 0
      %1595 = vmatprep.subr.bf16.mxu0 0
      %1596 = vmatpush1.bf16.msra.mxu0 0
      %1597 = vmatprep.subr.bf16.mxu0 0
      %1598 = vmatpush1.bf16.msra.mxu0 0
      %1599 = vmatprep.mubr.bf16.mxu0 0
      %1600 = vmatmul.mubr.bf16.gmra.mrb[0].mxu0 %v1565
      %v1601 = vpop.f32.mrb[0].mxu0
      %v1602 = vadd.f32 0.0, %v1601
      %v1603 = vpop.f32.mrb[0].mxu0
      %v1604 = vpop.f32.mrb[0].mxu0
      %v1605 = vpop.f32.mrb[0].mxu0
      %1606 = vdwg.mxu0
      %v1608 = vsel %vm1520, %v1518, 0
      %1610 = vmatprep.subr.bf16.mxu0 0
      %1611 = vmatpush1.bf16.msra.mxu0 %v1510
      %1612 = vmatprep.subr.bf16.mxu0 0
      %1613 = vmatpush1.bf16.msra.mxu0 0
      %1614 = vmatprep.subr.bf16.mxu0 0
      %1615 = vmatpush1.bf16.msra.mxu0 0
      %1616 = vmatprep.subr.bf16.mxu0 0
      %1617 = vmatpush1.bf16.msra.mxu0 0
      %1618 = vmatprep.subr.bf16.mxu0 0
      %1619 = vmatpush1.bf16.msra.mxu0 0
      %1620 = vmatprep.subr.bf16.mxu0 0
      %1621 = vmatpush1.bf16.msra.mxu0 0
      %1622 = vmatprep.subr.bf16.mxu0 0
      %1623 = vmatpush1.bf16.msra.mxu0 0
      %1624 = vmatprep.subr.bf16.mxu0 0
      %1625 = vmatpush1.bf16.msra.mxu0 0
      %1626 = vmatprep.subr.bf16.mxu0 0
      %1627 = vmatpush1.bf16.msra.mxu0 0
      %1628 = vmatprep.subr.bf16.mxu0 0
      %1629 = vmatpush1.bf16.msra.mxu0 0
      %1630 = vmatprep.subr.bf16.mxu0 0
      %1631 = vmatpush1.bf16.msra.mxu0 0
      %1632 = vmatprep.subr.bf16.mxu0 0
      %1633 = vmatpush1.bf16.msra.mxu0 0
      %1634 = vmatprep.subr.bf16.mxu0 0
      %1635 = vmatpush1.bf16.msra.mxu0 0
      %1636 = vmatprep.subr.bf16.mxu0 0
      %1637 = vmatpush1.bf16.msra.mxu0 0
      %1638 = vmatprep.subr.bf16.mxu0 0
      %1639 = vmatpush1.bf16.msra.mxu0 0
      %1640 = vmatprep.subr.bf16.mxu0 0
      %1641 = vmatpush1.bf16.msra.mxu0 0
      %1642 = vmatprep.mubr.bf16.mxu0 0
      %1643 = vmatmul.mubr.bf16.gmra.mrb[0].mxu0 %v1608
      %v1644 = vpop.f32.mrb[0].mxu0
      %v1645 = vadd.f32 0.0, %v1644
      %v1646 = vpop.f32.mrb[0].mxu0
      %v1647 = vpop.f32.mrb[0].mxu0
      %v1648 = vpop.f32.mrb[0].mxu0
      %1649 = vdwg.mxu0
      %v1651 = vsel %vm1520, %v1519, 0
      %1653 = vmatprep.subr.bf16.mxu0 0
      %1654 = vmatpush1.bf16.msra.mxu0 %v1511
      %1655 = vmatprep.subr.bf16.mxu0 0
      %1656 = vmatpush1.bf16.msra.mxu0 0
      %1657 = vmatprep.subr.bf16.mxu0 0
      %1658 = vmatpush1.bf16.msra.mxu0 0
      %1659 = vmatprep.subr.bf16.mxu0 0
      %1660 = vmatpush1.bf16.msra.mxu0 0
      %1661 = vmatprep.subr.bf16.mxu0 0
      %1662 = vmatpush1.bf16.msra.mxu0 0
      %1663 = vmatprep.subr.bf16.mxu0 0
      %1664 = vmatpush1.bf16.msra.mxu0 0
      %1665 = vmatprep.subr.bf16.mxu0 0
      %1666 = vmatpush1.bf16.msra.mxu0 0
      %1667 = vmatprep.subr.bf16.mxu0 0
      %1668 = vmatpush1.bf16.msra.mxu0 0
      %1669 = vmatprep.subr.bf16.mxu0 0
      %1670 = vmatpush1.bf16.msra.mxu0 0
      %1671 = vmatprep.subr.bf16.mxu0 0
      %1672 = vmatpush1.bf16.msra.mxu0 0
      %1673 = vmatprep.subr.bf16.mxu0 0
      %1674 = vmatpush1.bf16.msra.mxu0 0
      %1675 = vmatprep.subr.bf16.mxu0 0
      %1676 = vmatpush1.bf16.msra.mxu0 0
      %1677 = vmatprep.subr.bf16.mxu0 0
      %1678 = vmatpush1.bf16.msra.mxu0 0
      %1679 = vmatprep.subr.bf16.mxu0 0
      %1680 = vmatpush1.bf16.msra.mxu0 0
      %1681 = vmatprep.subr.bf16.mxu0 0
      %1682 = vmatpush1.bf16.msra.mxu0 0
      %1683 = vmatprep.subr.bf16.mxu0 0
      %1684 = vmatpush1.bf16.msra.mxu0 0
      %1685 = vmatprep.mubr.bf16.mxu0 0
      %1686 = vmatmul.mubr.bf16.gmra.mrb[0].mxu0 %v1651
      %v1687 = vpop.f32.mrb[0].mxu0
      %v1688 = vadd.f32 0.0, %v1687
      %v1689 = vpop.f32.mrb[0].mxu0
      %v1690 = vpop.f32.mrb[0].mxu0
      %v1691 = vpop.f32.mrb[0].mxu0
      %1692 = vdwg.mxu0
      %v1693 = vsel %vm1499, %v1559, -inf
      %v1694 = vsel %vm1499, %v1602, -inf
      %v1695 = vsel %vm1499, %v1645, -inf
      %v1696 = vsel %vm1499, %v1688, -inf
      %v1697 = vld [vmem:[#allocation3] sm:$0xff]
      %v1698 = vld [vmem:[#allocation3 + $0x8] sm:$0xff]
      %v1699 = vld [vmem:[#allocation3 + $0x10] sm:$0xff]
      %v1700 = vld [vmem:[#allocation3 + $0x18] sm:$0xff]
      %v1701 = vsel %vm1520, %v1693, -inf
      %1702 = vmax.xlane.f32.xlu0 %v1701
      %v1703 = vpop.xlane.xlu0 %1702
      %v1704 = vsel %vm1520, %v1694, -inf
      %1705 = vmax.xlane.f32.xlu0 %v1704
      %v1706 = vpop.xlane.xlu0 %1705
      %v1707 = vsel %vm1520, %v1695, -inf
      %1708 = vmax.xlane.f32.xlu0 %v1707
      %v1709 = vpop.xlane.xlu0 %1708
      %v1710 = vsel %vm1520, %v1696, -inf
      %1711 = vmax.xlane.f32.xlu0 %v1710
      %v1712 = vpop.xlane.xlu0 %1711
      %v1713 = vmax.f32 %v1697, %v1703
      %v1714 = vmax.f32 %v1698, %v1706
      %v1715 = vmax.f32 %v1699, %v1709
      %v1716 = vmax.f32 %v1700, %v1712
      %v1717 = vsub.f32 %v1697, %v1713
      %v1718 = vsub.f32 %v1698, %v1714
      %v1719 = vsub.f32 %v1699, %v1715
      %v1720 = vsub.f32 %v1700, %v1716
      %v1721 = vmul.f32 %v1717, 1.442695
      %v1722 = vpow.pop %v1721
      %v1723 = vmul.f32 %v1718, 1.442695
      %v1724 = vpow.pop %v1723
      %v1725 = vmul.f32 %v1719, 1.442695
      %v1726 = vpow.pop %v1725
      %v1727 = vmul.f32 %v1720, 1.442695
      %v1728 = vpow.pop %v1727
      %1730 = vset.pattern.permute.xlu0 0
      %1731 = vperm.xlu0 %1730, %v1713
      %v1732 = vpop.permute.xlu0 %1731
      %1735 = vset.pattern.permute.xlu0 0
      %1736 = vperm.xlu0 %1735, %v1714
      %v1737 = vpop.permute.xlu0 %1736
      %1740 = vset.pattern.permute.xlu0 0
      %1741 = vperm.xlu0 %1740, %v1715
      %v1742 = vpop.permute.xlu0 %1741
      %1745 = vset.pattern.permute.xlu0 0
      %1746 = vperm.xlu0 %1745, %v1716
      %v1747 = vpop.permute.xlu0 %1746
      %v1749 = vsub.f32 %v1693, %v1732
      %v1750 = vsub.f32 %v1694, %v1737
      %v1751 = vsub.f32 %v1695, %v1742
      %v1752 = vsub.f32 %v1696, %v1747
      %v1753 = vmul.f32 %v1749, 1.442695
      %v1754 = vpow.pop %v1753
      %v1755 = vmul.f32 %v1750, 1.442695
      %v1756 = vpow.pop %v1755
      %v1757 = vmul.f32 %v1751, 1.442695
      %v1758 = vpow.pop %v1757
      %v1759 = vmul.f32 %v1752, 1.442695
      %v1760 = vpow.pop %v1759
      %v1761 = vld [vmem:[#allocation4] sm:$0xff]
      %v1762 = vld [vmem:[#allocation4 + $0x8] sm:$0xff]
      %v1763 = vld [vmem:[#allocation4 + $0x10] sm:$0xff]
      %v1764 = vld [vmem:[#allocation4 + $0x18] sm:$0xff]
      %v1765 = vmul.f32 %v1722, %v1761
      %v1766 = vmul.f32 %v1724, %v1762
      %v1767 = vmul.f32 %v1726, %v1763
      %v1768 = vmul.f32 %v1728, %v1764
      %v1769 = vsel %vm1520, %v1754, 0.0
      %1770 = vadd.xlane.f32.xlu0 %v1769
      %v1771 = vpop.xlane.xlu0 %1770
      %v1772 = vsel %vm1520, %v1756, 0.0
      %1773 = vadd.xlane.f32.xlu0 %v1772
      %v1774 = vpop.xlane.xlu0 %1773
      %v1775 = vsel %vm1520, %v1758, 0.0
      %1776 = vadd.xlane.f32.xlu0 %v1775
      %v1777 = vpop.xlane.xlu0 %1776
      %v1778 = vsel %vm1520, %v1760, 0.0
      %1779 = vadd.xlane.f32.xlu0 %v1778
      %v1780 = vpop.xlane.xlu0 %1779
      %v1781 = vadd.f32 %v1765, %v1771
      %v1782 = vadd.f32 %v1766, %v1774
      %v1783 = vadd.f32 %v1767, %v1777
      %v1784 = vadd.f32 %v1768, %v1780
      %vm1785 = vcmask 7168
      %1786 = vst.msk [vmem:[#allocation4] sm:$0xff] %vm1785, %v1781
      %1787 = vst.msk [vmem:[#allocation4 + $0x8] sm:$0xff] %vm1785, %v1782
      %1788 = vst.msk [vmem:[#allocation4 + $0x10] sm:$0xff] %vm1785, %v1783
      %1789 = vst.msk [vmem:[#allocation4 + $0x18] sm:$0xff] %vm1785, %v1784
      %v1790 = vpack.c.bf16 %v1754, %v1754
      %v1791 = vpack.c.bf16 %v1756, %v1756
      %v1792 = vpack.c.bf16 %v1758, %v1758
      %v1793 = vpack.c.bf16 %v1760, %v1760
      %v1795 = vsel %vm1520, %v1790, 0
      %v1798 = vsel %vm1520, %v1512, 0
      %1800 = vmatprep.subr.bf16.mxu0 0
      %1801 = vmatpush1.bf16.xpose.msra.mxu0 %v1798
      %1802 = vmatprep.subr.bf16.mxu0 0
      %1803 = vmatpush1.bf16.xpose.msra.mxu0 0
      %1804 = vmatprep.subr.bf16.mxu0 0
      %1805 = vmatpush1.bf16.xpose.msra.mxu0 0
      %1806 = vmatprep.subr.bf16.mxu0 0
      %1807 = vmatpush1.bf16.xpose.msra.mxu0 0
      %1808 = vmatprep.subr.bf16.mxu0 0
      %1809 = vmatpush1.bf16.xpose.msra.mxu0 0
      %1810 = vmatprep.subr.bf16.mxu0 0
      %1811 = vmatpush1.bf16.xpose.msra.mxu0 0
      %1812 = vmatprep.subr.bf16.mxu0 0
      %1813 = vmatpush1.bf16.xpose.msra.mxu0 0
      %1814 = vmatprep.subr.bf16.mxu0 0
      %1815 = vmatpush1.bf16.xpose.msra.mxu0 0
      %1816 = vmatprep.subr.bf16.mxu0 0
      %1817 = vmatpush1.bf16.xpose.msra.mxu0 0
      %1818 = vmatprep.subr.bf16.mxu0 0
      %1819 = vmatpush1.bf16.xpose.msra.mxu0 0
      %1820 = vmatprep.subr.bf16.mxu0 0
      %1821 = vmatpush1.bf16.xpose.msra.mxu0 0
      %1822 = vmatprep.subr.bf16.mxu0 0
      %1823 = vmatpush1.bf16.xpose.msra.mxu0 0
      %1824 = vmatprep.subr.bf16.mxu0 0
      %1825 = vmatpush1.bf16.xpose.msra.mxu0 0
      %1826 = vmatprep.subr.bf16.mxu0 0
      %1827 = vmatpush1.bf16.xpose.msra.mxu0 0
      %1828 = vmatprep.subr.bf16.mxu0 0
      %1829 = vmatpush1.bf16.xpose.msra.mxu0 0
      %1830 = vmatprep.subr.bf16.mxu0 0
      %1831 = vmatpush1.bf16.xpose.msra.mxu0 0
      %1832 = vmatprep.mubr.bf16.mxu0 0
      %1833 = vmatmul.mubr.bf16.gmra.mrb[0].mxu0 %v1795
      %v1834 = vpop.f32.mrb[0].mxu0
      %v1835 = vadd.f32 0.0, %v1834
      %v1836 = vpop.f32.mrb[0].mxu0
      %v1837 = vpop.f32.mrb[0].mxu0
      %v1838 = vpop.f32.mrb[0].mxu0
      %1839 = vdwg.mxu0
      %v1841 = vsel %vm1520, %v1791, 0
      %v1844 = vsel %vm1520, %v1513, 0
      %1846 = vmatprep.subr.bf16.mxu0 0
      %1847 = vmatpush1.bf16.xpose.msra.mxu0 %v1844
      %1848 = vmatprep.subr.bf16.mxu0 0
      %1849 = vmatpush1.bf16.xpose.msra.mxu0 0
      %1850 = vmatprep.subr.bf16.mxu0 0
      %1851 = vmatpush1.bf16.xpose.msra.mxu0 0
      %1852 = vmatprep.subr.bf16.mxu0 0
      %1853 = vmatpush1.bf16.xpose.msra.mxu0 0
      %1854 = vmatprep.subr.bf16.mxu0 0
      %1855 = vmatpush1.bf16.xpose.msra.mxu0 0
      %1856 = vmatprep.subr.bf16.mxu0 0
      %1857 = vmatpush1.bf16.xpose.msra.mxu0 0
      %1858 = vmatprep.subr.bf16.mxu0 0
      %1859 = vmatpush1.bf16.xpose.msra.mxu0 0
      %1860 = vmatprep.subr.bf16.mxu0 0
      %1861 = vmatpush1.bf16.xpose.msra.mxu0 0
      %1862 = vmatprep.subr.bf16.mxu0 0
      %1863 = vmatpush1.bf16.xpose.msra.mxu0 0
      %1864 = vmatprep.subr.bf16.mxu0 0
      %1865 = vmatpush1.bf16.xpose.msra.mxu0 0
      %1866 = vmatprep.subr.bf16.mxu0 0
      %1867 = vmatpush1.bf16.xpose.msra.mxu0 0
      %1868 = vmatprep.subr.bf16.mxu0 0
      %1869 = vmatpush1.bf16.xpose.msra.mxu0 0
      %1870 = vmatprep.subr.bf16.mxu0 0
      %1871 = vmatpush1.bf16.xpose.msra.mxu0 0
      %1872 = vmatprep.subr.bf16.mxu0 0
      %1873 = vmatpush1.bf16.xpose.msra.mxu0 0
      %1874 = vmatprep.subr.bf16.mxu0 0
      %1875 = vmatpush1.bf16.xpose.msra.mxu0 0
      %1876 = vmatprep.subr.bf16.mxu0 0
      %1877 = vmatpush1.bf16.xpose.msra.mxu0 0
      %1878 = vmatprep.mubr.bf16.mxu0 0
      %1879 = vmatmul.mubr.bf16.gmra.mrb[0].mxu0 %v1841
      %v1880 = vpop.f32.mrb[0].mxu0
      %v1881 = vadd.f32 0.0, %v1880
      %v1882 = vpop.f32.mrb[0].mxu0
      %v1883 = vpop.f32.mrb[0].mxu0
      %v1884 = vpop.f32.mrb[0].mxu0
      %1885 = vdwg.mxu0
      %v1887 = vsel %vm1520, %v1792, 0
      %v1890 = vsel %vm1520, %v1514, 0
      %1892 = vmatprep.subr.bf16.mxu0 0
      %1893 = vmatpush1.bf16.xpose.msra.mxu0 %v1890
      %1894 = vmatprep.subr.bf16.mxu0 0
      %1895 = vmatpush1.bf16.xpose.msra.mxu0 0
      %1896 = vmatprep.subr.bf16.mxu0 0
      %1897 = vmatpush1.bf16.xpose.msra.mxu0 0
      %1898 = vmatprep.subr.bf16.mxu0 0
      %1899 = vmatpush1.bf16.xpose.msra.mxu0 0
      %1900 = vmatprep.subr.bf16.mxu0 0
      %1901 = vmatpush1.bf16.xpose.msra.mxu0 0
      %1902 = vmatprep.subr.bf16.mxu0 0
      %1903 = vmatpush1.bf16.xpose.msra.mxu0 0
      %1904 = vmatprep.subr.bf16.mxu0 0
      %1905 = vmatpush1.bf16.xpose.msra.mxu0 0
      %1906 = vmatprep.subr.bf16.mxu0 0
      %1907 = vmatpush1.bf16.xpose.msra.mxu0 0
      %1908 = vmatprep.subr.bf16.mxu0 0
      %1909 = vmatpush1.bf16.xpose.msra.mxu0 0
      %1910 = vmatprep.subr.bf16.mxu0 0
      %1911 = vmatpush1.bf16.xpose.msra.mxu0 0
      %1912 = vmatprep.subr.bf16.mxu0 0
      %1913 = vmatpush1.bf16.xpose.msra.mxu0 0
      %1914 = vmatprep.subr.bf16.mxu0 0
      %1915 = vmatpush1.bf16.xpose.msra.mxu0 0
      %1916 = vmatprep.subr.bf16.mxu0 0
      %1917 = vmatpush1.bf16.xpose.msra.mxu0 0
      %1918 = vmatprep.subr.bf16.mxu0 0
      %1919 = vmatpush1.bf16.xpose.msra.mxu0 0
      %1920 = vmatprep.subr.bf16.mxu0 0
      %1921 = vmatpush1.bf16.xpose.msra.mxu0 0
      %1922 = vmatprep.subr.bf16.mxu0 0
      %1923 = vmatpush1.bf16.xpose.msra.mxu0 0
      %1924 = vmatprep.mubr.bf16.mxu0 0
      %1925 = vmatmul.mubr.bf16.gmra.mrb[0].mxu0 %v1887
      %v1926 = vpop.f32.mrb[0].mxu0
      %v1927 = vadd.f32 0.0, %v1926
      %v1928 = vpop.f32.mrb[0].mxu0
      %v1929 = vpop.f32.mrb[0].mxu0
      %v1930 = vpop.f32.mrb[0].mxu0
      %1931 = vdwg.mxu0
      %v1933 = vsel %vm1520, %v1793, 0
      %v1936 = vsel %vm1520, %v1515, 0
      %1938 = vmatprep.subr.bf16.mxu0 0
      %1939 = vmatpush1.bf16.xpose.msra.mxu0 %v1936
      %1940 = vmatprep.subr.bf16.mxu0 0
      %1941 = vmatpush1.bf16.xpose.msra.mxu0 0
      %1942 = vmatprep.subr.bf16.mxu0 0
      %1943 = vmatpush1.bf16.xpose.msra.mxu0 0
      %1944 = vmatprep.subr.bf16.mxu0 0
      %1945 = vmatpush1.bf16.xpose.msra.mxu0 0
      %1946 = vmatprep.subr.bf16.mxu0 0
      %1947 = vmatpush1.bf16.xpose.msra.mxu0 0
      %1948 = vmatprep.subr.bf16.mxu0 0
      %1949 = vmatpush1.bf16.xpose.msra.mxu0 0
      %1950 = vmatprep.subr.bf16.mxu0 0
      %1951 = vmatpush1.bf16.xpose.msra.mxu0 0
      %1952 = vmatprep.subr.bf16.mxu0 0
      %1953 = vmatpush1.bf16.xpose.msra.mxu0 0
      %1954 = vmatprep.subr.bf16.mxu0 0
      %1955 = vmatpush1.bf16.xpose.msra.mxu0 0
      %1956 = vmatprep.subr.bf16.mxu0 0
      %1957 = vmatpush1.bf16.xpose.msra.mxu0 0
      %1958 = vmatprep.subr.bf16.mxu0 0
      %1959 = vmatpush1.bf16.xpose.msra.mxu0 0
      %1960 = vmatprep.subr.bf16.mxu0 0
      %1961 = vmatpush1.bf16.xpose.msra.mxu0 0
      %1962 = vmatprep.subr.bf16.mxu0 0
      %1963 = vmatpush1.bf16.xpose.msra.mxu0 0
      %1964 = vmatprep.subr.bf16.mxu0 0
      %1965 = vmatpush1.bf16.xpose.msra.mxu0 0
      %1966 = vmatprep.subr.bf16.mxu0 0
      %1967 = vmatpush1.bf16.xpose.msra.mxu0 0
      %1968 = vmatprep.subr.bf16.mxu0 0
      %1969 = vmatpush1.bf16.xpose.msra.mxu0 0
      %1970 = vmatprep.mubr.bf16.mxu0 0
      %1971 = vmatmul.mubr.bf16.gmra.mrb[0].mxu0 %v1933
      %v1972 = vpop.f32.mrb[0].mxu0
      %v1973 = vadd.f32 0.0, %v1972
      %v1974 = vpop.f32.mrb[0].mxu0
      %v1975 = vpop.f32.mrb[0].mxu0
      %v1976 = vpop.f32.mrb[0].mxu0
      %1977 = vdwg.mxu0
      %v1978 = vld [vmem:[#allocation5] sm:$0xff]
      %v1979 = vld [vmem:[#allocation5 + $0x8] sm:$0xff]
      %v1980 = vld [vmem:[#allocation5 + $0x10] sm:$0xff]
      %v1981 = vld [vmem:[#allocation5 + $0x18] sm:$0xff]
      %1983 = vset.pattern.permute.xlu0 0
      %1984 = vperm.xlu0 %1983, %v1722
      %v1985 = vpop.permute.xlu0 %1984
      %1988 = vset.pattern.permute.xlu0 0
      %1989 = vperm.xlu0 %1988, %v1724
      %v1990 = vpop.permute.xlu0 %1989
      %1993 = vset.pattern.permute.xlu0 0
      %1994 = vperm.xlu0 %1993, %v1726
      %v1995 = vpop.permute.xlu0 %1994
      %1998 = vset.pattern.permute.xlu0 0
      %1999 = vperm.xlu0 %1998, %v1728
      %v2000 = vpop.permute.xlu0 %1999
      %v2002 = vmul.f32 %v1985, %v1978
      %v2003 = vmul.f32 %v1990, %v1979
      %v2004 = vmul.f32 %v1995, %v1980
      %v2005 = vmul.f32 %v2000, %v1981
      %v2006 = vadd.f32 %v2002, %v1835
      %v2007 = vadd.f32 %v2003, %v1881
      %v2008 = vadd.f32 %v2004, %v1927
      %v2009 = vadd.f32 %v2005, %v1973
      %2010 = vst.msk [vmem:[#allocation5] sm:$0xff] %vm1520, %v2006
      %2011 = vst.msk [vmem:[#allocation5 + $0x8] sm:$0xff] %vm1520, %v2007
      %2012 = vst.msk [vmem:[#allocation5 + $0x10] sm:$0xff] %vm1520, %v2008
      %2013 = vst.msk [vmem:[#allocation5 + $0x18] sm:$0xff] %vm1520, %v2009
      %2014 = vst.msk [vmem:[#allocation3] sm:$0xff] %vm1785, %v1713
      %2015 = vst.msk [vmem:[#allocation3 + $0x8] sm:$0xff] %vm1785, %v1714
      %2016 = vst.msk [vmem:[#allocation3 + $0x10] sm:$0xff] %vm1785, %v1715
      %2017 = vst.msk [vmem:[#allocation3 + $0x18] sm:$0xff] %vm1785, %v1716
      %p2018 = scmp.eq.s32.totalorder %s33, 2
      // Predicated region
      $region85: #{block_forward.5} parent=79 // pred_check
        %p2019 = pneg %p2018
      $region86: #{block_forward.5} parent=79 // pred_check_branch
        %2021 = sbr.rel (%p2019) target = $region88
      $region87: #{block_forward.5} parent=79 // pred_region
        %v2022 = vld [vmem:[#allocation5] sm:$0xff]
        %v2023 = vld [vmem:[#allocation5 + $0x8] sm:$0xff]
        %v2024 = vld [vmem:[#allocation5 + $0x10] sm:$0xff]
        %v2025 = vld [vmem:[#allocation5 + $0x18] sm:$0xff]
        %v2026 = vld [vmem:[#allocation4] sm:$0xff]
        %v2027 = vld [vmem:[#allocation4 + $0x8] sm:$0xff]
        %v2028 = vld [vmem:[#allocation4 + $0x10] sm:$0xff]
        %v2029 = vld [vmem:[#allocation4 + $0x18] sm:$0xff]
        %v2030 = vrcp.pop %v2026
        %v2031 = vrcp.pop %v2027
        %v2032 = vrcp.pop %v2028
        %v2033 = vrcp.pop %v2029
        %2035 = vset.pattern.permute.xlu0 0
        %2036 = vperm.xlu0 %2035, %v2030
        %v2037 = vpop.permute.xlu0 %2036
        %2040 = vset.pattern.permute.xlu0 0
        %2041 = vperm.xlu0 %2040, %v2031
        %v2042 = vpop.permute.xlu0 %2041
        %2045 = vset.pattern.permute.xlu0 0
        %2046 = vperm.xlu0 %2045, %v2032
        %v2047 = vpop.permute.xlu0 %2046
        %2050 = vset.pattern.permute.xlu0 0
        %2051 = vperm.xlu0 %2050, %v2033
        %v2052 = vpop.permute.xlu0 %2051
        %v2054 = vmul.f32 %v2022, %v2037
        %v2055 = vmul.f32 %v2023, %v2042
        %v2056 = vmul.f32 %v2024, %v2047
        %v2057 = vmul.f32 %v2025, %v2052
        %v2058 = vpack.c.bf16 %v2054, %v2054
        %v2059 = vpack.c.bf16 %v2055, %v2055
        %v2060 = vpack.c.bf16 %v2056, %v2056
        %v2061 = vpack.c.bf16 %v2057, %v2057
        %v2062 = vld [vmem:[%s10] sm:$0xf]
        %v2063 = vld [vmem:[%s10 + $0x4] sm:$0xf]
        %v2064 = vld [vmem:[%s10 + $0x8] sm:$0xf]
        %v2065 = vld [vmem:[%s10 + $0xc] sm:$0xf]
        %v2066 = vld [vmem:[%s10 + $0x10] sm:$0xf]
        %v2067 = vld [vmem:[%s10 + $0x14] sm:$0xf]
        %v2068 = vld [vmem:[%s10 + $0x18] sm:$0xf]
        %v2069 = vld [vmem:[%s10 + $0x1c] sm:$0xf]
        %v2072 = vunpack.c.l.b16 %v2062
        %v2073 = vunpack.c.l.b16 %v2063
        %v2074 = vpack.c.b16 %v2073, %v2072
        %v2077 = vsel %vm1520, %v2058, 0
        %2079 = vmatprep.subr.bf16.mxu0 0
        %2080 = vmatpush1.bf16.msra.mxu0 %v2074
        %2081 = vmatprep.subr.bf16.mxu0 0
        %2082 = vmatpush1.bf16.msra.mxu0 0
        %2083 = vmatprep.subr.bf16.mxu0 0
        %2084 = vmatpush1.bf16.msra.mxu0 0
        %2085 = vmatprep.subr.bf16.mxu0 0
        %2086 = vmatpush1.bf16.msra.mxu0 0
        %2087 = vmatprep.subr.bf16.mxu0 0
        %2088 = vmatpush1.bf16.msra.mxu0 0
        %2089 = vmatprep.subr.bf16.mxu0 0
        %2090 = vmatpush1.bf16.msra.mxu0 0
        %2091 = vmatprep.subr.bf16.mxu0 0
        %2092 = vmatpush1.bf16.msra.mxu0 0
        %2093 = vmatprep.subr.bf16.mxu0 0
        %2094 = vmatpush1.bf16.msra.mxu0 0
        %2095 = vmatprep.subr.bf16.mxu0 0
        %2096 = vmatpush1.bf16.msra.mxu0 0
        %2097 = vmatprep.subr.bf16.mxu0 0
        %2098 = vmatpush1.bf16.msra.mxu0 0
        %2099 = vmatprep.subr.bf16.mxu0 0
        %2100 = vmatpush1.bf16.msra.mxu0 0
        %2101 = vmatprep.subr.bf16.mxu0 0
        %2102 = vmatpush1.bf16.msra.mxu0 0
        %2103 = vmatprep.subr.bf16.mxu0 0
        %2104 = vmatpush1.bf16.msra.mxu0 0
        %2105 = vmatprep.subr.bf16.mxu0 0
        %2106 = vmatpush1.bf16.msra.mxu0 0
        %2107 = vmatprep.subr.bf16.mxu0 0
        %2108 = vmatpush1.bf16.msra.mxu0 0
        %2109 = vmatprep.subr.bf16.mxu0 0
        %2110 = vmatpush1.bf16.msra.mxu0 0
        %2111 = vmatprep.mubr.bf16.mxu0 0
        %2112 = vmatmul.mubr.bf16.gmra.mrb[0].mxu0 %v2077
        %v2113 = vpop.f32.mrb[0].mxu0
        %v2114 = vadd.f32 0.0, %v2113
        %v2115 = vpop.f32.mrb[0].mxu0
        %v2116 = vpop.f32.mrb[0].mxu0
        %v2117 = vpop.f32.mrb[0].mxu0
        %2118 = vdwg.mxu0
        %v2121 = vunpack.c.l.b16 %v2064
        %v2122 = vunpack.c.l.b16 %v2065
        %v2123 = vpack.c.b16 %v2122, %v2121
        %v2126 = vsel %vm1520, %v2059, 0
        %2128 = vmatprep.subr.bf16.mxu0 0
        %2129 = vmatpush1.bf16.msra.mxu0 %v2123
        %2130 = vmatprep.subr.bf16.mxu0 0
        %2131 = vmatpush1.bf16.msra.mxu0 0
        %2132 = vmatprep.subr.bf16.mxu0 0
        %2133 = vmatpush1.bf16.msra.mxu0 0
        %2134 = vmatprep.subr.bf16.mxu0 0
        %2135 = vmatpush1.bf16.msra.mxu0 0
        %2136 = vmatprep.subr.bf16.mxu0 0
        %2137 = vmatpush1.bf16.msra.mxu0 0
        %2138 = vmatprep.subr.bf16.mxu0 0
        %2139 = vmatpush1.bf16.msra.mxu0 0
        %2140 = vmatprep.subr.bf16.mxu0 0
        %2141 = vmatpush1.bf16.msra.mxu0 0
        %2142 = vmatprep.subr.bf16.mxu0 0
        %2143 = vmatpush1.bf16.msra.mxu0 0
        %2144 = vmatprep.subr.bf16.mxu0 0
        %2145 = vmatpush1.bf16.msra.mxu0 0
        %2146 = vmatprep.subr.bf16.mxu0 0
        %2147 = vmatpush1.bf16.msra.mxu0 0
        %2148 = vmatprep.subr.bf16.mxu0 0
        %2149 = vmatpush1.bf16.msra.mxu0 0
        %2150 = vmatprep.subr.bf16.mxu0 0
        %2151 = vmatpush1.bf16.msra.mxu0 0
        %2152 = vmatprep.subr.bf16.mxu0 0
        %2153 = vmatpush1.bf16.msra.mxu0 0
        %2154 = vmatprep.subr.bf16.mxu0 0
        %2155 = vmatpush1.bf16.msra.mxu0 0
        %2156 = vmatprep.subr.bf16.mxu0 0
        %2157 = vmatpush1.bf16.msra.mxu0 0
        %2158 = vmatprep.subr.bf16.mxu0 0
        %2159 = vmatpush1.bf16.msra.mxu0 0
        %2160 = vmatprep.mubr.bf16.mxu0 0
        %2161 = vmatmul.mubr.bf16.gmra.mrb[0].mxu0 %v2126
        %v2162 = vpop.f32.mrb[0].mxu0
        %v2163 = vadd.f32 0.0, %v2162
        %v2164 = vpop.f32.mrb[0].mxu0
        %v2165 = vpop.f32.mrb[0].mxu0
        %v2166 = vpop.f32.mrb[0].mxu0
        %2167 = vdwg.mxu0
        %v2170 = vunpack.c.l.b16 %v2066
        %v2171 = vunpack.c.l.b16 %v2067
        %v2172 = vpack.c.b16 %v2171, %v2170
        %v2175 = vsel %vm1520, %v2060, 0
        %2177 = vmatprep.subr.bf16.mxu0 0
        %2178 = vmatpush1.bf16.msra.mxu0 %v2172
        %2179 = vmatprep.subr.bf16.mxu0 0
        %2180 = vmatpush1.bf16.msra.mxu0 0
        %2181 = vmatprep.subr.bf16.mxu0 0
        %2182 = vmatpush1.bf16.msra.mxu0 0
        %2183 = vmatprep.subr.bf16.mxu0 0
        %2184 = vmatpush1.bf16.msra.mxu0 0
        %2185 = vmatprep.subr.bf16.mxu0 0
        %2186 = vmatpush1.bf16.msra.mxu0 0
        %2187 = vmatprep.subr.bf16.mxu0 0
        %2188 = vmatpush1.bf16.msra.mxu0 0
        %2189 = vmatprep.subr.bf16.mxu0 0
        %2190 = vmatpush1.bf16.msra.mxu0 0
        %2191 = vmatprep.subr.bf16.mxu0 0
        %2192 = vmatpush1.bf16.msra.mxu0 0
        %2193 = vmatprep.subr.bf16.mxu0 0
        %2194 = vmatpush1.bf16.msra.mxu0 0
        %2195 = vmatprep.subr.bf16.mxu0 0
        %2196 = vmatpush1.bf16.msra.mxu0 0
        %2197 = vmatprep.subr.bf16.mxu0 0
        %2198 = vmatpush1.bf16.msra.mxu0 0
        %2199 = vmatprep.subr.bf16.mxu0 0
        %2200 = vmatpush1.bf16.msra.mxu0 0
        %2201 = vmatprep.subr.bf16.mxu0 0
        %2202 = vmatpush1.bf16.msra.mxu0 0
        %2203 = vmatprep.subr.bf16.mxu0 0
        %2204 = vmatpush1.bf16.msra.mxu0 0
        %2205 = vmatprep.subr.bf16.mxu0 0
        %2206 = vmatpush1.bf16.msra.mxu0 0
        %2207 = vmatprep.subr.bf16.mxu0 0
        %2208 = vmatpush1.bf16.msra.mxu0 0
        %2209 = vmatprep.mubr.bf16.mxu0 0
        %2210 = vmatmul.mubr.bf16.gmra.mrb[0].mxu0 %v2175
        %v2211 = vpop.f32.mrb[0].mxu0
        %v2212 = vadd.f32 0.0, %v2211
        %v2213 = vpop.f32.mrb[0].mxu0
        %v2214 = vpop.f32.mrb[0].mxu0
        %v2215 = vpop.f32.mrb[0].mxu0
        %2216 = vdwg.mxu0
        %v2219 = vunpack.c.l.b16 %v2068
        %v2220 = vunpack.c.l.b16 %v2069
        %v2221 = vpack.c.b16 %v2220, %v2219
        %v2224 = vsel %vm1520, %v2061, 0
        %2226 = vmatprep.subr.bf16.mxu0 0
        %2227 = vmatpush1.bf16.msra.mxu0 %v2221
        %2228 = vmatprep.subr.bf16.mxu0 0
        %2229 = vmatpush1.bf16.msra.mxu0 0
        %2230 = vmatprep.subr.bf16.mxu0 0
        %2231 = vmatpush1.bf16.msra.mxu0 0
        %2232 = vmatprep.subr.bf16.mxu0 0
        %2233 = vmatpush1.bf16.msra.mxu0 0
        %2234 = vmatprep.subr.bf16.mxu0 0
        %2235 = vmatpush1.bf16.msra.mxu0 0
        %2236 = vmatprep.subr.bf16.mxu0 0
        %2237 = vmatpush1.bf16.msra.mxu0 0
        %2238 = vmatprep.subr.bf16.mxu0 0
        %2239 = vmatpush1.bf16.msra.mxu0 0
        %2240 = vmatprep.subr.bf16.mxu0 0
        %2241 = vmatpush1.bf16.msra.mxu0 0
        %2242 = vmatprep.subr.bf16.mxu0 0
        %2243 = vmatpush1.bf16.msra.mxu0 0
        %2244 = vmatprep.subr.bf16.mxu0 0
        %2245 = vmatpush1.bf16.msra.mxu0 0
        %2246 = vmatprep.subr.bf16.mxu0 0
        %2247 = vmatpush1.bf16.msra.mxu0 0
        %2248 = vmatprep.subr.bf16.mxu0 0
        %2249 = vmatpush1.bf16.msra.mxu0 0
        %2250 = vmatprep.subr.bf16.mxu0 0
        %2251 = vmatpush1.bf16.msra.mxu0 0
        %2252 = vmatprep.subr.bf16.mxu0 0
        %2253 = vmatpush1.bf16.msra.mxu0 0
        %2254 = vmatprep.subr.bf16.mxu0 0
        %2255 = vmatpush1.bf16.msra.mxu0 0
        %2256 = vmatprep.subr.bf16.mxu0 0
        %2257 = vmatpush1.bf16.msra.mxu0 0
        %2258 = vmatprep.mubr.bf16.mxu0 0
        %2259 = vmatmul.mubr.bf16.gmra.mrb[0].mxu0 %v2224
        %v2260 = vpop.f32.mrb[0].mxu0
        %v2261 = vadd.f32 0.0, %v2260
        %v2262 = vpop.f32.mrb[0].mxu0
        %v2263 = vpop.f32.mrb[0].mxu0
        %v2264 = vpop.f32.mrb[0].mxu0
        %2265 = vdwg.mxu0
        %v2266 = vadd.f32 %v2114, %v2163
        %v2267 = vadd.f32 %v2266, %v2212
        %v2268 = vadd.f32 %v2267, %v2261
        %v2269 = vld [vmem:[%s11] sm:$0x1]
        %v2271 = vlaneseq
        %v2272 = vshrl.u32 %v2271, 7
        %v2273 = vsub.s32 0, %v2272
        %v2274 = vrot.slane %v2269, %v2273
        %v2276 = vadd.f32 %v2268, %v2274
        %v2277 = vld [vmem:[%s688] sm:$0xf]
        %v2278 = vunpack.c.l.bf16 %v2277
        %v2279 = vadd.f32 %v2276, %v2278
        %v2280 = vld [vmem:[%s13] sm:$0x1]
        %v2281 = vld [vmem:[%s14] sm:$0x1]
        %2282 = vadd.xlane.f32.xlu0 %v2279
        %v2283 = vpop.xlane.xlu0 %2282
        %v2284 = vrcp.pop 128.0
        %v2285 = vmul.f32 %v2283, %v2284
        %v2286 = vsub.f32 %v2279, %v2285
        %v2287 = vmul.f32 %v2286, %v2286
        %2288 = vadd.xlane.f32.xlu0 %v2287
        %v2289 = vpop.xlane.xlu0 %2288
        %v2290 = vmul.f32 %v2289, %v2284
        %v2291 = vadd.f32 %v2290, 1e-05
        %v2292 = vrsqrt.pop %v2291
        %v2293 = vmul.f32 %v2286, %v2292
        %v2295 = vlaneseq
        %v2296 = vshrl.u32 %v2295, 7
        %v2297 = vsub.s32 0, %v2296
        %v2298 = vrot.slane %v2280, %v2297
        %v2300 = vmul.f32 %v2293, %v2298
        %v2302 = vlaneseq
        %v2303 = vshrl.u32 %v2302, 7
        %v2304 = vsub.s32 0, %v2303
        %v2305 = vrot.slane %v2281, %v2304
        %v2307 = vadd.f32 %v2300, %v2305
        %v2308 = vpack.c.bf16 %v2307, %v2307
        %2309 = vst [vmem:[%s695] sm:$0xf] %v2308
      $region88: #{block_forward.5} parent=79 // pred_fallthru
        _
      %p2310 = scmp.lt.s32.totalorder %s31, 1
      %s2311 = scalar_select %p2310, %s31, 1
      %p2312 = scmp.lt.s32.totalorder %s32, 0
      %s2313 = scalar_select %p2312, %s32, 0
      %s2314 = sadd.s32 %s2313, %s2311
      %s2315 = smul.addr %s2314, 4
      %s2316 = scalar_lea.vmem %s15, %s2315
      // Predicated region
      $region89: #{block_forward.5} parent=79 // pred_check
        %p2317 = pneg %p415
      $region90: #{block_forward.5} parent=79 // pred_check_branch
        %2319 = sbr.rel (%p2317) target = $region92
      $region91: #{block_forward.5} parent=79 // pred_region
        _
      $region92: #{block_forward.5} parent=79 // pred_fallthru
        _
    $region80: #{block_forward.5} parent=5 // pred_fallthru
      _
    %p2320 = scmp.le.s32.totalorder 2, %s21
    // Predicated region
    $region93: #{block_forward.5} parent=5 // pred_check
      %p2321 = pneg %p2320
    $region94: #{block_forward.5} parent=5 // pred_check_branch
      %2323 = sbr.rel (%p2321) target = $region96
    $region95: #{block_forward.5} parent=5 // pred_region
      %s2324 = ssub.s32 %s21, 2
      // Predicated region
      $region97: #{block_forward.5} parent=95 // pred_check
        %p2325 = pneg %p421
      $region98: #{block_forward.5} parent=95 // pred_check_branch
        %2327 = sbr.rel (%p2325) target = $region100
      $region99: #{block_forward.5} parent=95 // pred_region
        %p2328 = scmp.lt.s32.totalorder %s34, 1
        %s2329 = scalar_select %p2328, %s34, 1
        %p2330 = scmp.lt.s32.totalorder %s35, 0
        %s2331 = scalar_select %p2330, %s35, 0
        %s2332 = sadd.s32 %s2331, %s2329
        %s2333 = smul.addr %s2332, 4
        %s2334 = scalar_lea.vmem %s15, %s2333
      $region100: #{block_forward.5} parent=95 // pred_fallthru
        _
    $region96: #{block_forward.5} parent=5 // pred_fallthru
      _
  $region6: #{block_forward.5} parent=0 // loop_footer
    %s25 = sadd.s32 1, %s21
  $region7: #{block_forward.5} parent=0 // loop_footer_branch
    %20 = sbr.rel target = $region3
  $region8: #{block_forward.5} parent=0 // loop_exit
    _

// kernel: block_forward.7
$region0: #{block_forward.7}
  #allocation0 [shape = 'u32[]', space=smem, size = 0x4, offset = 0x4, fixed_abs, tag = 'smem constant byte address 0x4 - core index']
  #allocation1 [shape = 'u32[144,128]{1,0:T(1,128)}', space=vmem, size = 0x12000, scoped, tag = 'internal scratch']
  #allocation2 [shape = 'bf16[4,16,16]{2,1,0:T(16,128)(2,1)}', space=vmem, size = 0x4000, scoped, tag = 'scratch operand']
  #allocation3 [shape = 'f32[4,16,1]{2,1,0:T(8,128)}', space=vmem, size = 0x8000, scoped, tag = 'scratch operand']
  #allocation4 [shape = 'f32[4,16,1]{2,1,0:T(8,128)}', space=vmem, size = 0x8000, scoped, tag = 'scratch operand']
  #allocation5 [shape = 'f32[4,16,16]{2,1,0:T(8,128)}', space=vmem, size = 0x8000, scoped, tag = 'scratch operand']
  %s0 = inlined_call_operand.vmem [shape: bf16[2,40,128], index: 0, kind: input, shape index: {}, may-alias: {0,12}]
  %s1 = inlined_call_operand.vmem [shape: bf16[2,40,128], index: 1, kind: input, shape index: {}]
  %s2 = inlined_call_operand.vmem [shape: bf16[2,8,128], index: 2, kind: input, shape index: {}]
  %s3 = inlined_call_operand.vmem [shape: bf16[2,8,128], index: 3, kind: input, shape index: {}]
  %s4 = inlined_call_operand.vmem [shape: bf16[4,128,16], index: 4, kind: input, shape index: {}]
  %s5 = inlined_call_operand.vmem [shape: f32[4,1,16], index: 5, kind: input, shape index: {}]
  %s6 = inlined_call_operand.vmem [shape: bf16[64,128], index: 6, kind: input, shape index: {}]
  %s7 = inlined_call_operand.vmem [shape: f32[64,1], index: 7, kind: input, shape index: {}]
  %s8 = inlined_call_operand.vmem [shape: bf16[64,128], index: 8, kind: input, shape index: {}]
  %s9 = inlined_call_operand.vmem [shape: f32[64,1], index: 9, kind: input, shape index: {}]
  %s10 = inlined_call_operand.vmem [shape: bf16[4,16,128], index: 10, kind: input, shape index: {}]
  %s11 = inlined_call_operand.vmem [shape: f32[1,128], index: 11, kind: input, shape index: {}]
  %s12 = inlined_call_operand.vmem [shape: bf16[2,40,128], index: 12, kind: input, shape index: {}, may-alias: {0,12}]
  %s13 = inlined_call_operand.vmem [shape: f32[1,128], index: 13, kind: input, shape index: {}]
  %s14 = inlined_call_operand.vmem [shape: f32[1,128], index: 14, kind: input, shape index: {}]
  %s15 = inlined_call_operand.vmem [shape: bf16[2,40,128], index: 15, kind: output, shape index: {}]
  %s16 = sld [smem:[#allocation0]]
  $region145: #{block_forward.7} parent=0
    _
  %s18 = ssub.s32 1, %s16
  %s19 = scalar_select 0, %s18, %s16
  $region1: #{block_forward.7} parent=0
    #allocation6 [shape = 'u8[8192]{0}', space=vmem, size = 0x2000, scoped, tag = 'output window, operand 0']
    loop: start=0, step=1, limit=8
    $region2: #{block_forward.7} parent=1 // loop_pre_header
      _
    $region3: #{block_forward.7} parent=1 // loop_header
      %s21 = sphi 0, %s25
      %p22 = scmp.ge.s32.totalorder %s21, 8
      %s28 = sphi 0, %s47
      %s29 = sphi 0, %s43
      %s30 = sphi 0, %s39
      %s31 = sphi 0, %s28
      %s32 = sphi 0, %s29
      %s33 = sphi 0, %s30
      %s34 = sphi 0, %s31
      %s35 = sphi 0, %s32
      %s36 = sphi 0, %s33
      %s52 = sphi 0, %s54
      %s55 = sphi 0, %s52
      %s56 = sphi 0, %s55
      %s72 = sphi 0, %s56
      %s80 = sphi 0, %s82
      %s83 = sphi 0, %s80
      %s84 = sphi 0, %s83
      %s100 = sphi 0, %s84
      %s108 = sphi 0, %s110
      %s111 = sphi 0, %s108
      %s112 = sphi 0, %s111
      %s128 = sphi 0, %s112
      %s136 = sphi 0, %s138
      %s139 = sphi 0, %s136
      %s140 = sphi 0, %s139
      %s156 = sphi 0, %s140
      %s160 = sphi 0, %s160
      %s162 = sphi 0, %s160
      %s163 = sphi 0, %s162
      %s177 = sphi 0, %s163
      %s181 = sphi 0, %s181
      %s183 = sphi 0, %s181
      %s184 = sphi 0, %s183
      %s198 = sphi 0, %s184
      %s202 = sphi 0, %s202
      %s204 = sphi 0, %s202
      %s205 = sphi 0, %s204
      %s219 = sphi 0, %s205
      %s223 = sphi 0, %s223
      %s225 = sphi 0, %s223
      %s226 = sphi 0, %s225
      %s240 = sphi 0, %s226
      %s244 = sphi 0, %s244
      %s246 = sphi 0, %s244
      %s247 = sphi 0, %s246
      %s261 = sphi 0, %s247
      %s265 = sphi 0, %s265
      %s267 = sphi 0, %s265
      %s268 = sphi 0, %s267
      %s282 = sphi 0, %s268
      %s286 = sphi 0, %s286
      %s288 = sphi 0, %s286
      %s289 = sphi 0, %s288
      %s303 = sphi 0, %s289
      %s307 = sphi 0, %s307
      %s309 = sphi 0, %s307
      %s310 = sphi 0, %s309
      %s324 = sphi 0, %s310
      %s332 = sphi 0, %s334
      %s335 = sphi 0, %s332
      %s336 = sphi 0, %s335
      %s352 = sphi 0, %s336
      %s356 = sphi 0, %s356
      %s358 = sphi 0, %s356
      %s359 = sphi 0, %s358
      %s373 = sphi 0, %s359
      %s377 = sphi 0, %s377
      %s379 = sphi 0, %s377
      %s380 = sphi 0, %s379
      %s394 = sphi 0, %s380
      %s402 = sphi 0, %s404
      %s405 = sphi 0, %s402
      %s406 = sphi 0, %s405
      %s422 = sphi 0, %s406
    $region4: #{block_forward.7} parent=1 // loop_header_branch
      %24 = sbr.rel (%p22) target = $region8
    $region5: #{block_forward.7} parent=1 // loop_body
      %s26 = ssub.s32 %s21, 1
      %s27 = ssub.s32 %s21, 2
      %s37 = sadd.s32 1, %s30
      %p38 = scmp.ge.s32.totalorder %s37, 1
      %s39 = scalar_select %p38, 0, %s37
      %s40 = sadd.s32 1, %s29
      %s41 = scalar_select %p38, %s40, %s29
      %p42 = scmp.ge.s32.totalorder %s41, 3
      %s43 = scalar_select %p42, 0, %s41
      %s44 = sadd.s32 1, %s28
      %s45 = scalar_select %p42, %s44, %s28
      %p46 = scmp.ge.s32.totalorder %s45, 2
      %s47 = scalar_select %p46, 0, %s45
      %s48 = ssub.s32 %s28, %s47
      %s49 = ssub.s32 %s29, %s43
      %s50 = sor.u32 %s48, %s49
      %p51 = scmp.eq.s32.totalorder %s50, 0
      %s53 = sadd.s32 %s52, 1
      %s54 = scalar_select %p51, %s52, %s53
      %p57 = pneg %p51
      %p58 = scmp.eq.s32.totalorder %s21, 5
      %p59 = por %p57, %p58
      %p60 = scmp.ne.s32.totalorder %s52, %s55
      %p61 = scmp.eq.s32.totalorder %s21, 0
      %p62 = por %p60, %p61
      %p63 = scmp.ne.s32.totalorder %s52, %s55
      %p64 = scmp.eq.s32.totalorder %s26, 5
      %p65 = por %p63, %p64
      %p66 = scmp.ne.s32.totalorder %s55, %s56
      %p67 = scmp.eq.s32.totalorder %s26, 0
      %p68 = por %p66, %p67
      %p69 = scmp.ne.s32.totalorder %s55, %s56
      %p70 = scmp.eq.s32.totalorder %s27, 5
      %p71 = por %p69, %p70
      %p73 = scmp.ne.s32.totalorder %s56, %s72
      %p74 = scmp.eq.s32.totalorder %s27, 0
      %p75 = por %p73, %p74
      %s76 = ssub.s32 %s28, %s47
      %s77 = ssub.s32 %s29, %s43
      %s78 = sor.u32 %s76, %s77
      %p79 = scmp.eq.s32.totalorder %s78, 0
      %s81 = sadd.s32 %s80, 1
      %s82 = scalar_select %p79, %s80, %s81
      %p85 = pneg %p79
      %p86 = scmp.eq.s32.totalorder %s21, 5
      %p87 = por %p85, %p86
      %p88 = scmp.ne.s32.totalorder %s80, %s83
      %p89 = scmp.eq.s32.totalorder %s21, 0
      %p90 = por %p88, %p89
      %p91 = scmp.ne.s32.totalorder %s80, %s83
      %p92 = scmp.eq.s32.totalorder %s26, 5
      %p93 = por %p91, %p92
      %p94 = scmp.ne.s32.totalorder %s83, %s84
      %p95 = scmp.eq.s32.totalorder %s26, 0
      %p96 = por %p94, %p95
      %p97 = scmp.ne.s32.totalorder %s83, %s84
      %p98 = scmp.eq.s32.totalorder %s27, 5
      %p99 = por %p97, %p98
      %p101 = scmp.ne.s32.totalorder %s84, %s100
      %p102 = scmp.eq.s32.totalorder %s27, 0
      %p103 = por %p101, %p102
      %s104 = ssub.s32 %s28, %s47
      %s105 = ssub.s32 %s30, %s39
      %s106 = sor.u32 %s104, %s105
      %p107 = scmp.eq.s32.totalorder %s106, 0
      %s109 = sadd.s32 %s108, 1
      %s110 = scalar_select %p107, %s108, %s109
      %p113 = pneg %p107
      %p114 = scmp.eq.s32.totalorder %s21, 5
      %p115 = por %p113, %p114
      %p116 = scmp.ne.s32.totalorder %s108, %s111
      %p117 = scmp.eq.s32.totalorder %s21, 0
      %p118 = por %p116, %p117
      %p119 = scmp.ne.s32.totalorder %s108, %s111
      %p120 = scmp.eq.s32.totalorder %s26, 5
      %p121 = por %p119, %p120
      %p122 = scmp.ne.s32.totalorder %s111, %s112
      %p123 = scmp.eq.s32.totalorder %s26, 0
      %p124 = por %p122, %p123
      %p125 = scmp.ne.s32.totalorder %s111, %s112
      %p126 = scmp.eq.s32.totalorder %s27, 5
      %p127 = por %p125, %p126
      %p129 = scmp.ne.s32.totalorder %s112, %s128
      %p130 = scmp.eq.s32.totalorder %s27, 0
      %p131 = por %p129, %p130
      %s132 = ssub.s32 %s28, %s47
      %s133 = ssub.s32 %s30, %s39
      %s134 = sor.u32 %s132, %s133
      %p135 = scmp.eq.s32.totalorder %s134, 0
      %s137 = sadd.s32 %s136, 1
      %s138 = scalar_select %p135, %s136, %s137
      %p141 = pneg %p135
      %p142 = scmp.eq.s32.totalorder %s21, 5
      %p143 = por %p141, %p142
      %p144 = scmp.ne.s32.totalorder %s136, %s139
      %p145 = scmp.eq.s32.totalorder %s21, 0
      %p146 = por %p144, %p145
      %p147 = scmp.ne.s32.totalorder %s136, %s139
      %p148 = scmp.eq.s32.totalorder %s26, 5
      %p149 = por %p147, %p148
      %p150 = scmp.ne.s32.totalorder %s139, %s140
      %p151 = scmp.eq.s32.totalorder %s26, 0
      %p152 = por %p150, %p151
      %p153 = scmp.ne.s32.totalorder %s139, %s140
      %p154 = scmp.eq.s32.totalorder %s27, 5
      %p155 = por %p153, %p154
      %p157 = scmp.ne.s32.totalorder %s140, %s156
      %p158 = scmp.eq.s32.totalorder %s27, 0
      %p159 = por %p157, %p158
      %s161 = sadd.s32 %s160, 1
      %p164 = scmp.eq.s32.totalorder %s21, 5
      %p165 = scmp.ne.s32.totalorder %s160, %s162
      %p166 = scmp.eq.s32.totalorder %s21, 0
      %p167 = por %p165, %p166
      %p168 = scmp.ne.s32.totalorder %s160, %s162
      %p169 = scmp.eq.s32.totalorder %s26, 5
      %p170 = por %p168, %p169
      %p171 = scmp.ne.s32.totalorder %s162, %s163
      %p172 = scmp.eq.s32.totalorder %s26, 0
      %p173 = por %p171, %p172
      %p174 = scmp.ne.s32.totalorder %s162, %s163
      %p175 = scmp.eq.s32.totalorder %s27, 5
      %p176 = por %p174, %p175
      %p178 = scmp.ne.s32.totalorder %s163, %s177
      %p179 = scmp.eq.s32.totalorder %s27, 0
      %p180 = por %p178, %p179
      %s182 = sadd.s32 %s181, 1
      %p185 = scmp.eq.s32.totalorder %s21, 5
      %p186 = scmp.ne.s32.totalorder %s181, %s183
      %p187 = scmp.eq.s32.totalorder %s21, 0
      %p188 = por %p186, %p187
      %p189 = scmp.ne.s32.totalorder %s181, %s183
      %p190 = scmp.eq.s32.totalorder %s26, 5
      %p191 = por %p189, %p190
      %p192 = scmp.ne.s32.totalorder %s183, %s184
      %p193 = scmp.eq.s32.totalorder %s26, 0
      %p194 = por %p192, %p193
      %p195 = scmp.ne.s32.totalorder %s183, %s184
      %p196 = scmp.eq.s32.totalorder %s27, 5
      %p197 = por %p195, %p196
      %p199 = scmp.ne.s32.totalorder %s184, %s198
      %p200 = scmp.eq.s32.totalorder %s27, 0
      %p201 = por %p199, %p200
      %s203 = sadd.s32 %s202, 1
      %p206 = scmp.eq.s32.totalorder %s21, 5
      %p207 = scmp.ne.s32.totalorder %s202, %s204
      %p208 = scmp.eq.s32.totalorder %s21, 0
      %p209 = por %p207, %p208
      %p210 = scmp.ne.s32.totalorder %s202, %s204
      %p211 = scmp.eq.s32.totalorder %s26, 5
      %p212 = por %p210, %p211
      %p213 = scmp.ne.s32.totalorder %s204, %s205
      %p214 = scmp.eq.s32.totalorder %s26, 0
      %p215 = por %p213, %p214
      %p216 = scmp.ne.s32.totalorder %s204, %s205
      %p217 = scmp.eq.s32.totalorder %s27, 5
      %p218 = por %p216, %p217
      %p220 = scmp.ne.s32.totalorder %s205, %s219
      %p221 = scmp.eq.s32.totalorder %s27, 0
      %p222 = por %p220, %p221
      %s224 = sadd.s32 %s223, 1
      %p227 = scmp.eq.s32.totalorder %s21, 5
      %p228 = scmp.ne.s32.totalorder %s223, %s225
      %p229 = scmp.eq.s32.totalorder %s21, 0
      %p230 = por %p228, %p229
      %p231 = scmp.ne.s32.totalorder %s223, %s225
      %p232 = scmp.eq.s32.totalorder %s26, 5
      %p233 = por %p231, %p232
      %p234 = scmp.ne.s32.totalorder %s225, %s226
      %p235 = scmp.eq.s32.totalorder %s26, 0
      %p236 = por %p234, %p235
      %p237 = scmp.ne.s32.totalorder %s225, %s226
      %p238 = scmp.eq.s32.totalorder %s27, 5
      %p239 = por %p237, %p238
      %p241 = scmp.ne.s32.totalorder %s226, %s240
      %p242 = scmp.eq.s32.totalorder %s27, 0
      %p243 = por %p241, %p242
      %s245 = sadd.s32 %s244, 1
      %p248 = scmp.eq.s32.totalorder %s21, 5
      %p249 = scmp.ne.s32.totalorder %s244, %s246
      %p250 = scmp.eq.s32.totalorder %s21, 0
      %p251 = por %p249, %p250
      %p252 = scmp.ne.s32.totalorder %s244, %s246
      %p253 = scmp.eq.s32.totalorder %s26, 5
      %p254 = por %p252, %p253
      %p255 = scmp.ne.s32.totalorder %s246, %s247
      %p256 = scmp.eq.s32.totalorder %s26, 0
      %p257 = por %p255, %p256
      %p258 = scmp.ne.s32.totalorder %s246, %s247
      %p259 = scmp.eq.s32.totalorder %s27, 5
      %p260 = por %p258, %p259
      %p262 = scmp.ne.s32.totalorder %s247, %s261
      %p263 = scmp.eq.s32.totalorder %s27, 0
      %p264 = por %p262, %p263
      %s266 = sadd.s32 %s265, 1
      %p269 = scmp.eq.s32.totalorder %s21, 5
      %p270 = scmp.ne.s32.totalorder %s265, %s267
      %p271 = scmp.eq.s32.totalorder %s21, 0
      %p272 = por %p270, %p271
      %p273 = scmp.ne.s32.totalorder %s265, %s267
      %p274 = scmp.eq.s32.totalorder %s26, 5
      %p275 = por %p273, %p274
      %p276 = scmp.ne.s32.totalorder %s267, %s268
      %p277 = scmp.eq.s32.totalorder %s26, 0
      %p278 = por %p276, %p277
      %p279 = scmp.ne.s32.totalorder %s267, %s268
      %p280 = scmp.eq.s32.totalorder %s27, 5
      %p281 = por %p279, %p280
      %p283 = scmp.ne.s32.totalorder %s268, %s282
      %p284 = scmp.eq.s32.totalorder %s27, 0
      %p285 = por %p283, %p284
      %s287 = sadd.s32 %s286, 1
      %p290 = scmp.eq.s32.totalorder %s21, 5
      %p291 = scmp.ne.s32.totalorder %s286, %s288
      %p292 = scmp.eq.s32.totalorder %s21, 0
      %p293 = por %p291, %p292
      %p294 = scmp.ne.s32.totalorder %s286, %s288
      %p295 = scmp.eq.s32.totalorder %s26, 5
      %p296 = por %p294, %p295
      %p297 = scmp.ne.s32.totalorder %s288, %s289
      %p298 = scmp.eq.s32.totalorder %s26, 0
      %p299 = por %p297, %p298
      %p300 = scmp.ne.s32.totalorder %s288, %s289
      %p301 = scmp.eq.s32.totalorder %s27, 5
      %p302 = por %p300, %p301
      %p304 = scmp.ne.s32.totalorder %s289, %s303
      %p305 = scmp.eq.s32.totalorder %s27, 0
      %p306 = por %p304, %p305
      %s308 = sadd.s32 %s307, 1
      %p311 = scmp.eq.s32.totalorder %s21, 5
      %p312 = scmp.ne.s32.totalorder %s307, %s309
      %p313 = scmp.eq.s32.totalorder %s21, 0
      %p314 = por %p312, %p313
      %p315 = scmp.ne.s32.totalorder %s307, %s309
      %p316 = scmp.eq.s32.totalorder %s26, 5
      %p317 = por %p315, %p316
      %p318 = scmp.ne.s32.totalorder %s309, %s310
      %p319 = scmp.eq.s32.totalorder %s26, 0
      %p320 = por %p318, %p319
      %p321 = scmp.ne.s32.totalorder %s309, %s310
      %p322 = scmp.eq.s32.totalorder %s27, 5
      %p323 = por %p321, %p322
      %p325 = scmp.ne.s32.totalorder %s310, %s324
      %p326 = scmp.eq.s32.totalorder %s27, 0
      %p327 = por %p325, %p326
      %s328 = ssub.s32 %s28, %s47
      %s329 = ssub.s32 %s29, %s43
      %s330 = sor.u32 %s328, %s329
      %p331 = scmp.eq.s32.totalorder %s330, 0
      %s333 = sadd.s32 %s332, 1
      %s334 = scalar_select %p331, %s332, %s333
      %p337 = pneg %p331
      %p338 = scmp.eq.s32.totalorder %s21, 5
      %p339 = por %p337, %p338
      %p340 = scmp.ne.s32.totalorder %s332, %s335
      %p341 = scmp.eq.s32.totalorder %s21, 0
      %p342 = por %p340, %p341
      %p343 = scmp.ne.s32.totalorder %s332, %s335
      %p344 = scmp.eq.s32.totalorder %s26, 5
      %p345 = por %p343, %p344
      %p346 = scmp.ne.s32.totalorder %s335, %s336
      %p347 = scmp.eq.s32.totalorder %s26, 0
      %p348 = por %p346, %p347
      %p349 = scmp.ne.s32.totalorder %s335, %s336
      %p350 = scmp.eq.s32.totalorder %s27, 5
      %p351 = por %p349, %p350
      %p353 = scmp.ne.s32.totalorder %s336, %s352
      %p354 = scmp.eq.s32.totalorder %s27, 0
      %p355 = por %p353, %p354
      %s357 = sadd.s32 %s356, 1
      %p360 = scmp.eq.s32.totalorder %s21, 5
      %p361 = scmp.ne.s32.totalorder %s356, %s358
      %p362 = scmp.eq.s32.totalorder %s21, 0
      %p363 = por %p361, %p362
      %p364 = scmp.ne.s32.totalorder %s356, %s358
      %p365 = scmp.eq.s32.totalorder %s26, 5
      %p366 = por %p364, %p365
      %p367 = scmp.ne.s32.totalorder %s358, %s359
      %p368 = scmp.eq.s32.totalorder %s26, 0
      %p369 = por %p367, %p368
      %p370 = scmp.ne.s32.totalorder %s358, %s359
      %p371 = scmp.eq.s32.totalorder %s27, 5
      %p372 = por %p370, %p371
      %p374 = scmp.ne.s32.totalorder %s359, %s373
      %p375 = scmp.eq.s32.totalorder %s27, 0
      %p376 = por %p374, %p375
      %s378 = sadd.s32 %s377, 1
      %p381 = scmp.eq.s32.totalorder %s21, 5
      %p382 = scmp.ne.s32.totalorder %s377, %s379
      %p383 = scmp.eq.s32.totalorder %s21, 0
      %p384 = por %p382, %p383
      %p385 = scmp.ne.s32.totalorder %s377, %s379
      %p386 = scmp.eq.s32.totalorder %s26, 5
      %p387 = por %p385, %p386
      %p388 = scmp.ne.s32.totalorder %s379, %s380
      %p389 = scmp.eq.s32.totalorder %s26, 0
      %p390 = por %p388, %p389
      %p391 = scmp.ne.s32.totalorder %s379, %s380
      %p392 = scmp.eq.s32.totalorder %s27, 5
      %p393 = por %p391, %p392
      %p395 = scmp.ne.s32.totalorder %s380, %s394
      %p396 = scmp.eq.s32.totalorder %s27, 0
      %p397 = por %p395, %p396
      %s398 = ssub.s32 %s28, %s47
      %s399 = ssub.s32 %s29, %s43
      %s400 = sor.u32 %s398, %s399
      %p401 = scmp.eq.s32.totalorder %s400, 0
      %s403 = sadd.s32 %s402, 1
      %s404 = scalar_select %p401, %s402, %s403
      %p407 = pneg %p401
      %p408 = scmp.eq.s32.totalorder %s21, 5
      %p409 = por %p407, %p408
      %p410 = scmp.ne.s32.totalorder %s402, %s405
      %p411 = scmp.eq.s32.totalorder %s21, 0
      %p412 = por %p410, %p411
      %p413 = scmp.ne.s32.totalorder %s402, %s405
      %p414 = scmp.eq.s32.totalorder %s26, 5
      %p415 = por %p413, %p414
      %p416 = scmp.ne.s32.totalorder %s405, %s406
      %p417 = scmp.eq.s32.totalorder %s26, 0
      %p418 = por %p416, %p417
      %p419 = scmp.ne.s32.totalorder %s405, %s406
      %p420 = scmp.eq.s32.totalorder %s27, 5
      %p421 = por %p419, %p420
      %p423 = scmp.ne.s32.totalorder %s406, %s422
      %p424 = scmp.eq.s32.totalorder %s27, 0
      %p425 = por %p423, %p424
      %p426 = scmp.le.s32.totalorder 1, %s21
      %p427 = scmp.lt.s32.totalorder %s21, 7
      %p428 = pnand %p426, %p427
      %p429 = pneg %p428
      // Predicated region
      $region9: #{block_forward.7} parent=5 // pred_check
        _
      $region10: #{block_forward.7} parent=5 // pred_check_branch
        %431 = sbr.rel (%p428) target = $region12
      $region11: #{block_forward.7} parent=5 // pred_region
        %s432 = ssub.s32 %s21, 1
        // Predicated region
        $region13: #{block_forward.7} parent=11 // pred_check
          %p433 = pneg %p173
        $region14: #{block_forward.7} parent=11 // pred_check_branch
          %435 = sbr.rel (%p433) target = $region16
        $region15: #{block_forward.7} parent=11 // pred_region
          _
        $region16: #{block_forward.7} parent=11 // pred_fallthru
          _
        // Predicated region
        $region17: #{block_forward.7} parent=11 // pred_check
          %p436 = pneg %p194
        $region18: #{block_forward.7} parent=11 // pred_check_branch
          %438 = sbr.rel (%p436) target = $region20
        $region19: #{block_forward.7} parent=11 // pred_region
          _
        $region20: #{block_forward.7} parent=11 // pred_fallthru
          _
        // Predicated region
        $region21: #{block_forward.7} parent=11 // pred_check
          %p439 = pneg %p215
        $region22: #{block_forward.7} parent=11 // pred_check_branch
          %441 = sbr.rel (%p439) target = $region24
        $region23: #{block_forward.7} parent=11 // pred_region
          _
        $region24: #{block_forward.7} parent=11 // pred_fallthru
          _
        // Predicated region
        $region25: #{block_forward.7} parent=11 // pred_check
          %p442 = pneg %p236
        $region26: #{block_forward.7} parent=11 // pred_check_branch
          %444 = sbr.rel (%p442) target = $region28
        $region27: #{block_forward.7} parent=11 // pred_region
          _
        $region28: #{block_forward.7} parent=11 // pred_fallthru
          _
        // Predicated region
        $region29: #{block_forward.7} parent=11 // pred_check
          %p445 = pneg %p257
        $region30: #{block_forward.7} parent=11 // pred_check_branch
          %447 = sbr.rel (%p445) target = $region32
        $region31: #{block_forward.7} parent=11 // pred_region
          _
        $region32: #{block_forward.7} parent=11 // pred_fallthru
          _
        // Predicated region
        $region33: #{block_forward.7} parent=11 // pred_check
          %p448 = pneg %p278
        $region34: #{block_forward.7} parent=11 // pred_check_branch
          %450 = sbr.rel (%p448) target = $region36
        $region35: #{block_forward.7} parent=11 // pred_region
          _
        $region36: #{block_forward.7} parent=11 // pred_fallthru
          _
        // Predicated region
        $region37: #{block_forward.7} parent=11 // pred_check
          %p451 = pneg %p299
        $region38: #{block_forward.7} parent=11 // pred_check_branch
          %453 = sbr.rel (%p451) target = $region40
        $region39: #{block_forward.7} parent=11 // pred_region
          _
        $region40: #{block_forward.7} parent=11 // pred_fallthru
          _
        // Predicated region
        $region41: #{block_forward.7} parent=11 // pred_check
          %p454 = pneg %p320
        $region42: #{block_forward.7} parent=11 // pred_check_branch
          %456 = sbr.rel (%p454) target = $region44
        $region43: #{block_forward.7} parent=11 // pred_region
          _
        $region44: #{block_forward.7} parent=11 // pred_fallthru
          _
        // Predicated region
        $region45: #{block_forward.7} parent=11 // pred_check
          %p457 = pneg %p369
        $region46: #{block_forward.7} parent=11 // pred_check_branch
          %459 = sbr.rel (%p457) target = $region48
        $region47: #{block_forward.7} parent=11 // pred_region
          _
        $region48: #{block_forward.7} parent=11 // pred_fallthru
          _
        // Predicated region
        $region49: #{block_forward.7} parent=11 // pred_check
          %p460 = pneg %p390
        $region50: #{block_forward.7} parent=11 // pred_check_branch
          %462 = sbr.rel (%p460) target = $region52
        $region51: #{block_forward.7} parent=11 // pred_region
          _
        $region52: #{block_forward.7} parent=11 // pred_fallthru
          _
      $region12: #{block_forward.7} parent=5 // pred_fallthru
        _
      %p463 = scmp.lt.s32.totalorder %s21, 6
      // Predicated region
      $region53: #{block_forward.7} parent=5 // pred_check
        %p464 = pneg %p463
      $region54: #{block_forward.7} parent=5 // pred_check_branch
        %466 = sbr.rel (%p464) target = $region56
      $region55: #{block_forward.7} parent=5 // pred_region
        // Predicated region
        $region57: #{block_forward.7} parent=55 // pred_check
          %p467 = pneg %p62
        $region58: #{block_forward.7} parent=55 // pred_check_branch
          %469 = sbr.rel (%p467) target = $region60
        $region59: #{block_forward.7} parent=55 // pred_region
          %s470 = smul.u32 2, %s29
          %s471 = ssub.s32 5, %s470
          %p472 = scmp.lt.s32.totalorder %s471, 2
          %s473 = scalar_select %p472, %s471, 2
          %s474 = smul.u32 64, %s473
          %p475 = scmp.lt.s32.totalorder %s28, 1
          %s476 = scalar_select %p475, %s28, 1
          %p477 = scmp.lt.s32.totalorder %s470, 4
          %s478 = scalar_select %p477, %s470, 4
          %s479 = smul.addr %s476, 5
          %s480 = sadd.s32 %s478, %s479
          %s481 = smul.addr %s480, 4
          %s482 = scalar_lea.vmem %s0, %s481
          %s483 = smul.u32 2, %s29
          %s484 = ssub.s32 5, %s483
          %p485 = scmp.lt.s32.totalorder %s484, 2
          %s486 = scalar_select %p485, %s484, 2
          %s487 = smul.u32 64, %s486
        $region60: #{block_forward.7} parent=55 // pred_fallthru
          _
        // Predicated region
        $region61: #{block_forward.7} parent=55 // pred_check
          %p488 = pneg %p90
        $region62: #{block_forward.7} parent=55 // pred_check_branch
          %490 = sbr.rel (%p488) target = $region64
        $region63: #{block_forward.7} parent=55 // pred_region
          %s491 = smul.u32 2, %s29
          %s492 = ssub.s32 5, %s491
          %p493 = scmp.lt.s32.totalorder %s492, 2
          %s494 = scalar_select %p493, %s492, 2
          %s495 = smul.u32 64, %s494
          %p496 = scmp.lt.s32.totalorder %s28, 1
          %s497 = scalar_select %p496, %s28, 1
          %p498 = scmp.lt.s32.totalorder %s491, 4
          %s499 = scalar_select %p498, %s491, 4
          %s500 = smul.addr %s497, 5
          %s501 = sadd.s32 %s499, %s500
          %s502 = smul.addr %s501, 4
          %s503 = scalar_lea.vmem %s1, %s502
          %s504 = smul.u32 2, %s29
          %s505 = ssub.s32 5, %s504
          %p506 = scmp.lt.s32.totalorder %s505, 2
          %s507 = scalar_select %p506, %s505, 2
          %s508 = smul.u32 64, %s507
        $region64: #{block_forward.7} parent=55 // pred_fallthru
          _
        // Predicated region
        $region65: #{block_forward.7} parent=55 // pred_check
          %p509 = pneg %p118
        $region66: #{block_forward.7} parent=55 // pred_check_branch
          %511 = sbr.rel (%p509) target = $region68
        $region67: #{block_forward.7} parent=55 // pred_region
          %p512 = scmp.lt.s32.totalorder %s28, 1
          %s513 = scalar_select %p512, %s28, 1
          %p514 = scmp.lt.s32.totalorder %s30, 0
          %s515 = scalar_select %p514, %s30, 0
          %s516 = sadd.s32 %s515, %s513
          %s517 = smul.addr %s516, 4
          %s518 = scalar_lea.vmem %s2, %s517
        $region68: #{block_forward.7} parent=55 // pred_fallthru
          _
        // Predicated region
        $region69: #{block_forward.7} parent=55 // pred_check
          %p519 = pneg %p146
        $region70: #{block_forward.7} parent=55 // pred_check_branch
          %521 = sbr.rel (%p519) target = $region72
        $region71: #{block_forward.7} parent=55 // pred_region
          %p522 = scmp.lt.s32.totalorder %s28, 1
          %s523 = scalar_select %p522, %s28, 1
          %p524 = scmp.lt.s32.totalorder %s30, 0
          %s525 = scalar_select %p524, %s30, 0
          %s526 = sadd.s32 %s525, %s523
          %s527 = smul.addr %s526, 4
          %s528 = scalar_lea.vmem %s3, %s527
        $region72: #{block_forward.7} parent=55 // pred_fallthru
          _
        // Predicated region
        $region73: #{block_forward.7} parent=55 // pred_check
          %p529 = pneg %p342
        $region74: #{block_forward.7} parent=55 // pred_check_branch
          %531 = sbr.rel (%p529) target = $region76
        $region75: #{block_forward.7} parent=55 // pred_region
          %s532 = smul.u32 2, %s29
          %s533 = ssub.s32 5, %s532
          %p534 = scmp.lt.s32.totalorder %s533, 2
          %s535 = scalar_select %p534, %s533, 2
          %s536 = smul.u32 64, %s535
          %p537 = scmp.lt.s32.totalorder %s28, 1
          %s538 = scalar_select %p537, %s28, 1
          %p539 = scmp.lt.s32.totalorder %s532, 4
          %s540 = scalar_select %p539, %s532, 4
          %s541 = smul.addr %s538, 5
          %s542 = sadd.s32 %s540, %s541
          %s543 = smul.addr %s542, 4
          %s544 = scalar_lea.vmem %s12, %s543
          %s545 = smul.u32 2, %s29
          %s546 = ssub.s32 5, %s545
          %p547 = scmp.lt.s32.totalorder %s546, 2
          %s548 = scalar_select %p547, %s546, 2
          %s549 = smul.u32 64, %s548
        $region76: #{block_forward.7} parent=55 // pred_fallthru
          _
      $region56: #{block_forward.7} parent=5 // pred_fallthru
        _
      %p550 = scmp.le.s32.totalorder 1, %s21
      %p551 = scmp.lt.s32.totalorder %s21, 7
      %p552 = pnand %p550, %p551
      %p553 = pneg %p552
      // Predicated region
      $region77: #{block_forward.7} parent=5 // pred_check
        _
      $region78: #{block_forward.7} parent=5 // pred_check_branch
        %555 = sbr.rel (%p552) target = $region80
      $region79: #{block_forward.7} parent=5 // pred_region
        %s556 = ssub.s32 %s21, 1
        %s557 = smul.u32 2, %s32
        %s558 = ssub.s32 5, %s557
        %p559 = scmp.lt.s32.totalorder %s558, 2
        %s560 = scalar_select %p559, %s558, 2
        %s561 = smul.u32 64, %s560
        %p562 = scmp.lt.s32.totalorder %s31, 1
        %s563 = scalar_select %p562, %s31, 1
        %p564 = scmp.lt.s32.totalorder %s557, 4
        %s565 = scalar_select %p564, %s557, 4
        %s566 = smul.addr %s563, 5
        %s567 = sadd.s32 %s565, %s566
        %s568 = smul.addr %s567, 4
        %s569 = scalar_lea.vmem %s0, %s568
        %p570 = pneg %p68
        %p571 = pneg %p65
        %s572 = smul.u32 2, %s32
        %s573 = ssub.s32 5, %s572
        %p574 = scmp.lt.s32.totalorder %s573, 2
        %s575 = scalar_select %p574, %s573, 2
        %s576 = smul.u32 64, %s575
        %p577 = scmp.lt.s32.totalorder %s31, 1
        %s578 = scalar_select %p577, %s31, 1
        %p579 = scmp.lt.s32.totalorder %s572, 4
        %s580 = scalar_select %p579, %s572, 4
        %s581 = smul.addr %s578, 5
        %s582 = sadd.s32 %s580, %s581
        %s583 = smul.addr %s582, 4
        %s584 = scalar_lea.vmem %s1, %s583
        %p585 = pneg %p96
        %p586 = pneg %p93
        %p587 = scmp.lt.s32.totalorder %s31, 1
        %s588 = scalar_select %p587, %s31, 1
        %p589 = scmp.lt.s32.totalorder %s33, 0
        %s590 = scalar_select %p589, %s33, 0
        %s591 = sadd.s32 %s590, %s588
        %s592 = smul.addr %s591, 4
        %s593 = scalar_lea.vmem %s2, %s592
        %p594 = pneg %p124
        %p595 = pneg %p121
        %p596 = scmp.lt.s32.totalorder %s31, 1
        %s597 = scalar_select %p596, %s31, 1
        %p598 = scmp.lt.s32.totalorder %s33, 0
        %s599 = scalar_select %p598, %s33, 0
        %s600 = sadd.s32 %s599, %s597
        %s601 = smul.addr %s600, 4
        %s602 = scalar_lea.vmem %s3, %s601
        %p603 = pneg %p152
        %p604 = pneg %p149
        %p605 = pneg %p173
        %p606 = pneg %p170
        %p607 = pneg %p194
        %p608 = pneg %p191
        %p609 = pneg %p215
        %p610 = pneg %p212
        %p611 = pneg %p236
        %p612 = pneg %p233
        %p613 = pneg %p257
        %p614 = pneg %p254
        %p615 = pneg %p278
        %p616 = pneg %p275
        %p617 = pneg %p299
        %p618 = pneg %p296
        %p619 = pneg %p320
        %p620 = pneg %p317
        %s621 = smul.u32 2, %s32
        %s622 = ssub.s32 5, %s621
        %p623 = scmp.lt.s32.totalorder %s622, 2
        %s624 = scalar_select %p623, %s622, 2
        %s625 = smul.u32 64, %s624
        %p626 = scmp.lt.s32.totalorder %s31, 1
        %s627 = scalar_select %p626, %s31, 1
        %p628 = scmp.lt.s32.totalorder %s621, 4
        %s629 = scalar_select %p628, %s621, 4
        %s630 = smul.addr %s627, 5
        %s631 = sadd.s32 %s629, %s630
        %s632 = smul.addr %s631, 4
        %s633 = scalar_lea.vmem %s12, %s632
        %p634 = pneg %p348
        %p635 = pneg %p345
        %p636 = pneg %p369
        %p637 = pneg %p366
        %p638 = pneg %p390
        %p639 = pneg %p387
        %p640 = pneg %p418
        %p641 = pneg %p415
        %s642 = sand.u32 %s405, 1
        %s643 = sand.u32 %s405, 1
        %s644 = smul.addr %s643, 8
        %s645 = scalar_lea.vmem [#allocation6], %s644
        %s646 = smul.u32 2, %s32
        %s647 = ssub.s32 5, %s646
        %p648 = scmp.lt.s32.totalorder %s647, 2
        %s649 = scalar_select %p648, %s647, 2
        %s650 = smul.u32 64, %s649
        %p651 = scmp.lt.s32.totalorder %s31, 1
        %s652 = scalar_select %p651, %s31, 1
        %p653 = scmp.lt.s32.totalorder %s646, 4
        %s654 = scalar_select %p653, %s646, 4
        %s655 = smul.addr %s652, 5
        %s656 = sadd.s32 %s654, %s655
        %s657 = smul.addr %s656, 4
        %s658 = scalar_lea.vmem %s0, %s657
        %s659 = smul.u32 2, %s32
        %s660 = ssub.s32 5, %s659
        %p661 = scmp.lt.s32.totalorder %s660, 2
        %s662 = scalar_select %p661, %s660, 2
        %s663 = smul.u32 64, %s662
        %s664 = smul.u32 2, %s32
        %s665 = ssub.s32 5, %s664
        %p666 = scmp.lt.s32.totalorder %s665, 2
        %s667 = scalar_select %p666, %s665, 2
        %s668 = smul.u32 64, %s667
        %p669 = scmp.lt.s32.totalorder %s31, 1
        %s670 = scalar_select %p669, %s31, 1
        %p671 = scmp.lt.s32.totalorder %s664, 4
        %s672 = scalar_select %p671, %s664, 4
        %s673 = smul.addr %s670, 5
        %s674 = sadd.s32 %s672, %s673
        %s675 = smul.addr %s674, 4
        %s676 = scalar_lea.vmem %s1, %s675
        %s677 = smul.u32 2, %s32
        %s678 = ssub.s32 5, %s677
        %p679 = scmp.lt.s32.totalorder %s678, 2
        %s680 = scalar_select %p679, %s678, 2
        %s681 = smul.u32 64, %s680
        %p682 = scmp.lt.s32.totalorder %s31, 1
        %s683 = scalar_select %p682, %s31, 1
        %p684 = scmp.lt.s32.totalorder %s33, 0
        %s685 = scalar_select %p684, %s33, 0
        %s686 = sadd.s32 %s685, %s683
        %s687 = smul.addr %s686, 4
        %s688 = scalar_lea.vmem %s2, %s687
        %p689 = scmp.lt.s32.totalorder %s31, 1
        %s690 = scalar_select %p689, %s31, 1
        %p691 = scmp.lt.s32.totalorder %s33, 0
        %s692 = scalar_select %p691, %s33, 0
        %s693 = sadd.s32 %s692, %s690
        %s694 = smul.addr %s693, 4
        %s695 = scalar_lea.vmem %s3, %s694
        %s696 = smul.u32 2, %s32
        %s697 = ssub.s32 5, %s696
        %p698 = scmp.lt.s32.totalorder %s697, 2
        %s699 = scalar_select %p698, %s697, 2
        %s700 = smul.u32 64, %s699
        %p701 = scmp.lt.s32.totalorder %s31, 1
        %s702 = scalar_select %p701, %s31, 1
        %p703 = scmp.lt.s32.totalorder %s696, 4
        %s704 = scalar_select %p703, %s696, 4
        %s705 = smul.addr %s702, 5
        %s706 = sadd.s32 %s704, %s705
        %s707 = smul.addr %s706, 4
        %s708 = scalar_lea.vmem %s12, %s707
        %s709 = smul.u32 2, %s32
        %s710 = ssub.s32 5, %s709
        %p711 = scmp.lt.s32.totalorder %s710, 2
        %s712 = scalar_select %p711, %s710, 2
        %s713 = smul.u32 64, %s712
        %s714 = smul.u32 2, %s32
        %s715 = ssub.s32 5, %s714
        %p716 = scmp.lt.s32.totalorder %s715, 2
        %s717 = scalar_select %p716, %s715, 2
        %s718 = smul.u32 64, %s717
        %p720 = scmp.eq.s32.totalorder %s33, 0
        // Predicated region
        $region81: #{block_forward.7} parent=79 // pred_check
          %p721 = pneg %p720
        $region82: #{block_forward.7} parent=79 // pred_check_branch
          %723 = sbr.rel (%p721) target = $region84
        $region83: #{block_forward.7} parent=79 // pred_region
          %v724 = vld [vmem:[%s658] sm:$0xf]
          %v725 = vld [vmem:[%s658 + $0x4] sm:$0xf]
          %v726 = vld [vmem:[%s676] sm:$0xf]
          %v727 = vld [vmem:[%s676 + $0x4] sm:$0xf]
          %v728 = vadd.bf16 %v724, %v726
          %v729 = vadd.bf16 %v725, %v727
          %v730 = vld [vmem:[%s4] sm:$0xf]
          %v731 = vld [vmem:[%s4 + $0x4] sm:$0xf]
          %v732 = vld [vmem:[%s4 + $0x8] sm:$0xf]
          %v733 = vld [vmem:[%s4 + $0xc] sm:$0xf]
          %v734 = vld [vmem:[%s4 + $0x10] sm:$0xf]
          %v735 = vld [vmem:[%s4 + $0x14] sm:$0xf]
          %v736 = vld [vmem:[%s4 + $0x18] sm:$0xf]
          %v737 = vld [vmem:[%s4 + $0x1c] sm:$0xf]
          %v738 = vld [vmem:[%s4 + $0x20] sm:$0xf]
          %v739 = vld [vmem:[%s4 + $0x24] sm:$0xf]
          %v740 = vld [vmem:[%s4 + $0x28] sm:$0xf]
          %v741 = vld [vmem:[%s4 + $0x2c] sm:$0xf]
          %v742 = vld [vmem:[%s4 + $0x30] sm:$0xf]
          %v743 = vld [vmem:[%s4 + $0x34] sm:$0xf]
          %v744 = vld [vmem:[%s4 + $0x38] sm:$0xf]
          %v745 = vld [vmem:[%s4 + $0x3c] sm:$0xf]
          %v746 = vld [vmem:[%s5] sm:$0x1]
          %v748 = vlaneseq
          %v749 = vshrl.u32 %v748, 7
          %v750 = vsub.s32 0, %v749
          %v751 = vrot.slane %v746, %v750
          %v755 = vunpack.c.l.b16 %v728
          %v756 = vunpack.c.l.b16 %v729
          %v757 = vpack.c.b16 %v756, %v755
          %v775 = vunpack.c.l.b16 %v730
          %v776 = vunpack.c.l.b16 %v731
          %v777 = vunpack.c.l.b16 %v732
          %v778 = vunpack.c.l.b16 %v733
          %v779 = vunpack.c.l.b16 %v734
          %v780 = vunpack.c.l.b16 %v735
          %v781 = vunpack.c.l.b16 %v736
          %v782 = vunpack.c.l.b16 %v737
          %v783 = vunpack.c.l.b16 %v738
          %v784 = vunpack.c.l.b16 %v739
          %v785 = vunpack.c.l.b16 %v740
          %v786 = vunpack.c.l.b16 %v741
          %v787 = vunpack.c.l.b16 %v742
          %v788 = vunpack.c.l.b16 %v743
          %v789 = vunpack.c.l.b16 %v744
          %v790 = vunpack.c.l.b16 %v745
          %v791 = vpack.c.b16 %v776, %v775
          %v792 = vpack.c.b16 %v778, %v777
          %v793 = vpack.c.b16 %v780, %v779
          %v794 = vpack.c.b16 %v782, %v781
          %v795 = vpack.c.b16 %v784, %v783
          %v796 = vpack.c.b16 %v786, %v785
          %v797 = vpack.c.b16 %v788, %v787
          %v798 = vpack.c.b16 %v790, %v789
          %807 = vmatprep.subr.bf16.mxu0 0
          %808 = vmatpush1.bf16.msra.mxu0 %v791
          %809 = vmatprep.subr.bf16.mxu0 0
          %810 = vmatpush1.bf16.msra.mxu0 %v792
          %811 = vmatprep.subr.bf16.mxu0 0
          %812 = vmatpush1.bf16.msra.mxu0 %v793
          %813 = vmatprep.subr.bf16.mxu0 0
          %814 = vmatpush1.bf16.msra.mxu0 %v794
          %815 = vmatprep.subr.bf16.mxu0 0
          %816 = vmatpush1.bf16.msra.mxu0 %v795
          %817 = vmatprep.subr.bf16.mxu0 0
          %818 = vmatpush1.bf16.msra.mxu0 %v796
          %819 = vmatprep.subr.bf16.mxu0 0
          %820 = vmatpush1.bf16.msra.mxu0 %v797
          %821 = vmatprep.subr.bf16.mxu0 0
          %822 = vmatpush1.bf16.msra.mxu0 %v798
          %823 = vmatprep.subr.bf16.mxu0 0
          %824 = vmatpush1.bf16.msra.mxu0 0
          %825 = vmatprep.subr.bf16.mxu0 0
          %826 = vmatpush1.bf16.msra.mxu0 0
          %827 = vmatprep.subr.bf16.mxu0 0
          %828 = vmatpush1.bf16.msra.mxu0 0
          %829 = vmatprep.subr.bf16.mxu0 0
          %830 = vmatpush1.bf16.msra.mxu0 0
          %831 = vmatprep.subr.bf16.mxu0 0
          %832 = vmatpush1.bf16.msra.mxu0 0
          %833 = vmatprep.subr.bf16.mxu0 0
          %834 = vmatpush1.bf16.msra.mxu0 0
          %835 = vmatprep.subr.bf16.mxu0 0
          %836 = vmatpush1.bf16.msra.mxu0 0
          %837 = vmatprep.subr.bf16.mxu0 0
          %838 = vmatpush1.bf16.msra.mxu0 0
          %839 = vmatprep.mubr.bf16.mxu0 0
          %840 = vmatmul.mubr.bf16.gmra.mrb[0].mxu0 %v757
          %v841 = vpop.f32.mrb[0].mxu0
          %v842 = vadd.f32 %v751, %v841
          %v843 = vpop.f32.mrb[0].mxu0
          %v844 = vpop.f32.mrb[0].mxu0
          %v845 = vadd.f32 %v751, %v844
          %v846 = vpop.f32.mrb[0].mxu0
          %847 = vdwg.mxu0
          %v848 = vmul.f32 %v842, 0.25
          %v849 = vmul.f32 %v845, 0.25
          %v850 = vpack.c.bf16 %v849, %v848
          %vm851 = vcmask 130048
          %852 = vst.msk [vmem:[#allocation2] sm:$0xff] %vm851, %v850
          %s853 = scalar_lea.vmem %s4, 64
          %v854 = vld [vmem:[%s853] sm:$0xf]
          %v855 = vld [vmem:[%s853 + $0x4] sm:$0xf]
          %v856 = vld [vmem:[%s853 + $0x8] sm:$0xf]
          %v857 = vld [vmem:[%s853 + $0xc] sm:$0xf]
          %v858 = vld [vmem:[%s853 + $0x10] sm:$0xf]
          %v859 = vld [vmem:[%s853 + $0x14] sm:$0xf]
          %v860 = vld [vmem:[%s853 + $0x18] sm:$0xf]
          %v861 = vld [vmem:[%s853 + $0x1c] sm:$0xf]
          %v862 = vld [vmem:[%s853 + $0x20] sm:$0xf]
          %v863 = vld [vmem:[%s853 + $0x24] sm:$0xf]
          %v864 = vld [vmem:[%s853 + $0x28] sm:$0xf]
          %v865 = vld [vmem:[%s853 + $0x2c] sm:$0xf]
          %v866 = vld [vmem:[%s853 + $0x30] sm:$0xf]
          %v867 = vld [vmem:[%s853 + $0x34] sm:$0xf]
          %v868 = vld [vmem:[%s853 + $0x38] sm:$0xf]
          %v869 = vld [vmem:[%s853 + $0x3c] sm:$0xf]
          %s870 = scalar_lea.vmem %s5, 1
          %v871 = vld [vmem:[%s870] sm:$0x1]
          %v873 = vlaneseq
          %v874 = vshrl.u32 %v873, 7
          %v875 = vsub.s32 0, %v874
          %v876 = vrot.slane %v871, %v875
          %v894 = vunpack.c.l.b16 %v854
          %v895 = vunpack.c.l.b16 %v855
          %v896 = vunpack.c.l.b16 %v856
          %v897 = vunpack.c.l.b16 %v857
          %v898 = vunpack.c.l.b16 %v858
          %v899 = vunpack.c.l.b16 %v859
          %v900 = vunpack.c.l.b16 %v860
          %v901 = vunpack.c.l.b16 %v861
          %v902 = vunpack.c.l.b16 %v862
          %v903 = vunpack.c.l.b16 %v863
          %v904 = vunpack.c.l.b16 %v864
          %v905 = vunpack.c.l.b16 %v865
          %v906 = vunpack.c.l.b16 %v866
          %v907 = vunpack.c.l.b16 %v867
          %v908 = vunpack.c.l.b16 %v868
          %v909 = vunpack.c.l.b16 %v869
          %v910 = vpack.c.b16 %v895, %v894
          %v911 = vpack.c.b16 %v897, %v896
          %v912 = vpack.c.b16 %v899, %v898
          %v913 = vpack.c.b16 %v901, %v900
          %v914 = vpack.c.b16 %v903, %v902
          %v915 = vpack.c.b16 %v905, %v904
          %v916 = vpack.c.b16 %v907, %v906
          %v917 = vpack.c.b16 %v909, %v908
          %926 = vmatprep.subr.bf16.mxu0 0
          %927 = vmatpush1.bf16.msra.mxu0 %v910
          %928 = vmatprep.subr.bf16.mxu0 0
          %929 = vmatpush1.bf16.msra.mxu0 %v911
          %930 = vmatprep.subr.bf16.mxu0 0
          %931 = vmatpush1.bf16.msra.mxu0 %v912
          %932 = vmatprep.subr.bf16.mxu0 0
          %933 = vmatpush1.bf16.msra.mxu0 %v913
          %934 = vmatprep.subr.bf16.mxu0 0
          %935 = vmatpush1.bf16.msra.mxu0 %v914
          %936 = vmatprep.subr.bf16.mxu0 0
          %937 = vmatpush1.bf16.msra.mxu0 %v915
          %938 = vmatprep.subr.bf16.mxu0 0
          %939 = vmatpush1.bf16.msra.mxu0 %v916
          %940 = vmatprep.subr.bf16.mxu0 0
          %941 = vmatpush1.bf16.msra.mxu0 %v917
          %942 = vmatprep.subr.bf16.mxu0 0
          %943 = vmatpush1.bf16.msra.mxu0 0
          %944 = vmatprep.subr.bf16.mxu0 0
          %945 = vmatpush1.bf16.msra.mxu0 0
          %946 = vmatprep.subr.bf16.mxu0 0
          %947 = vmatpush1.bf16.msra.mxu0 0
          %948 = vmatprep.subr.bf16.mxu0 0
          %949 = vmatpush1.bf16.msra.mxu0 0
          %950 = vmatprep.subr.bf16.mxu0 0
          %951 = vmatpush1.bf16.msra.mxu0 0
          %952 = vmatprep.subr.bf16.mxu0 0
          %953 = vmatpush1.bf16.msra.mxu0 0
          %954 = vmatprep.subr.bf16.mxu0 0
          %955 = vmatpush1.bf16.msra.mxu0 0
          %956 = vmatprep.subr.bf16.mxu0 0
          %957 = vmatpush1.bf16.msra.mxu0 0
          %958 = vmatprep.mubr.bf16.mxu0 0
          %959 = vmatmul.mubr.bf16.gmra.mrb[0].mxu0 %v757
          %v960 = vpop.f32.mrb[0].mxu0
          %v961 = vadd.f32 %v876, %v960
          %v962 = vpop.f32.mrb[0].mxu0
          %v963 = vpop.f32.mrb[0].mxu0
          %v964 = vadd.f32 %v876, %v963
          %v965 = vpop.f32.mrb[0].mxu0
          %966 = vdwg.mxu0
          %v967 = vmul.f32 %v961, 0.25
          %v968 = vmul.f32 %v964, 0.25
          %v969 = vpack.c.bf16 %v968, %v967
          %s970 = scalar_lea.vmem [#allocation2], 8
          %971 = vst.msk [vmem:[%s970] sm:$0xff] %vm851, %v969
          %s972 = scalar_lea.vmem %s4, 128
          %v973 = vld [vmem:[%s972] sm:$0xf]
          %v974 = vld [vmem:[%s972 + $0x4] sm:$0xf]
          %v975 = vld [vmem:[%s972 + $0x8] sm:$0xf]
          %v976 = vld [vmem:[%s972 + $0xc] sm:$0xf]
          %v977 = vld [vmem:[%s972 + $0x10] sm:$0xf]
          %v978 = vld [vmem:[%s972 + $0x14] sm:$0xf]
          %v979 = vld [vmem:[%s972 + $0x18] sm:$0xf]
          %v980 = vld [vmem:[%s972 + $0x1c] sm:$0xf]
          %v981 = vld [vmem:[%s972 + $0x20] sm:$0xf]
          %v982 = vld [vmem:[%s972 + $0x24] sm:$0xf]
          %v983 = vld [vmem:[%s972 + $0x28] sm:$0xf]
          %v984 = vld [vmem:[%s972 + $0x2c] sm:$0xf]
          %v985 = vld [vmem:[%s972 + $0x30] sm:$0xf]
          %v986 = vld [vmem:[%s972 + $0x34] sm:$0xf]
          %v987 = vld [vmem:[%s972 + $0x38] sm:$0xf]
          %v988 = vld [vmem:[%s972 + $0x3c] sm:$0xf]
          %s989 = scalar_lea.vmem %s5, 2
          %v990 = vld [vmem:[%s989] sm:$0x1]
          %v992 = vlaneseq
          %v993 = vshrl.u32 %v992, 7
          %v994 = vsub.s32 0, %v993
          %v995 = vrot.slane %v990, %v994
          %v1013 = vunpack.c.l.b16 %v973
          %v1014 = vunpack.c.l.b16 %v974
          %v1015 = vunpack.c.l.b16 %v975
          %v1016 = vunpack.c.l.b16 %v976
          %v1017 = vunpack.c.l.b16 %v977
          %v1018 = vunpack.c.l.b16 %v978
          %v1019 = vunpack.c.l.b16 %v979
          %v1020 = vunpack.c.l.b16 %v980
          %v1021 = vunpack.c.l.b16 %v981
          %v1022 = vunpack.c.l.b16 %v982
          %v1023 = vunpack.c.l.b16 %v983
          %v1024 = vunpack.c.l.b16 %v984
          %v1025 = vunpack.c.l.b16 %v985
          %v1026 = vunpack.c.l.b16 %v986
          %v1027 = vunpack.c.l.b16 %v987
          %v1028 = vunpack.c.l.b16 %v988
          %v1029 = vpack.c.b16 %v1014, %v1013
          %v1030 = vpack.c.b16 %v1016, %v1015
          %v1031 = vpack.c.b16 %v1018, %v1017
          %v1032 = vpack.c.b16 %v1020, %v1019
          %v1033 = vpack.c.b16 %v1022, %v1021
          %v1034 = vpack.c.b16 %v1024, %v1023
          %v1035 = vpack.c.b16 %v1026, %v1025
          %v1036 = vpack.c.b16 %v1028, %v1027
          %1045 = vmatprep.subr.bf16.mxu0 0
          %1046 = vmatpush1.bf16.msra.mxu0 %v1029
          %1047 = vmatprep.subr.bf16.mxu0 0
          %1048 = vmatpush1.bf16.msra.mxu0 %v1030
          %1049 = vmatprep.subr.bf16.mxu0 0
          %1050 = vmatpush1.bf16.msra.mxu0 %v1031
          %1051 = vmatprep.subr.bf16.mxu0 0
          %1052 = vmatpush1.bf16.msra.mxu0 %v1032
          %1053 = vmatprep.subr.bf16.mxu0 0
          %1054 = vmatpush1.bf16.msra.mxu0 %v1033
          %1055 = vmatprep.subr.bf16.mxu0 0
          %1056 = vmatpush1.bf16.msra.mxu0 %v1034
          %1057 = vmatprep.subr.bf16.mxu0 0
          %1058 = vmatpush1.bf16.msra.mxu0 %v1035
          %1059 = vmatprep.subr.bf16.mxu0 0
          %1060 = vmatpush1.bf16.msra.mxu0 %v1036
          %1061 = vmatprep.subr.bf16.mxu0 0
          %1062 = vmatpush1.bf16.msra.mxu0 0
          %1063 = vmatprep.subr.bf16.mxu0 0
          %1064 = vmatpush1.bf16.msra.mxu0 0
          %1065 = vmatprep.subr.bf16.mxu0 0
          %1066 = vmatpush1.bf16.msra.mxu0 0
          %1067 = vmatprep.subr.bf16.mxu0 0
          %1068 = vmatpush1.bf16.msra.mxu0 0
          %1069 = vmatprep.subr.bf16.mxu0 0
          %1070 = vmatpush1.bf16.msra.mxu0 0
          %1071 = vmatprep.subr.bf16.mxu0 0
          %1072 = vmatpush1.bf16.msra.mxu0 0
          %1073 = vmatprep.subr.bf16.mxu0 0
          %1074 = vmatpush1.bf16.msra.mxu0 0
          %1075 = vmatprep.subr.bf16.mxu0 0
          %1076 = vmatpush1.bf16.msra.mxu0 0
          %1077 = vmatprep.mubr.bf16.mxu0 0
          %1078 = vmatmul.mubr.bf16.gmra.mrb[0].mxu0 %v757
          %v1079 = vpop.f32.mrb[0].mxu0
          %v1080 = vadd.f32 %v995, %v1079
          %v1081 = vpop.f32.mrb[0].mxu0
          %v1082 = vpop.f32.mrb[0].mxu0
          %v1083 = vadd.f32 %v995, %v1082
          %v1084 = vpop.f32.mrb[0].mxu0
          %1085 = vdwg.mxu0
          %v1086 = vmul.f32 %v1080, 0.25
          %v1087 = vmul.f32 %v1083, 0.25
          %v1088 = vpack.c.bf16 %v1087, %v1086
          %s1089 = scalar_lea.vmem [#allocation2], 16
          %1090 = vst.msk [vmem:[%s1089] sm:$0xff] %vm851, %v1088
          %s1091 = scalar_lea.vmem %s4, 192
          %v1092 = vld [vmem:[%s1091] sm:$0xf]
          %v1093 = vld [vmem:[%s1091 + $0x4] sm:$0xf]
          %v1094 = vld [vmem:[%s1091 + $0x8] sm:$0xf]
          %v1095 = vld [vmem:[%s1091 + $0xc] sm:$0xf]
          %v1096 = vld [vmem:[%s1091 + $0x10] sm:$0xf]
          %v1097 = vld [vmem:[%s1091 + $0x14] sm:$0xf]
          %v1098 = vld [vmem:[%s1091 + $0x18] sm:$0xf]
          %v1099 = vld [vmem:[%s1091 + $0x1c] sm:$0xf]
          %v1100 = vld [vmem:[%s1091 + $0x20] sm:$0xf]
          %v1101 = vld [vmem:[%s1091 + $0x24] sm:$0xf]
          %v1102 = vld [vmem:[%s1091 + $0x28] sm:$0xf]
          %v1103 = vld [vmem:[%s1091 + $0x2c] sm:$0xf]
          %v1104 = vld [vmem:[%s1091 + $0x30] sm:$0xf]
          %v1105 = vld [vmem:[%s1091 + $0x34] sm:$0xf]
          %v1106 = vld [vmem:[%s1091 + $0x38] sm:$0xf]
          %v1107 = vld [vmem:[%s1091 + $0x3c] sm:$0xf]
          %s1108 = scalar_lea.vmem %s5, 3
          %v1109 = vld [vmem:[%s1108] sm:$0x1]
          %v1111 = vlaneseq
          %v1112 = vshrl.u32 %v1111, 7
          %v1113 = vsub.s32 0, %v1112
          %v1114 = vrot.slane %v1109, %v1113
          %v1132 = vunpack.c.l.b16 %v1092
          %v1133 = vunpack.c.l.b16 %v1093
          %v1134 = vunpack.c.l.b16 %v1094
          %v1135 = vunpack.c.l.b16 %v1095
          %v1136 = vunpack.c.l.b16 %v1096
          %v1137 = vunpack.c.l.b16 %v1097
          %v1138 = vunpack.c.l.b16 %v1098
          %v1139 = vunpack.c.l.b16 %v1099
          %v1140 = vunpack.c.l.b16 %v1100
          %v1141 = vunpack.c.l.b16 %v1101
          %v1142 = vunpack.c.l.b16 %v1102
          %v1143 = vunpack.c.l.b16 %v1103
          %v1144 = vunpack.c.l.b16 %v1104
          %v1145 = vunpack.c.l.b16 %v1105
          %v1146 = vunpack.c.l.b16 %v1106
          %v1147 = vunpack.c.l.b16 %v1107
          %v1148 = vpack.c.b16 %v1133, %v1132
          %v1149 = vpack.c.b16 %v1135, %v1134
          %v1150 = vpack.c.b16 %v1137, %v1136
          %v1151 = vpack.c.b16 %v1139, %v1138
          %v1152 = vpack.c.b16 %v1141, %v1140
          %v1153 = vpack.c.b16 %v1143, %v1142
          %v1154 = vpack.c.b16 %v1145, %v1144
          %v1155 = vpack.c.b16 %v1147, %v1146
          %1164 = vmatprep.subr.bf16.mxu0 0
          %1165 = vmatpush1.bf16.msra.mxu0 %v1148
          %1166 = vmatprep.subr.bf16.mxu0 0
          %1167 = vmatpush1.bf16.msra.mxu0 %v1149
          %1168 = vmatprep.subr.bf16.mxu0 0
          %1169 = vmatpush1.bf16.msra.mxu0 %v1150
          %1170 = vmatprep.subr.bf16.mxu0 0
          %1171 = vmatpush1.bf16.msra.mxu0 %v1151
          %1172 = vmatprep.subr.bf16.mxu0 0
          %1173 = vmatpush1.bf16.msra.mxu0 %v1152
          %1174 = vmatprep.subr.bf16.mxu0 0
          %1175 = vmatpush1.bf16.msra.mxu0 %v1153
          %1176 = vmatprep.subr.bf16.mxu0 0
          %1177 = vmatpush1.bf16.msra.mxu0 %v1154
          %1178 = vmatprep.subr.bf16.mxu0 0
          %1179 = vmatpush1.bf16.msra.mxu0 %v1155
          %1180 = vmatprep.subr.bf16.mxu0 0
          %1181 = vmatpush1.bf16.msra.mxu0 0
          %1182 = vmatprep.subr.bf16.mxu0 0
          %1183 = vmatpush1.bf16.msra.mxu0 0
          %1184 = vmatprep.subr.bf16.mxu0 0
          %1185 = vmatpush1.bf16.msra.mxu0 0
          %1186 = vmatprep.subr.bf16.mxu0 0
          %1187 = vmatpush1.bf16.msra.mxu0 0
          %1188 = vmatprep.subr.bf16.mxu0 0
          %1189 = vmatpush1.bf16.msra.mxu0 0
          %1190 = vmatprep.subr.bf16.mxu0 0
          %1191 = vmatpush1.bf16.msra.mxu0 0
          %1192 = vmatprep.subr.bf16.mxu0 0
          %1193 = vmatpush1.bf16.msra.mxu0 0
          %1194 = vmatprep.subr.bf16.mxu0 0
          %1195 = vmatpush1.bf16.msra.mxu0 0
          %1196 = vmatprep.mubr.bf16.mxu0 0
          %1197 = vmatmul.mubr.bf16.gmra.mrb[0].mxu0 %v757
          %v1198 = vpop.f32.mrb[0].mxu0
          %v1199 = vadd.f32 %v1114, %v1198
          %v1200 = vpop.f32.mrb[0].mxu0
          %v1201 = vpop.f32.mrb[0].mxu0
          %v1202 = vadd.f32 %v1114, %v1201
          %v1203 = vpop.f32.mrb[0].mxu0
          %1204 = vdwg.mxu0
          %v1205 = vmul.f32 %v1199, 0.25
          %v1206 = vmul.f32 %v1202, 0.25
          %v1207 = vpack.c.bf16 %v1206, %v1205
          %s1208 = scalar_lea.vmem [#allocation2], 24
          %1209 = vst.msk [vmem:[%s1208] sm:$0xff] %vm851, %v1207
          %vm1210 = vcmask 7168
          %1211 = vst.msk [vmem:[#allocation3] sm:$0xff] %vm1210, -inf
          %1212 = vst.msk [vmem:[#allocation3 + $0x8] sm:$0xff] %vm1210, -inf
          %1213 = vst.msk [vmem:[#allocation3 + $0x10] sm:$0xff] %vm1210, -inf
          %1214 = vst.msk [vmem:[#allocation3 + $0x18] sm:$0xff] %vm1210, -inf
          %1215 = vst.msk [vmem:[#allocation3 + $0x20] sm:$0xff] %vm1210, -inf
          %1216 = vst.msk [vmem:[#allocation3 + $0x28] sm:$0xff] %vm1210, -inf
          %1217 = vst.msk [vmem:[#allocation3 + $0x30] sm:$0xff] %vm1210, -inf
          %1218 = vst.msk [vmem:[#allocation3 + $0x38] sm:$0xff] %vm1210, -inf
          %1219 = vst.msk [vmem:[#allocation4] sm:$0xff] %vm1210, 0.0
          %1220 = vst.msk [vmem:[#allocation4 + $0x8] sm:$0xff] %vm1210, 0.0
          %1221 = vst.msk [vmem:[#allocation4 + $0x10] sm:$0xff] %vm1210, 0.0
          %1222 = vst.msk [vmem:[#allocation4 + $0x18] sm:$0xff] %vm1210, 0.0
          %1223 = vst.msk [vmem:[#allocation4 + $0x20] sm:$0xff] %vm1210, 0.0
          %1224 = vst.msk [vmem:[#allocation4 + $0x28] sm:$0xff] %vm1210, 0.0
          %1225 = vst.msk [vmem:[#allocation4 + $0x30] sm:$0xff] %vm1210, 0.0
          %1226 = vst.msk [vmem:[#allocation4 + $0x38] sm:$0xff] %vm1210, 0.0
          %1227 = vst.msk [vmem:[#allocation5] sm:$0xff] %vm851, 0.0
          %1228 = vst.msk [vmem:[#allocation5 + $0x8] sm:$0xff] %vm851, 0.0
          %1229 = vst.msk [vmem:[#allocation5 + $0x10] sm:$0xff] %vm851, 0.0
          %1230 = vst.msk [vmem:[#allocation5 + $0x18] sm:$0xff] %vm851, 0.0
          %1231 = vst.msk [vmem:[#allocation5 + $0x20] sm:$0xff] %vm851, 0.0
          %1232 = vst.msk [vmem:[#allocation5 + $0x28] sm:$0xff] %vm851, 0.0
          %1233 = vst.msk [vmem:[#allocation5 + $0x30] sm:$0xff] %vm851, 0.0
          %1234 = vst.msk [vmem:[#allocation5 + $0x38] sm:$0xff] %vm851, 0.0
        $region84: #{block_forward.7} parent=79 // pred_fallthru
          _
        %v1235 = vld [vmem:[%s688] sm:$0xf]
        %v1236 = vld [vmem:[%s695] sm:$0xf]
        %v1237 = vadd.bf16 %v1235, %v1236
        %v1238 = vld [vmem:[%s6] sm:$0xf]
        %v1239 = vld [vmem:[%s6 + $0x4] sm:$0xf]
        %v1240 = vld [vmem:[%s6 + $0x8] sm:$0xf]
        %v1241 = vld [vmem:[%s6 + $0xc] sm:$0xf]
        %v1242 = vld [vmem:[%s6 + $0x10] sm:$0xf]
        %v1243 = vld [vmem:[%s6 + $0x14] sm:$0xf]
        %v1244 = vld [vmem:[%s6 + $0x18] sm:$0xf]
        %v1245 = vld [vmem:[%s6 + $0x1c] sm:$0xf]
        %v1246 = vld [vmem:[%s7] sm:$0xff]
        %v1247 = vld [vmem:[%s7 + $0x8] sm:$0xff]
        %v1248 = vld [vmem:[%s7 + $0x10] sm:$0xff]
        %v1249 = vld [vmem:[%s7 + $0x18] sm:$0xff]
        %v1250 = vld [vmem:[%s7 + $0x20] sm:$0xff]
        %v1251 = vld [vmem:[%s7 + $0x28] sm:$0xff]
        %v1252 = vld [vmem:[%s7 + $0x30] sm:$0xff]
        %v1253 = vld [vmem:[%s7 + $0x38] sm:$0xff]
        %1255 = vset.pattern.permute.xlu0 0
        %1256 = vperm.xlu0 %1255, %v1246
        %v1257 = vpop.permute.xlu0 %1256
        %1260 = vset.pattern.permute.xlu0 0
        %1261 = vperm.xlu0 %1260, %v1247
        %v1262 = vpop.permute.xlu0 %1261
        %1265 = vset.pattern.permute.xlu0 0
        %1266 = vperm.xlu0 %1265, %v1248
        %v1267 = vpop.permute.xlu0 %1266
        %1270 = vset.pattern.permute.xlu0 0
        %1271 = vperm.xlu0 %1270, %v1249
        %v1272 = vpop.permute.xlu0 %1271
        %1275 = vset.pattern.permute.xlu0 0
        %1276 = vperm.xlu0 %1275, %v1250
        %v1277 = vpop.permute.xlu0 %1276
        %1280 = vset.pattern.permute.xlu0 0
        %1281 = vperm.xlu0 %1280, %v1251
        %v1282 = vpop.permute.xlu0 %1281
        %1285 = vset.pattern.permute.xlu0 0
        %1286 = vperm.xlu0 %1285, %v1252
        %v1287 = vpop.permute.xlu0 %1286
        %1290 = vset.pattern.permute.xlu0 0
        %1291 = vperm.xlu0 %1290, %v1253
        %v1292 = vpop.permute.xlu0 %1291
        %v1302 = vunpack.c.l.b16 %v1238
        %v1303 = vunpack.c.l.b16 %v1239
        %v1304 = vunpack.c.l.b16 %v1240
        %v1305 = vunpack.c.l.b16 %v1241
        %v1306 = vunpack.c.l.b16 %v1242
        %v1307 = vunpack.c.l.b16 %v1243
        %v1308 = vunpack.c.l.b16 %v1244
        %v1309 = vunpack.c.l.b16 %v1245
        %v1310 = vpack.c.b16 %v1303, %v1302
        %v1311 = vpack.c.b16 %v1305, %v1304
        %v1312 = vpack.c.b16 %v1307, %v1306
        %v1313 = vpack.c.b16 %v1309, %v1308
        %1318 = vmatprep.subr.bf16.mxu0 0
        %1319 = vmatpush1.bf16.xpose.msra.mxu0 %v1237
        %1320 = vmatprep.subr.bf16.mxu0 0
        %1321 = vmatpush1.bf16.xpose.msra.mxu0 0
        %1322 = vmatprep.subr.bf16.mxu0 0
        %1323 = vmatpush1.bf16.xpose.msra.mxu0 0
        %1324 = vmatprep.subr.bf16.mxu0 0
        %1325 = vmatpush1.bf16.xpose.msra.mxu0 0
        %1326 = vmatprep.subr.bf16.mxu0 0
        %1327 = vmatpush1.bf16.xpose.msra.mxu0 0
        %1328 = vmatprep.subr.bf16.mxu0 0
        %1329 = vmatpush1.bf16.xpose.msra.mxu0 0
        %1330 = vmatprep.subr.bf16.mxu0 0
        %1331 = vmatpush1.bf16.xpose.msra.mxu0 0
        %1332 = vmatprep.subr.bf16.mxu0 0
        %1333 = vmatpush1.bf16.xpose.msra.mxu0 0
        %1334 = vmatprep.subr.bf16.mxu0 0
        %1335 = vmatpush1.bf16.xpose.msra.mxu0 0
        %1336 = vmatprep.subr.bf16.mxu0 0
        %1337 = vmatpush1.bf16.xpose.msra.mxu0 0
        %1338 = vmatprep.subr.bf16.mxu0 0
        %1339 = vmatpush1.bf16.xpose.msra.mxu0 0
        %1340 = vmatprep.subr.bf16.mxu0 0
        %1341 = vmatpush1.bf16.xpose.msra.mxu0 0
        %1342 = vmatprep.subr.bf16.mxu0 0
        %1343 = vmatpush1.bf16.xpose.msra.mxu0 0
        %1344 = vmatprep.subr.bf16.mxu0 0
        %1345 = vmatpush1.bf16.xpose.msra.mxu0 0
        %1346 = vmatprep.subr.bf16.mxu0 0
        %1347 = vmatpush1.bf16.xpose.msra.mxu0 0
        %1348 = vmatprep.subr.bf16.mxu0 0
        %1349 = vmatpush1.bf16.xpose.msra.mxu0 0
        %1350 = vmatprep.mubr.bf16.mxu0 0
        %1351 = vmatmul.mubr.bf16.gmra.mrb[0].mxu0 %v1310
        %v1352 = vpop.f32.mrb[0].mxu0
        %v1353 = vadd.f32 %v1257, %v1352
        %v1354 = vpop.f32.mrb[0].mxu0
        %v1355 = vpop.f32.mrb[0].mxu0
        %v1356 = vadd.f32 %v1262, %v1355
        %v1357 = vpop.f32.mrb[0].mxu0
        %1358 = vmatprep.mubr.bf16.mxu0 0
        %1359 = vmatmul.mubr.bf16.gmra.mrb[0].mxu0 %v1311
        %v1360 = vpop.f32.mrb[0].mxu0
        %v1361 = vadd.f32 %v1267, %v1360
        %v1362 = vpop.f32.mrb[0].mxu0
        %v1363 = vpop.f32.mrb[0].mxu0
        %v1364 = vadd.f32 %v1272, %v1363
        %v1365 = vpop.f32.mrb[0].mxu0
        %1366 = vmatprep.mubr.bf16.mxu0 0
        %1367 = vmatmul.mubr.bf16.gmra.mrb[0].mxu0 %v1312
        %v1368 = vpop.f32.mrb[0].mxu0
        %v1369 = vadd.f32 %v1277, %v1368
        %v1370 = vpop.f32.mrb[0].mxu0
        %v1371 = vpop.f32.mrb[0].mxu0
        %v1372 = vadd.f32 %v1282, %v1371
        %v1373 = vpop.f32.mrb[0].mxu0
        %1374 = vmatprep.mubr.bf16.mxu0 0
        %1375 = vmatmul.mubr.bf16.gmra.mrb[0].mxu0 %v1313
        %v1376 = vpop.f32.mrb[0].mxu0
        %v1377 = vadd.f32 %v1287, %v1376
        %v1378 = vpop.f32.mrb[0].mxu0
        %v1379 = vpop.f32.mrb[0].mxu0
        %v1380 = vadd.f32 %v1292, %v1379
        %v1381 = vpop.f32.mrb[0].mxu0
        %1382 = vdwg.mxu0
        %v1383 = vld [vmem:[%s8] sm:$0xf]
        %v1384 = vld [vmem:[%s8 + $0x4] sm:$0xf]
        %v1385 = vld [vmem:[%s8 + $0x8] sm:$0xf]
        %v1386 = vld [vmem:[%s8 + $0xc] sm:$0xf]
        %v1387 = vld [vmem:[%s8 + $0x10] sm:$0xf]
        %v1388 = vld [vmem:[%s8 + $0x14] sm:$0xf]
        %v1389 = vld [vmem:[%s8 + $0x18] sm:$0xf]
        %v1390 = vld [vmem:[%s8 + $0x1c] sm:$0xf]
        %v1391 = vld [vmem:[%s9] sm:$0xff]
        %v1392 = vld [vmem:[%s9 + $0x8] sm:$0xff]
        %v1393 = vld [vmem:[%s9 + $0x10] sm:$0xff]
        %v1394 = vld [vmem:[%s9 + $0x18] sm:$0xff]
        %v1395 = vld [vmem:[%s9 + $0x20] sm:$0xff]
        %v1396 = vld [vmem:[%s9 + $0x28] sm:$0xff]
        %v1397 = vld [vmem:[%s9 + $0x30] sm:$0xff]
        %v1398 = vld [vmem:[%s9 + $0x38] sm:$0xff]
        %1400 = vset.pattern.permute.xlu0 0
        %1401 = vperm.xlu0 %1400, %v1391
        %v1402 = vpop.permute.xlu0 %1401
        %1405 = vset.pattern.permute.xlu0 0
        %1406 = vperm.xlu0 %1405, %v1392
        %v1407 = vpop.permute.xlu0 %1406
        %1410 = vset.pattern.permute.xlu0 0
        %1411 = vperm.xlu0 %1410, %v1393
        %v1412 = vpop.permute.xlu0 %1411
        %1415 = vset.pattern.permute.xlu0 0
        %1416 = vperm.xlu0 %1415, %v1394
        %v1417 = vpop.permute.xlu0 %1416
        %1420 = vset.pattern.permute.xlu0 0
        %1421 = vperm.xlu0 %1420, %v1395
        %v1422 = vpop.permute.xlu0 %1421
        %1425 = vset.pattern.permute.xlu0 0
        %1426 = vperm.xlu0 %1425, %v1396
        %v1427 = vpop.permute.xlu0 %1426
        %1430 = vset.pattern.permute.xlu0 0
        %1431 = vperm.xlu0 %1430, %v1397
        %v1432 = vpop.permute.xlu0 %1431
        %1435 = vset.pattern.permute.xlu0 0
        %1436 = vperm.xlu0 %1435, %v1398
        %v1437 = vpop.permute.xlu0 %1436
        %v1447 = vunpack.c.l.b16 %v1383
        %v1448 = vunpack.c.l.b16 %v1384
        %v1449 = vunpack.c.l.b16 %v1385
        %v1450 = vunpack.c.l.b16 %v1386
        %v1451 = vunpack.c.l.b16 %v1387
        %v1452 = vunpack.c.l.b16 %v1388
        %v1453 = vunpack.c.l.b16 %v1389
        %v1454 = vunpack.c.l.b16 %v1390
        %v1455 = vpack.c.b16 %v1448, %v1447
        %v1456 = vpack.c.b16 %v1450, %v1449
        %v1457 = vpack.c.b16 %v1452, %v1451
        %v1458 = vpack.c.b16 %v1454, %v1453
        %1463 = vmatprep.subr.bf16.mxu0 0
        %1464 = vmatpush1.bf16.xpose.msra.mxu0 %v1235
        %1465 = vmatprep.subr.bf16.mxu0 0
        %1466 = vmatpush1.bf16.xpose.msra.mxu0 0
        %1467 = vmatprep.subr.bf16.mxu0 0
        %1468 = vmatpush1.bf16.xpose.msra.mxu0 0
        %1469 = vmatprep.subr.bf16.mxu0 0
        %1470 = vmatpush1.bf16.xpose.msra.mxu0 0
        %1471 = vmatprep.subr.bf16.mxu0 0
        %1472 = vmatpush1.bf16.xpose.msra.mxu0 0
        %1473 = vmatprep.subr.bf16.mxu0 0
        %1474 = vmatpush1.bf16.xpose.msra.mxu0 0
        %1475 = vmatprep.subr.bf16.mxu0 0
        %1476 = vmatpush1.bf16.xpose.msra.mxu0 0
        %1477 = vmatprep.subr.bf16.mxu0 0
        %1478 = vmatpush1.bf16.xpose.msra.mxu0 0
        %1479 = vmatprep.subr.bf16.mxu0 0
        %1480 = vmatpush1.bf16.xpose.msra.mxu0 0
        %1481 = vmatprep.subr.bf16.mxu0 0
        %1482 = vmatpush1.bf16.xpose.msra.mxu0 0
        %1483 = vmatprep.subr.bf16.mxu0 0
        %1484 = vmatpush1.bf16.xpose.msra.mxu0 0
        %1485 = vmatprep.subr.bf16.mxu0 0
        %1486 = vmatpush1.bf16.xpose.msra.mxu0 0
        %1487 = vmatprep.subr.bf16.mxu0 0
        %1488 = vmatpush1.bf16.xpose.msra.mxu0 0
        %1489 = vmatprep.subr.bf16.mxu0 0
        %1490 = vmatpush1.bf16.xpose.msra.mxu0 0
        %1491 = vmatprep.subr.bf16.mxu0 0
        %1492 = vmatpush1.bf16.xpose.msra.mxu0 0
        %1493 = vmatprep.subr.bf16.mxu0 0
        %1494 = vmatpush1.bf16.xpose.msra.mxu0 0
        %1495 = vmatprep.mubr.bf16.mxu0 0
        %1496 = vmatmul.mubr.bf16.gmra.mrb[0].mxu0 %v1455
        %v1497 = vpop.f32.mrb[0].mxu0
        %v1498 = vadd.f32 %v1402, %v1497
        %v1499 = vpop.f32.mrb[0].mxu0
        %v1500 = vpop.f32.mrb[0].mxu0
        %v1501 = vadd.f32 %v1407, %v1500
        %v1502 = vpop.f32.mrb[0].mxu0
        %1503 = vmatprep.mubr.bf16.mxu0 0
        %1504 = vmatmul.mubr.bf16.gmra.mrb[0].mxu0 %v1456
        %v1505 = vpop.f32.mrb[0].mxu0
        %v1506 = vadd.f32 %v1412, %v1505
        %v1507 = vpop.f32.mrb[0].mxu0
        %v1508 = vpop.f32.mrb[0].mxu0
        %v1509 = vadd.f32 %v1417, %v1508
        %v1510 = vpop.f32.mrb[0].mxu0
        %1511 = vmatprep.mubr.bf16.mxu0 0
        %1512 = vmatmul.mubr.bf16.gmra.mrb[0].mxu0 %v1457
        %v1513 = vpop.f32.mrb[0].mxu0
        %v1514 = vadd.f32 %v1422, %v1513
        %v1515 = vpop.f32.mrb[0].mxu0
        %v1516 = vpop.f32.mrb[0].mxu0
        %v1517 = vadd.f32 %v1427, %v1516
        %v1518 = vpop.f32.mrb[0].mxu0
        %1519 = vmatprep.mubr.bf16.mxu0 0
        %1520 = vmatmul.mubr.bf16.gmra.mrb[0].mxu0 %v1458
        %v1521 = vpop.f32.mrb[0].mxu0
        %v1522 = vadd.f32 %v1432, %v1521
        %v1523 = vpop.f32.mrb[0].mxu0
        %v1524 = vpop.f32.mrb[0].mxu0
        %v1525 = vadd.f32 %v1437, %v1524
        %v1526 = vpop.f32.mrb[0].mxu0
        %1527 = vdwg.mxu0
        %v1528 = vpack.c.bf16 %v1356, %v1353
        %v1529 = vpack.c.bf16 %v1364, %v1361
        %v1530 = vpack.c.bf16 %v1372, %v1369
        %v1531 = vpack.c.bf16 %v1380, %v1377
        %v1532 = vpack.c.bf16 %v1501, %v1498
        %v1533 = vpack.c.bf16 %v1509, %v1506
        %v1534 = vpack.c.bf16 %v1517, %v1514
        %v1535 = vpack.c.bf16 %v1525, %v1522
        %v1536 = vld [vmem:[#allocation2] sm:$0xff]
        %v1537 = vld [vmem:[#allocation2 + $0x8] sm:$0xff]
        %v1538 = vld [vmem:[#allocation2 + $0x10] sm:$0xff]
        %v1539 = vld [vmem:[#allocation2 + $0x18] sm:$0xff]
        %vm1540 = vcmask 130048
        %v1542 = vsel %vm1540, %v1536, 0
        %1544 = vmatprep.subr.bf16.mxu0 0
        %1545 = vmatpush1.bf16.msra.mxu0 %v1528
        %1546 = vmatprep.subr.bf16.mxu0 0
        %1547 = vmatpush1.bf16.msra.mxu0 0
        %1548 = vmatprep.subr.bf16.mxu0 0
        %1549 = vmatpush1.bf16.msra.mxu0 0
        %1550 = vmatprep.subr.bf16.mxu0 0
        %1551 = vmatpush1.bf16.msra.mxu0 0
        %1552 = vmatprep.subr.bf16.mxu0 0
        %1553 = vmatpush1.bf16.msra.mxu0 0
        %1554 = vmatprep.subr.bf16.mxu0 0
        %1555 = vmatpush1.bf16.msra.mxu0 0
        %1556 = vmatprep.subr.bf16.mxu0 0
        %1557 = vmatpush1.bf16.msra.mxu0 0
        %1558 = vmatprep.subr.bf16.mxu0 0
        %1559 = vmatpush1.bf16.msra.mxu0 0
        %1560 = vmatprep.subr.bf16.mxu0 0
        %1561 = vmatpush1.bf16.msra.mxu0 0
        %1562 = vmatprep.subr.bf16.mxu0 0
        %1563 = vmatpush1.bf16.msra.mxu0 0
        %1564 = vmatprep.subr.bf16.mxu0 0
        %1565 = vmatpush1.bf16.msra.mxu0 0
        %1566 = vmatprep.subr.bf16.mxu0 0
        %1567 = vmatpush1.bf16.msra.mxu0 0
        %1568 = vmatprep.subr.bf16.mxu0 0
        %1569 = vmatpush1.bf16.msra.mxu0 0
        %1570 = vmatprep.subr.bf16.mxu0 0
        %1571 = vmatpush1.bf16.msra.mxu0 0
        %1572 = vmatprep.subr.bf16.mxu0 0
        %1573 = vmatpush1.bf16.msra.mxu0 0
        %1574 = vmatprep.subr.bf16.mxu0 0
        %1575 = vmatpush1.bf16.msra.mxu0 0
        %1576 = vmatprep.mubr.bf16.mxu0 0
        %1577 = vmatmul.mubr.bf16.gmra.mrb[0].mxu0 %v1542
        %v1578 = vpop.f32.mrb[0].mxu0
        %v1579 = vadd.f32 0.0, %v1578
        %v1580 = vpop.f32.mrb[0].mxu0
        %v1581 = vpop.f32.mrb[0].mxu0
        %v1582 = vadd.f32 0.0, %v1581
        %v1583 = vpop.f32.mrb[0].mxu0
        %1584 = vdwg.mxu0
        %v1586 = vsel %vm1540, %v1537, 0
        %1588 = vmatprep.subr.bf16.mxu0 0
        %1589 = vmatpush1.bf16.msra.mxu0 %v1529
        %1590 = vmatprep.subr.bf16.mxu0 0
        %1591 = vmatpush1.bf16.msra.mxu0 0
        %1592 = vmatprep.subr.bf16.mxu0 0
        %1593 = vmatpush1.bf16.msra.mxu0 0
        %1594 = vmatprep.subr.bf16.mxu0 0
        %1595 = vmatpush1.bf16.msra.mxu0 0
        %1596 = vmatprep.subr.bf16.mxu0 0
        %1597 = vmatpush1.bf16.msra.mxu0 0
        %1598 = vmatprep.subr.bf16.mxu0 0
        %1599 = vmatpush1.bf16.msra.mxu0 0
        %1600 = vmatprep.subr.bf16.mxu0 0
        %1601 = vmatpush1.bf16.msra.mxu0 0
        %1602 = vmatprep.subr.bf16.mxu0 0
        %1603 = vmatpush1.bf16.msra.mxu0 0
        %1604 = vmatprep.subr.bf16.mxu0 0
        %1605 = vmatpush1.bf16.msra.mxu0 0
        %1606 = vmatprep.subr.bf16.mxu0 0
        %1607 = vmatpush1.bf16.msra.mxu0 0
        %1608 = vmatprep.subr.bf16.mxu0 0
        %1609 = vmatpush1.bf16.msra.mxu0 0
        %1610 = vmatprep.subr.bf16.mxu0 0
        %1611 = vmatpush1.bf16.msra.mxu0 0
        %1612 = vmatprep.subr.bf16.mxu0 0
        %1613 = vmatpush1.bf16.msra.mxu0 0
        %1614 = vmatprep.subr.bf16.mxu0 0
        %1615 = vmatpush1.bf16.msra.mxu0 0
        %1616 = vmatprep.subr.bf16.mxu0 0
        %1617 = vmatpush1.bf16.msra.mxu0 0
        %1618 = vmatprep.subr.bf16.mxu0 0
        %1619 = vmatpush1.bf16.msra.mxu0 0
        %1620 = vmatprep.mubr.bf16.mxu0 0
        %1621 = vmatmul.mubr.bf16.gmra.mrb[0].mxu0 %v1586
        %v1622 = vpop.f32.mrb[0].mxu0
        %v1623 = vadd.f32 0.0, %v1622
        %v1624 = vpop.f32.mrb[0].mxu0
        %v1625 = vpop.f32.mrb[0].mxu0
        %v1626 = vadd.f32 0.0, %v1625
        %v1627 = vpop.f32.mrb[0].mxu0
        %1628 = vdwg.mxu0
        %v1630 = vsel %vm1540, %v1538, 0
        %1632 = vmatprep.subr.bf16.mxu0 0
        %1633 = vmatpush1.bf16.msra.mxu0 %v1530
        %1634 = vmatprep.subr.bf16.mxu0 0
        %1635 = vmatpush1.bf16.msra.mxu0 0
        %1636 = vmatprep.subr.bf16.mxu0 0
        %1637 = vmatpush1.bf16.msra.mxu0 0
        %1638 = vmatprep.subr.bf16.mxu0 0
        %1639 = vmatpush1.bf16.msra.mxu0 0
        %1640 = vmatprep.subr.bf16.mxu0 0
        %1641 = vmatpush1.bf16.msra.mxu0 0
        %1642 = vmatprep.subr.bf16.mxu0 0
        %1643 = vmatpush1.bf16.msra.mxu0 0
        %1644 = vmatprep.subr.bf16.mxu0 0
        %1645 = vmatpush1.bf16.msra.mxu0 0
        %1646 = vmatprep.subr.bf16.mxu0 0
        %1647 = vmatpush1.bf16.msra.mxu0 0
        %1648 = vmatprep.subr.bf16.mxu0 0
        %1649 = vmatpush1.bf16.msra.mxu0 0
        %1650 = vmatprep.subr.bf16.mxu0 0
        %1651 = vmatpush1.bf16.msra.mxu0 0
        %1652 = vmatprep.subr.bf16.mxu0 0
        %1653 = vmatpush1.bf16.msra.mxu0 0
        %1654 = vmatprep.subr.bf16.mxu0 0
        %1655 = vmatpush1.bf16.msra.mxu0 0
        %1656 = vmatprep.subr.bf16.mxu0 0
        %1657 = vmatpush1.bf16.msra.mxu0 0
        %1658 = vmatprep.subr.bf16.mxu0 0
        %1659 = vmatpush1.bf16.msra.mxu0 0
        %1660 = vmatprep.subr.bf16.mxu0 0
        %1661 = vmatpush1.bf16.msra.mxu0 0
        %1662 = vmatprep.subr.bf16.mxu0 0
        %1663 = vmatpush1.bf16.msra.mxu0 0
        %1664 = vmatprep.mubr.bf16.mxu0 0
        %1665 = vmatmul.mubr.bf16.gmra.mrb[0].mxu0 %v1630
        %v1666 = vpop.f32.mrb[0].mxu0
        %v1667 = vadd.f32 0.0, %v1666
        %v1668 = vpop.f32.mrb[0].mxu0
        %v1669 = vpop.f32.mrb[0].mxu0
        %v1670 = vadd.f32 0.0, %v1669
        %v1671 = vpop.f32.mrb[0].mxu0
        %1672 = vdwg.mxu0
        %v1674 = vsel %vm1540, %v1539, 0
        %1676 = vmatprep.subr.bf16.mxu0 0
        %1677 = vmatpush1.bf16.msra.mxu0 %v1531
        %1678 = vmatprep.subr.bf16.mxu0 0
        %1679 = vmatpush1.bf16.msra.mxu0 0
        %1680 = vmatprep.subr.bf16.mxu0 0
        %1681 = vmatpush1.bf16.msra.mxu0 0
        %1682 = vmatprep.subr.bf16.mxu0 0
        %1683 = vmatpush1.bf16.msra.mxu0 0
        %1684 = vmatprep.subr.bf16.mxu0 0
        %1685 = vmatpush1.bf16.msra.mxu0 0
        %1686 = vmatprep.subr.bf16.mxu0 0
        %1687 = vmatpush1.bf16.msra.mxu0 0
        %1688 = vmatprep.subr.bf16.mxu0 0
        %1689 = vmatpush1.bf16.msra.mxu0 0
        %1690 = vmatprep.subr.bf16.mxu0 0
        %1691 = vmatpush1.bf16.msra.mxu0 0
        %1692 = vmatprep.subr.bf16.mxu0 0
        %1693 = vmatpush1.bf16.msra.mxu0 0
        %1694 = vmatprep.subr.bf16.mxu0 0
        %1695 = vmatpush1.bf16.msra.mxu0 0
        %1696 = vmatprep.subr.bf16.mxu0 0
        %1697 = vmatpush1.bf16.msra.mxu0 0
        %1698 = vmatprep.subr.bf16.mxu0 0
        %1699 = vmatpush1.bf16.msra.mxu0 0
        %1700 = vmatprep.subr.bf16.mxu0 0
        %1701 = vmatpush1.bf16.msra.mxu0 0
        %1702 = vmatprep.subr.bf16.mxu0 0
        %1703 = vmatpush1.bf16.msra.mxu0 0
        %1704 = vmatprep.subr.bf16.mxu0 0
        %1705 = vmatpush1.bf16.msra.mxu0 0
        %1706 = vmatprep.subr.bf16.mxu0 0
        %1707 = vmatpush1.bf16.msra.mxu0 0
        %1708 = vmatprep.mubr.bf16.mxu0 0
        %1709 = vmatmul.mubr.bf16.gmra.mrb[0].mxu0 %v1674
        %v1710 = vpop.f32.mrb[0].mxu0
        %v1711 = vadd.f32 0.0, %v1710
        %v1712 = vpop.f32.mrb[0].mxu0
        %v1713 = vpop.f32.mrb[0].mxu0
        %v1714 = vadd.f32 0.0, %v1713
        %v1715 = vpop.f32.mrb[0].mxu0
        %1716 = vdwg.mxu0
        %v1717 = vld [vmem:[#allocation3] sm:$0xff]
        %v1718 = vld [vmem:[#allocation3 + $0x8] sm:$0xff]
        %v1719 = vld [vmem:[#allocation3 + $0x10] sm:$0xff]
        %v1720 = vld [vmem:[#allocation3 + $0x18] sm:$0xff]
        %v1721 = vld [vmem:[#allocation3 + $0x20] sm:$0xff]
        %v1722 = vld [vmem:[#allocation3 + $0x28] sm:$0xff]
        %v1723 = vld [vmem:[#allocation3 + $0x30] sm:$0xff]
        %v1724 = vld [vmem:[#allocation3 + $0x38] sm:$0xff]
        %vm1725 = vcmask 64512
        %v1726 = vsel %vm1725, %v1579, -inf
        %1727 = vmax.xlane.f32.xlu0 %v1726
        %v1728 = vpop.xlane.xlu0 %1727
        %v1729 = vsel %vm1725, %v1582, -inf
        %1730 = vmax.xlane.f32.xlu0 %v1729
        %v1731 = vpop.xlane.xlu0 %1730
        %v1732 = vsel %vm1725, %v1623, -inf
        %1733 = vmax.xlane.f32.xlu0 %v1732
        %v1734 = vpop.xlane.xlu0 %1733
        %v1735 = vsel %vm1725, %v1626, -inf
        %1736 = vmax.xlane.f32.xlu0 %v1735
        %v1737 = vpop.xlane.xlu0 %1736
        %v1738 = vsel %vm1725, %v1667, -inf
        %1739 = vmax.xlane.f32.xlu0 %v1738
        %v1740 = vpop.xlane.xlu0 %1739
        %v1741 = vsel %vm1725, %v1670, -inf
        %1742 = vmax.xlane.f32.xlu0 %v1741
        %v1743 = vpop.xlane.xlu0 %1742
        %v1744 = vsel %vm1725, %v1711, -inf
        %1745 = vmax.xlane.f32.xlu0 %v1744
        %v1746 = vpop.xlane.xlu0 %1745
        %v1747 = vsel %vm1725, %v1714, -inf
        %1748 = vmax.xlane.f32.xlu0 %v1747
        %v1749 = vpop.xlane.xlu0 %1748
        %v1750 = vmax.f32 %v1717, %v1728
        %v1751 = vmax.f32 %v1718, %v1731
        %v1752 = vmax.f32 %v1719, %v1734
        %v1753 = vmax.f32 %v1720, %v1737
        %v1754 = vmax.f32 %v1721, %v1740
        %v1755 = vmax.f32 %v1722, %v1743
        %v1756 = vmax.f32 %v1723, %v1746
        %v1757 = vmax.f32 %v1724, %v1749
        %v1758 = vsub.f32 %v1717, %v1750
        %v1759 = vsub.f32 %v1718, %v1751
        %v1760 = vsub.f32 %v1719, %v1752
        %v1761 = vsub.f32 %v1720, %v1753
        %v1762 = vsub.f32 %v1721, %v1754
        %v1763 = vsub.f32 %v1722, %v1755
        %v1764 = vsub.f32 %v1723, %v1756
        %v1765 = vsub.f32 %v1724, %v1757
        %v1766 = vmul.f32 %v1758, 1.442695
        %v1767 = vpow.pop %v1766
        %v1768 = vmul.f32 %v1759, 1.442695
        %v1769 = vpow.pop %v1768
        %v1770 = vmul.f32 %v1760, 1.442695
        %v1771 = vpow.pop %v1770
        %v1772 = vmul.f32 %v1761, 1.442695
        %v1773 = vpow.pop %v1772
        %v1774 = vmul.f32 %v1762, 1.442695
        %v1775 = vpow.pop %v1774
        %v1776 = vmul.f32 %v1763, 1.442695
        %v1777 = vpow.pop %v1776
        %v1778 = vmul.f32 %v1764, 1.442695
        %v1779 = vpow.pop %v1778
        %v1780 = vmul.f32 %v1765, 1.442695
        %v1781 = vpow.pop %v1780
        %1783 = vset.pattern.permute.xlu0 0
        %1784 = vperm.xlu0 %1783, %v1750
        %v1785 = vpop.permute.xlu0 %1784
        %1788 = vset.pattern.permute.xlu0 0
        %1789 = vperm.xlu0 %1788, %v1751
        %v1790 = vpop.permute.xlu0 %1789
        %1793 = vset.pattern.permute.xlu0 0
        %1794 = vperm.xlu0 %1793, %v1752
        %v1795 = vpop.permute.xlu0 %1794
        %1798 = vset.pattern.permute.xlu0 0
        %1799 = vperm.xlu0 %1798, %v1753
        %v1800 = vpop.permute.xlu0 %1799
        %1803 = vset.pattern.permute.xlu0 0
        %1804 = vperm.xlu0 %1803, %v1754
        %v1805 = vpop.permute.xlu0 %1804
        %1808 = vset.pattern.permute.xlu0 0
        %1809 = vperm.xlu0 %1808, %v1755
        %v1810 = vpop.permute.xlu0 %1809
        %1813 = vset.pattern.permute.xlu0 0
        %1814 = vperm.xlu0 %1813, %v1756
        %v1815 = vpop.permute.xlu0 %1814
        %1818 = vset.pattern.permute.xlu0 0
        %1819 = vperm.xlu0 %1818, %v1757
        %v1820 = vpop.permute.xlu0 %1819
        %v1822 = vsub.f32 %v1579, %v1785
        %v1823 = vsub.f32 %v1582, %v1790
        %v1824 = vsub.f32 %v1623, %v1795
        %v1825 = vsub.f32 %v1626, %v1800
        %v1826 = vsub.f32 %v1667, %v1805
        %v1827 = vsub.f32 %v1670, %v1810
        %v1828 = vsub.f32 %v1711, %v1815
        %v1829 = vsub.f32 %v1714, %v1820
        %v1830 = vmul.f32 %v1822, 1.442695
        %v1831 = vpow.pop %v1830
        %v1832 = vmul.f32 %v1823, 1.442695
        %v1833 = vpow.pop %v1832
        %v1834 = vmul.f32 %v1824, 1.442695
        %v1835 = vpow.pop %v1834
        %v1836 = vmul.f32 %v1825, 1.442695
        %v1837 = vpow.pop %v1836
        %v1838 = vmul.f32 %v1826, 1.442695
        %v1839 = vpow.pop %v1838
        %v1840 = vmul.f32 %v1827, 1.442695
        %v1841 = vpow.pop %v1840
        %v1842 = vmul.f32 %v1828, 1.442695
        %v1843 = vpow.pop %v1842
        %v1844 = vmul.f32 %v1829, 1.442695
        %v1845 = vpow.pop %v1844
        %v1846 = vld [vmem:[#allocation4] sm:$0xff]
        %v1847 = vld [vmem:[#allocation4 + $0x8] sm:$0xff]
        %v1848 = vld [vmem:[#allocation4 + $0x10] sm:$0xff]
        %v1849 = vld [vmem:[#allocation4 + $0x18] sm:$0xff]
        %v1850 = vld [vmem:[#allocation4 + $0x20] sm:$0xff]
        %v1851 = vld [vmem:[#allocation4 + $0x28] sm:$0xff]
        %v1852 = vld [vmem:[#allocation4 + $0x30] sm:$0xff]
        %v1853 = vld [vmem:[#allocation4 + $0x38] sm:$0xff]
        %v1854 = vmul.f32 %v1767, %v1846
        %v1855 = vmul.f32 %v1769, %v1847
        %v1856 = vmul.f32 %v1771, %v1848
        %v1857 = vmul.f32 %v1773, %v1849
        %v1858 = vmul.f32 %v1775, %v1850
        %v1859 = vmul.f32 %v1777, %v1851
        %v1860 = vmul.f32 %v1779, %v1852
        %v1861 = vmul.f32 %v1781, %v1853
        %v1862 = vsel %vm1725, %v1831, 0.0
        %1863 = vadd.xlane.f32.xlu0 %v1862
        %v1864 = vpop.xlane.xlu0 %1863
        %v1865 = vsel %vm1725, %v1833, 0.0
        %1866 = vadd.xlane.f32.xlu0 %v1865
        %v1867 = vpop.xlane.xlu0 %1866
        %v1868 = vsel %vm1725, %v1835, 0.0
        %1869 = vadd.xlane.f32.xlu0 %v1868
        %v1870 = vpop.xlane.xlu0 %1869
        %v1871 = vsel %vm1725, %v1837, 0.0
        %1872 = vadd.xlane.f32.xlu0 %v1871
        %v1873 = vpop.xlane.xlu0 %1872
        %v1874 = vsel %vm1725, %v1839, 0.0
        %1875 = vadd.xlane.f32.xlu0 %v1874
        %v1876 = vpop.xlane.xlu0 %1875
        %v1877 = vsel %vm1725, %v1841, 0.0
        %1878 = vadd.xlane.f32.xlu0 %v1877
        %v1879 = vpop.xlane.xlu0 %1878
        %v1880 = vsel %vm1725, %v1843, 0.0
        %1881 = vadd.xlane.f32.xlu0 %v1880
        %v1882 = vpop.xlane.xlu0 %1881
        %v1883 = vsel %vm1725, %v1845, 0.0
        %1884 = vadd.xlane.f32.xlu0 %v1883
        %v1885 = vpop.xlane.xlu0 %1884
        %v1886 = vadd.f32 %v1854, %v1864
        %v1887 = vadd.f32 %v1855, %v1867
        %v1888 = vadd.f32 %v1856, %v1870
        %v1889 = vadd.f32 %v1857, %v1873
        %v1890 = vadd.f32 %v1858, %v1876
        %v1891 = vadd.f32 %v1859, %v1879
        %v1892 = vadd.f32 %v1860, %v1882
        %v1893 = vadd.f32 %v1861, %v1885
        %vm1894 = vcmask 7168
        %1895 = vst.msk [vmem:[#allocation4] sm:$0xff] %vm1894, %v1886
        %1896 = vst.msk [vmem:[#allocation4 + $0x8] sm:$0xff] %vm1894, %v1887
        %1897 = vst.msk [vmem:[#allocation4 + $0x10] sm:$0xff] %vm1894, %v1888
        %1898 = vst.msk [vmem:[#allocation4 + $0x18] sm:$0xff] %vm1894, %v1889
        %1899 = vst.msk [vmem:[#allocation4 + $0x20] sm:$0xff] %vm1894, %v1890
        %1900 = vst.msk [vmem:[#allocation4 + $0x28] sm:$0xff] %vm1894, %v1891
        %1901 = vst.msk [vmem:[#allocation4 + $0x30] sm:$0xff] %vm1894, %v1892
        %1902 = vst.msk [vmem:[#allocation4 + $0x38] sm:$0xff] %vm1894, %v1893
        %v1903 = vpack.c.bf16 %v1833, %v1831
        %v1904 = vpack.c.bf16 %v1837, %v1835
        %v1905 = vpack.c.bf16 %v1841, %v1839
        %v1906 = vpack.c.bf16 %v1845, %v1843
        %v1908 = vsel %vm1725, %v1903, 0
        %v1911 = vsel %vm1725, %v1532, 0
        %1913 = vmatprep.subr.bf16.mxu0 0
        %1914 = vmatpush1.bf16.xpose.msra.mxu0 %v1911
        %1915 = vmatprep.subr.bf16.mxu0 0
        %1916 = vmatpush1.bf16.xpose.msra.mxu0 0
        %1917 = vmatprep.subr.bf16.mxu0 0
        %1918 = vmatpush1.bf16.xpose.msra.mxu0 0
        %1919 = vmatprep.subr.bf16.mxu0 0
        %1920 = vmatpush1.bf16.xpose.msra.mxu0 0
        %1921 = vmatprep.subr.bf16.mxu0 0
        %1922 = vmatpush1.bf16.xpose.msra.mxu0 0
        %1923 = vmatprep.subr.bf16.mxu0 0
        %1924 = vmatpush1.bf16.xpose.msra.mxu0 0
        %1925 = vmatprep.subr.bf16.mxu0 0
        %1926 = vmatpush1.bf16.xpose.msra.mxu0 0
        %1927 = vmatprep.subr.bf16.mxu0 0
        %1928 = vmatpush1.bf16.xpose.msra.mxu0 0
        %1929 = vmatprep.subr.bf16.mxu0 0
        %1930 = vmatpush1.bf16.xpose.msra.mxu0 0
        %1931 = vmatprep.subr.bf16.mxu0 0
        %1932 = vmatpush1.bf16.xpose.msra.mxu0 0
        %1933 = vmatprep.subr.bf16.mxu0 0
        %1934 = vmatpush1.bf16.xpose.msra.mxu0 0
        %1935 = vmatprep.subr.bf16.mxu0 0
        %1936 = vmatpush1.bf16.xpose.msra.mxu0 0
        %1937 = vmatprep.subr.bf16.mxu0 0
        %1938 = vmatpush1.bf16.xpose.msra.mxu0 0
        %1939 = vmatprep.subr.bf16.mxu0 0
        %1940 = vmatpush1.bf16.xpose.msra.mxu0 0
        %1941 = vmatprep.subr.bf16.mxu0 0
        %1942 = vmatpush1.bf16.xpose.msra.mxu0 0
        %1943 = vmatprep.subr.bf16.mxu0 0
        %1944 = vmatpush1.bf16.xpose.msra.mxu0 0
        %1945 = vmatprep.mubr.bf16.mxu0 0
        %1946 = vmatmul.mubr.bf16.gmra.mrb[0].mxu0 %v1908
        %v1947 = vpop.f32.mrb[0].mxu0
        %v1948 = vadd.f32 0.0, %v1947
        %v1949 = vpop.f32.mrb[0].mxu0
        %v1950 = vpop.f32.mrb[0].mxu0
        %v1951 = vadd.f32 0.0, %v1950
        %v1952 = vpop.f32.mrb[0].mxu0
        %1953 = vdwg.mxu0
        %v1955 = vsel %vm1725, %v1904, 0
        %v1958 = vsel %vm1725, %v1533, 0
        %1960 = vmatprep.subr.bf16.mxu0 0
        %1961 = vmatpush1.bf16.xpose.msra.mxu0 %v1958
        %1962 = vmatprep.subr.bf16.mxu0 0
        %1963 = vmatpush1.bf16.xpose.msra.mxu0 0
        %1964 = vmatprep.subr.bf16.mxu0 0
        %1965 = vmatpush1.bf16.xpose.msra.mxu0 0
        %1966 = vmatprep.subr.bf16.mxu0 0
        %1967 = vmatpush1.bf16.xpose.msra.mxu0 0
        %1968 = vmatprep.subr.bf16.mxu0 0
        %1969 = vmatpush1.bf16.xpose.msra.mxu0 0
        %1970 = vmatprep.subr.bf16.mxu0 0
        %1971 = vmatpush1.bf16.xpose.msra.mxu0 0
        %1972 = vmatprep.subr.bf16.mxu0 0
        %1973 = vmatpush1.bf16.xpose.msra.mxu0 0
        %1974 = vmatprep.subr.bf16.mxu0 0
        %1975 = vmatpush1.bf16.xpose.msra.mxu0 0
        %1976 = vmatprep.subr.bf16.mxu0 0
        %1977 = vmatpush1.bf16.xpose.msra.mxu0 0
        %1978 = vmatprep.subr.bf16.mxu0 0
        %1979 = vmatpush1.bf16.xpose.msra.mxu0 0
        %1980 = vmatprep.subr.bf16.mxu0 0
        %1981 = vmatpush1.bf16.xpose.msra.mxu0 0
        %1982 = vmatprep.subr.bf16.mxu0 0
        %1983 = vmatpush1.bf16.xpose.msra.mxu0 0
        %1984 = vmatprep.subr.bf16.mxu0 0
        %1985 = vmatpush1.bf16.xpose.msra.mxu0 0
        %1986 = vmatprep.subr.bf16.mxu0 0
        %1987 = vmatpush1.bf16.xpose.msra.mxu0 0
        %1988 = vmatprep.subr.bf16.mxu0 0
        %1989 = vmatpush1.bf16.xpose.msra.mxu0 0
        %1990 = vmatprep.subr.bf16.mxu0 0
        %1991 = vmatpush1.bf16.xpose.msra.mxu0 0
        %1992 = vmatprep.mubr.bf16.mxu0 0
        %1993 = vmatmul.mubr.bf16.gmra.mrb[0].mxu0 %v1955
        %v1994 = vpop.f32.mrb[0].mxu0
        %v1995 = vadd.f32 0.0, %v1994
        %v1996 = vpop.f32.mrb[0].mxu0
        %v1997 = vpop.f32.mrb[0].mxu0
        %v1998 = vadd.f32 0.0, %v1997
        %v1999 = vpop.f32.mrb[0].mxu0
        %2000 = vdwg.mxu0
        %v2002 = vsel %vm1725, %v1905, 0
        %v2005 = vsel %vm1725, %v1534, 0
        %2007 = vmatprep.subr.bf16.mxu0 0
        %2008 = vmatpush1.bf16.xpose.msra.mxu0 %v2005
        %2009 = vmatprep.subr.bf16.mxu0 0
        %2010 = vmatpush1.bf16.xpose.msra.mxu0 0
        %2011 = vmatprep.subr.bf16.mxu0 0
        %2012 = vmatpush1.bf16.xpose.msra.mxu0 0
        %2013 = vmatprep.subr.bf16.mxu0 0
        %2014 = vmatpush1.bf16.xpose.msra.mxu0 0
        %2015 = vmatprep.subr.bf16.mxu0 0
        %2016 = vmatpush1.bf16.xpose.msra.mxu0 0
        %2017 = vmatprep.subr.bf16.mxu0 0
        %2018 = vmatpush1.bf16.xpose.msra.mxu0 0
        %2019 = vmatprep.subr.bf16.mxu0 0
        %2020 = vmatpush1.bf16.xpose.msra.mxu0 0
        %2021 = vmatprep.subr.bf16.mxu0 0
        %2022 = vmatpush1.bf16.xpose.msra.mxu0 0
        %2023 = vmatprep.subr.bf16.mxu0 0
        %2024 = vmatpush1.bf16.xpose.msra.mxu0 0
        %2025 = vmatprep.subr.bf16.mxu0 0
        %2026 = vmatpush1.bf16.xpose.msra.mxu0 0
        %2027 = vmatprep.subr.bf16.mxu0 0
        %2028 = vmatpush1.bf16.xpose.msra.mxu0 0
        %2029 = vmatprep.subr.bf16.mxu0 0
        %2030 = vmatpush1.bf16.xpose.msra.mxu0 0
        %2031 = vmatprep.subr.bf16.mxu0 0
        %2032 = vmatpush1.bf16.xpose.msra.mxu0 0
        %2033 = vmatprep.subr.bf16.mxu0 0
        %2034 = vmatpush1.bf16.xpose.msra.mxu0 0
        %2035 = vmatprep.subr.bf16.mxu0 0
        %2036 = vmatpush1.bf16.xpose.msra.mxu0 0
        %2037 = vmatprep.subr.bf16.mxu0 0
        %2038 = vmatpush1.bf16.xpose.msra.mxu0 0
        %2039 = vmatprep.mubr.bf16.mxu0 0
        %2040 = vmatmul.mubr.bf16.gmra.mrb[0].mxu0 %v2002
        %v2041 = vpop.f32.mrb[0].mxu0
        %v2042 = vadd.f32 0.0, %v2041
        %v2043 = vpop.f32.mrb[0].mxu0
        %v2044 = vpop.f32.mrb[0].mxu0
        %v2045 = vadd.f32 0.0, %v2044
        %v2046 = vpop.f32.mrb[0].mxu0
        %2047 = vdwg.mxu0
        %v2049 = vsel %vm1725, %v1906, 0
        %v2052 = vsel %vm1725, %v1535, 0
        %2054 = vmatprep.subr.bf16.mxu0 0
        %2055 = vmatpush1.bf16.xpose.msra.mxu0 %v2052
        %2056 = vmatprep.subr.bf16.mxu0 0
        %2057 = vmatpush1.bf16.xpose.msra.mxu0 0
        %2058 = vmatprep.subr.bf16.mxu0 0
        %2059 = vmatpush1.bf16.xpose.msra.mxu0 0
        %2060 = vmatprep.subr.bf16.mxu0 0
        %2061 = vmatpush1.bf16.xpose.msra.mxu0 0
        %2062 = vmatprep.subr.bf16.mxu0 0
        %2063 = vmatpush1.bf16.xpose.msra.mxu0 0
        %2064 = vmatprep.subr.bf16.mxu0 0
        %2065 = vmatpush1.bf16.xpose.msra.mxu0 0
        %2066 = vmatprep.subr.bf16.mxu0 0
        %2067 = vmatpush1.bf16.xpose.msra.mxu0 0
        %2068 = vmatprep.subr.bf16.mxu0 0
        %2069 = vmatpush1.bf16.xpose.msra.mxu0 0
        %2070 = vmatprep.subr.bf16.mxu0 0
        %2071 = vmatpush1.bf16.xpose.msra.mxu0 0
        %2072 = vmatprep.subr.bf16.mxu0 0
        %2073 = vmatpush1.bf16.xpose.msra.mxu0 0
        %2074 = vmatprep.subr.bf16.mxu0 0
        %2075 = vmatpush1.bf16.xpose.msra.mxu0 0
        %2076 = vmatprep.subr.bf16.mxu0 0
        %2077 = vmatpush1.bf16.xpose.msra.mxu0 0
        %2078 = vmatprep.subr.bf16.mxu0 0
        %2079 = vmatpush1.bf16.xpose.msra.mxu0 0
        %2080 = vmatprep.subr.bf16.mxu0 0
        %2081 = vmatpush1.bf16.xpose.msra.mxu0 0
        %2082 = vmatprep.subr.bf16.mxu0 0
        %2083 = vmatpush1.bf16.xpose.msra.mxu0 0
        %2084 = vmatprep.subr.bf16.mxu0 0
        %2085 = vmatpush1.bf16.xpose.msra.mxu0 0
        %2086 = vmatprep.mubr.bf16.mxu0 0
        %2087 = vmatmul.mubr.bf16.gmra.mrb[0].mxu0 %v2049
        %v2088 = vpop.f32.mrb[0].mxu0
        %v2089 = vadd.f32 0.0, %v2088
        %v2090 = vpop.f32.mrb[0].mxu0
        %v2091 = vpop.f32.mrb[0].mxu0
        %v2092 = vadd.f32 0.0, %v2091
        %v2093 = vpop.f32.mrb[0].mxu0
        %2094 = vdwg.mxu0
        %v2095 = vld [vmem:[#allocation5] sm:$0xff]
        %v2096 = vld [vmem:[#allocation5 + $0x8] sm:$0xff]
        %v2097 = vld [vmem:[#allocation5 + $0x10] sm:$0xff]
        %v2098 = vld [vmem:[#allocation5 + $0x18] sm:$0xff]
        %v2099 = vld [vmem:[#allocation5 + $0x20] sm:$0xff]
        %v2100 = vld [vmem:[#allocation5 + $0x28] sm:$0xff]
        %v2101 = vld [vmem:[#allocation5 + $0x30] sm:$0xff]
        %v2102 = vld [vmem:[#allocation5 + $0x38] sm:$0xff]
        %2104 = vset.pattern.permute.xlu0 0
        %2105 = vperm.xlu0 %2104, %v1767
        %v2106 = vpop.permute.xlu0 %2105
        %2109 = vset.pattern.permute.xlu0 0
        %2110 = vperm.xlu0 %2109, %v1769
        %v2111 = vpop.permute.xlu0 %2110
        %2114 = vset.pattern.permute.xlu0 0
        %2115 = vperm.xlu0 %2114, %v1771
        %v2116 = vpop.permute.xlu0 %2115
        %2119 = vset.pattern.permute.xlu0 0
        %2120 = vperm.xlu0 %2119, %v1773
        %v2121 = vpop.permute.xlu0 %2120
        %2124 = vset.pattern.permute.xlu0 0
        %2125 = vperm.xlu0 %2124, %v1775
        %v2126 = vpop.permute.xlu0 %2125
        %2129 = vset.pattern.permute.xlu0 0
        %2130 = vperm.xlu0 %2129, %v1777
        %v2131 = vpop.permute.xlu0 %2130
        %2134 = vset.pattern.permute.xlu0 0
        %2135 = vperm.xlu0 %2134, %v1779
        %v2136 = vpop.permute.xlu0 %2135
        %2139 = vset.pattern.permute.xlu0 0
        %2140 = vperm.xlu0 %2139, %v1781
        %v2141 = vpop.permute.xlu0 %2140
        %v2143 = vmul.f32 %v2106, %v2095
        %v2144 = vmul.f32 %v2111, %v2096
        %v2145 = vmul.f32 %v2116, %v2097
        %v2146 = vmul.f32 %v2121, %v2098
        %v2147 = vmul.f32 %v2126, %v2099
        %v2148 = vmul.f32 %v2131, %v2100
        %v2149 = vmul.f32 %v2136, %v2101
        %v2150 = vmul.f32 %v2141, %v2102
        %v2151 = vadd.f32 %v2143, %v1948
        %v2152 = vadd.f32 %v2144, %v1951
        %v2153 = vadd.f32 %v2145, %v1995
        %v2154 = vadd.f32 %v2146, %v1998
        %v2155 = vadd.f32 %v2147, %v2042
        %v2156 = vadd.f32 %v2148, %v2045
        %v2157 = vadd.f32 %v2149, %v2089
        %v2158 = vadd.f32 %v2150, %v2092
        %2159 = vst.msk [vmem:[#allocation5] sm:$0xff] %vm1540, %v2151
        %2160 = vst.msk [vmem:[#allocation5 + $0x8] sm:$0xff] %vm1540, %v2152
        %2161 = vst.msk [vmem:[#allocation5 + $0x10] sm:$0xff] %vm1540, %v2153
        %2162 = vst.msk [vmem:[#allocation5 + $0x18] sm:$0xff] %vm1540, %v2154
        %2163 = vst.msk [vmem:[#allocation5 + $0x20] sm:$0xff] %vm1540, %v2155
        %2164 = vst.msk [vmem:[#allocation5 + $0x28] sm:$0xff] %vm1540, %v2156
        %2165 = vst.msk [vmem:[#allocation5 + $0x30] sm:$0xff] %vm1540, %v2157
        %2166 = vst.msk [vmem:[#allocation5 + $0x38] sm:$0xff] %vm1540, %v2158
        %2167 = vst.msk [vmem:[#allocation3] sm:$0xff] %vm1894, %v1750
        %2168 = vst.msk [vmem:[#allocation3 + $0x8] sm:$0xff] %vm1894, %v1751
        %2169 = vst.msk [vmem:[#allocation3 + $0x10] sm:$0xff] %vm1894, %v1752
        %2170 = vst.msk [vmem:[#allocation3 + $0x18] sm:$0xff] %vm1894, %v1753
        %2171 = vst.msk [vmem:[#allocation3 + $0x20] sm:$0xff] %vm1894, %v1754
        %2172 = vst.msk [vmem:[#allocation3 + $0x28] sm:$0xff] %vm1894, %v1755
        %2173 = vst.msk [vmem:[#allocation3 + $0x30] sm:$0xff] %vm1894, %v1756
        %2174 = vst.msk [vmem:[#allocation3 + $0x38] sm:$0xff] %vm1894, %v1757
        // Predicated region
        $region85: #{block_forward.7} parent=79 // pred_check
          %p2175 = pneg %p720
        $region86: #{block_forward.7} parent=79 // pred_check_branch
          %2177 = sbr.rel (%p2175) target = $region88
        $region87: #{block_forward.7} parent=79 // pred_region
          %v2178 = vld [vmem:[#allocation5] sm:$0xff]
          %v2179 = vld [vmem:[#allocation5 + $0x8] sm:$0xff]
          %v2180 = vld [vmem:[#allocation5 + $0x10] sm:$0xff]
          %v2181 = vld [vmem:[#allocation5 + $0x18] sm:$0xff]
          %v2182 = vld [vmem:[#allocation5 + $0x20] sm:$0xff]
          %v2183 = vld [vmem:[#allocation5 + $0x28] sm:$0xff]
          %v2184 = vld [vmem:[#allocation5 + $0x30] sm:$0xff]
          %v2185 = vld [vmem:[#allocation5 + $0x38] sm:$0xff]
          %v2186 = vld [vmem:[#allocation4] sm:$0xff]
          %v2187 = vld [vmem:[#allocation4 + $0x8] sm:$0xff]
          %v2188 = vld [vmem:[#allocation4 + $0x10] sm:$0xff]
          %v2189 = vld [vmem:[#allocation4 + $0x18] sm:$0xff]
          %v2190 = vld [vmem:[#allocation4 + $0x20] sm:$0xff]
          %v2191 = vld [vmem:[#allocation4 + $0x28] sm:$0xff]
          %v2192 = vld [vmem:[#allocation4 + $0x30] sm:$0xff]
          %v2193 = vld [vmem:[#allocation4 + $0x38] sm:$0xff]
          %v2194 = vrcp.pop %v2186
          %v2195 = vrcp.pop %v2187
          %v2196 = vrcp.pop %v2188
          %v2197 = vrcp.pop %v2189
          %v2198 = vrcp.pop %v2190
          %v2199 = vrcp.pop %v2191
          %v2200 = vrcp.pop %v2192
          %v2201 = vrcp.pop %v2193
          %2203 = vset.pattern.permute.xlu0 0
          %2204 = vperm.xlu0 %2203, %v2194
          %v2205 = vpop.permute.xlu0 %2204
          %2208 = vset.pattern.permute.xlu0 0
          %2209 = vperm.xlu0 %2208, %v2195
          %v2210 = vpop.permute.xlu0 %2209
          %2213 = vset.pattern.permute.xlu0 0
          %2214 = vperm.xlu0 %2213, %v2196
          %v2215 = vpop.permute.xlu0 %2214
          %2218 = vset.pattern.permute.xlu0 0
          %2219 = vperm.xlu0 %2218, %v2197
          %v2220 = vpop.permute.xlu0 %2219
          %2223 = vset.pattern.permute.xlu0 0
          %2224 = vperm.xlu0 %2223, %v2198
          %v2225 = vpop.permute.xlu0 %2224
          %2228 = vset.pattern.permute.xlu0 0
          %2229 = vperm.xlu0 %2228, %v2199
          %v2230 = vpop.permute.xlu0 %2229
          %2233 = vset.pattern.permute.xlu0 0
          %2234 = vperm.xlu0 %2233, %v2200
          %v2235 = vpop.permute.xlu0 %2234
          %2238 = vset.pattern.permute.xlu0 0
          %2239 = vperm.xlu0 %2238, %v2201
          %v2240 = vpop.permute.xlu0 %2239
          %v2242 = vmul.f32 %v2178, %v2205
          %v2243 = vmul.f32 %v2179, %v2210
          %v2244 = vmul.f32 %v2180, %v2215
          %v2245 = vmul.f32 %v2181, %v2220
          %v2246 = vmul.f32 %v2182, %v2225
          %v2247 = vmul.f32 %v2183, %v2230
          %v2248 = vmul.f32 %v2184, %v2235
          %v2249 = vmul.f32 %v2185, %v2240
          %v2250 = vpack.c.bf16 %v2243, %v2242
          %v2251 = vpack.c.bf16 %v2245, %v2244
          %v2252 = vpack.c.bf16 %v2247, %v2246
          %v2253 = vpack.c.bf16 %v2249, %v2248
          %v2254 = vld [vmem:[%s10] sm:$0xf]
          %v2255 = vld [vmem:[%s10 + $0x4] sm:$0xf]
          %v2256 = vld [vmem:[%s10 + $0x8] sm:$0xf]
          %v2257 = vld [vmem:[%s10 + $0xc] sm:$0xf]
          %v2258 = vld [vmem:[%s10 + $0x10] sm:$0xf]
          %v2259 = vld [vmem:[%s10 + $0x14] sm:$0xf]
          %v2260 = vld [vmem:[%s10 + $0x18] sm:$0xf]
          %v2261 = vld [vmem:[%s10 + $0x1c] sm:$0xf]
          %v2264 = vunpack.c.l.b16 %v2254
          %v2265 = vunpack.c.l.b16 %v2255
          %v2266 = vpack.c.b16 %v2265, %v2264
          %v2269 = vsel %vm1540, %v2250, 0
          %2271 = vmatprep.subr.bf16.mxu0 0
          %2272 = vmatpush1.bf16.msra.mxu0 %v2266
          %2273 = vmatprep.subr.bf16.mxu0 0
          %2274 = vmatpush1.bf16.msra.mxu0 0
          %2275 = vmatprep.subr.bf16.mxu0 0
          %2276 = vmatpush1.bf16.msra.mxu0 0
          %2277 = vmatprep.subr.bf16.mxu0 0
          %2278 = vmatpush1.bf16.msra.mxu0 0
          %2279 = vmatprep.subr.bf16.mxu0 0
          %2280 = vmatpush1.bf16.msra.mxu0 0
          %2281 = vmatprep.subr.bf16.mxu0 0
          %2282 = vmatpush1.bf16.msra.mxu0 0
          %2283 = vmatprep.subr.bf16.mxu0 0
          %2284 = vmatpush1.bf16.msra.mxu0 0
          %2285 = vmatprep.subr.bf16.mxu0 0
          %2286 = vmatpush1.bf16.msra.mxu0 0
          %2287 = vmatprep.subr.bf16.mxu0 0
          %2288 = vmatpush1.bf16.msra.mxu0 0
          %2289 = vmatprep.subr.bf16.mxu0 0
          %2290 = vmatpush1.bf16.msra.mxu0 0
          %2291 = vmatprep.subr.bf16.mxu0 0
          %2292 = vmatpush1.bf16.msra.mxu0 0
          %2293 = vmatprep.subr.bf16.mxu0 0
          %2294 = vmatpush1.bf16.msra.mxu0 0
          %2295 = vmatprep.subr.bf16.mxu0 0
          %2296 = vmatpush1.bf16.msra.mxu0 0
          %2297 = vmatprep.subr.bf16.mxu0 0
          %2298 = vmatpush1.bf16.msra.mxu0 0
          %2299 = vmatprep.subr.bf16.mxu0 0
          %2300 = vmatpush1.bf16.msra.mxu0 0
          %2301 = vmatprep.subr.bf16.mxu0 0
          %2302 = vmatpush1.bf16.msra.mxu0 0
          %2303 = vmatprep.mubr.bf16.mxu0 0
          %2304 = vmatmul.mubr.bf16.gmra.mrb[0].mxu0 %v2269
          %v2305 = vpop.f32.mrb[0].mxu0
          %v2306 = vadd.f32 0.0, %v2305
          %v2307 = vpop.f32.mrb[0].mxu0
          %v2308 = vpop.f32.mrb[0].mxu0
          %v2309 = vadd.f32 0.0, %v2308
          %v2310 = vpop.f32.mrb[0].mxu0
          %2311 = vdwg.mxu0
          %v2314 = vunpack.c.l.b16 %v2256
          %v2315 = vunpack.c.l.b16 %v2257
          %v2316 = vpack.c.b16 %v2315, %v2314
          %v2319 = vsel %vm1540, %v2251, 0
          %2321 = vmatprep.subr.bf16.mxu0 0
          %2322 = vmatpush1.bf16.msra.mxu0 %v2316
          %2323 = vmatprep.subr.bf16.mxu0 0
          %2324 = vmatpush1.bf16.msra.mxu0 0
          %2325 = vmatprep.subr.bf16.mxu0 0
          %2326 = vmatpush1.bf16.msra.mxu0 0
          %2327 = vmatprep.subr.bf16.mxu0 0
          %2328 = vmatpush1.bf16.msra.mxu0 0
          %2329 = vmatprep.subr.bf16.mxu0 0
          %2330 = vmatpush1.bf16.msra.mxu0 0
          %2331 = vmatprep.subr.bf16.mxu0 0
          %2332 = vmatpush1.bf16.msra.mxu0 0
          %2333 = vmatprep.subr.bf16.mxu0 0
          %2334 = vmatpush1.bf16.msra.mxu0 0
          %2335 = vmatprep.subr.bf16.mxu0 0
          %2336 = vmatpush1.bf16.msra.mxu0 0
          %2337 = vmatprep.subr.bf16.mxu0 0
          %2338 = vmatpush1.bf16.msra.mxu0 0
          %2339 = vmatprep.subr.bf16.mxu0 0
          %2340 = vmatpush1.bf16.msra.mxu0 0
          %2341 = vmatprep.subr.bf16.mxu0 0
          %2342 = vmatpush1.bf16.msra.mxu0 0
          %2343 = vmatprep.subr.bf16.mxu0 0
          %2344 = vmatpush1.bf16.msra.mxu0 0
          %2345 = vmatprep.subr.bf16.mxu0 0
          %2346 = vmatpush1.bf16.msra.mxu0 0
          %2347 = vmatprep.subr.bf16.mxu0 0
          %2348 = vmatpush1.bf16.msra.mxu0 0
          %2349 = vmatprep.subr.bf16.mxu0 0
          %2350 = vmatpush1.bf16.msra.mxu0 0
          %2351 = vmatprep.subr.bf16.mxu0 0
          %2352 = vmatpush1.bf16.msra.mxu0 0
          %2353 = vmatprep.mubr.bf16.mxu0 0
          %2354 = vmatmul.mubr.bf16.gmra.mrb[0].mxu0 %v2319
          %v2355 = vpop.f32.mrb[0].mxu0
          %v2356 = vadd.f32 0.0, %v2355
          %v2357 = vpop.f32.mrb[0].mxu0
          %v2358 = vpop.f32.mrb[0].mxu0
          %v2359 = vadd.f32 0.0, %v2358
          %v2360 = vpop.f32.mrb[0].mxu0
          %2361 = vdwg.mxu0
          %v2364 = vunpack.c.l.b16 %v2258
          %v2365 = vunpack.c.l.b16 %v2259
          %v2366 = vpack.c.b16 %v2365, %v2364
          %v2369 = vsel %vm1540, %v2252, 0
          %2371 = vmatprep.subr.bf16.mxu0 0
          %2372 = vmatpush1.bf16.msra.mxu0 %v2366
          %2373 = vmatprep.subr.bf16.mxu0 0
          %2374 = vmatpush1.bf16.msra.mxu0 0
          %2375 = vmatprep.subr.bf16.mxu0 0
          %2376 = vmatpush1.bf16.msra.mxu0 0
          %2377 = vmatprep.subr.bf16.mxu0 0
          %2378 = vmatpush1.bf16.msra.mxu0 0
          %2379 = vmatprep.subr.bf16.mxu0 0
          %2380 = vmatpush1.bf16.msra.mxu0 0
          %2381 = vmatprep.subr.bf16.mxu0 0
          %2382 = vmatpush1.bf16.msra.mxu0 0
          %2383 = vmatprep.subr.bf16.mxu0 0
          %2384 = vmatpush1.bf16.msra.mxu0 0
          %2385 = vmatprep.subr.bf16.mxu0 0
          %2386 = vmatpush1.bf16.msra.mxu0 0
          %2387 = vmatprep.subr.bf16.mxu0 0
          %2388 = vmatpush1.bf16.msra.mxu0 0
          %2389 = vmatprep.subr.bf16.mxu0 0
          %2390 = vmatpush1.bf16.msra.mxu0 0
          %2391 = vmatprep.subr.bf16.mxu0 0
          %2392 = vmatpush1.bf16.msra.mxu0 0
          %2393 = vmatprep.subr.bf16.mxu0 0
          %2394 = vmatpush1.bf16.msra.mxu0 0
          %2395 = vmatprep.subr.bf16.mxu0 0
          %2396 = vmatpush1.bf16.msra.mxu0 0
          %2397 = vmatprep.subr.bf16.mxu0 0
          %2398 = vmatpush1.bf16.msra.mxu0 0
          %2399 = vmatprep.subr.bf16.mxu0 0
          %2400 = vmatpush1.bf16.msra.mxu0 0
          %2401 = vmatprep.subr.bf16.mxu0 0
          %2402 = vmatpush1.bf16.msra.mxu0 0
          %2403 = vmatprep.mubr.bf16.mxu0 0
          %2404 = vmatmul.mubr.bf16.gmra.mrb[0].mxu0 %v2369
          %v2405 = vpop.f32.mrb[0].mxu0
          %v2406 = vadd.f32 0.0, %v2405
          %v2407 = vpop.f32.mrb[0].mxu0
          %v2408 = vpop.f32.mrb[0].mxu0
          %v2409 = vadd.f32 0.0, %v2408
          %v2410 = vpop.f32.mrb[0].mxu0
          %2411 = vdwg.mxu0
          %v2414 = vunpack.c.l.b16 %v2260
          %v2415 = vunpack.c.l.b16 %v2261
          %v2416 = vpack.c.b16 %v2415, %v2414
          %v2419 = vsel %vm1540, %v2253, 0
          %2421 = vmatprep.subr.bf16.mxu0 0
          %2422 = vmatpush1.bf16.msra.mxu0 %v2416
          %2423 = vmatprep.subr.bf16.mxu0 0
          %2424 = vmatpush1.bf16.msra.mxu0 0
          %2425 = vmatprep.subr.bf16.mxu0 0
          %2426 = vmatpush1.bf16.msra.mxu0 0
          %2427 = vmatprep.subr.bf16.mxu0 0
          %2428 = vmatpush1.bf16.msra.mxu0 0
          %2429 = vmatprep.subr.bf16.mxu0 0
          %2430 = vmatpush1.bf16.msra.mxu0 0
          %2431 = vmatprep.subr.bf16.mxu0 0
          %2432 = vmatpush1.bf16.msra.mxu0 0
          %2433 = vmatprep.subr.bf16.mxu0 0
          %2434 = vmatpush1.bf16.msra.mxu0 0
          %2435 = vmatprep.subr.bf16.mxu0 0
          %2436 = vmatpush1.bf16.msra.mxu0 0
          %2437 = vmatprep.subr.bf16.mxu0 0
          %2438 = vmatpush1.bf16.msra.mxu0 0
          %2439 = vmatprep.subr.bf16.mxu0 0
          %2440 = vmatpush1.bf16.msra.mxu0 0
          %2441 = vmatprep.subr.bf16.mxu0 0
          %2442 = vmatpush1.bf16.msra.mxu0 0
          %2443 = vmatprep.subr.bf16.mxu0 0
          %2444 = vmatpush1.bf16.msra.mxu0 0
          %2445 = vmatprep.subr.bf16.mxu0 0
          %2446 = vmatpush1.bf16.msra.mxu0 0
          %2447 = vmatprep.subr.bf16.mxu0 0
          %2448 = vmatpush1.bf16.msra.mxu0 0
          %2449 = vmatprep.subr.bf16.mxu0 0
          %2450 = vmatpush1.bf16.msra.mxu0 0
          %2451 = vmatprep.subr.bf16.mxu0 0
          %2452 = vmatpush1.bf16.msra.mxu0 0
          %2453 = vmatprep.mubr.bf16.mxu0 0
          %2454 = vmatmul.mubr.bf16.gmra.mrb[0].mxu0 %v2419
          %v2455 = vpop.f32.mrb[0].mxu0
          %v2456 = vadd.f32 0.0, %v2455
          %v2457 = vpop.f32.mrb[0].mxu0
          %v2458 = vpop.f32.mrb[0].mxu0
          %v2459 = vadd.f32 0.0, %v2458
          %v2460 = vpop.f32.mrb[0].mxu0
          %2461 = vdwg.mxu0
          %v2462 = vadd.f32 %v2306, %v2356
          %v2463 = vadd.f32 %v2462, %v2406
          %v2464 = vadd.f32 %v2463, %v2456
          %v2465 = vadd.f32 %v2309, %v2359
          %v2466 = vadd.f32 %v2465, %v2409
          %v2467 = vadd.f32 %v2466, %v2459
          %v2468 = vld [vmem:[%s11] sm:$0x1]
          %v2470 = vlaneseq
          %v2471 = vshrl.u32 %v2470, 7
          %v2472 = vsub.s32 0, %v2471
          %v2473 = vrot.slane %v2468, %v2472
          %v2475 = vadd.f32 %v2464, %v2473
          %v2476 = vadd.f32 %v2467, %v2473
          %v2477 = vld [vmem:[%s708] sm:$0xf]
          %v2478 = vld [vmem:[%s708 + $0x4] sm:$0xf]
          %v2479 = vunpack.c.l.bf16 %v2477
          %v2480 = vunpack.c.l.bf16 %v2478
          %v2481 = vadd.f32 %v2475, %v2479
          %v2482 = vadd.f32 %v2476, %v2480
          %v2483 = vld [vmem:[%s13] sm:$0x1]
          %v2484 = vld [vmem:[%s14] sm:$0x1]
          %2485 = vadd.xlane.f32.xlu0 %v2481
          %v2486 = vpop.xlane.xlu0 %2485
          %2487 = vadd.xlane.f32.xlu0 %v2482
          %v2488 = vpop.xlane.xlu0 %2487
          %v2489 = vrcp.pop 128.0
          %v2490 = vmul.f32 %v2486, %v2489
          %v2491 = vmul.f32 %v2488, %v2489
          %v2492 = vsub.f32 %v2481, %v2490
          %v2493 = vsub.f32 %v2482, %v2491
          %v2494 = vmul.f32 %v2492, %v2492
          %v2495 = vmul.f32 %v2493, %v2493
          %2496 = vadd.xlane.f32.xlu0 %v2494
          %v2497 = vpop.xlane.xlu0 %2496
          %2498 = vadd.xlane.f32.xlu0 %v2495
          %v2499 = vpop.xlane.xlu0 %2498
          %v2500 = vmul.f32 %v2497, %v2489
          %v2501 = vmul.f32 %v2499, %v2489
          %v2502 = vadd.f32 %v2500, 1e-05
          %v2503 = vadd.f32 %v2501, 1e-05
          %v2504 = vrsqrt.pop %v2502
          %v2505 = vrsqrt.pop %v2503
          %v2506 = vmul.f32 %v2492, %v2504
          %v2507 = vmul.f32 %v2493, %v2505
          %v2509 = vlaneseq
          %v2510 = vshrl.u32 %v2509, 7
          %v2511 = vsub.s32 0, %v2510
          %v2512 = vrot.slane %v2483, %v2511
          %v2514 = vmul.f32 %v2506, %v2512
          %v2515 = vmul.f32 %v2507, %v2512
          %v2517 = vlaneseq
          %v2518 = vshrl.u32 %v2517, 7
          %v2519 = vsub.s32 0, %v2518
          %v2520 = vrot.slane %v2484, %v2519
          %v2522 = vadd.f32 %v2514, %v2520
          %v2523 = vadd.f32 %v2515, %v2520
          %v2524 = vpack.c.bf16 %v2523, %v2522
          %v2526 = vunpack.c.l.b16 %v2524
          %v2527 = vunpack.c.h.b16 %v2524
          %v2528 = vpack.c.b16 %v2526, %v2526
          %v2529 = vpack.c.b16 %v2527, %v2527
          %2532 = vst [vmem:[%s645] sm:$0xf] %v2528
          %2533 = vst [vmem:[%s645 + $0x4] sm:$0xf] %v2529
        $region88: #{block_forward.7} parent=79 // pred_fallthru
          _
        %s2534 = sand.u32 %s405, 1
        %s2535 = sand.u32 %s405, 1
        %s2536 = smul.addr %s2535, 8
        %s2537 = scalar_lea.vmem [#allocation6], %s2536
        // Predicated region
        $region89: #{block_forward.7} parent=79 // pred_check
          %p2538 = pneg %p415
        $region90: #{block_forward.7} parent=79 // pred_check_branch
          %2540 = sbr.rel (%p2538) target = $region92
        $region91: #{block_forward.7} parent=79 // pred_region
          %s2541 = smul.u32 2, %s32
          %s2542 = ssub.s32 5, %s2541
          %p2543 = scmp.lt.s32.totalorder %s2542, 2
          %s2544 = scalar_select %p2543, %s2542, 2
          %s2545 = smul.u32 64, %s2544
          %p2546 = scmp.ne.s32.totalorder 0, %s2545
          %s2547 = smul.addr %s31, 5
          %s2548 = sadd.s32 %s2541, %s2547
          %s2549 = smul.addr %s2548, 4
          %s2550 = scalar_lea.vmem %s15, %s2549
          // Predicated region
          $region93: #{block_forward.7} parent=91 // pred_check
            %p2551 = pneg %p2546
          $region94: #{block_forward.7} parent=91 // pred_check_branch
            %2553 = sbr.rel (%p2551) target = $region96
          $region95: #{block_forward.7} parent=91 // pred_region
            // Predicated region
            $region97: #{block_forward.7} parent=95 // pred_check
              _
            $region98: #{block_forward.7} parent=95 // pred_check_branch
              %2555 = sbr.rel target = $region100
            $region99: #{block_forward.7} parent=95 // pred_region
              // Predicated region
              $region119: #{block_forward.7} parent=99 // pred_check
                _
              $region120: #{block_forward.7} parent=99 // pred_check_branch
                %2606 = sbr.rel (0) target = $region122
              $region121: #{block_forward.7} parent=99 // pred_region
                %s2608 = sshrl.u32 %s2544, 1
                // While loop
                $region123: #{block_forward.7} parent=121 // loop_pre_header
                  _
                $region124: #{block_forward.7} parent=121 // loop_header
                  %s2610 = sphi 0, %s2612
                  %p2611 = scmp.ge.s32.totalorder %s2610, %s2608
                  %s2615 = sphi 0, %s2624
                  %s2616 = sphi %s2537, %s2627
                  %s2617 = sphi %s2550, %s2628
                $region125: #{block_forward.7} parent=121 // loop_header_branch
                  %2614 = sbr.rel (%p2611) target = $region129
                $region126: #{block_forward.7} parent=121 // loop_body
                  %v2618 = vld [vmem:[%s2616] sm:$0xf]
                  %2619 = vst [vmem:[%s2617] sm:$0xf] %v2618
                  %v2620 = vld [vmem:[%s2616 + $0x4] sm:$0xf]
                  %2621 = vst [vmem:[%s2617 + $0x4] sm:$0xf] %v2620
                  %s2622 = sadd.s32 1, %s2615
                  %p2623 = scmp.ge.s32.totalorder %s2622, %s2608
                  %s2624 = scalar_select %p2623, 0, %s2622
                  %s2625 = smul.u32 %s2624, 8
                  %s2626 = smul.u32 %s2624, 8
                  %s2627 = scalar_lea.vmem %s2537, %s2625 [#allocation6]
                  %s2628 = scalar_lea.vmem %s2550, %s2626
                $region127: #{block_forward.7} parent=121 // loop_footer
                  %s2612 = sadd.s32 %s2610, 1
                $region128: #{block_forward.7} parent=121 // loop_footer_branch
                  %2609 = sbr.rel target = $region124
                $region129: #{block_forward.7} parent=121 // loop_exit
                  _
                %s2629 = sshrl.u32 %s2544, 1
                %s2630 = sand.u32 %s2544, 1
                %s2631 = smul.u32 %s2629, 2
                %s2632 = smul.u32 4, %s2631
                %s2633 = scalar_lea.vmem %s2537, %s2632 [#allocation6]
                %s2634 = smul.u32 4, %s2631
                %s2635 = scalar_lea.vmem %s2550, %s2634
                // While loop
                $region130: #{block_forward.7} parent=121 // loop_pre_header
                  _
                $region131: #{block_forward.7} parent=121 // loop_header
                  %s2637 = sphi 0, %s2639
                  %p2638 = scmp.ge.s32.totalorder %s2637, %s2630
                  %s2642 = sphi 0, %s2649
                  %s2643 = sphi %s2633, %s2652
                  %s2644 = sphi %s2635, %s2653
                $region132: #{block_forward.7} parent=121 // loop_header_branch
                  %2641 = sbr.rel (%p2638) target = $region136
                $region133: #{block_forward.7} parent=121 // loop_body
                  %v2645 = vld [vmem:[%s2643] sm:$0xf]
                  %2646 = vst [vmem:[%s2644] sm:$0xf] %v2645
                  %s2647 = sadd.s32 1, %s2642
                  %p2648 = scmp.ge.s32.totalorder %s2647, %s2630
                  %s2649 = scalar_select %p2648, 0, %s2647
                  %s2650 = smul.u32 %s2649, 4
                  %s2651 = smul.u32 %s2649, 4
                  %s2652 = scalar_lea.vmem %s2633, %s2650 [#allocation6]
                  %s2653 = scalar_lea.vmem %s2635, %s2651
                $region134: #{block_forward.7} parent=121 // loop_footer
                  %s2639 = sadd.s32 %s2637, 1
                $region135: #{block_forward.7} parent=121 // loop_footer_branch
                  %2636 = sbr.rel target = $region131
                $region136: #{block_forward.7} parent=121 // loop_exit
                  _
              $region122: #{block_forward.7} parent=99 // pred_fallthru
                _
            $region100: #{block_forward.7} parent=95 // pred_fallthru
              _
            // Predicated region
            $region101: #{block_forward.7} parent=95 // pred_check
              _
            $region102: #{block_forward.7} parent=95 // pred_check_branch
              %2557 = sbr.rel (0) target = $region104
            $region103: #{block_forward.7} parent=95 // pred_region
              %s2559 = sshrl.u32 %s2544, 1
              // While loop
              $region105: #{block_forward.7} parent=103 // loop_pre_header
                _
              $region106: #{block_forward.7} parent=103 // loop_header
                %s2561 = sphi 0, %s2563
                %p2562 = scmp.ge.s32.totalorder %s2561, %s2559
                %s2566 = sphi 0, %s2575
                %s2567 = sphi %s2537, %s2578
                %s2568 = sphi %s2550, %s2579
              $region107: #{block_forward.7} parent=103 // loop_header_branch
                %2565 = sbr.rel (%p2562) target = $region111
              $region108: #{block_forward.7} parent=103 // loop_body
                %v2569 = vld [vmem:[%s2567] sm:$0xf]
                %2570 = vst [vmem:[%s2568] sm:$0xf] %v2569
                %v2571 = vld [vmem:[%s2567 + $0x4] sm:$0xf]
                %2572 = vst [vmem:[%s2568 + $0x4] sm:$0xf] %v2571
                %s2573 = sadd.s32 1, %s2566
                %p2574 = scmp.ge.s32.totalorder %s2573, %s2559
                %s2575 = scalar_select %p2574, 0, %s2573
                %s2576 = smul.u32 %s2575, 8
                %s2577 = smul.u32 %s2575, 8
                %s2578 = scalar_lea.vmem %s2537, %s2576 [#allocation6]
                %s2579 = scalar_lea.vmem %s2550, %s2577
              $region109: #{block_forward.7} parent=103 // loop_footer
                %s2563 = sadd.s32 %s2561, 1
              $region110: #{block_forward.7} parent=103 // loop_footer_branch
                %2560 = sbr.rel target = $region106
              $region111: #{block_forward.7} parent=103 // loop_exit
                _
              %s2580 = sshrl.u32 %s2544, 1
              %s2581 = sand.u32 %s2544, 1
              %s2582 = smul.u32 %s2580, 2
              %s2583 = smul.u32 4, %s2582
              %s2584 = scalar_lea.vmem %s2537, %s2583 [#allocation6]
              %s2585 = smul.u32 4, %s2582
              %s2586 = scalar_lea.vmem %s2550, %s2585
              // While loop
              $region112: #{block_forward.7} parent=103 // loop_pre_header
                _
              $region113: #{block_forward.7} parent=103 // loop_header
                %s2588 = sphi 0, %s2590
                %p2589 = scmp.ge.s32.totalorder %s2588, %s2581
                %s2593 = sphi 0, %s2600
                %s2594 = sphi %s2584, %s2603
                %s2595 = sphi %s2586, %s2604
              $region114: #{block_forward.7} parent=103 // loop_header_branch
                %2592 = sbr.rel (%p2589) target = $region118
              $region115: #{block_forward.7} parent=103 // loop_body
                %v2596 = vld [vmem:[%s2594] sm:$0xf]
                %2597 = vst [vmem:[%s2595] sm:$0xf] %v2596
                %s2598 = sadd.s32 1, %s2593
                %p2599 = scmp.ge.s32.totalorder %s2598, %s2581
                %s2600 = scalar_select %p2599, 0, %s2598
                %s2601 = smul.u32 %s2600, 4
                %s2602 = smul.u32 %s2600, 4
                %s2603 = scalar_lea.vmem %s2584, %s2601 [#allocation6]
                %s2604 = scalar_lea.vmem %s2586, %s2602
              $region116: #{block_forward.7} parent=103 // loop_footer
                %s2590 = sadd.s32 %s2588, 1
              $region117: #{block_forward.7} parent=103 // loop_footer_branch
                %2587 = sbr.rel target = $region113
              $region118: #{block_forward.7} parent=103 // loop_exit
                _
            $region104: #{block_forward.7} parent=95 // pred_fallthru
              _
          $region96: #{block_forward.7} parent=91 // pred_fallthru
            _
          %2654 = vnop
        $region92: #{block_forward.7} parent=79 // pred_fallthru
          _
      $region80: #{block_forward.7} parent=5 // pred_fallthru
        _
      %p2655 = scmp.le.s32.totalorder 2, %s21
      // Predicated region
      $region137: #{block_forward.7} parent=5 // pred_check
        %p2656 = pneg %p2655
      $region138: #{block_forward.7} parent=5 // pred_check_branch
        %2658 = sbr.rel (%p2656) target = $region140
      $region139: #{block_forward.7} parent=5 // pred_region
        %s2659 = ssub.s32 %s21, 2
        // Predicated region
        $region141: #{block_forward.7} parent=139 // pred_check
          %p2660 = pneg %p421
        $region142: #{block_forward.7} parent=139 // pred_check_branch
          %2662 = sbr.rel (%p2660) target = $region144
        $region143: #{block_forward.7} parent=139 // pred_region
          %s2663 = sand.u32 %s406, 1
          %s2664 = sand.u32 %s406, 1
          %s2665 = smul.addr %s2664, 8
          %s2666 = scalar_lea.vmem [#allocation6], %s2665
        $region144: #{block_forward.7} parent=139 // pred_fallthru
          _
      $region140: #{block_forward.7} parent=5 // pred_fallthru
        _
    $region6: #{block_forward.7} parent=1 // loop_footer
      %s25 = sadd.s32 1, %s21
    $region7: #{block_forward.7} parent=1 // loop_footer_branch
      %20 = sbr.rel target = $region3
    $region8: #{block_forward.7} parent=1 // loop_exit
      _

</llo_original>
